<compile_context>
chip_gen: v7x
topology: tpu7x:2x2x1
jax: 0.10.0
libtpu: 0.0.40
codegen_flags: <defaults>
</compile_context>

<pallas_src>
import functools

import jax
import jax.numpy as jnp
from jax.experimental import pallas as pl
from jax.experimental.pallas import tpu as pltpu

# ---- GeSCF constants (from __init__) ---------------------------------------
Z_VALUE = -0.52
NI = -0.2
NJ = 0.2
ALPHA_T = 0.65
COSINE_THR = 0.88


def _round_up(x, m):
    return ((x + m - 1) // m) * m


def _pick_tile_rows(H, W, budget_elems, row_align):
    """Row-tile height: whole map if it fits the budget (MiB-scale tiles are
    the streaming sweet spot), else the largest aligned tile under budget."""
    if H * W <= budget_elems or W > budget_elems:
        return H                           # full block: always a legal shape
    th = max(row_align, (budget_elems // W) // row_align * row_align)
    return H if th >= H else th


def _pick_k(HW_pad, TN, C, budget_bytes=12 * 1024 * 1024):
    """Reduction-tile size for the scoring kernel: largest K (multiple of 128,
    dividing HW_pad) whose double-buffered bf16 input footprint fits budget.
    Shrinking K costs no HBM traffic (reduction axis, accumulators resident)."""
    for K in (4096, 2048, 1024, 512, 256, 128):
        if HW_pad % K:
            continue
        per_step = 2 * (TN * K * 2 + 2 * K * C * 2 + K * 2 * 2)
        if per_step <= budget_bytes:
            return K
    return 128


# =============================================================================
# Kernel 1: shifted-moment reduction over the similarity map
#   out lanes: [0]=sum(x-s), [1]=sum((x-s)^2), [2]=sum((x-s)^3)
#   Central moments are shift-invariant, so a provisional shift ~mean removes
#   the f32 cancellation of the raw-moment formulation.
#   Ragged last row-tile handled with an in-kernel row mask (cdiv grid).
# =============================================================================
def moments_kernel(shift_ref, x_ref, out_ref, *, h_total, tile_rows):
    i = pl.program_id(0)

    @pl.when(i == 0)
    def _():
        out_ref[...] = jnp.zeros_like(out_ref)

    shift = shift_ref[0]
    x = x_ref[...].astype(jnp.float32)
    row = jax.lax.broadcasted_iota(jnp.int32, x.shape, 0) + i * tile_rows
    d = jnp.where(row < h_total, x - shift, 0.0)
    d2 = d * d
    s1 = jnp.sum(d)
    s2 = jnp.sum(d2)
    s3 = jnp.sum(d2 * d)
    lane = jax.lax.broadcasted_iota(jnp.int32, out_ref.shape, 1)
    out_ref[...] += jnp.where(lane == 0, s1,
                              jnp.where(lane == 1, s2,
                                        jnp.where(lane == 2, s3, 0.0)))


def compute_moments(sim_map, shift):
    H, W = sim_map.shape
    th = _pick_tile_rows(H, W, budget_elems=512 * 1024, row_align=8)  # ~2 MiB f32
    grid = pl.cdiv(H, th)
    shift_arr = jnp.reshape(shift.astype(jnp.float32), (1,))
    out = pl.pallas_call(
        functools.partial(moments_kernel, h_total=H, tile_rows=th),
        out_shape=jax.ShapeDtypeStruct((1, 128), jnp.float32),
        grid_spec=pltpu.PrefetchScalarGridSpec(
            num_scalar_prefetch=1,
            grid=(grid,),
            in_specs=[pl.BlockSpec((th, W), lambda i, s: (i, 0))],
            out_specs=pl.BlockSpec((1, 128), lambda i, s: (0, 0)),
        ),
        compiler_params=pltpu.CompilerParams(
            dimension_semantics=("arbitrary",)),
    )(shift_arr, sim_map)
    return out[0, 0], out[0, 1], out[0, 2]


# =============================================================================
# Kernel 2: pixel-wise pseudo mask.  All scalar math (z-score threshold, MAD
# threshold, skew-type select) is folded into one precomputed scalar so the
# kernel is a single compare + bf16 store (pure writeback-bound pass).
# =============================================================================
def mask_kernel(t_ref, sim_ref, pseudo_ref):
    t = t_ref[0]
    pseudo_ref[...] = (sim_ref[...] < t).astype(pseudo_ref.dtype)


def compute_pseudo_mask(sim_map, t_pseudo):
    H, W = sim_map.shape
    th = _pick_tile_rows(H, W, budget_elems=512 * 1024, row_align=16)
    grid = pl.cdiv(H, th)
    params = jnp.reshape(t_pseudo.astype(jnp.float32), (1,))
    return pl.pallas_call(
        mask_kernel,
        out_shape=jax.ShapeDtypeStruct((H, W), jnp.bfloat16),
        grid_spec=pltpu.PrefetchScalarGridSpec(
            num_scalar_prefetch=1,
            grid=(grid,),
            in_specs=[pl.BlockSpec((th, W), lambda i, p: (i, 0))],
            out_specs=pl.BlockSpec((th, W), lambda i, p: (i, 0)),
        ),
        compiler_params=pltpu.CompilerParams(
            dimension_semantics=("parallel",)),
    )(params, sim_map)


# =============================================================================
# Kernel 3: batched per-mask scoring.
#   grid = (N tiles, HW tiles); per step, with pstat = [pseudo, ones] (K,2):
#     e0m / e1m    = pseudo_col * emb_t0/t1 K-tile          (small VPU scale)
#     acc0 / acc1 += seg @ e0m / e1m                        (bf16 MXU, f32 acc)
#     acc_ps     += seg @ pstat  -> [intersection, seg_area](bf16 MXU, f32 acc)
#   finalize at last K step -> lane-dense (TN,128) output:
#     lane 0 = intersection, lane 1 = seg area,
#     lane 2 = cosine of masked embedding sums (means cancel).
#   No (TN,K) overlap multiply, no K-wide XLU reductions, no channel padding.
# =============================================================================
def mask_score_kernel(pstat_ref, seg_ref, emb0_ref, emb1_ref, out_ref,
                      acc0, acc1, acc_ps):
    k = pl.program_id(1)

    @pl.when(k == 0)
    def _():
        acc0[...] = jnp.zeros_like(acc0)
        acc1[...] = jnp.zeros_like(acc1)
        acc_ps[...] = jnp.zeros_like(acc_ps)

    ps = pstat_ref[...]                         # (K, 2)  bf16 [pseudo, ones]
    pcol = ps[:, 0:1]                           # (K, 1)  pseudo column
    seg = seg_ref[...]                          # (TN, K) bf16

    e0m = pcol * emb0_ref[...]                  # (K, C) masked emb (exact: 0/1)
    e1m = pcol * emb1_ref[...]

    acc0[...] += jnp.dot(seg, e0m, preferred_element_type=jnp.float32)
    acc1[...] += jnp.dot(seg, e1m, preferred_element_type=jnp.float32)
    acc_ps[...] += jnp.dot(seg, ps, preferred_element_type=jnp.float32)

    @pl.when(k == pl.num_programs(1) - 1)
    def _():
        s0 = acc0[...]                          # (TN, C) f32 masked emb sums
        s1 = acc1[...]
        num = jnp.sum(s0 * s1, axis=1, keepdims=True)
        n0 = jnp.sum(s0 * s0, axis=1, keepdims=True)
        n1 = jnp.sum(s1 * s1, axis=1, keepdims=True)
        cos = (num * jax.lax.rsqrt(jnp.maximum(n0, 1e-12))
                   * jax.lax.rsqrt(jnp.maximum(n1, 1e-12)))

        stats = acc_ps[...]                     # (TN, 2)
        inter = stats[:, 0:1]
        seg_area = stats[:, 1:2]

        lane = jax.lax.broadcasted_iota(jnp.int32, out_ref.shape, 1)
        out_ref[...] = jnp.where(lane == 0, inter,
                                 jnp.where(lane == 1, seg_area,
                                           jnp.where(lane == 2, cos, 0.0)))


def compute_mask_scores(pseudo_flat, segs_bf, embed_t0, embed_t1):
    """pseudo_flat: (HW,) bf16 {0,1}; segs_bf: (N, HW) bf16 {0,1};
    embed_t0/t1: (HW, C).  Returns (intersection, seg_area, cos), each (N,)."""
    N, HW = segs_bf.shape
    C = embed_t0.shape[1]

    TN = min(256, _round_up(max(N, 1), 16))      # mask tile; 256 keeps emb
    N_pad = _round_up(N, TN)                     # streamed once for N<=256
    HW_pad = _round_up(HW, 128)
    K = _pick_k(HW_pad, TN, C)                   # HW (reduction) tile

    e0 = embed_t0.astype(jnp.bfloat16)           # full-C, no padding, no concat
    e1 = embed_t1.astype(jnp.bfloat16)
    pstat = jnp.stack([pseudo_flat, jnp.ones_like(pseudo_flat)], axis=1)

    if HW_pad != HW:                             # rare: only if HW % 128 != 0
        pad = HW_pad - HW
        pstat = jnp.pad(pstat, ((0, pad), (0, 0)))
        e0 = jnp.pad(e0, ((0, pad), (0, 0)))
        e1 = jnp.pad(e1, ((0, pad), (0, 0)))
        segs_bf = jnp.pad(segs_bf, ((0, 0), (0, pad)))
    if N_pad != N:
        segs_bf = jnp.pad(segs_bf, ((0, N_pad - N), (0, 0)))

    nn = N_pad // TN
    nk = HW_pad // K

    # TODO(synk): on v7x (2 TCs) with nn == 1 only one core is used; a split
    # HW reduction with a tiny combine pass would recover the second core.
    out = pl.pallas_call(
        mask_score_kernel,
        out_shape=jax.ShapeDtypeStruct((N_pad, 128), jnp.float32),
        grid_spec=pltpu.PrefetchScalarGridSpec(
            num_scalar_prefetch=0,
            grid=(nn, nk),
            in_specs=[
                pl.BlockSpec((K, 2), lambda n, k: (k, 0)),     # [pseudo, ones]
                pl.BlockSpec((TN, K), lambda n, k: (n, k)),    # segs tile
                pl.BlockSpec((K, C), lambda n, k: (k, 0)),     # emb_t0 K-tile
                pl.BlockSpec((K, C), lambda n, k: (k, 0)),     # emb_t1 K-tile
            ],
            out_specs=pl.BlockSpec((TN, 128), lambda n, k: (n, 0)),
            scratch_shapes=[
                pltpu.VMEM((TN, C), jnp.float32),   # masked emb_t0 sums
                pltpu.VMEM((TN, C), jnp.float32),   # masked emb_t1 sums
                pltpu.VMEM((TN, 2), jnp.float32),   # [intersection, seg area]
            ],
        ),
        compiler_params=pltpu.CompilerParams(
            dimension_semantics=("parallel", "arbitrary"),
            vmem_limit_bytes=32 * 1024 * 1024),
    )(pstat, segs_bf, e0, e1)
    return out[:N, 0], out[:N, 1], out[:N, 2]


# =============================================================================
# GeSCF forward (flag=False / no-homography path), numerical core only.
# =============================================================================
@jax.jit
def gescf_forward(sim_map, embed_t0, embed_t1, segs):
    H, W = sim_map.shape
    n = jnp.float32(H * W)

    # --- skewness / mean / std (scipy.stats.skew, biased central moments) ---
    # Provisional shift (~mean) so the in-kernel f32 accumulation of shifted
    # moments does not cancel catastrophically.
    shift = jnp.mean(sim_map[: min(8, H)]).astype(jnp.float32)
    s1, s2, s3 = compute_moments(sim_map, shift)
    dm = s1 / n                                      # mean of (x - shift)
    m2 = s2 / n - dm * dm
    m3 = s3 / n - 3.0 * dm * (s2 / n) + 2.0 * dm ** 3
    mean = shift + dm
    std = jnp.sqrt(jnp.maximum(m2, 0.0))             # np.std (population)
    skewness = m3 / jnp.power(jnp.maximum(m2, 1e-24), 1.5)

    # --- dynamic threshold (self.threshold), traced scalar branches ---------
    b_left, b_right, s_left, s_right = 0.7, 0.05, 1.0, 0.1
    mu = 250000.0 / (H * W)
    c = 1.0 / mu ** 3
    thr = jnp.where(skewness >= NJ, b_right + s_right * skewness * c,
                    jnp.where(skewness <= NI, b_left - s_left * skewness * c,
                              0.0))
    use_outliers = (skewness >= NJ) | (skewness <= NI)

    # --- median / MAD, only when the outlier path is taken ------------------
    # TODO(synk): a histogram/bucket median fused into the moments kernel
    # would avoid the XLA sorts entirely.
    flat = sim_map.reshape(-1)

    def _mad_branch(f):
        med = jnp.median(f)
        mad = jnp.median(jnp.abs(f - med))
        return med, mad

    def _skip_branch(f):
        return jnp.zeros((), jnp.float32), jnp.zeros((), jnp.float32)

    median, mad = jax.lax.cond(use_outliers, _mad_branch, _skip_branch, flat)
    mad_safe = jnp.maximum(mad, 1e-12)
    std_safe = jnp.maximum(std, 1e-12)

    # Fold both tests into one scalar threshold, selected by skew type:
    #   moderate : (x-mean)/std < Z       <=>  x < mean + Z*std
    #   outliers : .6745*(x-med)/mad<-thr <=>  x < median - thr*mad/.6745
    t_mod = mean + Z_VALUE * std_safe
    t_out = median - thr * mad_safe / 0.6745
    t_pseudo = jnp.where(use_outliers, t_out, t_mod)

    # --- pixel-wise initial pseudo mask (bf16 {0,1}) -------------------------
    initial_pseudo_mask = compute_pseudo_mask(sim_map, t_pseudo)
    # TODO(synk): cv2 morphological opening (17x17 ellipse) and small-contour
    # removal on initial_pseudo_mask have no Pallas equivalent; skipped.

    pseudo_flat = initial_pseudo_mask.reshape(-1)
    pseudo_area = jnp.sum(pseudo_flat.astype(jnp.float32))

    # --- batched per-SAM-mask IoU + cosine scoring ---------------------------
    segs_bf = segs.astype(jnp.bfloat16)
    inter, seg_area, cos = compute_mask_scores(pseudo_flat, segs_bf,
                                               embed_t0, embed_t1)
    union = pseudo_area + seg_area - inter
    iou = inter / jnp.maximum(union, 1.0)
    selected = (iou >= ALPHA_T) & (cos < COSINE_THR)

    # --- fuse selected SAM masks (logical OR) --------------------------------
    fused = jnp.max(segs_bf * selected[:, None].astype(jnp.bfloat16), axis=0)
    final = (fused > 0).astype(jnp.uint8).reshape(H, W)
    # TODO(synk): cv2.resize to args.output_size with bilinear interp skipped;
    # the subsequent (>127) binarization is a no-op on a binary mask here.
    return final, skewness, iou, cos


if __name__ == "__main__":
    key = jax.random.PRNGKey(0)
    k1, k2, k3, k4 = jax.random.split(key, 4)

    H = W = 64          # small stand-in for img_size (512/256 in the module)
    C = 32              # embedding channels
    N_MASKS = 4         # SAM mask proposals

    sim_map = 0.5 + 0.1 * jax.random.normal(k1, (H, W), jnp.float32)
    embed_t0 = jax.random.normal(k2, (H * W, C), jnp.float32)
    embed_t1 = jax.random.normal(k3, (H * W, C), jnp.float32)
    segs = (jax.random.uniform(k4, (N_MASKS, H * W)) > 0.7).astype(jnp.float32)

    final_mask, skewness, iou, cos = gescf_forward(
        sim_map, embed_t0, embed_t1, segs)
    jax.block_until_ready((final_mask, skewness, iou, cos))

    assert final_mask.shape == (H, W) and final_mask.dtype == jnp.uint8
    assert iou.shape == (N_MASKS,) and cos.shape == (N_MASKS,)
    assert bool(jnp.isfinite(skewness))
    assert bool(jnp.all(jnp.isfinite(iou))) and bool(jnp.all(jnp.isfinite(cos)))
    print("KERNEL_OK")
</pallas_src>

<mosaic_0001>
module attributes {stable_mosaic.version = 11 : i64} {
  func.func @moments_kernel(%arg0: i32, %arg1: memref<1xf32, #tpu.memory_space<smem>>, %arg2: memref<64x64xf32, #tpu.memory_space<vmem>>, %arg3: memref<1x128xf32, #tpu.memory_space<vmem>>) attributes {dimension_semantics = [#tpu.dimension_semantics<arbitrary>], iteration_bounds = array<i64: 1>, scalar_prefetch = 1 : i64, scratch_operands = 0 : i64, tpu.core_type = #tpu.core_type<tc>, window_params = [{transform_indices = @transform_0, window_bounds = array<i64: 64, 64>}, {pipeline_mode = #tpu.pipeline_mode<synchronous>, transform_indices = @transform_1, window_bounds = array<i64: 1, 128>}]} {
    %c0_i32 = arith.constant 0 : i32
    %0 = arith.cmpi eq, %arg0, %c0_i32 : i32
    %1 = arith.extui %0 : i1 to i32
    %c0_i32_0 = arith.constant 0 : i32
    %2 = arith.cmpi ne, %1, %c0_i32_0 : i32
    scf.if %2 {
      %cst_13 = arith.constant 0.000000e+00 : f32
      %46 = vector.broadcast %cst_13 : f32 to vector<1x128xf32>
      %c0_14 = arith.constant 0 : index
      %c0_15 = arith.constant 0 : index
      %47 = vector.load %arg3[%c0_14, %c0_15] : memref<1x128xf32, #tpu.memory_space<vmem>>, vector<1x128xf32>
      tpu.vector_store %arg3[%c0_14, %c0_15], %46 {strides = array<i32>} : memref<1x128xf32, #tpu.memory_space<vmem>>, vector<1x128xf32>,
    } else {
    }
    %c0 = arith.constant 0 : index
    %3 = memref.load %arg1[%c0] : memref<1xf32, #tpu.memory_space<smem>>
    %c0_1 = arith.constant 0 : index
    %c0_2 = arith.constant 0 : index
    %4 = vector.load %arg2[%c0_1, %c0_2] : memref<64x64xf32, #tpu.memory_space<vmem>>, vector<64x64xf32>
    %5 = tpu.iota {dimensions = array<i32: 0>} : vector<64x64xi32>
    %c64_i32 = arith.constant 64 : i32
    %6 = arith.muli %arg0, %c64_i32 : i32
    %7 = vector.broadcast %6 : i32 to vector<64x64xi32>
    %8 = arith.addi %5, %7 : vector<64x64xi32>
    %c64_i32_3 = arith.constant 64 : i32
    %9 = vector.broadcast %c64_i32_3 : i32 to vector<64x64xi32>
    %10 = arith.cmpi slt, %8, %9 : vector<64x64xi32>
    %11 = vector.broadcast %3 : f32 to vector<64x64xf32>
    %12 = arith.subf %4, %11 : vector<64x64xf32>
    %cst = arith.constant 0.000000e+00 : f32
    %13 = vector.broadcast %cst : f32 to vector<64x64xf32>
    %14 = arith.select %10, %12, %13 : vector<64x64xi1>, vector<64x64xf32>
    %15 = arith.mulf %14, %14 : vector<64x64xf32>
    %16 = vector.shape_cast %14 : vector<64x64xf32> to vector<1x64x64xf32>
    %cst_4 = arith.constant dense<0.000000e+00> : vector<1xf32>
    %17 = vector.multi_reduction <add>, %16, %cst_4 [1, 2] : vector<1x64x64xf32> to vector<1xf32>
    %18 = vector.shape_cast %17 : vector<1xf32> to vector<1x1x1xf32>
    %19 = vector.extract %18[0, 0, 0] : f32 from vector<1x1x1xf32>
    %20 = vector.shape_cast %15 : vector<64x64xf32> to vector<1x64x64xf32>
    %cst_5 = arith.constant dense<0.000000e+00> : vector<1xf32>
    %21 = vector.multi_reduction <add>, %20, %cst_5 [1, 2] : vector<1x64x64xf32> to vector<1xf32>
    %22 = vector.shape_cast %21 : vector<1xf32> to vector<1x1x1xf32>
    %23 = vector.extract %22[0, 0, 0] : f32 from vector<1x1x1xf32>
    %24 = arith.mulf %15, %14 : vector<64x64xf32>
    %25 = vector.shape_cast %24 : vector<64x64xf32> to vector<1x64x64xf32>
    %cst_6 = arith.constant dense<0.000000e+00> : vector<1xf32>
    %26 = vector.multi_reduction <add>, %25, %cst_6 [1, 2] : vector<1x64x64xf32> to vector<1xf32>
    %27 = vector.shape_cast %26 : vector<1xf32> to vector<1x1x1xf32>
    %28 = vector.extract %27[0, 0, 0] : f32 from vector<1x1x1xf32>
    %29 = tpu.iota {dimensions = array<i32: 1>} : vector<1x128xi32>
    %c0_7 = arith.constant 0 : index
    %c0_8 = arith.constant 0 : index
    %30 = vector.load %arg3[%c0_7, %c0_8] : memref<1x128xf32, #tpu.memory_space<vmem>>, vector<1x128xf32>
    %c0_i32_9 = arith.constant 0 : i32
    %31 = vector.broadcast %c0_i32_9 : i32 to vector<1x128xi32>
    %32 = arith.cmpi eq, %29, %31 : vector<1x128xi32>
    %c1_i32 = arith.constant 1 : i32
    %33 = vector.broadcast %c1_i32 : i32 to vector<1x128xi32>
    %34 = arith.cmpi eq, %29, %33 : vector<1x128xi32>
    %c2_i32 = arith.constant 2 : i32
    %35 = vector.broadcast %c2_i32 : i32 to vector<1x128xi32>
    %36 = arith.cmpi eq, %29, %35 : vector<1x128xi32>
    %cst_10 = arith.constant 0.000000e+00 : f32
    %37 = vector.broadcast %28 : f32 to vector<1x128xf32>
    %38 = vector.broadcast %cst_10 : f32 to vector<1x128xf32>
    %39 = arith.select %36, %37, %38 : vector<1x128xi1>, vector<1x128xf32>
    %40 = vector.broadcast %23 : f32 to vector<1x128xf32>
    %41 = arith.select %34, %40, %39 : vector<1x128xi1>, vector<1x128xf32>
    %42 = vector.broadcast %19 : f32 to vector<1x128xf32>
    %43 = arith.select %32, %42, %41 : vector<1x128xi1>, vector<1x128xf32>
    %44 = arith.addf %30, %43 : vector<1x128xf32>
    %c0_11 = arith.constant 0 : index
    %c0_12 = arith.constant 0 : index
    %45 = vector.load %arg3[%c0_11, %c0_12] : memref<1x128xf32, #tpu.memory_space<vmem>>, vector<1x128xf32>
    tpu.vector_store %arg3[%c0_11, %c0_12], %44 {strides = array<i32>} : memref<1x128xf32, #tpu.memory_space<vmem>>, vector<1x128xf32>,
    return
  }
  func.func @transform_0(%arg0: i32, %arg1: memref<1xf32, #tpu.memory_space<smem>>) -> (i32, i32) {
    %c0_i32 = arith.constant 0 : i32
    %c0_i32_0 = arith.constant 0 : i32
    return %arg0, %c0_i32 : i32, i32
  }
  func.func @transform_1(%arg0: i32, %arg1: memref<1xf32, #tpu.memory_space<smem>>) -> (i32, i32) {
    %c0_i32 = arith.constant 0 : i32
    %c0_i32_0 = arith.constant 0 : i32
    %c0_i32_1 = arith.constant 0 : i32
    return %c0_i32, %c0_i32_0 : i32, i32
  }
}

module attributes {stable_mosaic.version = 11 : i64} {
  func.func @mask_kernel(%arg0: i32, %arg1: memref<1xf32, #tpu.memory_space<smem>>, %arg2: memref<64x64xf32, #tpu.memory_space<vmem>>, %arg3: memref<64x64xbf16, #tpu.memory_space<vmem>>) attributes {dimension_semantics = [#tpu.dimension_semantics<parallel>], iteration_bounds = array<i64: 1>, scalar_prefetch = 1 : i64, scratch_operands = 0 : i64, tpu.core_type = #tpu.core_type<tc>, window_params = [{transform_indices = @transform_0, window_bounds = array<i64: 64, 64>}, {transform_indices = @transform_1, window_bounds = array<i64: 64, 64>}]} {
    %c0 = arith.constant 0 : index
    %0 = memref.load %arg1[%c0] : memref<1xf32, #tpu.memory_space<smem>>
    %c0_0 = arith.constant 0 : index
    %c0_1 = arith.constant 0 : index
    %1 = vector.load %arg2[%c0_0, %c0_1] : memref<64x64xf32, #tpu.memory_space<vmem>>, vector<64x64xf32>
    %2 = vector.broadcast %0 : f32 to vector<64x64xf32>
    %3 = arith.cmpf olt, %1, %2 : vector<64x64xf32>
    %4 = arith.extui %3 : vector<64x64xi1> to vector<64x64xi32>
    %5 = arith.sitofp %4 : vector<64x64xi32> to vector<64x64xf32>
    %6 = arith.truncf %5 : vector<64x64xf32> to vector<64x64xbf16>
    %c0_2 = arith.constant 0 : index
    %c0_3 = arith.constant 0 : index
    %7 = vector.load %arg3[%c0_2, %c0_3] : memref<64x64xbf16, #tpu.memory_space<vmem>>, vector<64x64xbf16>
    tpu.vector_store %arg3[%c0_2, %c0_3], %6 {strides = array<i32>} : memref<64x64xbf16, #tpu.memory_space<vmem>>, vector<64x64xbf16>,
    return
  }
  func.func @transform_0(%arg0: i32, %arg1: memref<1xf32, #tpu.memory_space<smem>>) -> (i32, i32) {
    %c0_i32 = arith.constant 0 : i32
    %c0_i32_0 = arith.constant 0 : i32
    return %arg0, %c0_i32 : i32, i32
  }
  func.func @transform_1(%arg0: i32, %arg1: memref<1xf32, #tpu.memory_space<smem>>) -> (i32, i32) {
    %c0_i32 = arith.constant 0 : i32
    %c0_i32_0 = arith.constant 0 : i32
    return %arg0, %c0_i32 : i32, i32
  }
}

module attributes {stable_mosaic.version = 11 : i64} {
  func.func @mask_score_kernel(%arg0: i32, %arg1: i32, %arg2: memref<4096x2xbf16, #tpu.memory_space<vmem>>, %arg3: memref<16x4096xbf16, #tpu.memory_space<vmem>>, %arg4: memref<4096x32xbf16, #tpu.memory_space<vmem>>, %arg5: memref<4096x32xbf16, #tpu.memory_space<vmem>>, %arg6: memref<16x128xf32, #tpu.memory_space<vmem>>, %arg7: memref<16x32xf32, #tpu.memory_space<vmem>>, %arg8: memref<16x32xf32, #tpu.memory_space<vmem>>, %arg9: memref<16x2xf32, #tpu.memory_space<vmem>>) attributes {dimension_semantics = [#tpu.dimension_semantics<parallel>, #tpu.dimension_semantics<arbitrary>], iteration_bounds = array<i64: 1, 1>, scalar_prefetch = 0 : i64, scratch_operands = 3 : i64, tpu.core_type = #tpu.core_type<tc>, window_params = [{transform_indices = @transform_0, window_bounds = array<i64: 4096, 2>}, {transform_indices = @transform_1, window_bounds = array<i64: 16, 4096>}, {transform_indices = @transform_2, window_bounds = array<i64: 4096, 32>}, {transform_indices = @transform_3, window_bounds = array<i64: 4096, 32>}, {transform_indices = @transform_4, window_bounds = array<i64: 16, 128>}]} {
    %c0_i32 = arith.constant 0 : i32
    %0 = arith.cmpi eq, %arg1, %c0_i32 : i32
    %1 = arith.extui %0 : i1 to i32
    %c0_i32_0 = arith.constant 0 : i32
    %2 = arith.cmpi ne, %1, %c0_i32_0 : i32
    scf.if %2 {
      %cst_24 = arith.constant 0.000000e+00 : f32
      %27 = vector.broadcast %cst_24 : f32 to vector<16x32xf32>
      %c0_25 = arith.constant 0 : index
      %c0_26 = arith.constant 0 : index
      %28 = vector.load %arg7[%c0_25, %c0_26] : memref<16x32xf32, #tpu.memory_space<vmem>>, vector<16x32xf32>
      tpu.vector_store %arg7[%c0_25, %c0_26], %27 {strides = array<i32>} : memref<16x32xf32, #tpu.memory_space<vmem>>, vector<16x32xf32>,
      %cst_27 = arith.constant 0.000000e+00 : f32
      %29 = vector.broadcast %cst_27 : f32 to vector<16x32xf32>
      %c0_28 = arith.constant 0 : index
      %c0_29 = arith.constant 0 : index
      %30 = vector.load %arg8[%c0_28, %c0_29] : memref<16x32xf32, #tpu.memory_space<vmem>>, vector<16x32xf32>
      tpu.vector_store %arg8[%c0_28, %c0_29], %29 {strides = array<i32>} : memref<16x32xf32, #tpu.memory_space<vmem>>, vector<16x32xf32>,
      %cst_30 = arith.constant 0.000000e+00 : f32
      %31 = vector.broadcast %cst_30 : f32 to vector<16x2xf32>
      %c0_31 = arith.constant 0 : index
      %c0_32 = arith.constant 0 : index
      %32 = vector.load %arg9[%c0_31, %c0_32] : memref<16x2xf32, #tpu.memory_space<vmem>>, vector<16x2xf32>
      tpu.vector_store %arg9[%c0_31, %c0_32], %31 {strides = array<i32>} : memref<16x2xf32, #tpu.memory_space<vmem>>, vector<16x2xf32>,
    } else {
    }
    %c0 = arith.constant 0 : index
    %c0_1 = arith.constant 0 : index
    %3 = vector.load %arg2[%c0, %c0_1] : memref<4096x2xbf16, #tpu.memory_space<vmem>>, vector<4096x2xbf16>
    %4 = vector.extract_strided_slice %3 {offsets = [0, 0], sizes = [4096, 1], strides = [1, 1]} : vector<4096x2xbf16> to vector<4096x1xbf16>
    %c0_2 = arith.constant 0 : index
    %c0_3 = arith.constant 0 : index
    %5 = vector.load %arg3[%c0_2, %c0_3] : memref<16x4096xbf16, #tpu.memory_space<vmem>>, vector<16x4096xbf16>
    %c0_4 = arith.constant 0 : index
    %c0_5 = arith.constant 0 : index
    %6 = vector.load %arg4[%c0_4, %c0_5] : memref<4096x32xbf16, #tpu.memory_space<vmem>>, vector<4096x32xbf16>
    %7 = vector.broadcast %4 : vector<4096x1xbf16> to vector<4096x32xbf16>
    %8 = arith.mulf %7, %6 : vector<4096x32xbf16>
    %c0_6 = arith.constant 0 : index
    %c0_7 = arith.constant 0 : index
    %9 = vector.load %arg5[%c0_6, %c0_7] : memref<4096x32xbf16, #tpu.memory_space<vmem>>, vector<4096x32xbf16>
    %10 = vector.broadcast %4 : vector<4096x1xbf16> to vector<4096x32xbf16>
    %11 = arith.mulf %10, %9 : vector<4096x32xbf16>
    %c0_8 = arith.constant 0 : index
    %c0_9 = arith.constant 0 : index
    %12 = vector.load %arg7[%c0_8, %c0_9] : memref<16x32xf32, #tpu.memory_space<vmem>>, vector<16x32xf32>
    %cst = arith.constant dense<0.000000e+00> : vector<16x32xf32>
    %13 = tpu.matmul %5, %8, %cst {dimension_numbers = #tpu.dot_dimension_numbers<[1], [0], [0], [1], [0, 0, 1, 1], [], []>} : vector<16x4096xbf16>, vector<4096x32xbf16>, vector<16x32xf32> -> vector<16x32xf32>
    %14 = arith.addf %12, %13 : vector<16x32xf32>
    %c0_10 = arith.constant 0 : index
    %c0_11 = arith.constant 0 : index
    %15 = vector.load %arg7[%c0_10, %c0_11] : memref<16x32xf32, #tpu.memory_space<vmem>>, vector<16x32xf32>
    tpu.vector_store %arg7[%c0_10, %c0_11], %14 {strides = array<i32>} : memref<16x32xf32, #tpu.memory_space<vmem>>, vector<16x32xf32>,
    %c0_12 = arith.constant 0 : index
    %c0_13 = arith.constant 0 : index
    %16 = vector.load %arg8[%c0_12, %c0_13] : memref<16x32xf32, #tpu.memory_space<vmem>>, vector<16x32xf32>
    %cst_14 = arith.constant dense<0.000000e+00> : vector<16x32xf32>
    %17 = tpu.matmul %5, %11, %cst_14 {dimension_numbers = #tpu.dot_dimension_numbers<[1], [0], [0], [1], [0, 0, 1, 1], [], []>} : vector<16x4096xbf16>, vector<4096x32xbf16>, vector<16x32xf32> -> vector<16x32xf32>
    %18 = arith.addf %16, %17 : vector<16x32xf32>
    %c0_15 = arith.constant 0 : index
    %c0_16 = arith.constant 0 : index
    %19 = vector.load %arg8[%c0_15, %c0_16] : memref<16x32xf32, #tpu.memory_space<vmem>>, vector<16x32xf32>
    tpu.vector_store %arg8[%c0_15, %c0_16], %18 {strides = array<i32>} : memref<16x32xf32, #tpu.memory_space<vmem>>, vector<16x32xf32>,
    %c0_17 = arith.constant 0 : index
    %c0_18 = arith.constant 0 : index
    %20 = vector.load %arg9[%c0_17, %c0_18] : memref<16x2xf32, #tpu.memory_space<vmem>>, vector<16x2xf32>
    %cst_19 = arith.constant dense<0.000000e+00> : vector<16x2xf32>
    %21 = tpu.matmul %5, %3, %cst_19 {dimension_numbers = #tpu.dot_dimension_numbers<[1], [0], [0], [1], [0, 0, 1, 1], [], []>} : vector<16x4096xbf16>, vector<4096x2xbf16>, vector<16x2xf32> -> vector<16x2xf32>
    %22 = arith.addf %20, %21 : vector<16x2xf32>
    %c0_20 = arith.constant 0 : index
    %c0_21 = arith.constant 0 : index
    %23 = vector.load %arg9[%c0_20, %c0_21] : memref<16x2xf32, #tpu.memory_space<vmem>>, vector<16x2xf32>
    tpu.vector_store %arg9[%c0_20, %c0_21], %22 {strides = array<i32>} : memref<16x2xf32, #tpu.memory_space<vmem>>, vector<16x2xf32>,
    %c0_i32_22 = arith.constant 0 : i32
    %24 = arith.cmpi eq, %arg1, %c0_i32_22 : i32
    %25 = arith.extui %24 : i1 to i32
    %c0_i32_23 = arith.constant 0 : i32
    %26 = arith.cmpi ne, %25, %c0_i32_23 : i32
    scf.if %26 {
      %c0_24 = arith.constant 0 : index
      %c0_25 = arith.constant 0 : index
      %27 = vector.load %arg7[%c0_24, %c0_25] : memref<16x32xf32, #tpu.memory_space<vmem>>, vector<16x32xf32>
      %c0_26 = arith.constant 0 : index
      %c0_27 = arith.constant 0 : index
      %28 = vector.load %arg8[%c0_26, %c0_27] : memref<16x32xf32, #tpu.memory_space<vmem>>, vector<16x32xf32>
      %29 = arith.mulf %27, %28 : vector<16x32xf32>
      %cst_28 = arith.constant dense<0.000000e+00> : vector<16xf32>
      %30 = vector.multi_reduction <add>, %29, %cst_28 [1] : vector<16x32xf32> to vector<16xf32>
      %31 = vector.shape_cast %30 : vector<16xf32> to vector<16x1xf32>
      %32 = arith.mulf %27, %27 : vector<16x32xf32>
      %cst_29 = arith.constant dense<0.000000e+00> : vector<16xf32>
      %33 = vector.multi_reduction <add>, %32, %cst_29 [1] : vector<16x32xf32> to vector<16xf32>
      %34 = vector.shape_cast %33 : vector<16xf32> to vector<16x1xf32>
      %35 = arith.mulf %28, %28 : vector<16x32xf32>
      %cst_30 = arith.constant dense<0.000000e+00> : vector<16xf32>
      %36 = vector.multi_reduction <add>, %35, %cst_30 [1] : vector<16x32xf32> to vector<16xf32>
      %37 = vector.shape_cast %36 : vector<16xf32> to vector<16x1xf32>
      %cst_31 = arith.constant 9.99999996E-13 : f32
      %38 = vector.broadcast %cst_31 : f32 to vector<16x1xf32>
      %39 = arith.maximumf %34, %38 : vector<16x1xf32>
      %40 = math.rsqrt %39 : vector<16x1xf32>
      %41 = arith.mulf %31, %40 : vector<16x1xf32>
      %cst_32 = arith.constant 9.99999996E-13 : f32
      %42 = vector.broadcast %cst_32 : f32 to vector<16x1xf32>
      %43 = arith.maximumf %37, %42 : vector<16x1xf32>
      %44 = math.rsqrt %43 : vector<16x1xf32>
      %45 = arith.mulf %41, %44 : vector<16x1xf32>
      %c0_33 = arith.constant 0 : index
      %c0_34 = arith.constant 0 : index
      %46 = vector.load %arg9[%c0_33, %c0_34] : memref<16x2xf32, #tpu.memory_space<vmem>>, vector<16x2xf32>
      %47 = vector.extract_strided_slice %46 {offsets = [0, 0], sizes = [16, 1], strides = [1, 1]} : vector<16x2xf32> to vector<16x1xf32>
      %48 = vector.extract_strided_slice %46 {offsets = [0, 1], sizes = [16, 1], strides = [1, 1]} : vector<16x2xf32> to vector<16x1xf32>
      %49 = tpu.iota {dimensions = array<i32: 1>} : vector<16x128xi32>
      %c0_i32_35 = arith.constant 0 : i32
      %50 = vector.broadcast %c0_i32_35 : i32 to vector<16x128xi32>
      %51 = arith.cmpi eq, %49, %50 : vector<16x128xi32>
      %c1_i32 = arith.constant 1 : i32
      %52 = vector.broadcast %c1_i32 : i32 to vector<16x128xi32>
      %53 = arith.cmpi eq, %49, %52 : vector<16x128xi32>
      %c2_i32 = arith.constant 2 : i32
      %54 = vector.broadcast %c2_i32 : i32 to vector<16x128xi32>
      %55 = arith.cmpi eq, %49, %54 : vector<16x128xi32>
      %cst_36 = arith.constant 0.000000e+00 : f32
      %56 = vector.shape_cast %45 : vector<16x1xf32> to vector<16x1xf32>
      %57 = vector.broadcast %56 : vector<16x1xf32> to vector<16x128xf32>
      %58 = vector.broadcast %cst_36 : f32 to vector<16x128xf32>
      %59 = arith.select %55, %57, %58 : vector<16x128xi1>, vector<16x128xf32>
      %60 = vector.shape_cast %48 : vector<16x1xf32> to vector<16x1xf32>
      %61 = vector.broadcast %60 : vector<16x1xf32> to vector<16x128xf32>
      %62 = arith.select %53, %61, %59 : vector<16x128xi1>, vector<16x128xf32>
      %63 = vector.shape_cast %47 : vector<16x1xf32> to vector<16x1xf32>
      %64 = vector.broadcast %63 : vector<16x1xf32> to vector<16x128xf32>
      %65 = arith.select %51, %64, %62 : vector<16x128xi1>, vector<16x128xf32>
      %c0_37 = arith.constant 0 : index
      %c0_38 = arith.constant 0 : index
      %66 = vector.load %arg6[%c0_37, %c0_38] : memref<16x128xf32, #tpu.memory_space<vmem>>, vector<16x128xf32>
      tpu.vector_store %arg6[%c0_37, %c0_38], %65 {strides = array<i32>} : memref<16x128xf32, #tpu.memory_space<vmem>>, vector<16x128xf32>,
    } else {
    }
    return
  }
  func.func @transform_0(%arg0: i32, %arg1: i32) -> (i32, i32) {
    %c0_i32 = arith.constant 0 : i32
    %c0_i32_0 = arith.constant 0 : i32
    return %arg1, %c0_i32 : i32, i32
  }
  func.func @transform_1(%arg0: i32, %arg1: i32) -> (i32, i32) {
    %c0_i32 = arith.constant 0 : i32
    return %arg0, %arg1 : i32, i32
  }
  func.func @transform_2(%arg0: i32, %arg1: i32) -> (i32, i32) {
    %c0_i32 = arith.constant 0 : i32
    %c0_i32_0 = arith.constant 0 : i32
    return %arg1, %c0_i32 : i32, i32
  }
  func.func @transform_3(%arg0: i32, %arg1: i32) -> (i32, i32) {
    %c0_i32 = arith.constant 0 : i32
    %c0_i32_0 = arith.constant 0 : i32
    return %arg1, %c0_i32 : i32, i32
  }
  func.func @transform_4(%arg0: i32, %arg1: i32) -> (i32, i32) {
    %c0_i32 = arith.constant 0 : i32
    %c0_i32_0 = arith.constant 0 : i32
    return %arg0, %c0_i32 : i32, i32
  }
}

</mosaic_0001>

<llo_original>
// kernel: gescf_forward.3
$region0: #{gescf_forward.3}
  #allocation0 [shape = 'u32[]', space=smem, size = 0x4, offset = 0x4, fixed_abs, tag = 'smem constant byte address 0x4 - core index']
  #allocation1 [shape = 'u32[144,128]{1,0:T(1,128)}', space=vmem, size = 0x12000, scoped, tag = 'internal scratch']
  #allocation2 [shape = 's32[1]{0}', space=sflag, size = 0x4, scoped, tag = 'scoped memory for gescf_forward.3']
  #allocation3 [shape = 'f32[1]{0:T(128)S(6)}', space=smem, size = 0x200, scoped, tag = 'prefetched SMEM operand 0']
  %s0 = inlined_call_operand.<no memory space> [shape: f32[1], index: 0, kind: input, shape index: {}]
  %s1 = inlined_call_operand.hbm [shape: f32[64,64], index: 1, kind: input, shape index: {}]
  %s2 = inlined_call_operand.vmem [shape: f32[1,128], index: 2, kind: output, shape index: {}]
  %s3 = sld [smem:[#allocation0]]
  $region22: #{gescf_forward.3} parent=0
    _
  %s5 = ssub.s32 1, %s3
  %s6 = scalar_select 0, %s5, %s3
  %7 = sst [smem:[#allocation3]] %s0
  $region1: #{gescf_forward.3} parent=0
    #allocation4 [shape = 'u8[32768]{0}', space=vmem, size = 0x8000, scoped, tag = 'input window, operand 1, single buffered']
    #allocation5 [shape = 's32[1]{0}', space=sflag, size = 0x4, scoped, tag = 'scoped memory for gescf_forward.3']
    %8 = vsyncpa [#allocation5], 0
    // Predicated region
    $region2: #{gescf_forward.3} parent=1 // pred_check
      _
    $region3: #{gescf_forward.3} parent=1 // pred_check_branch
      %10 = sbr.rel (0) target = $region5
    $region4: #{gescf_forward.3} parent=1 // pred_region
      %s12 = ssub.s32 1024, 1024
      %13 = vsyncadd [#allocation5], %s12
      %s14 = sshll.u32 [#allocation4], 4
      %s15 = int_to_ptr.vmem [resolvable:$true] %s14
      %20 = dma.hbm_to_vmem [thread:$0]  %s1, 1024, %s15, [#allocation5], 128, 128, 8
    $region5: #{gescf_forward.3} parent=1 // pred_fallthru
      _
    // Predicated region
    $region6: #{gescf_forward.3} parent=1 // pred_check
      _
    $region7: #{gescf_forward.3} parent=1 // pred_check_branch
      %22 = sbr.rel (0) target = $region9
    $region8: #{gescf_forward.3} parent=1 // pred_region
      %23 = dma.done [#allocation5], 1024
    $region9: #{gescf_forward.3} parent=1 // pred_fallthru
      _
    %p24 = scmp.eq.s32.totalorder 0, 0
    // Predicated region
    $region10: #{gescf_forward.3} parent=1 // pred_check
      %p25 = pneg %p24
    $region11: #{gescf_forward.3} parent=1 // pred_check_branch
      %27 = sbr.rel (%p25) target = $region13
    $region12: #{gescf_forward.3} parent=1 // pred_region
      %28 = vst [vmem:[%s2] sm:$0x1] 0.0
    $region13: #{gescf_forward.3} parent=1 // pred_fallthru
      _
    %s29 = sld [smem:[#allocation3]]
    %v30 = vld [vmem:[#allocation4] sm:$0xff]
    %v31 = vld [vmem:[#allocation4 + $0x8] sm:$0xff]
    %v32 = vld [vmem:[#allocation4 + $0x10] sm:$0xff]
    %v33 = vld [vmem:[#allocation4 + $0x18] sm:$0xff]
    %v34 = vld [vmem:[#allocation4 + $0x20] sm:$0xff]
    %v35 = vld [vmem:[#allocation4 + $0x28] sm:$0xff]
    %v36 = vld [vmem:[#allocation4 + $0x30] sm:$0xff]
    %v37 = vld [vmem:[#allocation4 + $0x38] sm:$0xff]
    %v38 = vlaneseq
    %v39 = vshrl.u32 %v38, 7
    %v40 = vadd.s32 %v39, 8
    %v41 = vadd.s32 %v39, 16
    %v42 = vadd.s32 %v39, 24
    %v43 = vadd.s32 %v39, 32
    %v44 = vadd.s32 %v39, 40
    %v45 = vadd.s32 %v39, 48
    %v46 = vadd.s32 %v39, 56
    %s47 = smul.u32 0, 64
    %v48 = vstv %s47
    %v49 = vadd.s32 %v39, %v48
    %v50 = vadd.s32 %v40, %v48
    %v51 = vadd.s32 %v41, %v48
    %v52 = vadd.s32 %v42, %v48
    %v53 = vadd.s32 %v43, %v48
    %v54 = vadd.s32 %v44, %v48
    %v55 = vadd.s32 %v45, %v48
    %v56 = vadd.s32 %v46, %v48
    %vm57 = vcmp.lt.s32.totalorder %v49, 64
    %vm58 = vcmp.lt.s32.totalorder %v50, 64
    %vm59 = vcmp.lt.s32.totalorder %v51, 64
    %vm60 = vcmp.lt.s32.totalorder %v52, 64
    %vm61 = vcmp.lt.s32.totalorder %v53, 64
    %vm62 = vcmp.lt.s32.totalorder %v54, 64
    %vm63 = vcmp.lt.s32.totalorder %v55, 64
    %vm64 = vcmp.lt.s32.totalorder %v56, 64
    %v65 = vstv %s29
    %v66 = vsub.f32 %v30, %v65
    %v67 = vsub.f32 %v31, %v65
    %v68 = vsub.f32 %v32, %v65
    %v69 = vsub.f32 %v33, %v65
    %v70 = vsub.f32 %v34, %v65
    %v71 = vsub.f32 %v35, %v65
    %v72 = vsub.f32 %v36, %v65
    %v73 = vsub.f32 %v37, %v65
    %v74 = vsel %vm57, %v66, 0.0
    %v75 = vsel %vm58, %v67, 0.0
    %v76 = vsel %vm59, %v68, 0.0
    %v77 = vsel %vm60, %v69, 0.0
    %v78 = vsel %vm61, %v70, 0.0
    %v79 = vsel %vm62, %v71, 0.0
    %v80 = vsel %vm63, %v72, 0.0
    %v81 = vsel %vm64, %v73, 0.0
    %v82 = vmul.f32 %v74, %v74
    %v83 = vmul.f32 %v75, %v75
    %v84 = vmul.f32 %v76, %v76
    %v85 = vmul.f32 %v77, %v77
    %v86 = vmul.f32 %v78, %v78
    %v87 = vmul.f32 %v79, %v79
    %v88 = vmul.f32 %v80, %v80
    %v89 = vmul.f32 %v81, %v81
    %vm90 = vcmask 523264
    %v91 = vsel %vm90, %v74, 0.0
    %v92 = vsel %vm90, %v75, 0.0
    %v93 = vadd.f32 %v91, %v92
    %v94 = vsel %vm90, %v76, 0.0
    %v95 = vadd.f32 %v93, %v94
    %v96 = vsel %vm90, %v77, 0.0
    %v97 = vadd.f32 %v95, %v96
    %v98 = vsel %vm90, %v78, 0.0
    %v99 = vadd.f32 %v97, %v98
    %v100 = vsel %vm90, %v79, 0.0
    %v101 = vadd.f32 %v99, %v100
    %v102 = vsel %vm90, %v80, 0.0
    %v103 = vadd.f32 %v101, %v102
    %v104 = vsel %vm90, %v81, 0.0
    %v105 = vadd.f32 %v103, %v104
    %106 = vadd.xlane.f32.xlu0 %v105
    %v107 = vpop.xlane.xlu0 %106
    %v108 = vrot.slane %v107, 4
    %v109 = vadd.f32 %v107, %v108
    %v110 = vrot.slane %v109, 2
    %v111 = vadd.f32 %v109, %v110
    %v112 = vrot.slane %v111, 1
    %v113 = vadd.f32 %v111, %v112
    %s114 = vtos %v113
    %v115 = vsel %vm90, %v82, 0.0
    %v116 = vsel %vm90, %v83, 0.0
    %v117 = vadd.f32 %v115, %v116
    %v118 = vsel %vm90, %v84, 0.0
    %v119 = vadd.f32 %v117, %v118
    %v120 = vsel %vm90, %v85, 0.0
    %v121 = vadd.f32 %v119, %v120
    %v122 = vsel %vm90, %v86, 0.0
    %v123 = vadd.f32 %v121, %v122
    %v124 = vsel %vm90, %v87, 0.0
    %v125 = vadd.f32 %v123, %v124
    %v126 = vsel %vm90, %v88, 0.0
    %v127 = vadd.f32 %v125, %v126
    %v128 = vsel %vm90, %v89, 0.0
    %v129 = vadd.f32 %v127, %v128
    %130 = vadd.xlane.f32.xlu0 %v129
    %v131 = vpop.xlane.xlu0 %130
    %v132 = vrot.slane %v131, 4
    %v133 = vadd.f32 %v131, %v132
    %v134 = vrot.slane %v133, 2
    %v135 = vadd.f32 %v133, %v134
    %v136 = vrot.slane %v135, 1
    %v137 = vadd.f32 %v135, %v136
    %s138 = vtos %v137
    %v139 = vmul.f32 %v82, %v74
    %v140 = vmul.f32 %v83, %v75
    %v141 = vmul.f32 %v84, %v76
    %v142 = vmul.f32 %v85, %v77
    %v143 = vmul.f32 %v86, %v78
    %v144 = vmul.f32 %v87, %v79
    %v145 = vmul.f32 %v88, %v80
    %v146 = vmul.f32 %v89, %v81
    %v147 = vsel %vm90, %v139, 0.0
    %v148 = vsel %vm90, %v140, 0.0
    %v149 = vadd.f32 %v147, %v148
    %v150 = vsel %vm90, %v141, 0.0
    %v151 = vadd.f32 %v149, %v150
    %v152 = vsel %vm90, %v142, 0.0
    %v153 = vadd.f32 %v151, %v152
    %v154 = vsel %vm90, %v143, 0.0
    %v155 = vadd.f32 %v153, %v154
    %v156 = vsel %vm90, %v144, 0.0
    %v157 = vadd.f32 %v155, %v156
    %v158 = vsel %vm90, %v145, 0.0
    %v159 = vadd.f32 %v157, %v158
    %v160 = vsel %vm90, %v146, 0.0
    %v161 = vadd.f32 %v159, %v160
    %162 = vadd.xlane.f32.xlu0 %v161
    %v163 = vpop.xlane.xlu0 %162
    %v164 = vrot.slane %v163, 4
    %v165 = vadd.f32 %v163, %v164
    %v166 = vrot.slane %v165, 2
    %v167 = vadd.f32 %v165, %v166
    %v168 = vrot.slane %v167, 1
    %v169 = vadd.f32 %v167, %v168
    %s170 = vtos %v169
    %v171 = vlaneseq
    %v172 = vand.u32 %v171, 127
    %v173 = vld [vmem:[%s2] sm:$0x1]
    %vm174 = vcmp.eq.s32.totalorder %v172, 0
    %vm175 = vcmp.eq.s32.totalorder %v172, 1
    %vm176 = vcmp.eq.s32.totalorder %v172, 2
    %v177 = vstv %s170
    %v178 = vsel %vm176, %v177, 0.0
    %v179 = vstv %s138
    %v180 = vsel %vm175, %v179, %v178
    %v181 = vstv %s114
    %v182 = vsel %vm174, %v181, %v180
    %v183 = vadd.f32 %v173, %v182
    %184 = vst [vmem:[%s2] sm:$0x1] %v183
    // Predicated region
    $region14: #{gescf_forward.3} parent=1 // pred_check
      _
    $region15: #{gescf_forward.3} parent=1 // pred_check_branch
      %186 = sbr.rel (0) target = $region17
    $region16: #{gescf_forward.3} parent=1 // pred_region
      _
    $region17: #{gescf_forward.3} parent=1 // pred_fallthru
      _
    // Predicated region
    $region18: #{gescf_forward.3} parent=1 // pred_check
      _
    $region19: #{gescf_forward.3} parent=1 // pred_check_branch
      %188 = sbr.rel (0) target = $region21
    $region20: #{gescf_forward.3} parent=1 // pred_region
      _
    $region21: #{gescf_forward.3} parent=1 // pred_fallthru
      _
    %189 = vsyncpa [#allocation5], 1

// kernel: gescf_forward.4
$region0: #{gescf_forward.4}
  #allocation0 [shape = 'u32[]', space=smem, size = 0x4, offset = 0x4, fixed_abs, tag = 'smem constant byte address 0x4 - core index']
  #allocation1 [shape = 'u32[144,128]{1,0:T(1,128)}', space=vmem, size = 0x12000, scoped, tag = 'internal scratch']
  #allocation2 [shape = 's32[1]{0}', space=sflag, size = 0x4, scoped, tag = 'scoped memory for gescf_forward.4']
  #allocation3 [shape = 'f32[1]{0:T(128)S(6)}', space=smem, size = 0x200, scoped, tag = 'prefetched SMEM operand 0']
  %s0 = inlined_call_operand.<no memory space> [shape: f32[1], index: 0, kind: input, shape index: {}]
  %s1 = inlined_call_operand.hbm [shape: f32[64,64], index: 1, kind: input, shape index: {}]
  %s2 = inlined_call_operand.vmem [shape: bf16[64,64], index: 2, kind: output, shape index: {}]
  %s3 = sld [smem:[#allocation0]]
  $region18: #{gescf_forward.4} parent=0
    _
  %s5 = ssub.s32 1, %s3
  %s6 = scalar_select 0, %s5, %s3
  %7 = sst [smem:[#allocation3]] %s0
  $region1: #{gescf_forward.4} parent=0
    #allocation4 [shape = 'u8[32768]{0}', space=vmem, size = 0x8000, scoped, tag = 'input window, operand 1, single buffered']
    #allocation5 [shape = 's32[1]{0}', space=sflag, size = 0x4, scoped, tag = 'scoped memory for gescf_forward.4']
    %8 = vsyncpa [#allocation5], 0
    // Predicated region
    $region2: #{gescf_forward.4} parent=1 // pred_check
      _
    $region3: #{gescf_forward.4} parent=1 // pred_check_branch
      %10 = sbr.rel (0) target = $region5
    $region4: #{gescf_forward.4} parent=1 // pred_region
      %s12 = ssub.s32 1024, 1024
      %13 = vsyncadd [#allocation5], %s12
      %s14 = sshll.u32 [#allocation4], 4
      %s15 = int_to_ptr.vmem [resolvable:$true] %s14
      %20 = dma.hbm_to_vmem [thread:$0]  %s1, 1024, %s15, [#allocation5], 128, 128, 8
    $region5: #{gescf_forward.4} parent=1 // pred_fallthru
      _
    // Predicated region
    $region6: #{gescf_forward.4} parent=1 // pred_check
      _
    $region7: #{gescf_forward.4} parent=1 // pred_check_branch
      %22 = sbr.rel (0) target = $region9
    $region8: #{gescf_forward.4} parent=1 // pred_region
      %23 = dma.done [#allocation5], 1024
    $region9: #{gescf_forward.4} parent=1 // pred_fallthru
      _
    %s24 = sld [smem:[#allocation3]]
    %v25 = vld [vmem:[#allocation4] sm:$0xff]
    %v26 = vld [vmem:[#allocation4 + $0x8] sm:$0xff]
    %v27 = vld [vmem:[#allocation4 + $0x10] sm:$0xff]
    %v28 = vld [vmem:[#allocation4 + $0x18] sm:$0xff]
    %v29 = vld [vmem:[#allocation4 + $0x20] sm:$0xff]
    %v30 = vld [vmem:[#allocation4 + $0x28] sm:$0xff]
    %v31 = vld [vmem:[#allocation4 + $0x30] sm:$0xff]
    %v32 = vld [vmem:[#allocation4 + $0x38] sm:$0xff]
    %v33 = vstv %s24
    %vm34 = vcmp.lt.f32.partialorder %v25, %v33
    %vm35 = vcmp.lt.f32.partialorder %v26, %v33
    %vm36 = vcmp.lt.f32.partialorder %v27, %v33
    %vm37 = vcmp.lt.f32.partialorder %v28, %v33
    %vm38 = vcmp.lt.f32.partialorder %v29, %v33
    %vm39 = vcmp.lt.f32.partialorder %v30, %v33
    %vm40 = vcmp.lt.f32.partialorder %v31, %v33
    %vm41 = vcmp.lt.f32.partialorder %v32, %v33
    %v42 = vsel %vm34, 1, 0
    %v43 = vsel %vm35, 1, 0
    %v44 = vsel %vm36, 1, 0
    %v45 = vsel %vm37, 1, 0
    %v46 = vsel %vm38, 1, 0
    %v47 = vsel %vm39, 1, 0
    %v48 = vsel %vm40, 1, 0
    %v49 = vsel %vm41, 1, 0
    %v50 = vcvt.s32.f32 %v42
    %v51 = vcvt.s32.f32 %v43
    %v52 = vcvt.s32.f32 %v44
    %v53 = vcvt.s32.f32 %v45
    %v54 = vcvt.s32.f32 %v46
    %v55 = vcvt.s32.f32 %v47
    %v56 = vcvt.s32.f32 %v48
    %v57 = vcvt.s32.f32 %v49
    %v58 = vpack.c.bf16 %v51, %v50
    %v59 = vpack.c.bf16 %v53, %v52
    %v60 = vpack.c.bf16 %v55, %v54
    %v61 = vpack.c.bf16 %v57, %v56
    %v66 = vunpack.c.l.b16 %v58
    %v67 = vunpack.c.h.b16 %v58
    %v68 = vunpack.c.l.b16 %v59
    %v69 = vunpack.c.h.b16 %v59
    %v70 = vunpack.c.l.b16 %v60
    %v71 = vunpack.c.h.b16 %v60
    %v72 = vunpack.c.l.b16 %v61
    %v73 = vunpack.c.h.b16 %v61
    %v74 = vpack.c.b16 %v66, %v66
    %v75 = vpack.c.b16 %v67, %v67
    %v76 = vpack.c.b16 %v68, %v68
    %v77 = vpack.c.b16 %v69, %v69
    %v78 = vpack.c.b16 %v70, %v70
    %v79 = vpack.c.b16 %v71, %v71
    %v80 = vpack.c.b16 %v72, %v72
    %v81 = vpack.c.b16 %v73, %v73
    %vm90 = vcmask 519168
    %91 = vst.msk [vmem:[%s2] sm:$0xf] %vm90, %v74
    %92 = vst.msk [vmem:[%s2 + $0x4] sm:$0xf] %vm90, %v75
    %93 = vst.msk [vmem:[%s2 + $0x8] sm:$0xf] %vm90, %v76
    %94 = vst.msk [vmem:[%s2 + $0xc] sm:$0xf] %vm90, %v77
    %95 = vst.msk [vmem:[%s2 + $0x10] sm:$0xf] %vm90, %v78
    %96 = vst.msk [vmem:[%s2 + $0x14] sm:$0xf] %vm90, %v79
    %97 = vst.msk [vmem:[%s2 + $0x18] sm:$0xf] %vm90, %v80
    %98 = vst.msk [vmem:[%s2 + $0x1c] sm:$0xf] %vm90, %v81
    // Predicated region
    $region10: #{gescf_forward.4} parent=1 // pred_check
      _
    $region11: #{gescf_forward.4} parent=1 // pred_check_branch
      %100 = sbr.rel (0) target = $region13
    $region12: #{gescf_forward.4} parent=1 // pred_region
      _
    $region13: #{gescf_forward.4} parent=1 // pred_fallthru
      _
    // Predicated region
    $region14: #{gescf_forward.4} parent=1 // pred_check
      _
    $region15: #{gescf_forward.4} parent=1 // pred_check_branch
      %102 = sbr.rel (0) target = $region17
    $region16: #{gescf_forward.4} parent=1 // pred_region
      _
    $region17: #{gescf_forward.4} parent=1 // pred_fallthru
      _
    %103 = vsyncpa [#allocation5], 1

// kernel: gescf_forward.5
$region0: #{gescf_forward.5}
  #allocation0 [shape = 'u32[]', space=smem, size = 0x4, offset = 0x4, fixed_abs, tag = 'smem constant byte address 0x4 - core index']
  #allocation1 [shape = 'u32[144,128]{1,0:T(1,128)}', space=vmem, size = 0x12000, scoped, tag = 'internal scratch']
  #allocation2 [shape = 'f32[16,32]{1,0:T(8,128)}', space=vmem, size = 0x2000, scoped, tag = 'scratch operand']
  #allocation3 [shape = 'f32[16,32]{1,0:T(8,128)}', space=vmem, size = 0x2000, scoped, tag = 'scratch operand']
  #allocation4 [shape = 'f32[16,2]{1,0:T(8,128)}', space=vmem, size = 0x2000, scoped, tag = 'scratch operand']
  %s0 = inlined_call_operand.vmem [shape: bf16[4096,2], index: 0, kind: input, shape index: {}]
  %s1 = inlined_call_operand.vmem [shape: bf16[16,4096], index: 1, kind: input, shape index: {}]
  %s2 = inlined_call_operand.vmem [shape: bf16[4096,32], index: 2, kind: input, shape index: {}]
  %s3 = inlined_call_operand.vmem [shape: bf16[4096,32], index: 3, kind: input, shape index: {}]
  %s4 = inlined_call_operand.vmem [shape: f32[16,128], index: 4, kind: output, shape index: {}]
  %s5 = sld [smem:[#allocation0]]
  $region34: #{gescf_forward.5} parent=0
    _
  %s7 = ssub.s32 1, %s5
  %s8 = scalar_select 0, %s7, %s5
  // Predicated region
  $region2: #{gescf_forward.5} parent=0 // pred_check
    _
  $region3: #{gescf_forward.5} parent=0 // pred_check_branch
    %10 = sbr.rel (0) target = $region5
  $region4: #{gescf_forward.5} parent=0 // pred_region
    _
  $region5: #{gescf_forward.5} parent=0 // pred_fallthru
    _
  // Predicated region
  $region6: #{gescf_forward.5} parent=0 // pred_check
    _
  $region7: #{gescf_forward.5} parent=0 // pred_check_branch
    %12 = sbr.rel (0) target = $region9
  $region8: #{gescf_forward.5} parent=0 // pred_region
    _
  $region9: #{gescf_forward.5} parent=0 // pred_fallthru
    _
  // Predicated region
  $region10: #{gescf_forward.5} parent=0 // pred_check
    _
  $region11: #{gescf_forward.5} parent=0 // pred_check_branch
    %14 = sbr.rel (0) target = $region13
  $region12: #{gescf_forward.5} parent=0 // pred_region
    _
  $region13: #{gescf_forward.5} parent=0 // pred_fallthru
    _
  // Predicated region
  $region14: #{gescf_forward.5} parent=0 // pred_check
    _
  $region15: #{gescf_forward.5} parent=0 // pred_check_branch
    %16 = sbr.rel (0) target = $region17
  $region16: #{gescf_forward.5} parent=0 // pred_region
    _
  $region17: #{gescf_forward.5} parent=0 // pred_fallthru
    _
  %p18 = scmp.eq.s32.totalorder 0, 0
  // Predicated region
  $region18: #{gescf_forward.5} parent=0 // pred_check
    %p19 = pneg %p18
  $region19: #{gescf_forward.5} parent=0 // pred_check_branch
    %21 = sbr.rel (%p19) target = $region21
  $region20: #{gescf_forward.5} parent=0 // pred_region
    %vm22 = vcmask 261120
    %23 = vst.msk [vmem:[#allocation2] sm:$0xff] %vm22, 0.0
    %24 = vst.msk [vmem:[#allocation2 + $0x8] sm:$0xff] %vm22, 0.0
    %25 = vst.msk [vmem:[#allocation3] sm:$0xff] %vm22, 0.0
    %26 = vst.msk [vmem:[#allocation3 + $0x8] sm:$0xff] %vm22, 0.0
    %vm27 = vcmask 15360
    %28 = vst.msk [vmem:[#allocation4] sm:$0xff] %vm27, 0.0
    %29 = vst.msk [vmem:[#allocation4 + $0x8] sm:$0xff] %vm27, 0.0
  $region21: #{gescf_forward.5} parent=0 // pred_fallthru
    _
  %v30 = vld [vmem:[%s0] sm:$0xf]
  %v31 = vld [vmem:[%s0 + $0x4] sm:$0xf]
  %v32 = vld [vmem:[%s0 + $0x8] sm:$0xf]
  %v33 = vld [vmem:[%s0 + $0xc] sm:$0xf]
  %v34 = vld [vmem:[%s0 + $0x10] sm:$0xf]
  %v35 = vld [vmem:[%s0 + $0x14] sm:$0xf]
  %v36 = vld [vmem:[%s0 + $0x18] sm:$0xf]
  %v37 = vld [vmem:[%s0 + $0x1c] sm:$0xf]
  %v38 = vld [vmem:[%s0 + $0x20] sm:$0xf]
  %v39 = vld [vmem:[%s0 + $0x24] sm:$0xf]
  %v40 = vld [vmem:[%s0 + $0x28] sm:$0xf]
  %v41 = vld [vmem:[%s0 + $0x2c] sm:$0xf]
  %v42 = vld [vmem:[%s0 + $0x30] sm:$0xf]
  %v43 = vld [vmem:[%s0 + $0x34] sm:$0xf]
  %v44 = vld [vmem:[%s0 + $0x38] sm:$0xf]
  %v45 = vld [vmem:[%s0 + $0x3c] sm:$0xf]
  %v46 = vld [vmem:[%s0 + $0x40] sm:$0xf]
  %v47 = vld [vmem:[%s0 + $0x44] sm:$0xf]
  %v48 = vld [vmem:[%s0 + $0x48] sm:$0xf]
  %v49 = vld [vmem:[%s0 + $0x4c] sm:$0xf]
  %v50 = vld [vmem:[%s0 + $0x50] sm:$0xf]
  %v51 = vld [vmem:[%s0 + $0x54] sm:$0xf]
  %v52 = vld [vmem:[%s0 + $0x58] sm:$0xf]
  %v53 = vld [vmem:[%s0 + $0x5c] sm:$0xf]
  %v54 = vld [vmem:[%s0 + $0x60] sm:$0xf]
  %v55 = vld [vmem:[%s0 + $0x64] sm:$0xf]
  %v56 = vld [vmem:[%s0 + $0x68] sm:$0xf]
  %v57 = vld [vmem:[%s0 + $0x6c] sm:$0xf]
  %v58 = vld [vmem:[%s0 + $0x70] sm:$0xf]
  %v59 = vld [vmem:[%s0 + $0x74] sm:$0xf]
  %v60 = vld [vmem:[%s0 + $0x78] sm:$0xf]
  %v61 = vld [vmem:[%s0 + $0x7c] sm:$0xf]
  %v62 = vld [vmem:[%s0 + $0x80] sm:$0xf]
  %v63 = vld [vmem:[%s0 + $0x84] sm:$0xf]
  %v64 = vld [vmem:[%s0 + $0x88] sm:$0xf]
  %v65 = vld [vmem:[%s0 + $0x8c] sm:$0xf]
  %v66 = vld [vmem:[%s0 + $0x90] sm:$0xf]
  %v67 = vld [vmem:[%s0 + $0x94] sm:$0xf]
  %v68 = vld [vmem:[%s0 + $0x98] sm:$0xf]
  %v69 = vld [vmem:[%s0 + $0x9c] sm:$0xf]
  %v70 = vld [vmem:[%s0 + $0xa0] sm:$0xf]
  %v71 = vld [vmem:[%s0 + $0xa4] sm:$0xf]
  %v72 = vld [vmem:[%s0 + $0xa8] sm:$0xf]
  %v73 = vld [vmem:[%s0 + $0xac] sm:$0xf]
  %v74 = vld [vmem:[%s0 + $0xb0] sm:$0xf]
  %v75 = vld [vmem:[%s0 + $0xb4] sm:$0xf]
  %v76 = vld [vmem:[%s0 + $0xb8] sm:$0xf]
  %v77 = vld [vmem:[%s0 + $0xbc] sm:$0xf]
  %v78 = vld [vmem:[%s0 + $0xc0] sm:$0xf]
  %v79 = vld [vmem:[%s0 + $0xc4] sm:$0xf]
  %v80 = vld [vmem:[%s0 + $0xc8] sm:$0xf]
  %v81 = vld [vmem:[%s0 + $0xcc] sm:$0xf]
  %v82 = vld [vmem:[%s0 + $0xd0] sm:$0xf]
  %v83 = vld [vmem:[%s0 + $0xd4] sm:$0xf]
  %v84 = vld [vmem:[%s0 + $0xd8] sm:$0xf]
  %v85 = vld [vmem:[%s0 + $0xdc] sm:$0xf]
  %v86 = vld [vmem:[%s0 + $0xe0] sm:$0xf]
  %v87 = vld [vmem:[%s0 + $0xe4] sm:$0xf]
  %v88 = vld [vmem:[%s0 + $0xe8] sm:$0xf]
  %v89 = vld [vmem:[%s0 + $0xec] sm:$0xf]
  %v90 = vld [vmem:[%s0 + $0xf0] sm:$0xf]
  %v91 = vld [vmem:[%s0 + $0xf4] sm:$0xf]
  %v92 = vld [vmem:[%s0 + $0xf8] sm:$0xf]
  %v93 = vld [vmem:[%s0 + $0xfc] sm:$0xf]
  %v94 = vld [vmem:[%s0 + $0x100] sm:$0xf]
  %v95 = vld [vmem:[%s0 + $0x104] sm:$0xf]
  %v96 = vld [vmem:[%s0 + $0x108] sm:$0xf]
  %v97 = vld [vmem:[%s0 + $0x10c] sm:$0xf]
  %v98 = vld [vmem:[%s0 + $0x110] sm:$0xf]
  %v99 = vld [vmem:[%s0 + $0x114] sm:$0xf]
  %v100 = vld [vmem:[%s0 + $0x118] sm:$0xf]
  %v101 = vld [vmem:[%s0 + $0x11c] sm:$0xf]
  %v102 = vld [vmem:[%s0 + $0x120] sm:$0xf]
  %v103 = vld [vmem:[%s0 + $0x124] sm:$0xf]
  %v104 = vld [vmem:[%s0 + $0x128] sm:$0xf]
  %v105 = vld [vmem:[%s0 + $0x12c] sm:$0xf]
  %v106 = vld [vmem:[%s0 + $0x130] sm:$0xf]
  %v107 = vld [vmem:[%s0 + $0x134] sm:$0xf]
  %v108 = vld [vmem:[%s0 + $0x138] sm:$0xf]
  %v109 = vld [vmem:[%s0 + $0x13c] sm:$0xf]
  %v110 = vld [vmem:[%s0 + $0x140] sm:$0xf]
  %v111 = vld [vmem:[%s0 + $0x144] sm:$0xf]
  %v112 = vld [vmem:[%s0 + $0x148] sm:$0xf]
  %v113 = vld [vmem:[%s0 + $0x14c] sm:$0xf]
  %v114 = vld [vmem:[%s0 + $0x150] sm:$0xf]
  %v115 = vld [vmem:[%s0 + $0x154] sm:$0xf]
  %v116 = vld [vmem:[%s0 + $0x158] sm:$0xf]
  %v117 = vld [vmem:[%s0 + $0x15c] sm:$0xf]
  %v118 = vld [vmem:[%s0 + $0x160] sm:$0xf]
  %v119 = vld [vmem:[%s0 + $0x164] sm:$0xf]
  %v120 = vld [vmem:[%s0 + $0x168] sm:$0xf]
  %v121 = vld [vmem:[%s0 + $0x16c] sm:$0xf]
  %v122 = vld [vmem:[%s0 + $0x170] sm:$0xf]
  %v123 = vld [vmem:[%s0 + $0x174] sm:$0xf]
  %v124 = vld [vmem:[%s0 + $0x178] sm:$0xf]
  %v125 = vld [vmem:[%s0 + $0x17c] sm:$0xf]
  %v126 = vld [vmem:[%s0 + $0x180] sm:$0xf]
  %v127 = vld [vmem:[%s0 + $0x184] sm:$0xf]
  %v128 = vld [vmem:[%s0 + $0x188] sm:$0xf]
  %v129 = vld [vmem:[%s0 + $0x18c] sm:$0xf]
  %v130 = vld [vmem:[%s0 + $0x190] sm:$0xf]
  %v131 = vld [vmem:[%s0 + $0x194] sm:$0xf]
  %v132 = vld [vmem:[%s0 + $0x198] sm:$0xf]
  %v133 = vld [vmem:[%s0 + $0x19c] sm:$0xf]
  %v134 = vld [vmem:[%s0 + $0x1a0] sm:$0xf]
  %v135 = vld [vmem:[%s0 + $0x1a4] sm:$0xf]
  %v136 = vld [vmem:[%s0 + $0x1a8] sm:$0xf]
  %v137 = vld [vmem:[%s0 + $0x1ac] sm:$0xf]
  %v138 = vld [vmem:[%s0 + $0x1b0] sm:$0xf]
  %v139 = vld [vmem:[%s0 + $0x1b4] sm:$0xf]
  %v140 = vld [vmem:[%s0 + $0x1b8] sm:$0xf]
  %v141 = vld [vmem:[%s0 + $0x1bc] sm:$0xf]
  %v142 = vld [vmem:[%s0 + $0x1c0] sm:$0xf]
  %v143 = vld [vmem:[%s0 + $0x1c4] sm:$0xf]
  %v144 = vld [vmem:[%s0 + $0x1c8] sm:$0xf]
  %v145 = vld [vmem:[%s0 + $0x1cc] sm:$0xf]
  %v146 = vld [vmem:[%s0 + $0x1d0] sm:$0xf]
  %v147 = vld [vmem:[%s0 + $0x1d4] sm:$0xf]
  %v148 = vld [vmem:[%s0 + $0x1d8] sm:$0xf]
  %v149 = vld [vmem:[%s0 + $0x1dc] sm:$0xf]
  %v150 = vld [vmem:[%s0 + $0x1e0] sm:$0xf]
  %v151 = vld [vmem:[%s0 + $0x1e4] sm:$0xf]
  %v152 = vld [vmem:[%s0 + $0x1e8] sm:$0xf]
  %v153 = vld [vmem:[%s0 + $0x1ec] sm:$0xf]
  %v154 = vld [vmem:[%s0 + $0x1f0] sm:$0xf]
  %v155 = vld [vmem:[%s0 + $0x1f4] sm:$0xf]
  %v156 = vld [vmem:[%s0 + $0x1f8] sm:$0xf]
  %v157 = vld [vmem:[%s0 + $0x1fc] sm:$0xf]
  %v158 = vld [vmem:[%s0 + $0x200] sm:$0xf]
  %v159 = vld [vmem:[%s0 + $0x204] sm:$0xf]
  %v160 = vld [vmem:[%s0 + $0x208] sm:$0xf]
  %v161 = vld [vmem:[%s0 + $0x20c] sm:$0xf]
  %v162 = vld [vmem:[%s0 + $0x210] sm:$0xf]
  %v163 = vld [vmem:[%s0 + $0x214] sm:$0xf]
  %v164 = vld [vmem:[%s0 + $0x218] sm:$0xf]
  %v165 = vld [vmem:[%s0 + $0x21c] sm:$0xf]
  %v166 = vld [vmem:[%s0 + $0x220] sm:$0xf]
  %v167 = vld [vmem:[%s0 + $0x224] sm:$0xf]
  %v168 = vld [vmem:[%s0 + $0x228] sm:$0xf]
  %v169 = vld [vmem:[%s0 + $0x22c] sm:$0xf]
  %v170 = vld [vmem:[%s0 + $0x230] sm:$0xf]
  %v171 = vld [vmem:[%s0 + $0x234] sm:$0xf]
  %v172 = vld [vmem:[%s0 + $0x238] sm:$0xf]
  %v173 = vld [vmem:[%s0 + $0x23c] sm:$0xf]
  %v174 = vld [vmem:[%s0 + $0x240] sm:$0xf]
  %v175 = vld [vmem:[%s0 + $0x244] sm:$0xf]
  %v176 = vld [vmem:[%s0 + $0x248] sm:$0xf]
  %v177 = vld [vmem:[%s0 + $0x24c] sm:$0xf]
  %v178 = vld [vmem:[%s0 + $0x250] sm:$0xf]
  %v179 = vld [vmem:[%s0 + $0x254] sm:$0xf]
  %v180 = vld [vmem:[%s0 + $0x258] sm:$0xf]
  %v181 = vld [vmem:[%s0 + $0x25c] sm:$0xf]
  %v182 = vld [vmem:[%s0 + $0x260] sm:$0xf]
  %v183 = vld [vmem:[%s0 + $0x264] sm:$0xf]
  %v184 = vld [vmem:[%s0 + $0x268] sm:$0xf]
  %v185 = vld [vmem:[%s0 + $0x26c] sm:$0xf]
  %v186 = vld [vmem:[%s0 + $0x270] sm:$0xf]
  %v187 = vld [vmem:[%s0 + $0x274] sm:$0xf]
  %v188 = vld [vmem:[%s0 + $0x278] sm:$0xf]
  %v189 = vld [vmem:[%s0 + $0x27c] sm:$0xf]
  %v190 = vld [vmem:[%s0 + $0x280] sm:$0xf]
  %v191 = vld [vmem:[%s0 + $0x284] sm:$0xf]
  %v192 = vld [vmem:[%s0 + $0x288] sm:$0xf]
  %v193 = vld [vmem:[%s0 + $0x28c] sm:$0xf]
  %v194 = vld [vmem:[%s0 + $0x290] sm:$0xf]
  %v195 = vld [vmem:[%s0 + $0x294] sm:$0xf]
  %v196 = vld [vmem:[%s0 + $0x298] sm:$0xf]
  %v197 = vld [vmem:[%s0 + $0x29c] sm:$0xf]
  %v198 = vld [vmem:[%s0 + $0x2a0] sm:$0xf]
  %v199 = vld [vmem:[%s0 + $0x2a4] sm:$0xf]
  %v200 = vld [vmem:[%s0 + $0x2a8] sm:$0xf]
  %v201 = vld [vmem:[%s0 + $0x2ac] sm:$0xf]
  %v202 = vld [vmem:[%s0 + $0x2b0] sm:$0xf]
  %v203 = vld [vmem:[%s0 + $0x2b4] sm:$0xf]
  %v204 = vld [vmem:[%s0 + $0x2b8] sm:$0xf]
  %v205 = vld [vmem:[%s0 + $0x2bc] sm:$0xf]
  %v206 = vld [vmem:[%s0 + $0x2c0] sm:$0xf]
  %v207 = vld [vmem:[%s0 + $0x2c4] sm:$0xf]
  %v208 = vld [vmem:[%s0 + $0x2c8] sm:$0xf]
  %v209 = vld [vmem:[%s0 + $0x2cc] sm:$0xf]
  %v210 = vld [vmem:[%s0 + $0x2d0] sm:$0xf]
  %v211 = vld [vmem:[%s0 + $0x2d4] sm:$0xf]
  %v212 = vld [vmem:[%s0 + $0x2d8] sm:$0xf]
  %v213 = vld [vmem:[%s0 + $0x2dc] sm:$0xf]
  %v214 = vld [vmem:[%s0 + $0x2e0] sm:$0xf]
  %v215 = vld [vmem:[%s0 + $0x2e4] sm:$0xf]
  %v216 = vld [vmem:[%s0 + $0x2e8] sm:$0xf]
  %v217 = vld [vmem:[%s0 + $0x2ec] sm:$0xf]
  %v218 = vld [vmem:[%s0 + $0x2f0] sm:$0xf]
  %v219 = vld [vmem:[%s0 + $0x2f4] sm:$0xf]
  %v220 = vld [vmem:[%s0 + $0x2f8] sm:$0xf]
  %v221 = vld [vmem:[%s0 + $0x2fc] sm:$0xf]
  %v222 = vld [vmem:[%s0 + $0x300] sm:$0xf]
  %v223 = vld [vmem:[%s0 + $0x304] sm:$0xf]
  %v224 = vld [vmem:[%s0 + $0x308] sm:$0xf]
  %v225 = vld [vmem:[%s0 + $0x30c] sm:$0xf]
  %v226 = vld [vmem:[%s0 + $0x310] sm:$0xf]
  %v227 = vld [vmem:[%s0 + $0x314] sm:$0xf]
  %v228 = vld [vmem:[%s0 + $0x318] sm:$0xf]
  %v229 = vld [vmem:[%s0 + $0x31c] sm:$0xf]
  %v230 = vld [vmem:[%s0 + $0x320] sm:$0xf]
  %v231 = vld [vmem:[%s0 + $0x324] sm:$0xf]
  %v232 = vld [vmem:[%s0 + $0x328] sm:$0xf]
  %v233 = vld [vmem:[%s0 + $0x32c] sm:$0xf]
  %v234 = vld [vmem:[%s0 + $0x330] sm:$0xf]
  %v235 = vld [vmem:[%s0 + $0x334] sm:$0xf]
  %v236 = vld [vmem:[%s0 + $0x338] sm:$0xf]
  %v237 = vld [vmem:[%s0 + $0x33c] sm:$0xf]
  %v238 = vld [vmem:[%s0 + $0x340] sm:$0xf]
  %v239 = vld [vmem:[%s0 + $0x344] sm:$0xf]
  %v240 = vld [vmem:[%s0 + $0x348] sm:$0xf]
  %v241 = vld [vmem:[%s0 + $0x34c] sm:$0xf]
  %v242 = vld [vmem:[%s0 + $0x350] sm:$0xf]
  %v243 = vld [vmem:[%s0 + $0x354] sm:$0xf]
  %v244 = vld [vmem:[%s0 + $0x358] sm:$0xf]
  %v245 = vld [vmem:[%s0 + $0x35c] sm:$0xf]
  %v246 = vld [vmem:[%s0 + $0x360] sm:$0xf]
  %v247 = vld [vmem:[%s0 + $0x364] sm:$0xf]
  %v248 = vld [vmem:[%s0 + $0x368] sm:$0xf]
  %v249 = vld [vmem:[%s0 + $0x36c] sm:$0xf]
  %v250 = vld [vmem:[%s0 + $0x370] sm:$0xf]
  %v251 = vld [vmem:[%s0 + $0x374] sm:$0xf]
  %v252 = vld [vmem:[%s0 + $0x378] sm:$0xf]
  %v253 = vld [vmem:[%s0 + $0x37c] sm:$0xf]
  %v254 = vld [vmem:[%s0 + $0x380] sm:$0xf]
  %v255 = vld [vmem:[%s0 + $0x384] sm:$0xf]
  %v256 = vld [vmem:[%s0 + $0x388] sm:$0xf]
  %v257 = vld [vmem:[%s0 + $0x38c] sm:$0xf]
  %v258 = vld [vmem:[%s0 + $0x390] sm:$0xf]
  %v259 = vld [vmem:[%s0 + $0x394] sm:$0xf]
  %v260 = vld [vmem:[%s0 + $0x398] sm:$0xf]
  %v261 = vld [vmem:[%s0 + $0x39c] sm:$0xf]
  %v262 = vld [vmem:[%s0 + $0x3a0] sm:$0xf]
  %v263 = vld [vmem:[%s0 + $0x3a4] sm:$0xf]
  %v264 = vld [vmem:[%s0 + $0x3a8] sm:$0xf]
  %v265 = vld [vmem:[%s0 + $0x3ac] sm:$0xf]
  %v266 = vld [vmem:[%s0 + $0x3b0] sm:$0xf]
  %v267 = vld [vmem:[%s0 + $0x3b4] sm:$0xf]
  %v268 = vld [vmem:[%s0 + $0x3b8] sm:$0xf]
  %v269 = vld [vmem:[%s0 + $0x3bc] sm:$0xf]
  %v270 = vld [vmem:[%s0 + $0x3c0] sm:$0xf]
  %v271 = vld [vmem:[%s0 + $0x3c4] sm:$0xf]
  %v272 = vld [vmem:[%s0 + $0x3c8] sm:$0xf]
  %v273 = vld [vmem:[%s0 + $0x3cc] sm:$0xf]
  %v274 = vld [vmem:[%s0 + $0x3d0] sm:$0xf]
  %v275 = vld [vmem:[%s0 + $0x3d4] sm:$0xf]
  %v276 = vld [vmem:[%s0 + $0x3d8] sm:$0xf]
  %v277 = vld [vmem:[%s0 + $0x3dc] sm:$0xf]
  %v278 = vld [vmem:[%s0 + $0x3e0] sm:$0xf]
  %v279 = vld [vmem:[%s0 + $0x3e4] sm:$0xf]
  %v280 = vld [vmem:[%s0 + $0x3e8] sm:$0xf]
  %v281 = vld [vmem:[%s0 + $0x3ec] sm:$0xf]
  %v282 = vld [vmem:[%s0 + $0x3f0] sm:$0xf]
  %v283 = vld [vmem:[%s0 + $0x3f4] sm:$0xf]
  %v284 = vld [vmem:[%s0 + $0x3f8] sm:$0xf]
  %v285 = vld [vmem:[%s0 + $0x3fc] sm:$0xf]
  %v286 = vld [vmem:[%s0 + $0x400] sm:$0xf]
  %v287 = vld [vmem:[%s0 + $0x404] sm:$0xf]
  %v288 = vld [vmem:[%s0 + $0x408] sm:$0xf]
  %v289 = vld [vmem:[%s0 + $0x40c] sm:$0xf]
  %v290 = vld [vmem:[%s0 + $0x410] sm:$0xf]
  %v291 = vld [vmem:[%s0 + $0x414] sm:$0xf]
  %v292 = vld [vmem:[%s0 + $0x418] sm:$0xf]
  %v293 = vld [vmem:[%s0 + $0x41c] sm:$0xf]
  %v294 = vld [vmem:[%s0 + $0x420] sm:$0xf]
  %v295 = vld [vmem:[%s0 + $0x424] sm:$0xf]
  %v296 = vld [vmem:[%s0 + $0x428] sm:$0xf]
  %v297 = vld [vmem:[%s0 + $0x42c] sm:$0xf]
  %v298 = vld [vmem:[%s0 + $0x430] sm:$0xf]
  %v299 = vld [vmem:[%s0 + $0x434] sm:$0xf]
  %v300 = vld [vmem:[%s0 + $0x438] sm:$0xf]
  %v301 = vld [vmem:[%s0 + $0x43c] sm:$0xf]
  %v302 = vld [vmem:[%s0 + $0x440] sm:$0xf]
  %v303 = vld [vmem:[%s0 + $0x444] sm:$0xf]
  %v304 = vld [vmem:[%s0 + $0x448] sm:$0xf]
  %v305 = vld [vmem:[%s0 + $0x44c] sm:$0xf]
  %v306 = vld [vmem:[%s0 + $0x450] sm:$0xf]
  %v307 = vld [vmem:[%s0 + $0x454] sm:$0xf]
  %v308 = vld [vmem:[%s0 + $0x458] sm:$0xf]
  %v309 = vld [vmem:[%s0 + $0x45c] sm:$0xf]
  %v310 = vld [vmem:[%s0 + $0x460] sm:$0xf]
  %v311 = vld [vmem:[%s0 + $0x464] sm:$0xf]
  %v312 = vld [vmem:[%s0 + $0x468] sm:$0xf]
  %v313 = vld [vmem:[%s0 + $0x46c] sm:$0xf]
  %v314 = vld [vmem:[%s0 + $0x470] sm:$0xf]
  %v315 = vld [vmem:[%s0 + $0x474] sm:$0xf]
  %v316 = vld [vmem:[%s0 + $0x478] sm:$0xf]
  %v317 = vld [vmem:[%s0 + $0x47c] sm:$0xf]
  %v318 = vld [vmem:[%s0 + $0x480] sm:$0xf]
  %v319 = vld [vmem:[%s0 + $0x484] sm:$0xf]
  %v320 = vld [vmem:[%s0 + $0x488] sm:$0xf]
  %v321 = vld [vmem:[%s0 + $0x48c] sm:$0xf]
  %v322 = vld [vmem:[%s0 + $0x490] sm:$0xf]
  %v323 = vld [vmem:[%s0 + $0x494] sm:$0xf]
  %v324 = vld [vmem:[%s0 + $0x498] sm:$0xf]
  %v325 = vld [vmem:[%s0 + $0x49c] sm:$0xf]
  %v326 = vld [vmem:[%s0 + $0x4a0] sm:$0xf]
  %v327 = vld [vmem:[%s0 + $0x4a4] sm:$0xf]
  %v328 = vld [vmem:[%s0 + $0x4a8] sm:$0xf]
  %v329 = vld [vmem:[%s0 + $0x4ac] sm:$0xf]
  %v330 = vld [vmem:[%s0 + $0x4b0] sm:$0xf]
  %v331 = vld [vmem:[%s0 + $0x4b4] sm:$0xf]
  %v332 = vld [vmem:[%s0 + $0x4b8] sm:$0xf]
  %v333 = vld [vmem:[%s0 + $0x4bc] sm:$0xf]
  %v334 = vld [vmem:[%s0 + $0x4c0] sm:$0xf]
  %v335 = vld [vmem:[%s0 + $0x4c4] sm:$0xf]
  %v336 = vld [vmem:[%s0 + $0x4c8] sm:$0xf]
  %v337 = vld [vmem:[%s0 + $0x4cc] sm:$0xf]
  %v338 = vld [vmem:[%s0 + $0x4d0] sm:$0xf]
  %v339 = vld [vmem:[%s0 + $0x4d4] sm:$0xf]
  %v340 = vld [vmem:[%s0 + $0x4d8] sm:$0xf]
  %v341 = vld [vmem:[%s0 + $0x4dc] sm:$0xf]
  %v342 = vld [vmem:[%s0 + $0x4e0] sm:$0xf]
  %v343 = vld [vmem:[%s0 + $0x4e4] sm:$0xf]
  %v344 = vld [vmem:[%s0 + $0x4e8] sm:$0xf]
  %v345 = vld [vmem:[%s0 + $0x4ec] sm:$0xf]
  %v346 = vld [vmem:[%s0 + $0x4f0] sm:$0xf]
  %v347 = vld [vmem:[%s0 + $0x4f4] sm:$0xf]
  %v348 = vld [vmem:[%s0 + $0x4f8] sm:$0xf]
  %v349 = vld [vmem:[%s0 + $0x4fc] sm:$0xf]
  %v350 = vld [vmem:[%s0 + $0x500] sm:$0xf]
  %v351 = vld [vmem:[%s0 + $0x504] sm:$0xf]
  %v352 = vld [vmem:[%s0 + $0x508] sm:$0xf]
  %v353 = vld [vmem:[%s0 + $0x50c] sm:$0xf]
  %v354 = vld [vmem:[%s0 + $0x510] sm:$0xf]
  %v355 = vld [vmem:[%s0 + $0x514] sm:$0xf]
  %v356 = vld [vmem:[%s0 + $0x518] sm:$0xf]
  %v357 = vld [vmem:[%s0 + $0x51c] sm:$0xf]
  %v358 = vld [vmem:[%s0 + $0x520] sm:$0xf]
  %v359 = vld [vmem:[%s0 + $0x524] sm:$0xf]
  %v360 = vld [vmem:[%s0 + $0x528] sm:$0xf]
  %v361 = vld [vmem:[%s0 + $0x52c] sm:$0xf]
  %v362 = vld [vmem:[%s0 + $0x530] sm:$0xf]
  %v363 = vld [vmem:[%s0 + $0x534] sm:$0xf]
  %v364 = vld [vmem:[%s0 + $0x538] sm:$0xf]
  %v365 = vld [vmem:[%s0 + $0x53c] sm:$0xf]
  %v366 = vld [vmem:[%s0 + $0x540] sm:$0xf]
  %v367 = vld [vmem:[%s0 + $0x544] sm:$0xf]
  %v368 = vld [vmem:[%s0 + $0x548] sm:$0xf]
  %v369 = vld [vmem:[%s0 + $0x54c] sm:$0xf]
  %v370 = vld [vmem:[%s0 + $0x550] sm:$0xf]
  %v371 = vld [vmem:[%s0 + $0x554] sm:$0xf]
  %v372 = vld [vmem:[%s0 + $0x558] sm:$0xf]
  %v373 = vld [vmem:[%s0 + $0x55c] sm:$0xf]
  %v374 = vld [vmem:[%s0 + $0x560] sm:$0xf]
  %v375 = vld [vmem:[%s0 + $0x564] sm:$0xf]
  %v376 = vld [vmem:[%s0 + $0x568] sm:$0xf]
  %v377 = vld [vmem:[%s0 + $0x56c] sm:$0xf]
  %v378 = vld [vmem:[%s0 + $0x570] sm:$0xf]
  %v379 = vld [vmem:[%s0 + $0x574] sm:$0xf]
  %v380 = vld [vmem:[%s0 + $0x578] sm:$0xf]
  %v381 = vld [vmem:[%s0 + $0x57c] sm:$0xf]
  %v382 = vld [vmem:[%s0 + $0x580] sm:$0xf]
  %v383 = vld [vmem:[%s0 + $0x584] sm:$0xf]
  %v384 = vld [vmem:[%s0 + $0x588] sm:$0xf]
  %v385 = vld [vmem:[%s0 + $0x58c] sm:$0xf]
  %v386 = vld [vmem:[%s0 + $0x590] sm:$0xf]
  %v387 = vld [vmem:[%s0 + $0x594] sm:$0xf]
  %v388 = vld [vmem:[%s0 + $0x598] sm:$0xf]
  %v389 = vld [vmem:[%s0 + $0x59c] sm:$0xf]
  %v390 = vld [vmem:[%s0 + $0x5a0] sm:$0xf]
  %v391 = vld [vmem:[%s0 + $0x5a4] sm:$0xf]
  %v392 = vld [vmem:[%s0 + $0x5a8] sm:$0xf]
  %v393 = vld [vmem:[%s0 + $0x5ac] sm:$0xf]
  %v394 = vld [vmem:[%s0 + $0x5b0] sm:$0xf]
  %v395 = vld [vmem:[%s0 + $0x5b4] sm:$0xf]
  %v396 = vld [vmem:[%s0 + $0x5b8] sm:$0xf]
  %v397 = vld [vmem:[%s0 + $0x5bc] sm:$0xf]
  %v398 = vld [vmem:[%s0 + $0x5c0] sm:$0xf]
  %v399 = vld [vmem:[%s0 + $0x5c4] sm:$0xf]
  %v400 = vld [vmem:[%s0 + $0x5c8] sm:$0xf]
  %v401 = vld [vmem:[%s0 + $0x5cc] sm:$0xf]
  %v402 = vld [vmem:[%s0 + $0x5d0] sm:$0xf]
  %v403 = vld [vmem:[%s0 + $0x5d4] sm:$0xf]
  %v404 = vld [vmem:[%s0 + $0x5d8] sm:$0xf]
  %v405 = vld [vmem:[%s0 + $0x5dc] sm:$0xf]
  %v406 = vld [vmem:[%s0 + $0x5e0] sm:$0xf]
  %v407 = vld [vmem:[%s0 + $0x5e4] sm:$0xf]
  %v408 = vld [vmem:[%s0 + $0x5e8] sm:$0xf]
  %v409 = vld [vmem:[%s0 + $0x5ec] sm:$0xf]
  %v410 = vld [vmem:[%s0 + $0x5f0] sm:$0xf]
  %v411 = vld [vmem:[%s0 + $0x5f4] sm:$0xf]
  %v412 = vld [vmem:[%s0 + $0x5f8] sm:$0xf]
  %v413 = vld [vmem:[%s0 + $0x5fc] sm:$0xf]
  %v414 = vld [vmem:[%s0 + $0x600] sm:$0xf]
  %v415 = vld [vmem:[%s0 + $0x604] sm:$0xf]
  %v416 = vld [vmem:[%s0 + $0x608] sm:$0xf]
  %v417 = vld [vmem:[%s0 + $0x60c] sm:$0xf]
  %v418 = vld [vmem:[%s0 + $0x610] sm:$0xf]
  %v419 = vld [vmem:[%s0 + $0x614] sm:$0xf]
  %v420 = vld [vmem:[%s0 + $0x618] sm:$0xf]
  %v421 = vld [vmem:[%s0 + $0x61c] sm:$0xf]
  %v422 = vld [vmem:[%s0 + $0x620] sm:$0xf]
  %v423 = vld [vmem:[%s0 + $0x624] sm:$0xf]
  %v424 = vld [vmem:[%s0 + $0x628] sm:$0xf]
  %v425 = vld [vmem:[%s0 + $0x62c] sm:$0xf]
  %v426 = vld [vmem:[%s0 + $0x630] sm:$0xf]
  %v427 = vld [vmem:[%s0 + $0x634] sm:$0xf]
  %v428 = vld [vmem:[%s0 + $0x638] sm:$0xf]
  %v429 = vld [vmem:[%s0 + $0x63c] sm:$0xf]
  %v430 = vld [vmem:[%s0 + $0x640] sm:$0xf]
  %v431 = vld [vmem:[%s0 + $0x644] sm:$0xf]
  %v432 = vld [vmem:[%s0 + $0x648] sm:$0xf]
  %v433 = vld [vmem:[%s0 + $0x64c] sm:$0xf]
  %v434 = vld [vmem:[%s0 + $0x650] sm:$0xf]
  %v435 = vld [vmem:[%s0 + $0x654] sm:$0xf]
  %v436 = vld [vmem:[%s0 + $0x658] sm:$0xf]
  %v437 = vld [vmem:[%s0 + $0x65c] sm:$0xf]
  %v438 = vld [vmem:[%s0 + $0x660] sm:$0xf]
  %v439 = vld [vmem:[%s0 + $0x664] sm:$0xf]
  %v440 = vld [vmem:[%s0 + $0x668] sm:$0xf]
  %v441 = vld [vmem:[%s0 + $0x66c] sm:$0xf]
  %v442 = vld [vmem:[%s0 + $0x670] sm:$0xf]
  %v443 = vld [vmem:[%s0 + $0x674] sm:$0xf]
  %v444 = vld [vmem:[%s0 + $0x678] sm:$0xf]
  %v445 = vld [vmem:[%s0 + $0x67c] sm:$0xf]
  %v446 = vld [vmem:[%s0 + $0x680] sm:$0xf]
  %v447 = vld [vmem:[%s0 + $0x684] sm:$0xf]
  %v448 = vld [vmem:[%s0 + $0x688] sm:$0xf]
  %v449 = vld [vmem:[%s0 + $0x68c] sm:$0xf]
  %v450 = vld [vmem:[%s0 + $0x690] sm:$0xf]
  %v451 = vld [vmem:[%s0 + $0x694] sm:$0xf]
  %v452 = vld [vmem:[%s0 + $0x698] sm:$0xf]
  %v453 = vld [vmem:[%s0 + $0x69c] sm:$0xf]
  %v454 = vld [vmem:[%s0 + $0x6a0] sm:$0xf]
  %v455 = vld [vmem:[%s0 + $0x6a4] sm:$0xf]
  %v456 = vld [vmem:[%s0 + $0x6a8] sm:$0xf]
  %v457 = vld [vmem:[%s0 + $0x6ac] sm:$0xf]
  %v458 = vld [vmem:[%s0 + $0x6b0] sm:$0xf]
  %v459 = vld [vmem:[%s0 + $0x6b4] sm:$0xf]
  %v460 = vld [vmem:[%s0 + $0x6b8] sm:$0xf]
  %v461 = vld [vmem:[%s0 + $0x6bc] sm:$0xf]
  %v462 = vld [vmem:[%s0 + $0x6c0] sm:$0xf]
  %v463 = vld [vmem:[%s0 + $0x6c4] sm:$0xf]
  %v464 = vld [vmem:[%s0 + $0x6c8] sm:$0xf]
  %v465 = vld [vmem:[%s0 + $0x6cc] sm:$0xf]
  %v466 = vld [vmem:[%s0 + $0x6d0] sm:$0xf]
  %v467 = vld [vmem:[%s0 + $0x6d4] sm:$0xf]
  %v468 = vld [vmem:[%s0 + $0x6d8] sm:$0xf]
  %v469 = vld [vmem:[%s0 + $0x6dc] sm:$0xf]
  %v470 = vld [vmem:[%s0 + $0x6e0] sm:$0xf]
  %v471 = vld [vmem:[%s0 + $0x6e4] sm:$0xf]
  %v472 = vld [vmem:[%s0 + $0x6e8] sm:$0xf]
  %v473 = vld [vmem:[%s0 + $0x6ec] sm:$0xf]
  %v474 = vld [vmem:[%s0 + $0x6f0] sm:$0xf]
  %v475 = vld [vmem:[%s0 + $0x6f4] sm:$0xf]
  %v476 = vld [vmem:[%s0 + $0x6f8] sm:$0xf]
  %v477 = vld [vmem:[%s0 + $0x6fc] sm:$0xf]
  %v478 = vld [vmem:[%s0 + $0x700] sm:$0xf]
  %v479 = vld [vmem:[%s0 + $0x704] sm:$0xf]
  %v480 = vld [vmem:[%s0 + $0x708] sm:$0xf]
  %v481 = vld [vmem:[%s0 + $0x70c] sm:$0xf]
  %v482 = vld [vmem:[%s0 + $0x710] sm:$0xf]
  %v483 = vld [vmem:[%s0 + $0x714] sm:$0xf]
  %v484 = vld [vmem:[%s0 + $0x718] sm:$0xf]
  %v485 = vld [vmem:[%s0 + $0x71c] sm:$0xf]
  %v486 = vld [vmem:[%s0 + $0x720] sm:$0xf]
  %v487 = vld [vmem:[%s0 + $0x724] sm:$0xf]
  %v488 = vld [vmem:[%s0 + $0x728] sm:$0xf]
  %v489 = vld [vmem:[%s0 + $0x72c] sm:$0xf]
  %v490 = vld [vmem:[%s0 + $0x730] sm:$0xf]
  %v491 = vld [vmem:[%s0 + $0x734] sm:$0xf]
  %v492 = vld [vmem:[%s0 + $0x738] sm:$0xf]
  %v493 = vld [vmem:[%s0 + $0x73c] sm:$0xf]
  %v494 = vld [vmem:[%s0 + $0x740] sm:$0xf]
  %v495 = vld [vmem:[%s0 + $0x744] sm:$0xf]
  %v496 = vld [vmem:[%s0 + $0x748] sm:$0xf]
  %v497 = vld [vmem:[%s0 + $0x74c] sm:$0xf]
  %v498 = vld [vmem:[%s0 + $0x750] sm:$0xf]
  %v499 = vld [vmem:[%s0 + $0x754] sm:$0xf]
  %v500 = vld [vmem:[%s0 + $0x758] sm:$0xf]
  %v501 = vld [vmem:[%s0 + $0x75c] sm:$0xf]
  %v502 = vld [vmem:[%s0 + $0x760] sm:$0xf]
  %v503 = vld [vmem:[%s0 + $0x764] sm:$0xf]
  %v504 = vld [vmem:[%s0 + $0x768] sm:$0xf]
  %v505 = vld [vmem:[%s0 + $0x76c] sm:$0xf]
  %v506 = vld [vmem:[%s0 + $0x770] sm:$0xf]
  %v507 = vld [vmem:[%s0 + $0x774] sm:$0xf]
  %v508 = vld [vmem:[%s0 + $0x778] sm:$0xf]
  %v509 = vld [vmem:[%s0 + $0x77c] sm:$0xf]
  %v510 = vld [vmem:[%s0 + $0x780] sm:$0xf]
  %v511 = vld [vmem:[%s0 + $0x784] sm:$0xf]
  %v512 = vld [vmem:[%s0 + $0x788] sm:$0xf]
  %v513 = vld [vmem:[%s0 + $0x78c] sm:$0xf]
  %v514 = vld [vmem:[%s0 + $0x790] sm:$0xf]
  %v515 = vld [vmem:[%s0 + $0x794] sm:$0xf]
  %v516 = vld [vmem:[%s0 + $0x798] sm:$0xf]
  %v517 = vld [vmem:[%s0 + $0x79c] sm:$0xf]
  %v518 = vld [vmem:[%s0 + $0x7a0] sm:$0xf]
  %v519 = vld [vmem:[%s0 + $0x7a4] sm:$0xf]
  %v520 = vld [vmem:[%s0 + $0x7a8] sm:$0xf]
  %v521 = vld [vmem:[%s0 + $0x7ac] sm:$0xf]
  %v522 = vld [vmem:[%s0 + $0x7b0] sm:$0xf]
  %v523 = vld [vmem:[%s0 + $0x7b4] sm:$0xf]
  %v524 = vld [vmem:[%s0 + $0x7b8] sm:$0xf]
  %v525 = vld [vmem:[%s0 + $0x7bc] sm:$0xf]
  %v526 = vld [vmem:[%s0 + $0x7c0] sm:$0xf]
  %v527 = vld [vmem:[%s0 + $0x7c4] sm:$0xf]
  %v528 = vld [vmem:[%s0 + $0x7c8] sm:$0xf]
  %v529 = vld [vmem:[%s0 + $0x7cc] sm:$0xf]
  %v530 = vld [vmem:[%s0 + $0x7d0] sm:$0xf]
  %v531 = vld [vmem:[%s0 + $0x7d4] sm:$0xf]
  %v532 = vld [vmem:[%s0 + $0x7d8] sm:$0xf]
  %v533 = vld [vmem:[%s0 + $0x7dc] sm:$0xf]
  %v534 = vld [vmem:[%s0 + $0x7e0] sm:$0xf]
  %v535 = vld [vmem:[%s0 + $0x7e4] sm:$0xf]
  %v536 = vld [vmem:[%s0 + $0x7e8] sm:$0xf]
  %v537 = vld [vmem:[%s0 + $0x7ec] sm:$0xf]
  %v538 = vld [vmem:[%s0 + $0x7f0] sm:$0xf]
  %v539 = vld [vmem:[%s0 + $0x7f4] sm:$0xf]
  %v540 = vld [vmem:[%s0 + $0x7f8] sm:$0xf]
  %v541 = vld [vmem:[%s0 + $0x7fc] sm:$0xf]
  %v542 = vld [vmem:[%s1] sm:$0xff]
  %v543 = vld [vmem:[%s1 + $0x8] sm:$0xff]
  %v544 = vld [vmem:[%s1 + $0x10] sm:$0xff]
  %v545 = vld [vmem:[%s1 + $0x18] sm:$0xff]
  %v546 = vld [vmem:[%s1 + $0x20] sm:$0xff]
  %v547 = vld [vmem:[%s1 + $0x28] sm:$0xff]
  %v548 = vld [vmem:[%s1 + $0x30] sm:$0xff]
  %v549 = vld [vmem:[%s1 + $0x38] sm:$0xff]
  %v550 = vld [vmem:[%s1 + $0x40] sm:$0xff]
  %v551 = vld [vmem:[%s1 + $0x48] sm:$0xff]
  %v552 = vld [vmem:[%s1 + $0x50] sm:$0xff]
  %v553 = vld [vmem:[%s1 + $0x58] sm:$0xff]
  %v554 = vld [vmem:[%s1 + $0x60] sm:$0xff]
  %v555 = vld [vmem:[%s1 + $0x68] sm:$0xff]
  %v556 = vld [vmem:[%s1 + $0x70] sm:$0xff]
  %v557 = vld [vmem:[%s1 + $0x78] sm:$0xff]
  %v558 = vld [vmem:[%s1 + $0x80] sm:$0xff]
  %v559 = vld [vmem:[%s1 + $0x88] sm:$0xff]
  %v560 = vld [vmem:[%s1 + $0x90] sm:$0xff]
  %v561 = vld [vmem:[%s1 + $0x98] sm:$0xff]
  %v562 = vld [vmem:[%s1 + $0xa0] sm:$0xff]
  %v563 = vld [vmem:[%s1 + $0xa8] sm:$0xff]
  %v564 = vld [vmem:[%s1 + $0xb0] sm:$0xff]
  %v565 = vld [vmem:[%s1 + $0xb8] sm:$0xff]
  %v566 = vld [vmem:[%s1 + $0xc0] sm:$0xff]
  %v567 = vld [vmem:[%s1 + $0xc8] sm:$0xff]
  %v568 = vld [vmem:[%s1 + $0xd0] sm:$0xff]
  %v569 = vld [vmem:[%s1 + $0xd8] sm:$0xff]
  %v570 = vld [vmem:[%s1 + $0xe0] sm:$0xff]
  %v571 = vld [vmem:[%s1 + $0xe8] sm:$0xff]
  %v572 = vld [vmem:[%s1 + $0xf0] sm:$0xff]
  %v573 = vld [vmem:[%s1 + $0xf8] sm:$0xff]
  %v574 = vld [vmem:[%s2] sm:$0xf]
  %v575 = vld [vmem:[%s2 + $0x4] sm:$0xf]
  %v576 = vld [vmem:[%s2 + $0x8] sm:$0xf]
  %v577 = vld [vmem:[%s2 + $0xc] sm:$0xf]
  %v578 = vld [vmem:[%s2 + $0x10] sm:$0xf]
  %v579 = vld [vmem:[%s2 + $0x14] sm:$0xf]
  %v580 = vld [vmem:[%s2 + $0x18] sm:$0xf]
  %v581 = vld [vmem:[%s2 + $0x1c] sm:$0xf]
  %v582 = vld [vmem:[%s2 + $0x20] sm:$0xf]
  %v583 = vld [vmem:[%s2 + $0x24] sm:$0xf]
  %v584 = vld [vmem:[%s2 + $0x28] sm:$0xf]
  %v585 = vld [vmem:[%s2 + $0x2c] sm:$0xf]
  %v586 = vld [vmem:[%s2 + $0x30] sm:$0xf]
  %v587 = vld [vmem:[%s2 + $0x34] sm:$0xf]
  %v588 = vld [vmem:[%s2 + $0x38] sm:$0xf]
  %v589 = vld [vmem:[%s2 + $0x3c] sm:$0xf]
  %v590 = vld [vmem:[%s2 + $0x40] sm:$0xf]
  %v591 = vld [vmem:[%s2 + $0x44] sm:$0xf]
  %v592 = vld [vmem:[%s2 + $0x48] sm:$0xf]
  %v593 = vld [vmem:[%s2 + $0x4c] sm:$0xf]
  %v594 = vld [vmem:[%s2 + $0x50] sm:$0xf]
  %v595 = vld [vmem:[%s2 + $0x54] sm:$0xf]
  %v596 = vld [vmem:[%s2 + $0x58] sm:$0xf]
  %v597 = vld [vmem:[%s2 + $0x5c] sm:$0xf]
  %v598 = vld [vmem:[%s2 + $0x60] sm:$0xf]
  %v599 = vld [vmem:[%s2 + $0x64] sm:$0xf]
  %v600 = vld [vmem:[%s2 + $0x68] sm:$0xf]
  %v601 = vld [vmem:[%s2 + $0x6c] sm:$0xf]
  %v602 = vld [vmem:[%s2 + $0x70] sm:$0xf]
  %v603 = vld [vmem:[%s2 + $0x74] sm:$0xf]
  %v604 = vld [vmem:[%s2 + $0x78] sm:$0xf]
  %v605 = vld [vmem:[%s2 + $0x7c] sm:$0xf]
  %v606 = vld [vmem:[%s2 + $0x80] sm:$0xf]
  %v607 = vld [vmem:[%s2 + $0x84] sm:$0xf]
  %v608 = vld [vmem:[%s2 + $0x88] sm:$0xf]
  %v609 = vld [vmem:[%s2 + $0x8c] sm:$0xf]
  %v610 = vld [vmem:[%s2 + $0x90] sm:$0xf]
  %v611 = vld [vmem:[%s2 + $0x94] sm:$0xf]
  %v612 = vld [vmem:[%s2 + $0x98] sm:$0xf]
  %v613 = vld [vmem:[%s2 + $0x9c] sm:$0xf]
  %v614 = vld [vmem:[%s2 + $0xa0] sm:$0xf]
  %v615 = vld [vmem:[%s2 + $0xa4] sm:$0xf]
  %v616 = vld [vmem:[%s2 + $0xa8] sm:$0xf]
  %v617 = vld [vmem:[%s2 + $0xac] sm:$0xf]
  %v618 = vld [vmem:[%s2 + $0xb0] sm:$0xf]
  %v619 = vld [vmem:[%s2 + $0xb4] sm:$0xf]
  %v620 = vld [vmem:[%s2 + $0xb8] sm:$0xf]
  %v621 = vld [vmem:[%s2 + $0xbc] sm:$0xf]
  %v622 = vld [vmem:[%s2 + $0xc0] sm:$0xf]
  %v623 = vld [vmem:[%s2 + $0xc4] sm:$0xf]
  %v624 = vld [vmem:[%s2 + $0xc8] sm:$0xf]
  %v625 = vld [vmem:[%s2 + $0xcc] sm:$0xf]
  %v626 = vld [vmem:[%s2 + $0xd0] sm:$0xf]
  %v627 = vld [vmem:[%s2 + $0xd4] sm:$0xf]
  %v628 = vld [vmem:[%s2 + $0xd8] sm:$0xf]
  %v629 = vld [vmem:[%s2 + $0xdc] sm:$0xf]
  %v630 = vld [vmem:[%s2 + $0xe0] sm:$0xf]
  %v631 = vld [vmem:[%s2 + $0xe4] sm:$0xf]
  %v632 = vld [vmem:[%s2 + $0xe8] sm:$0xf]
  %v633 = vld [vmem:[%s2 + $0xec] sm:$0xf]
  %v634 = vld [vmem:[%s2 + $0xf0] sm:$0xf]
  %v635 = vld [vmem:[%s2 + $0xf4] sm:$0xf]
  %v636 = vld [vmem:[%s2 + $0xf8] sm:$0xf]
  %v637 = vld [vmem:[%s2 + $0xfc] sm:$0xf]
  %v638 = vld [vmem:[%s2 + $0x100] sm:$0xf]
  %v639 = vld [vmem:[%s2 + $0x104] sm:$0xf]
  %v640 = vld [vmem:[%s2 + $0x108] sm:$0xf]
  %v641 = vld [vmem:[%s2 + $0x10c] sm:$0xf]
  %v642 = vld [vmem:[%s2 + $0x110] sm:$0xf]
  %v643 = vld [vmem:[%s2 + $0x114] sm:$0xf]
  %v644 = vld [vmem:[%s2 + $0x118] sm:$0xf]
  %v645 = vld [vmem:[%s2 + $0x11c] sm:$0xf]
  %v646 = vld [vmem:[%s2 + $0x120] sm:$0xf]
  %v647 = vld [vmem:[%s2 + $0x124] sm:$0xf]
  %v648 = vld [vmem:[%s2 + $0x128] sm:$0xf]
  %v649 = vld [vmem:[%s2 + $0x12c] sm:$0xf]
  %v650 = vld [vmem:[%s2 + $0x130] sm:$0xf]
  %v651 = vld [vmem:[%s2 + $0x134] sm:$0xf]
  %v652 = vld [vmem:[%s2 + $0x138] sm:$0xf]
  %v653 = vld [vmem:[%s2 + $0x13c] sm:$0xf]
  %v654 = vld [vmem:[%s2 + $0x140] sm:$0xf]
  %v655 = vld [vmem:[%s2 + $0x144] sm:$0xf]
  %v656 = vld [vmem:[%s2 + $0x148] sm:$0xf]
  %v657 = vld [vmem:[%s2 + $0x14c] sm:$0xf]
  %v658 = vld [vmem:[%s2 + $0x150] sm:$0xf]
  %v659 = vld [vmem:[%s2 + $0x154] sm:$0xf]
  %v660 = vld [vmem:[%s2 + $0x158] sm:$0xf]
  %v661 = vld [vmem:[%s2 + $0x15c] sm:$0xf]
  %v662 = vld [vmem:[%s2 + $0x160] sm:$0xf]
  %v663 = vld [vmem:[%s2 + $0x164] sm:$0xf]
  %v664 = vld [vmem:[%s2 + $0x168] sm:$0xf]
  %v665 = vld [vmem:[%s2 + $0x16c] sm:$0xf]
  %v666 = vld [vmem:[%s2 + $0x170] sm:$0xf]
  %v667 = vld [vmem:[%s2 + $0x174] sm:$0xf]
  %v668 = vld [vmem:[%s2 + $0x178] sm:$0xf]
  %v669 = vld [vmem:[%s2 + $0x17c] sm:$0xf]
  %v670 = vld [vmem:[%s2 + $0x180] sm:$0xf]
  %v671 = vld [vmem:[%s2 + $0x184] sm:$0xf]
  %v672 = vld [vmem:[%s2 + $0x188] sm:$0xf]
  %v673 = vld [vmem:[%s2 + $0x18c] sm:$0xf]
  %v674 = vld [vmem:[%s2 + $0x190] sm:$0xf]
  %v675 = vld [vmem:[%s2 + $0x194] sm:$0xf]
  %v676 = vld [vmem:[%s2 + $0x198] sm:$0xf]
  %v677 = vld [vmem:[%s2 + $0x19c] sm:$0xf]
  %v678 = vld [vmem:[%s2 + $0x1a0] sm:$0xf]
  %v679 = vld [vmem:[%s2 + $0x1a4] sm:$0xf]
  %v680 = vld [vmem:[%s2 + $0x1a8] sm:$0xf]
  %v681 = vld [vmem:[%s2 + $0x1ac] sm:$0xf]
  %v682 = vld [vmem:[%s2 + $0x1b0] sm:$0xf]
  %v683 = vld [vmem:[%s2 + $0x1b4] sm:$0xf]
  %v684 = vld [vmem:[%s2 + $0x1b8] sm:$0xf]
  %v685 = vld [vmem:[%s2 + $0x1bc] sm:$0xf]
  %v686 = vld [vmem:[%s2 + $0x1c0] sm:$0xf]
  %v687 = vld [vmem:[%s2 + $0x1c4] sm:$0xf]
  %v688 = vld [vmem:[%s2 + $0x1c8] sm:$0xf]
  %v689 = vld [vmem:[%s2 + $0x1cc] sm:$0xf]
  %v690 = vld [vmem:[%s2 + $0x1d0] sm:$0xf]
  %v691 = vld [vmem:[%s2 + $0x1d4] sm:$0xf]
  %v692 = vld [vmem:[%s2 + $0x1d8] sm:$0xf]
  %v693 = vld [vmem:[%s2 + $0x1dc] sm:$0xf]
  %v694 = vld [vmem:[%s2 + $0x1e0] sm:$0xf]
  %v695 = vld [vmem:[%s2 + $0x1e4] sm:$0xf]
  %v696 = vld [vmem:[%s2 + $0x1e8] sm:$0xf]
  %v697 = vld [vmem:[%s2 + $0x1ec] sm:$0xf]
  %v698 = vld [vmem:[%s2 + $0x1f0] sm:$0xf]
  %v699 = vld [vmem:[%s2 + $0x1f4] sm:$0xf]
  %v700 = vld [vmem:[%s2 + $0x1f8] sm:$0xf]
  %v701 = vld [vmem:[%s2 + $0x1fc] sm:$0xf]
  %v702 = vld [vmem:[%s2 + $0x200] sm:$0xf]
  %v703 = vld [vmem:[%s2 + $0x204] sm:$0xf]
  %v704 = vld [vmem:[%s2 + $0x208] sm:$0xf]
  %v705 = vld [vmem:[%s2 + $0x20c] sm:$0xf]
  %v706 = vld [vmem:[%s2 + $0x210] sm:$0xf]
  %v707 = vld [vmem:[%s2 + $0x214] sm:$0xf]
  %v708 = vld [vmem:[%s2 + $0x218] sm:$0xf]
  %v709 = vld [vmem:[%s2 + $0x21c] sm:$0xf]
  %v710 = vld [vmem:[%s2 + $0x220] sm:$0xf]
  %v711 = vld [vmem:[%s2 + $0x224] sm:$0xf]
  %v712 = vld [vmem:[%s2 + $0x228] sm:$0xf]
  %v713 = vld [vmem:[%s2 + $0x22c] sm:$0xf]
  %v714 = vld [vmem:[%s2 + $0x230] sm:$0xf]
  %v715 = vld [vmem:[%s2 + $0x234] sm:$0xf]
  %v716 = vld [vmem:[%s2 + $0x238] sm:$0xf]
  %v717 = vld [vmem:[%s2 + $0x23c] sm:$0xf]
  %v718 = vld [vmem:[%s2 + $0x240] sm:$0xf]
  %v719 = vld [vmem:[%s2 + $0x244] sm:$0xf]
  %v720 = vld [vmem:[%s2 + $0x248] sm:$0xf]
  %v721 = vld [vmem:[%s2 + $0x24c] sm:$0xf]
  %v722 = vld [vmem:[%s2 + $0x250] sm:$0xf]
  %v723 = vld [vmem:[%s2 + $0x254] sm:$0xf]
  %v724 = vld [vmem:[%s2 + $0x258] sm:$0xf]
  %v725 = vld [vmem:[%s2 + $0x25c] sm:$0xf]
  %v726 = vld [vmem:[%s2 + $0x260] sm:$0xf]
  %v727 = vld [vmem:[%s2 + $0x264] sm:$0xf]
  %v728 = vld [vmem:[%s2 + $0x268] sm:$0xf]
  %v729 = vld [vmem:[%s2 + $0x26c] sm:$0xf]
  %v730 = vld [vmem:[%s2 + $0x270] sm:$0xf]
  %v731 = vld [vmem:[%s2 + $0x274] sm:$0xf]
  %v732 = vld [vmem:[%s2 + $0x278] sm:$0xf]
  %v733 = vld [vmem:[%s2 + $0x27c] sm:$0xf]
  %v734 = vld [vmem:[%s2 + $0x280] sm:$0xf]
  %v735 = vld [vmem:[%s2 + $0x284] sm:$0xf]
  %v736 = vld [vmem:[%s2 + $0x288] sm:$0xf]
  %v737 = vld [vmem:[%s2 + $0x28c] sm:$0xf]
  %v738 = vld [vmem:[%s2 + $0x290] sm:$0xf]
  %v739 = vld [vmem:[%s2 + $0x294] sm:$0xf]
  %v740 = vld [vmem:[%s2 + $0x298] sm:$0xf]
  %v741 = vld [vmem:[%s2 + $0x29c] sm:$0xf]
  %v742 = vld [vmem:[%s2 + $0x2a0] sm:$0xf]
  %v743 = vld [vmem:[%s2 + $0x2a4] sm:$0xf]
  %v744 = vld [vmem:[%s2 + $0x2a8] sm:$0xf]
  %v745 = vld [vmem:[%s2 + $0x2ac] sm:$0xf]
  %v746 = vld [vmem:[%s2 + $0x2b0] sm:$0xf]
  %v747 = vld [vmem:[%s2 + $0x2b4] sm:$0xf]
  %v748 = vld [vmem:[%s2 + $0x2b8] sm:$0xf]
  %v749 = vld [vmem:[%s2 + $0x2bc] sm:$0xf]
  %v750 = vld [vmem:[%s2 + $0x2c0] sm:$0xf]
  %v751 = vld [vmem:[%s2 + $0x2c4] sm:$0xf]
  %v752 = vld [vmem:[%s2 + $0x2c8] sm:$0xf]
  %v753 = vld [vmem:[%s2 + $0x2cc] sm:$0xf]
  %v754 = vld [vmem:[%s2 + $0x2d0] sm:$0xf]
  %v755 = vld [vmem:[%s2 + $0x2d4] sm:$0xf]
  %v756 = vld [vmem:[%s2 + $0x2d8] sm:$0xf]
  %v757 = vld [vmem:[%s2 + $0x2dc] sm:$0xf]
  %v758 = vld [vmem:[%s2 + $0x2e0] sm:$0xf]
  %v759 = vld [vmem:[%s2 + $0x2e4] sm:$0xf]
  %v760 = vld [vmem:[%s2 + $0x2e8] sm:$0xf]
  %v761 = vld [vmem:[%s2 + $0x2ec] sm:$0xf]
  %v762 = vld [vmem:[%s2 + $0x2f0] sm:$0xf]
  %v763 = vld [vmem:[%s2 + $0x2f4] sm:$0xf]
  %v764 = vld [vmem:[%s2 + $0x2f8] sm:$0xf]
  %v765 = vld [vmem:[%s2 + $0x2fc] sm:$0xf]
  %v766 = vld [vmem:[%s2 + $0x300] sm:$0xf]
  %v767 = vld [vmem:[%s2 + $0x304] sm:$0xf]
  %v768 = vld [vmem:[%s2 + $0x308] sm:$0xf]
  %v769 = vld [vmem:[%s2 + $0x30c] sm:$0xf]
  %v770 = vld [vmem:[%s2 + $0x310] sm:$0xf]
  %v771 = vld [vmem:[%s2 + $0x314] sm:$0xf]
  %v772 = vld [vmem:[%s2 + $0x318] sm:$0xf]
  %v773 = vld [vmem:[%s2 + $0x31c] sm:$0xf]
  %v774 = vld [vmem:[%s2 + $0x320] sm:$0xf]
  %v775 = vld [vmem:[%s2 + $0x324] sm:$0xf]
  %v776 = vld [vmem:[%s2 + $0x328] sm:$0xf]
  %v777 = vld [vmem:[%s2 + $0x32c] sm:$0xf]
  %v778 = vld [vmem:[%s2 + $0x330] sm:$0xf]
  %v779 = vld [vmem:[%s2 + $0x334] sm:$0xf]
  %v780 = vld [vmem:[%s2 + $0x338] sm:$0xf]
  %v781 = vld [vmem:[%s2 + $0x33c] sm:$0xf]
  %v782 = vld [vmem:[%s2 + $0x340] sm:$0xf]
  %v783 = vld [vmem:[%s2 + $0x344] sm:$0xf]
  %v784 = vld [vmem:[%s2 + $0x348] sm:$0xf]
  %v785 = vld [vmem:[%s2 + $0x34c] sm:$0xf]
  %v786 = vld [vmem:[%s2 + $0x350] sm:$0xf]
  %v787 = vld [vmem:[%s2 + $0x354] sm:$0xf]
  %v788 = vld [vmem:[%s2 + $0x358] sm:$0xf]
  %v789 = vld [vmem:[%s2 + $0x35c] sm:$0xf]
  %v790 = vld [vmem:[%s2 + $0x360] sm:$0xf]
  %v791 = vld [vmem:[%s2 + $0x364] sm:$0xf]
  %v792 = vld [vmem:[%s2 + $0x368] sm:$0xf]
  %v793 = vld [vmem:[%s2 + $0x36c] sm:$0xf]
  %v794 = vld [vmem:[%s2 + $0x370] sm:$0xf]
  %v795 = vld [vmem:[%s2 + $0x374] sm:$0xf]
  %v796 = vld [vmem:[%s2 + $0x378] sm:$0xf]
  %v797 = vld [vmem:[%s2 + $0x37c] sm:$0xf]
  %v798 = vld [vmem:[%s2 + $0x380] sm:$0xf]
  %v799 = vld [vmem:[%s2 + $0x384] sm:$0xf]
  %v800 = vld [vmem:[%s2 + $0x388] sm:$0xf]
  %v801 = vld [vmem:[%s2 + $0x38c] sm:$0xf]
  %v802 = vld [vmem:[%s2 + $0x390] sm:$0xf]
  %v803 = vld [vmem:[%s2 + $0x394] sm:$0xf]
  %v804 = vld [vmem:[%s2 + $0x398] sm:$0xf]
  %v805 = vld [vmem:[%s2 + $0x39c] sm:$0xf]
  %v806 = vld [vmem:[%s2 + $0x3a0] sm:$0xf]
  %v807 = vld [vmem:[%s2 + $0x3a4] sm:$0xf]
  %v808 = vld [vmem:[%s2 + $0x3a8] sm:$0xf]
  %v809 = vld [vmem:[%s2 + $0x3ac] sm:$0xf]
  %v810 = vld [vmem:[%s2 + $0x3b0] sm:$0xf]
  %v811 = vld [vmem:[%s2 + $0x3b4] sm:$0xf]
  %v812 = vld [vmem:[%s2 + $0x3b8] sm:$0xf]
  %v813 = vld [vmem:[%s2 + $0x3bc] sm:$0xf]
  %v814 = vld [vmem:[%s2 + $0x3c0] sm:$0xf]
  %v815 = vld [vmem:[%s2 + $0x3c4] sm:$0xf]
  %v816 = vld [vmem:[%s2 + $0x3c8] sm:$0xf]
  %v817 = vld [vmem:[%s2 + $0x3cc] sm:$0xf]
  %v818 = vld [vmem:[%s2 + $0x3d0] sm:$0xf]
  %v819 = vld [vmem:[%s2 + $0x3d4] sm:$0xf]
  %v820 = vld [vmem:[%s2 + $0x3d8] sm:$0xf]
  %v821 = vld [vmem:[%s2 + $0x3dc] sm:$0xf]
  %v822 = vld [vmem:[%s2 + $0x3e0] sm:$0xf]
  %v823 = vld [vmem:[%s2 + $0x3e4] sm:$0xf]
  %v824 = vld [vmem:[%s2 + $0x3e8] sm:$0xf]
  %v825 = vld [vmem:[%s2 + $0x3ec] sm:$0xf]
  %v826 = vld [vmem:[%s2 + $0x3f0] sm:$0xf]
  %v827 = vld [vmem:[%s2 + $0x3f4] sm:$0xf]
  %v828 = vld [vmem:[%s2 + $0x3f8] sm:$0xf]
  %v829 = vld [vmem:[%s2 + $0x3fc] sm:$0xf]
  %v830 = vld [vmem:[%s2 + $0x400] sm:$0xf]
  %v831 = vld [vmem:[%s2 + $0x404] sm:$0xf]
  %v832 = vld [vmem:[%s2 + $0x408] sm:$0xf]
  %v833 = vld [vmem:[%s2 + $0x40c] sm:$0xf]
  %v834 = vld [vmem:[%s2 + $0x410] sm:$0xf]
  %v835 = vld [vmem:[%s2 + $0x414] sm:$0xf]
  %v836 = vld [vmem:[%s2 + $0x418] sm:$0xf]
  %v837 = vld [vmem:[%s2 + $0x41c] sm:$0xf]
  %v838 = vld [vmem:[%s2 + $0x420] sm:$0xf]
  %v839 = vld [vmem:[%s2 + $0x424] sm:$0xf]
  %v840 = vld [vmem:[%s2 + $0x428] sm:$0xf]
  %v841 = vld [vmem:[%s2 + $0x42c] sm:$0xf]
  %v842 = vld [vmem:[%s2 + $0x430] sm:$0xf]
  %v843 = vld [vmem:[%s2 + $0x434] sm:$0xf]
  %v844 = vld [vmem:[%s2 + $0x438] sm:$0xf]
  %v845 = vld [vmem:[%s2 + $0x43c] sm:$0xf]
  %v846 = vld [vmem:[%s2 + $0x440] sm:$0xf]
  %v847 = vld [vmem:[%s2 + $0x444] sm:$0xf]
  %v848 = vld [vmem:[%s2 + $0x448] sm:$0xf]
  %v849 = vld [vmem:[%s2 + $0x44c] sm:$0xf]
  %v850 = vld [vmem:[%s2 + $0x450] sm:$0xf]
  %v851 = vld [vmem:[%s2 + $0x454] sm:$0xf]
  %v852 = vld [vmem:[%s2 + $0x458] sm:$0xf]
  %v853 = vld [vmem:[%s2 + $0x45c] sm:$0xf]
  %v854 = vld [vmem:[%s2 + $0x460] sm:$0xf]
  %v855 = vld [vmem:[%s2 + $0x464] sm:$0xf]
  %v856 = vld [vmem:[%s2 + $0x468] sm:$0xf]
  %v857 = vld [vmem:[%s2 + $0x46c] sm:$0xf]
  %v858 = vld [vmem:[%s2 + $0x470] sm:$0xf]
  %v859 = vld [vmem:[%s2 + $0x474] sm:$0xf]
  %v860 = vld [vmem:[%s2 + $0x478] sm:$0xf]
  %v861 = vld [vmem:[%s2 + $0x47c] sm:$0xf]
  %v862 = vld [vmem:[%s2 + $0x480] sm:$0xf]
  %v863 = vld [vmem:[%s2 + $0x484] sm:$0xf]
  %v864 = vld [vmem:[%s2 + $0x488] sm:$0xf]
  %v865 = vld [vmem:[%s2 + $0x48c] sm:$0xf]
  %v866 = vld [vmem:[%s2 + $0x490] sm:$0xf]
  %v867 = vld [vmem:[%s2 + $0x494] sm:$0xf]
  %v868 = vld [vmem:[%s2 + $0x498] sm:$0xf]
  %v869 = vld [vmem:[%s2 + $0x49c] sm:$0xf]
  %v870 = vld [vmem:[%s2 + $0x4a0] sm:$0xf]
  %v871 = vld [vmem:[%s2 + $0x4a4] sm:$0xf]
  %v872 = vld [vmem:[%s2 + $0x4a8] sm:$0xf]
  %v873 = vld [vmem:[%s2 + $0x4ac] sm:$0xf]
  %v874 = vld [vmem:[%s2 + $0x4b0] sm:$0xf]
  %v875 = vld [vmem:[%s2 + $0x4b4] sm:$0xf]
  %v876 = vld [vmem:[%s2 + $0x4b8] sm:$0xf]
  %v877 = vld [vmem:[%s2 + $0x4bc] sm:$0xf]
  %v878 = vld [vmem:[%s2 + $0x4c0] sm:$0xf]
  %v879 = vld [vmem:[%s2 + $0x4c4] sm:$0xf]
  %v880 = vld [vmem:[%s2 + $0x4c8] sm:$0xf]
  %v881 = vld [vmem:[%s2 + $0x4cc] sm:$0xf]
  %v882 = vld [vmem:[%s2 + $0x4d0] sm:$0xf]
  %v883 = vld [vmem:[%s2 + $0x4d4] sm:$0xf]
  %v884 = vld [vmem:[%s2 + $0x4d8] sm:$0xf]
  %v885 = vld [vmem:[%s2 + $0x4dc] sm:$0xf]
  %v886 = vld [vmem:[%s2 + $0x4e0] sm:$0xf]
  %v887 = vld [vmem:[%s2 + $0x4e4] sm:$0xf]
  %v888 = vld [vmem:[%s2 + $0x4e8] sm:$0xf]
  %v889 = vld [vmem:[%s2 + $0x4ec] sm:$0xf]
  %v890 = vld [vmem:[%s2 + $0x4f0] sm:$0xf]
  %v891 = vld [vmem:[%s2 + $0x4f4] sm:$0xf]
  %v892 = vld [vmem:[%s2 + $0x4f8] sm:$0xf]
  %v893 = vld [vmem:[%s2 + $0x4fc] sm:$0xf]
  %v894 = vld [vmem:[%s2 + $0x500] sm:$0xf]
  %v895 = vld [vmem:[%s2 + $0x504] sm:$0xf]
  %v896 = vld [vmem:[%s2 + $0x508] sm:$0xf]
  %v897 = vld [vmem:[%s2 + $0x50c] sm:$0xf]
  %v898 = vld [vmem:[%s2 + $0x510] sm:$0xf]
  %v899 = vld [vmem:[%s2 + $0x514] sm:$0xf]
  %v900 = vld [vmem:[%s2 + $0x518] sm:$0xf]
  %v901 = vld [vmem:[%s2 + $0x51c] sm:$0xf]
  %v902 = vld [vmem:[%s2 + $0x520] sm:$0xf]
  %v903 = vld [vmem:[%s2 + $0x524] sm:$0xf]
  %v904 = vld [vmem:[%s2 + $0x528] sm:$0xf]
  %v905 = vld [vmem:[%s2 + $0x52c] sm:$0xf]
  %v906 = vld [vmem:[%s2 + $0x530] sm:$0xf]
  %v907 = vld [vmem:[%s2 + $0x534] sm:$0xf]
  %v908 = vld [vmem:[%s2 + $0x538] sm:$0xf]
  %v909 = vld [vmem:[%s2 + $0x53c] sm:$0xf]
  %v910 = vld [vmem:[%s2 + $0x540] sm:$0xf]
  %v911 = vld [vmem:[%s2 + $0x544] sm:$0xf]
  %v912 = vld [vmem:[%s2 + $0x548] sm:$0xf]
  %v913 = vld [vmem:[%s2 + $0x54c] sm:$0xf]
  %v914 = vld [vmem:[%s2 + $0x550] sm:$0xf]
  %v915 = vld [vmem:[%s2 + $0x554] sm:$0xf]
  %v916 = vld [vmem:[%s2 + $0x558] sm:$0xf]
  %v917 = vld [vmem:[%s2 + $0x55c] sm:$0xf]
  %v918 = vld [vmem:[%s2 + $0x560] sm:$0xf]
  %v919 = vld [vmem:[%s2 + $0x564] sm:$0xf]
  %v920 = vld [vmem:[%s2 + $0x568] sm:$0xf]
  %v921 = vld [vmem:[%s2 + $0x56c] sm:$0xf]
  %v922 = vld [vmem:[%s2 + $0x570] sm:$0xf]
  %v923 = vld [vmem:[%s2 + $0x574] sm:$0xf]
  %v924 = vld [vmem:[%s2 + $0x578] sm:$0xf]
  %v925 = vld [vmem:[%s2 + $0x57c] sm:$0xf]
  %v926 = vld [vmem:[%s2 + $0x580] sm:$0xf]
  %v927 = vld [vmem:[%s2 + $0x584] sm:$0xf]
  %v928 = vld [vmem:[%s2 + $0x588] sm:$0xf]
  %v929 = vld [vmem:[%s2 + $0x58c] sm:$0xf]
  %v930 = vld [vmem:[%s2 + $0x590] sm:$0xf]
  %v931 = vld [vmem:[%s2 + $0x594] sm:$0xf]
  %v932 = vld [vmem:[%s2 + $0x598] sm:$0xf]
  %v933 = vld [vmem:[%s2 + $0x59c] sm:$0xf]
  %v934 = vld [vmem:[%s2 + $0x5a0] sm:$0xf]
  %v935 = vld [vmem:[%s2 + $0x5a4] sm:$0xf]
  %v936 = vld [vmem:[%s2 + $0x5a8] sm:$0xf]
  %v937 = vld [vmem:[%s2 + $0x5ac] sm:$0xf]
  %v938 = vld [vmem:[%s2 + $0x5b0] sm:$0xf]
  %v939 = vld [vmem:[%s2 + $0x5b4] sm:$0xf]
  %v940 = vld [vmem:[%s2 + $0x5b8] sm:$0xf]
  %v941 = vld [vmem:[%s2 + $0x5bc] sm:$0xf]
  %v942 = vld [vmem:[%s2 + $0x5c0] sm:$0xf]
  %v943 = vld [vmem:[%s2 + $0x5c4] sm:$0xf]
  %v944 = vld [vmem:[%s2 + $0x5c8] sm:$0xf]
  %v945 = vld [vmem:[%s2 + $0x5cc] sm:$0xf]
  %v946 = vld [vmem:[%s2 + $0x5d0] sm:$0xf]
  %v947 = vld [vmem:[%s2 + $0x5d4] sm:$0xf]
  %v948 = vld [vmem:[%s2 + $0x5d8] sm:$0xf]
  %v949 = vld [vmem:[%s2 + $0x5dc] sm:$0xf]
  %v950 = vld [vmem:[%s2 + $0x5e0] sm:$0xf]
  %v951 = vld [vmem:[%s2 + $0x5e4] sm:$0xf]
  %v952 = vld [vmem:[%s2 + $0x5e8] sm:$0xf]
  %v953 = vld [vmem:[%s2 + $0x5ec] sm:$0xf]
  %v954 = vld [vmem:[%s2 + $0x5f0] sm:$0xf]
  %v955 = vld [vmem:[%s2 + $0x5f4] sm:$0xf]
  %v956 = vld [vmem:[%s2 + $0x5f8] sm:$0xf]
  %v957 = vld [vmem:[%s2 + $0x5fc] sm:$0xf]
  %v958 = vld [vmem:[%s2 + $0x600] sm:$0xf]
  %v959 = vld [vmem:[%s2 + $0x604] sm:$0xf]
  %v960 = vld [vmem:[%s2 + $0x608] sm:$0xf]
  %v961 = vld [vmem:[%s2 + $0x60c] sm:$0xf]
  %v962 = vld [vmem:[%s2 + $0x610] sm:$0xf]
  %v963 = vld [vmem:[%s2 + $0x614] sm:$0xf]
  %v964 = vld [vmem:[%s2 + $0x618] sm:$0xf]
  %v965 = vld [vmem:[%s2 + $0x61c] sm:$0xf]
  %v966 = vld [vmem:[%s2 + $0x620] sm:$0xf]
  %v967 = vld [vmem:[%s2 + $0x624] sm:$0xf]
  %v968 = vld [vmem:[%s2 + $0x628] sm:$0xf]
  %v969 = vld [vmem:[%s2 + $0x62c] sm:$0xf]
  %v970 = vld [vmem:[%s2 + $0x630] sm:$0xf]
  %v971 = vld [vmem:[%s2 + $0x634] sm:$0xf]
  %v972 = vld [vmem:[%s2 + $0x638] sm:$0xf]
  %v973 = vld [vmem:[%s2 + $0x63c] sm:$0xf]
  %v974 = vld [vmem:[%s2 + $0x640] sm:$0xf]
  %v975 = vld [vmem:[%s2 + $0x644] sm:$0xf]
  %v976 = vld [vmem:[%s2 + $0x648] sm:$0xf]
  %v977 = vld [vmem:[%s2 + $0x64c] sm:$0xf]
  %v978 = vld [vmem:[%s2 + $0x650] sm:$0xf]
  %v979 = vld [vmem:[%s2 + $0x654] sm:$0xf]
  %v980 = vld [vmem:[%s2 + $0x658] sm:$0xf]
  %v981 = vld [vmem:[%s2 + $0x65c] sm:$0xf]
  %v982 = vld [vmem:[%s2 + $0x660] sm:$0xf]
  %v983 = vld [vmem:[%s2 + $0x664] sm:$0xf]
  %v984 = vld [vmem:[%s2 + $0x668] sm:$0xf]
  %v985 = vld [vmem:[%s2 + $0x66c] sm:$0xf]
  %v986 = vld [vmem:[%s2 + $0x670] sm:$0xf]
  %v987 = vld [vmem:[%s2 + $0x674] sm:$0xf]
  %v988 = vld [vmem:[%s2 + $0x678] sm:$0xf]
  %v989 = vld [vmem:[%s2 + $0x67c] sm:$0xf]
  %v990 = vld [vmem:[%s2 + $0x680] sm:$0xf]
  %v991 = vld [vmem:[%s2 + $0x684] sm:$0xf]
  %v992 = vld [vmem:[%s2 + $0x688] sm:$0xf]
  %v993 = vld [vmem:[%s2 + $0x68c] sm:$0xf]
  %v994 = vld [vmem:[%s2 + $0x690] sm:$0xf]
  %v995 = vld [vmem:[%s2 + $0x694] sm:$0xf]
  %v996 = vld [vmem:[%s2 + $0x698] sm:$0xf]
  %v997 = vld [vmem:[%s2 + $0x69c] sm:$0xf]
  %v998 = vld [vmem:[%s2 + $0x6a0] sm:$0xf]
  %v999 = vld [vmem:[%s2 + $0x6a4] sm:$0xf]
  %v1000 = vld [vmem:[%s2 + $0x6a8] sm:$0xf]
  %v1001 = vld [vmem:[%s2 + $0x6ac] sm:$0xf]
  %v1002 = vld [vmem:[%s2 + $0x6b0] sm:$0xf]
  %v1003 = vld [vmem:[%s2 + $0x6b4] sm:$0xf]
  %v1004 = vld [vmem:[%s2 + $0x6b8] sm:$0xf]
  %v1005 = vld [vmem:[%s2 + $0x6bc] sm:$0xf]
  %v1006 = vld [vmem:[%s2 + $0x6c0] sm:$0xf]
  %v1007 = vld [vmem:[%s2 + $0x6c4] sm:$0xf]
  %v1008 = vld [vmem:[%s2 + $0x6c8] sm:$0xf]
  %v1009 = vld [vmem:[%s2 + $0x6cc] sm:$0xf]
  %v1010 = vld [vmem:[%s2 + $0x6d0] sm:$0xf]
  %v1011 = vld [vmem:[%s2 + $0x6d4] sm:$0xf]
  %v1012 = vld [vmem:[%s2 + $0x6d8] sm:$0xf]
  %v1013 = vld [vmem:[%s2 + $0x6dc] sm:$0xf]
  %v1014 = vld [vmem:[%s2 + $0x6e0] sm:$0xf]
  %v1015 = vld [vmem:[%s2 + $0x6e4] sm:$0xf]
  %v1016 = vld [vmem:[%s2 + $0x6e8] sm:$0xf]
  %v1017 = vld [vmem:[%s2 + $0x6ec] sm:$0xf]
  %v1018 = vld [vmem:[%s2 + $0x6f0] sm:$0xf]
  %v1019 = vld [vmem:[%s2 + $0x6f4] sm:$0xf]
  %v1020 = vld [vmem:[%s2 + $0x6f8] sm:$0xf]
  %v1021 = vld [vmem:[%s2 + $0x6fc] sm:$0xf]
  %v1022 = vld [vmem:[%s2 + $0x700] sm:$0xf]
  %v1023 = vld [vmem:[%s2 + $0x704] sm:$0xf]
  %v1024 = vld [vmem:[%s2 + $0x708] sm:$0xf]
  %v1025 = vld [vmem:[%s2 + $0x70c] sm:$0xf]
  %v1026 = vld [vmem:[%s2 + $0x710] sm:$0xf]
  %v1027 = vld [vmem:[%s2 + $0x714] sm:$0xf]
  %v1028 = vld [vmem:[%s2 + $0x718] sm:$0xf]
  %v1029 = vld [vmem:[%s2 + $0x71c] sm:$0xf]
  %v1030 = vld [vmem:[%s2 + $0x720] sm:$0xf]
  %v1031 = vld [vmem:[%s2 + $0x724] sm:$0xf]
  %v1032 = vld [vmem:[%s2 + $0x728] sm:$0xf]
  %v1033 = vld [vmem:[%s2 + $0x72c] sm:$0xf]
  %v1034 = vld [vmem:[%s2 + $0x730] sm:$0xf]
  %v1035 = vld [vmem:[%s2 + $0x734] sm:$0xf]
  %v1036 = vld [vmem:[%s2 + $0x738] sm:$0xf]
  %v1037 = vld [vmem:[%s2 + $0x73c] sm:$0xf]
  %v1038 = vld [vmem:[%s2 + $0x740] sm:$0xf]
  %v1039 = vld [vmem:[%s2 + $0x744] sm:$0xf]
  %v1040 = vld [vmem:[%s2 + $0x748] sm:$0xf]
  %v1041 = vld [vmem:[%s2 + $0x74c] sm:$0xf]
  %v1042 = vld [vmem:[%s2 + $0x750] sm:$0xf]
  %v1043 = vld [vmem:[%s2 + $0x754] sm:$0xf]
  %v1044 = vld [vmem:[%s2 + $0x758] sm:$0xf]
  %v1045 = vld [vmem:[%s2 + $0x75c] sm:$0xf]
  %v1046 = vld [vmem:[%s2 + $0x760] sm:$0xf]
  %v1047 = vld [vmem:[%s2 + $0x764] sm:$0xf]
  %v1048 = vld [vmem:[%s2 + $0x768] sm:$0xf]
  %v1049 = vld [vmem:[%s2 + $0x76c] sm:$0xf]
  %v1050 = vld [vmem:[%s2 + $0x770] sm:$0xf]
  %v1051 = vld [vmem:[%s2 + $0x774] sm:$0xf]
  %v1052 = vld [vmem:[%s2 + $0x778] sm:$0xf]
  %v1053 = vld [vmem:[%s2 + $0x77c] sm:$0xf]
  %v1054 = vld [vmem:[%s2 + $0x780] sm:$0xf]
  %v1055 = vld [vmem:[%s2 + $0x784] sm:$0xf]
  %v1056 = vld [vmem:[%s2 + $0x788] sm:$0xf]
  %v1057 = vld [vmem:[%s2 + $0x78c] sm:$0xf]
  %v1058 = vld [vmem:[%s2 + $0x790] sm:$0xf]
  %v1059 = vld [vmem:[%s2 + $0x794] sm:$0xf]
  %v1060 = vld [vmem:[%s2 + $0x798] sm:$0xf]
  %v1061 = vld [vmem:[%s2 + $0x79c] sm:$0xf]
  %v1062 = vld [vmem:[%s2 + $0x7a0] sm:$0xf]
  %v1063 = vld [vmem:[%s2 + $0x7a4] sm:$0xf]
  %v1064 = vld [vmem:[%s2 + $0x7a8] sm:$0xf]
  %v1065 = vld [vmem:[%s2 + $0x7ac] sm:$0xf]
  %v1066 = vld [vmem:[%s2 + $0x7b0] sm:$0xf]
  %v1067 = vld [vmem:[%s2 + $0x7b4] sm:$0xf]
  %v1068 = vld [vmem:[%s2 + $0x7b8] sm:$0xf]
  %v1069 = vld [vmem:[%s2 + $0x7bc] sm:$0xf]
  %v1070 = vld [vmem:[%s2 + $0x7c0] sm:$0xf]
  %v1071 = vld [vmem:[%s2 + $0x7c4] sm:$0xf]
  %v1072 = vld [vmem:[%s2 + $0x7c8] sm:$0xf]
  %v1073 = vld [vmem:[%s2 + $0x7cc] sm:$0xf]
  %v1074 = vld [vmem:[%s2 + $0x7d0] sm:$0xf]
  %v1075 = vld [vmem:[%s2 + $0x7d4] sm:$0xf]
  %v1076 = vld [vmem:[%s2 + $0x7d8] sm:$0xf]
  %v1077 = vld [vmem:[%s2 + $0x7dc] sm:$0xf]
  %v1078 = vld [vmem:[%s2 + $0x7e0] sm:$0xf]
  %v1079 = vld [vmem:[%s2 + $0x7e4] sm:$0xf]
  %v1080 = vld [vmem:[%s2 + $0x7e8] sm:$0xf]
  %v1081 = vld [vmem:[%s2 + $0x7ec] sm:$0xf]
  %v1082 = vld [vmem:[%s2 + $0x7f0] sm:$0xf]
  %v1083 = vld [vmem:[%s2 + $0x7f4] sm:$0xf]
  %v1084 = vld [vmem:[%s2 + $0x7f8] sm:$0xf]
  %v1085 = vld [vmem:[%s2 + $0x7fc] sm:$0xf]
  %1087 = vset.pattern.permute.xlu0 0
  %1088 = vperm.xlu0 %1087, %v30
  %v1089 = vpop.permute.xlu0 %1088
  %v1092 = vunpack.c.l.s4 839922192
  %v1093 = vunpack.c.0.s8 %v1092
  %v1094 = vlaneseq
  %v1095 = vshrl.u32 %v1094, 7
  %v1096 = vsub.s32 %v1093, %v1095
  %v1097 = vrot.slane %v1089, %v1096
  %1099 = vset.pattern.permute.xlu0 0
  %1100 = vperm.xlu0 %1099, %v31
  %v1101 = vpop.permute.xlu0 %1100
  %v1104 = vunpack.c.l.s4 839922192
  %v1105 = vunpack.c.0.s8 %v1104
  %v1106 = vlaneseq
  %v1107 = vshrl.u32 %v1106, 7
  %v1108 = vsub.s32 %v1105, %v1107
  %v1109 = vrot.slane %v1101, %v1108
  %1111 = vset.pattern.permute.xlu0 0
  %1112 = vperm.xlu0 %1111, %v32
  %v1113 = vpop.permute.xlu0 %1112
  %v1116 = vunpack.c.l.s4 839922192
  %v1117 = vunpack.c.0.s8 %v1116
  %v1118 = vlaneseq
  %v1119 = vshrl.u32 %v1118, 7
  %v1120 = vsub.s32 %v1117, %v1119
  %v1121 = vrot.slane %v1113, %v1120
  %1123 = vset.pattern.permute.xlu0 0
  %1124 = vperm.xlu0 %1123, %v33
  %v1125 = vpop.permute.xlu0 %1124
  %v1128 = vunpack.c.l.s4 839922192
  %v1129 = vunpack.c.0.s8 %v1128
  %v1130 = vlaneseq
  %v1131 = vshrl.u32 %v1130, 7
  %v1132 = vsub.s32 %v1129, %v1131
  %v1133 = vrot.slane %v1125, %v1132
  %1135 = vset.pattern.permute.xlu0 0
  %1136 = vperm.xlu0 %1135, %v34
  %v1137 = vpop.permute.xlu0 %1136
  %v1140 = vunpack.c.l.s4 839922192
  %v1141 = vunpack.c.0.s8 %v1140
  %v1142 = vlaneseq
  %v1143 = vshrl.u32 %v1142, 7
  %v1144 = vsub.s32 %v1141, %v1143
  %v1145 = vrot.slane %v1137, %v1144
  %1147 = vset.pattern.permute.xlu0 0
  %1148 = vperm.xlu0 %1147, %v35
  %v1149 = vpop.permute.xlu0 %1148
  %v1152 = vunpack.c.l.s4 839922192
  %v1153 = vunpack.c.0.s8 %v1152
  %v1154 = vlaneseq
  %v1155 = vshrl.u32 %v1154, 7
  %v1156 = vsub.s32 %v1153, %v1155
  %v1157 = vrot.slane %v1149, %v1156
  %1159 = vset.pattern.permute.xlu0 0
  %1160 = vperm.xlu0 %1159, %v36
  %v1161 = vpop.permute.xlu0 %1160
  %v1164 = vunpack.c.l.s4 839922192
  %v1165 = vunpack.c.0.s8 %v1164
  %v1166 = vlaneseq
  %v1167 = vshrl.u32 %v1166, 7
  %v1168 = vsub.s32 %v1165, %v1167
  %v1169 = vrot.slane %v1161, %v1168
  %1171 = vset.pattern.permute.xlu0 0
  %1172 = vperm.xlu0 %1171, %v37
  %v1173 = vpop.permute.xlu0 %1172
  %v1176 = vunpack.c.l.s4 839922192
  %v1177 = vunpack.c.0.s8 %v1176
  %v1178 = vlaneseq
  %v1179 = vshrl.u32 %v1178, 7
  %v1180 = vsub.s32 %v1177, %v1179
  %v1181 = vrot.slane %v1173, %v1180
  %1183 = vset.pattern.permute.xlu0 0
  %1184 = vperm.xlu0 %1183, %v38
  %v1185 = vpop.permute.xlu0 %1184
  %v1188 = vunpack.c.l.s4 839922192
  %v1189 = vunpack.c.0.s8 %v1188
  %v1190 = vlaneseq
  %v1191 = vshrl.u32 %v1190, 7
  %v1192 = vsub.s32 %v1189, %v1191
  %v1193 = vrot.slane %v1185, %v1192
  %1195 = vset.pattern.permute.xlu0 0
  %1196 = vperm.xlu0 %1195, %v39
  %v1197 = vpop.permute.xlu0 %1196
  %v1200 = vunpack.c.l.s4 839922192
  %v1201 = vunpack.c.0.s8 %v1200
  %v1202 = vlaneseq
  %v1203 = vshrl.u32 %v1202, 7
  %v1204 = vsub.s32 %v1201, %v1203
  %v1205 = vrot.slane %v1197, %v1204
  %1207 = vset.pattern.permute.xlu0 0
  %1208 = vperm.xlu0 %1207, %v40
  %v1209 = vpop.permute.xlu0 %1208
  %v1212 = vunpack.c.l.s4 839922192
  %v1213 = vunpack.c.0.s8 %v1212
  %v1214 = vlaneseq
  %v1215 = vshrl.u32 %v1214, 7
  %v1216 = vsub.s32 %v1213, %v1215
  %v1217 = vrot.slane %v1209, %v1216
  %1219 = vset.pattern.permute.xlu0 0
  %1220 = vperm.xlu0 %1219, %v41
  %v1221 = vpop.permute.xlu0 %1220
  %v1224 = vunpack.c.l.s4 839922192
  %v1225 = vunpack.c.0.s8 %v1224
  %v1226 = vlaneseq
  %v1227 = vshrl.u32 %v1226, 7
  %v1228 = vsub.s32 %v1225, %v1227
  %v1229 = vrot.slane %v1221, %v1228
  %1231 = vset.pattern.permute.xlu0 0
  %1232 = vperm.xlu0 %1231, %v42
  %v1233 = vpop.permute.xlu0 %1232
  %v1236 = vunpack.c.l.s4 839922192
  %v1237 = vunpack.c.0.s8 %v1236
  %v1238 = vlaneseq
  %v1239 = vshrl.u32 %v1238, 7
  %v1240 = vsub.s32 %v1237, %v1239
  %v1241 = vrot.slane %v1233, %v1240
  %1243 = vset.pattern.permute.xlu0 0
  %1244 = vperm.xlu0 %1243, %v43
  %v1245 = vpop.permute.xlu0 %1244
  %v1248 = vunpack.c.l.s4 839922192
  %v1249 = vunpack.c.0.s8 %v1248
  %v1250 = vlaneseq
  %v1251 = vshrl.u32 %v1250, 7
  %v1252 = vsub.s32 %v1249, %v1251
  %v1253 = vrot.slane %v1245, %v1252
  %1255 = vset.pattern.permute.xlu0 0
  %1256 = vperm.xlu0 %1255, %v44
  %v1257 = vpop.permute.xlu0 %1256
  %v1260 = vunpack.c.l.s4 839922192
  %v1261 = vunpack.c.0.s8 %v1260
  %v1262 = vlaneseq
  %v1263 = vshrl.u32 %v1262, 7
  %v1264 = vsub.s32 %v1261, %v1263
  %v1265 = vrot.slane %v1257, %v1264
  %1267 = vset.pattern.permute.xlu0 0
  %1268 = vperm.xlu0 %1267, %v45
  %v1269 = vpop.permute.xlu0 %1268
  %v1272 = vunpack.c.l.s4 839922192
  %v1273 = vunpack.c.0.s8 %v1272
  %v1274 = vlaneseq
  %v1275 = vshrl.u32 %v1274, 7
  %v1276 = vsub.s32 %v1273, %v1275
  %v1277 = vrot.slane %v1269, %v1276
  %1279 = vset.pattern.permute.xlu0 0
  %1280 = vperm.xlu0 %1279, %v46
  %v1281 = vpop.permute.xlu0 %1280
  %v1284 = vunpack.c.l.s4 839922192
  %v1285 = vunpack.c.0.s8 %v1284
  %v1286 = vlaneseq
  %v1287 = vshrl.u32 %v1286, 7
  %v1288 = vsub.s32 %v1285, %v1287
  %v1289 = vrot.slane %v1281, %v1288
  %1291 = vset.pattern.permute.xlu0 0
  %1292 = vperm.xlu0 %1291, %v47
  %v1293 = vpop.permute.xlu0 %1292
  %v1296 = vunpack.c.l.s4 839922192
  %v1297 = vunpack.c.0.s8 %v1296
  %v1298 = vlaneseq
  %v1299 = vshrl.u32 %v1298, 7
  %v1300 = vsub.s32 %v1297, %v1299
  %v1301 = vrot.slane %v1293, %v1300
  %1303 = vset.pattern.permute.xlu0 0
  %1304 = vperm.xlu0 %1303, %v48
  %v1305 = vpop.permute.xlu0 %1304
  %v1308 = vunpack.c.l.s4 839922192
  %v1309 = vunpack.c.0.s8 %v1308
  %v1310 = vlaneseq
  %v1311 = vshrl.u32 %v1310, 7
  %v1312 = vsub.s32 %v1309, %v1311
  %v1313 = vrot.slane %v1305, %v1312
  %1315 = vset.pattern.permute.xlu0 0
  %1316 = vperm.xlu0 %1315, %v49
  %v1317 = vpop.permute.xlu0 %1316
  %v1320 = vunpack.c.l.s4 839922192
  %v1321 = vunpack.c.0.s8 %v1320
  %v1322 = vlaneseq
  %v1323 = vshrl.u32 %v1322, 7
  %v1324 = vsub.s32 %v1321, %v1323
  %v1325 = vrot.slane %v1317, %v1324
  %1327 = vset.pattern.permute.xlu0 0
  %1328 = vperm.xlu0 %1327, %v50
  %v1329 = vpop.permute.xlu0 %1328
  %v1332 = vunpack.c.l.s4 839922192
  %v1333 = vunpack.c.0.s8 %v1332
  %v1334 = vlaneseq
  %v1335 = vshrl.u32 %v1334, 7
  %v1336 = vsub.s32 %v1333, %v1335
  %v1337 = vrot.slane %v1329, %v1336
  %1339 = vset.pattern.permute.xlu0 0
  %1340 = vperm.xlu0 %1339, %v51
  %v1341 = vpop.permute.xlu0 %1340
  %v1344 = vunpack.c.l.s4 839922192
  %v1345 = vunpack.c.0.s8 %v1344
  %v1346 = vlaneseq
  %v1347 = vshrl.u32 %v1346, 7
  %v1348 = vsub.s32 %v1345, %v1347
  %v1349 = vrot.slane %v1341, %v1348
  %1351 = vset.pattern.permute.xlu0 0
  %1352 = vperm.xlu0 %1351, %v52
  %v1353 = vpop.permute.xlu0 %1352
  %v1356 = vunpack.c.l.s4 839922192
  %v1357 = vunpack.c.0.s8 %v1356
  %v1358 = vlaneseq
  %v1359 = vshrl.u32 %v1358, 7
  %v1360 = vsub.s32 %v1357, %v1359
  %v1361 = vrot.slane %v1353, %v1360
  %1363 = vset.pattern.permute.xlu0 0
  %1364 = vperm.xlu0 %1363, %v53
  %v1365 = vpop.permute.xlu0 %1364
  %v1368 = vunpack.c.l.s4 839922192
  %v1369 = vunpack.c.0.s8 %v1368
  %v1370 = vlaneseq
  %v1371 = vshrl.u32 %v1370, 7
  %v1372 = vsub.s32 %v1369, %v1371
  %v1373 = vrot.slane %v1365, %v1372
  %1375 = vset.pattern.permute.xlu0 0
  %1376 = vperm.xlu0 %1375, %v54
  %v1377 = vpop.permute.xlu0 %1376
  %v1380 = vunpack.c.l.s4 839922192
  %v1381 = vunpack.c.0.s8 %v1380
  %v1382 = vlaneseq
  %v1383 = vshrl.u32 %v1382, 7
  %v1384 = vsub.s32 %v1381, %v1383
  %v1385 = vrot.slane %v1377, %v1384
  %1387 = vset.pattern.permute.xlu0 0
  %1388 = vperm.xlu0 %1387, %v55
  %v1389 = vpop.permute.xlu0 %1388
  %v1392 = vunpack.c.l.s4 839922192
  %v1393 = vunpack.c.0.s8 %v1392
  %v1394 = vlaneseq
  %v1395 = vshrl.u32 %v1394, 7
  %v1396 = vsub.s32 %v1393, %v1395
  %v1397 = vrot.slane %v1389, %v1396
  %1399 = vset.pattern.permute.xlu0 0
  %1400 = vperm.xlu0 %1399, %v56
  %v1401 = vpop.permute.xlu0 %1400
  %v1404 = vunpack.c.l.s4 839922192
  %v1405 = vunpack.c.0.s8 %v1404
  %v1406 = vlaneseq
  %v1407 = vshrl.u32 %v1406, 7
  %v1408 = vsub.s32 %v1405, %v1407
  %v1409 = vrot.slane %v1401, %v1408
  %1411 = vset.pattern.permute.xlu0 0
  %1412 = vperm.xlu0 %1411, %v57
  %v1413 = vpop.permute.xlu0 %1412
  %v1416 = vunpack.c.l.s4 839922192
  %v1417 = vunpack.c.0.s8 %v1416
  %v1418 = vlaneseq
  %v1419 = vshrl.u32 %v1418, 7
  %v1420 = vsub.s32 %v1417, %v1419
  %v1421 = vrot.slane %v1413, %v1420
  %1423 = vset.pattern.permute.xlu0 0
  %1424 = vperm.xlu0 %1423, %v58
  %v1425 = vpop.permute.xlu0 %1424
  %v1428 = vunpack.c.l.s4 839922192
  %v1429 = vunpack.c.0.s8 %v1428
  %v1430 = vlaneseq
  %v1431 = vshrl.u32 %v1430, 7
  %v1432 = vsub.s32 %v1429, %v1431
  %v1433 = vrot.slane %v1425, %v1432
  %1435 = vset.pattern.permute.xlu0 0
  %1436 = vperm.xlu0 %1435, %v59
  %v1437 = vpop.permute.xlu0 %1436
  %v1440 = vunpack.c.l.s4 839922192
  %v1441 = vunpack.c.0.s8 %v1440
  %v1442 = vlaneseq
  %v1443 = vshrl.u32 %v1442, 7
  %v1444 = vsub.s32 %v1441, %v1443
  %v1445 = vrot.slane %v1437, %v1444
  %1447 = vset.pattern.permute.xlu0 0
  %1448 = vperm.xlu0 %1447, %v60
  %v1449 = vpop.permute.xlu0 %1448
  %v1452 = vunpack.c.l.s4 839922192
  %v1453 = vunpack.c.0.s8 %v1452
  %v1454 = vlaneseq
  %v1455 = vshrl.u32 %v1454, 7
  %v1456 = vsub.s32 %v1453, %v1455
  %v1457 = vrot.slane %v1449, %v1456
  %1459 = vset.pattern.permute.xlu0 0
  %1460 = vperm.xlu0 %1459, %v61
  %v1461 = vpop.permute.xlu0 %1460
  %v1464 = vunpack.c.l.s4 839922192
  %v1465 = vunpack.c.0.s8 %v1464
  %v1466 = vlaneseq
  %v1467 = vshrl.u32 %v1466, 7
  %v1468 = vsub.s32 %v1465, %v1467
  %v1469 = vrot.slane %v1461, %v1468
  %1471 = vset.pattern.permute.xlu0 0
  %1472 = vperm.xlu0 %1471, %v62
  %v1473 = vpop.permute.xlu0 %1472
  %v1476 = vunpack.c.l.s4 839922192
  %v1477 = vunpack.c.0.s8 %v1476
  %v1478 = vlaneseq
  %v1479 = vshrl.u32 %v1478, 7
  %v1480 = vsub.s32 %v1477, %v1479
  %v1481 = vrot.slane %v1473, %v1480
  %1483 = vset.pattern.permute.xlu0 0
  %1484 = vperm.xlu0 %1483, %v63
  %v1485 = vpop.permute.xlu0 %1484
  %v1488 = vunpack.c.l.s4 839922192
  %v1489 = vunpack.c.0.s8 %v1488
  %v1490 = vlaneseq
  %v1491 = vshrl.u32 %v1490, 7
  %v1492 = vsub.s32 %v1489, %v1491
  %v1493 = vrot.slane %v1485, %v1492
  %1495 = vset.pattern.permute.xlu0 0
  %1496 = vperm.xlu0 %1495, %v64
  %v1497 = vpop.permute.xlu0 %1496
  %v1500 = vunpack.c.l.s4 839922192
  %v1501 = vunpack.c.0.s8 %v1500
  %v1502 = vlaneseq
  %v1503 = vshrl.u32 %v1502, 7
  %v1504 = vsub.s32 %v1501, %v1503
  %v1505 = vrot.slane %v1497, %v1504
  %1507 = vset.pattern.permute.xlu0 0
  %1508 = vperm.xlu0 %1507, %v65
  %v1509 = vpop.permute.xlu0 %1508
  %v1512 = vunpack.c.l.s4 839922192
  %v1513 = vunpack.c.0.s8 %v1512
  %v1514 = vlaneseq
  %v1515 = vshrl.u32 %v1514, 7
  %v1516 = vsub.s32 %v1513, %v1515
  %v1517 = vrot.slane %v1509, %v1516
  %1519 = vset.pattern.permute.xlu0 0
  %1520 = vperm.xlu0 %1519, %v66
  %v1521 = vpop.permute.xlu0 %1520
  %v1524 = vunpack.c.l.s4 839922192
  %v1525 = vunpack.c.0.s8 %v1524
  %v1526 = vlaneseq
  %v1527 = vshrl.u32 %v1526, 7
  %v1528 = vsub.s32 %v1525, %v1527
  %v1529 = vrot.slane %v1521, %v1528
  %1531 = vset.pattern.permute.xlu0 0
  %1532 = vperm.xlu0 %1531, %v67
  %v1533 = vpop.permute.xlu0 %1532
  %v1536 = vunpack.c.l.s4 839922192
  %v1537 = vunpack.c.0.s8 %v1536
  %v1538 = vlaneseq
  %v1539 = vshrl.u32 %v1538, 7
  %v1540 = vsub.s32 %v1537, %v1539
  %v1541 = vrot.slane %v1533, %v1540
  %1543 = vset.pattern.permute.xlu0 0
  %1544 = vperm.xlu0 %1543, %v68
  %v1545 = vpop.permute.xlu0 %1544
  %v1548 = vunpack.c.l.s4 839922192
  %v1549 = vunpack.c.0.s8 %v1548
  %v1550 = vlaneseq
  %v1551 = vshrl.u32 %v1550, 7
  %v1552 = vsub.s32 %v1549, %v1551
  %v1553 = vrot.slane %v1545, %v1552
  %1555 = vset.pattern.permute.xlu0 0
  %1556 = vperm.xlu0 %1555, %v69
  %v1557 = vpop.permute.xlu0 %1556
  %v1560 = vunpack.c.l.s4 839922192
  %v1561 = vunpack.c.0.s8 %v1560
  %v1562 = vlaneseq
  %v1563 = vshrl.u32 %v1562, 7
  %v1564 = vsub.s32 %v1561, %v1563
  %v1565 = vrot.slane %v1557, %v1564
  %1567 = vset.pattern.permute.xlu0 0
  %1568 = vperm.xlu0 %1567, %v70
  %v1569 = vpop.permute.xlu0 %1568
  %v1572 = vunpack.c.l.s4 839922192
  %v1573 = vunpack.c.0.s8 %v1572
  %v1574 = vlaneseq
  %v1575 = vshrl.u32 %v1574, 7
  %v1576 = vsub.s32 %v1573, %v1575
  %v1577 = vrot.slane %v1569, %v1576
  %1579 = vset.pattern.permute.xlu0 0
  %1580 = vperm.xlu0 %1579, %v71
  %v1581 = vpop.permute.xlu0 %1580
  %v1584 = vunpack.c.l.s4 839922192
  %v1585 = vunpack.c.0.s8 %v1584
  %v1586 = vlaneseq
  %v1587 = vshrl.u32 %v1586, 7
  %v1588 = vsub.s32 %v1585, %v1587
  %v1589 = vrot.slane %v1581, %v1588
  %1591 = vset.pattern.permute.xlu0 0
  %1592 = vperm.xlu0 %1591, %v72
  %v1593 = vpop.permute.xlu0 %1592
  %v1596 = vunpack.c.l.s4 839922192
  %v1597 = vunpack.c.0.s8 %v1596
  %v1598 = vlaneseq
  %v1599 = vshrl.u32 %v1598, 7
  %v1600 = vsub.s32 %v1597, %v1599
  %v1601 = vrot.slane %v1593, %v1600
  %1603 = vset.pattern.permute.xlu0 0
  %1604 = vperm.xlu0 %1603, %v73
  %v1605 = vpop.permute.xlu0 %1604
  %v1608 = vunpack.c.l.s4 839922192
  %v1609 = vunpack.c.0.s8 %v1608
  %v1610 = vlaneseq
  %v1611 = vshrl.u32 %v1610, 7
  %v1612 = vsub.s32 %v1609, %v1611
  %v1613 = vrot.slane %v1605, %v1612
  %1615 = vset.pattern.permute.xlu0 0
  %1616 = vperm.xlu0 %1615, %v74
  %v1617 = vpop.permute.xlu0 %1616
  %v1620 = vunpack.c.l.s4 839922192
  %v1621 = vunpack.c.0.s8 %v1620
  %v1622 = vlaneseq
  %v1623 = vshrl.u32 %v1622, 7
  %v1624 = vsub.s32 %v1621, %v1623
  %v1625 = vrot.slane %v1617, %v1624
  %1627 = vset.pattern.permute.xlu0 0
  %1628 = vperm.xlu0 %1627, %v75
  %v1629 = vpop.permute.xlu0 %1628
  %v1632 = vunpack.c.l.s4 839922192
  %v1633 = vunpack.c.0.s8 %v1632
  %v1634 = vlaneseq
  %v1635 = vshrl.u32 %v1634, 7
  %v1636 = vsub.s32 %v1633, %v1635
  %v1637 = vrot.slane %v1629, %v1636
  %1639 = vset.pattern.permute.xlu0 0
  %1640 = vperm.xlu0 %1639, %v76
  %v1641 = vpop.permute.xlu0 %1640
  %v1644 = vunpack.c.l.s4 839922192
  %v1645 = vunpack.c.0.s8 %v1644
  %v1646 = vlaneseq
  %v1647 = vshrl.u32 %v1646, 7
  %v1648 = vsub.s32 %v1645, %v1647
  %v1649 = vrot.slane %v1641, %v1648
  %1651 = vset.pattern.permute.xlu0 0
  %1652 = vperm.xlu0 %1651, %v77
  %v1653 = vpop.permute.xlu0 %1652
  %v1656 = vunpack.c.l.s4 839922192
  %v1657 = vunpack.c.0.s8 %v1656
  %v1658 = vlaneseq
  %v1659 = vshrl.u32 %v1658, 7
  %v1660 = vsub.s32 %v1657, %v1659
  %v1661 = vrot.slane %v1653, %v1660
  %1663 = vset.pattern.permute.xlu0 0
  %1664 = vperm.xlu0 %1663, %v78
  %v1665 = vpop.permute.xlu0 %1664
  %v1668 = vunpack.c.l.s4 839922192
  %v1669 = vunpack.c.0.s8 %v1668
  %v1670 = vlaneseq
  %v1671 = vshrl.u32 %v1670, 7
  %v1672 = vsub.s32 %v1669, %v1671
  %v1673 = vrot.slane %v1665, %v1672
  %1675 = vset.pattern.permute.xlu0 0
  %1676 = vperm.xlu0 %1675, %v79
  %v1677 = vpop.permute.xlu0 %1676
  %v1680 = vunpack.c.l.s4 839922192
  %v1681 = vunpack.c.0.s8 %v1680
  %v1682 = vlaneseq
  %v1683 = vshrl.u32 %v1682, 7
  %v1684 = vsub.s32 %v1681, %v1683
  %v1685 = vrot.slane %v1677, %v1684
  %1687 = vset.pattern.permute.xlu0 0
  %1688 = vperm.xlu0 %1687, %v80
  %v1689 = vpop.permute.xlu0 %1688
  %v1692 = vunpack.c.l.s4 839922192
  %v1693 = vunpack.c.0.s8 %v1692
  %v1694 = vlaneseq
  %v1695 = vshrl.u32 %v1694, 7
  %v1696 = vsub.s32 %v1693, %v1695
  %v1697 = vrot.slane %v1689, %v1696
  %1699 = vset.pattern.permute.xlu0 0
  %1700 = vperm.xlu0 %1699, %v81
  %v1701 = vpop.permute.xlu0 %1700
  %v1704 = vunpack.c.l.s4 839922192
  %v1705 = vunpack.c.0.s8 %v1704
  %v1706 = vlaneseq
  %v1707 = vshrl.u32 %v1706, 7
  %v1708 = vsub.s32 %v1705, %v1707
  %v1709 = vrot.slane %v1701, %v1708
  %1711 = vset.pattern.permute.xlu0 0
  %1712 = vperm.xlu0 %1711, %v82
  %v1713 = vpop.permute.xlu0 %1712
  %v1716 = vunpack.c.l.s4 839922192
  %v1717 = vunpack.c.0.s8 %v1716
  %v1718 = vlaneseq
  %v1719 = vshrl.u32 %v1718, 7
  %v1720 = vsub.s32 %v1717, %v1719
  %v1721 = vrot.slane %v1713, %v1720
  %1723 = vset.pattern.permute.xlu0 0
  %1724 = vperm.xlu0 %1723, %v83
  %v1725 = vpop.permute.xlu0 %1724
  %v1728 = vunpack.c.l.s4 839922192
  %v1729 = vunpack.c.0.s8 %v1728
  %v1730 = vlaneseq
  %v1731 = vshrl.u32 %v1730, 7
  %v1732 = vsub.s32 %v1729, %v1731
  %v1733 = vrot.slane %v1725, %v1732
  %1735 = vset.pattern.permute.xlu0 0
  %1736 = vperm.xlu0 %1735, %v84
  %v1737 = vpop.permute.xlu0 %1736
  %v1740 = vunpack.c.l.s4 839922192
  %v1741 = vunpack.c.0.s8 %v1740
  %v1742 = vlaneseq
  %v1743 = vshrl.u32 %v1742, 7
  %v1744 = vsub.s32 %v1741, %v1743
  %v1745 = vrot.slane %v1737, %v1744
  %1747 = vset.pattern.permute.xlu0 0
  %1748 = vperm.xlu0 %1747, %v85
  %v1749 = vpop.permute.xlu0 %1748
  %v1752 = vunpack.c.l.s4 839922192
  %v1753 = vunpack.c.0.s8 %v1752
  %v1754 = vlaneseq
  %v1755 = vshrl.u32 %v1754, 7
  %v1756 = vsub.s32 %v1753, %v1755
  %v1757 = vrot.slane %v1749, %v1756
  %1759 = vset.pattern.permute.xlu0 0
  %1760 = vperm.xlu0 %1759, %v86
  %v1761 = vpop.permute.xlu0 %1760
  %v1764 = vunpack.c.l.s4 839922192
  %v1765 = vunpack.c.0.s8 %v1764
  %v1766 = vlaneseq
  %v1767 = vshrl.u32 %v1766, 7
  %v1768 = vsub.s32 %v1765, %v1767
  %v1769 = vrot.slane %v1761, %v1768
  %1771 = vset.pattern.permute.xlu0 0
  %1772 = vperm.xlu0 %1771, %v87
  %v1773 = vpop.permute.xlu0 %1772
  %v1776 = vunpack.c.l.s4 839922192
  %v1777 = vunpack.c.0.s8 %v1776
  %v1778 = vlaneseq
  %v1779 = vshrl.u32 %v1778, 7
  %v1780 = vsub.s32 %v1777, %v1779
  %v1781 = vrot.slane %v1773, %v1780
  %1783 = vset.pattern.permute.xlu0 0
  %1784 = vperm.xlu0 %1783, %v88
  %v1785 = vpop.permute.xlu0 %1784
  %v1788 = vunpack.c.l.s4 839922192
  %v1789 = vunpack.c.0.s8 %v1788
  %v1790 = vlaneseq
  %v1791 = vshrl.u32 %v1790, 7
  %v1792 = vsub.s32 %v1789, %v1791
  %v1793 = vrot.slane %v1785, %v1792
  %1795 = vset.pattern.permute.xlu0 0
  %1796 = vperm.xlu0 %1795, %v89
  %v1797 = vpop.permute.xlu0 %1796
  %v1800 = vunpack.c.l.s4 839922192
  %v1801 = vunpack.c.0.s8 %v1800
  %v1802 = vlaneseq
  %v1803 = vshrl.u32 %v1802, 7
  %v1804 = vsub.s32 %v1801, %v1803
  %v1805 = vrot.slane %v1797, %v1804
  %1807 = vset.pattern.permute.xlu0 0
  %1808 = vperm.xlu0 %1807, %v90
  %v1809 = vpop.permute.xlu0 %1808
  %v1812 = vunpack.c.l.s4 839922192
  %v1813 = vunpack.c.0.s8 %v1812
  %v1814 = vlaneseq
  %v1815 = vshrl.u32 %v1814, 7
  %v1816 = vsub.s32 %v1813, %v1815
  %v1817 = vrot.slane %v1809, %v1816
  %1819 = vset.pattern.permute.xlu0 0
  %1820 = vperm.xlu0 %1819, %v91
  %v1821 = vpop.permute.xlu0 %1820
  %v1824 = vunpack.c.l.s4 839922192
  %v1825 = vunpack.c.0.s8 %v1824
  %v1826 = vlaneseq
  %v1827 = vshrl.u32 %v1826, 7
  %v1828 = vsub.s32 %v1825, %v1827
  %v1829 = vrot.slane %v1821, %v1828
  %1831 = vset.pattern.permute.xlu0 0
  %1832 = vperm.xlu0 %1831, %v92
  %v1833 = vpop.permute.xlu0 %1832
  %v1836 = vunpack.c.l.s4 839922192
  %v1837 = vunpack.c.0.s8 %v1836
  %v1838 = vlaneseq
  %v1839 = vshrl.u32 %v1838, 7
  %v1840 = vsub.s32 %v1837, %v1839
  %v1841 = vrot.slane %v1833, %v1840
  %1843 = vset.pattern.permute.xlu0 0
  %1844 = vperm.xlu0 %1843, %v93
  %v1845 = vpop.permute.xlu0 %1844
  %v1848 = vunpack.c.l.s4 839922192
  %v1849 = vunpack.c.0.s8 %v1848
  %v1850 = vlaneseq
  %v1851 = vshrl.u32 %v1850, 7
  %v1852 = vsub.s32 %v1849, %v1851
  %v1853 = vrot.slane %v1845, %v1852
  %1855 = vset.pattern.permute.xlu0 0
  %1856 = vperm.xlu0 %1855, %v94
  %v1857 = vpop.permute.xlu0 %1856
  %v1860 = vunpack.c.l.s4 839922192
  %v1861 = vunpack.c.0.s8 %v1860
  %v1862 = vlaneseq
  %v1863 = vshrl.u32 %v1862, 7
  %v1864 = vsub.s32 %v1861, %v1863
  %v1865 = vrot.slane %v1857, %v1864
  %1867 = vset.pattern.permute.xlu0 0
  %1868 = vperm.xlu0 %1867, %v95
  %v1869 = vpop.permute.xlu0 %1868
  %v1872 = vunpack.c.l.s4 839922192
  %v1873 = vunpack.c.0.s8 %v1872
  %v1874 = vlaneseq
  %v1875 = vshrl.u32 %v1874, 7
  %v1876 = vsub.s32 %v1873, %v1875
  %v1877 = vrot.slane %v1869, %v1876
  %1879 = vset.pattern.permute.xlu0 0
  %1880 = vperm.xlu0 %1879, %v96
  %v1881 = vpop.permute.xlu0 %1880
  %v1884 = vunpack.c.l.s4 839922192
  %v1885 = vunpack.c.0.s8 %v1884
  %v1886 = vlaneseq
  %v1887 = vshrl.u32 %v1886, 7
  %v1888 = vsub.s32 %v1885, %v1887
  %v1889 = vrot.slane %v1881, %v1888
  %1891 = vset.pattern.permute.xlu0 0
  %1892 = vperm.xlu0 %1891, %v97
  %v1893 = vpop.permute.xlu0 %1892
  %v1896 = vunpack.c.l.s4 839922192
  %v1897 = vunpack.c.0.s8 %v1896
  %v1898 = vlaneseq
  %v1899 = vshrl.u32 %v1898, 7
  %v1900 = vsub.s32 %v1897, %v1899
  %v1901 = vrot.slane %v1893, %v1900
  %1903 = vset.pattern.permute.xlu0 0
  %1904 = vperm.xlu0 %1903, %v98
  %v1905 = vpop.permute.xlu0 %1904
  %v1908 = vunpack.c.l.s4 839922192
  %v1909 = vunpack.c.0.s8 %v1908
  %v1910 = vlaneseq
  %v1911 = vshrl.u32 %v1910, 7
  %v1912 = vsub.s32 %v1909, %v1911
  %v1913 = vrot.slane %v1905, %v1912
  %1915 = vset.pattern.permute.xlu0 0
  %1916 = vperm.xlu0 %1915, %v99
  %v1917 = vpop.permute.xlu0 %1916
  %v1920 = vunpack.c.l.s4 839922192
  %v1921 = vunpack.c.0.s8 %v1920
  %v1922 = vlaneseq
  %v1923 = vshrl.u32 %v1922, 7
  %v1924 = vsub.s32 %v1921, %v1923
  %v1925 = vrot.slane %v1917, %v1924
  %1927 = vset.pattern.permute.xlu0 0
  %1928 = vperm.xlu0 %1927, %v100
  %v1929 = vpop.permute.xlu0 %1928
  %v1932 = vunpack.c.l.s4 839922192
  %v1933 = vunpack.c.0.s8 %v1932
  %v1934 = vlaneseq
  %v1935 = vshrl.u32 %v1934, 7
  %v1936 = vsub.s32 %v1933, %v1935
  %v1937 = vrot.slane %v1929, %v1936
  %1939 = vset.pattern.permute.xlu0 0
  %1940 = vperm.xlu0 %1939, %v101
  %v1941 = vpop.permute.xlu0 %1940
  %v1944 = vunpack.c.l.s4 839922192
  %v1945 = vunpack.c.0.s8 %v1944
  %v1946 = vlaneseq
  %v1947 = vshrl.u32 %v1946, 7
  %v1948 = vsub.s32 %v1945, %v1947
  %v1949 = vrot.slane %v1941, %v1948
  %1951 = vset.pattern.permute.xlu0 0
  %1952 = vperm.xlu0 %1951, %v102
  %v1953 = vpop.permute.xlu0 %1952
  %v1956 = vunpack.c.l.s4 839922192
  %v1957 = vunpack.c.0.s8 %v1956
  %v1958 = vlaneseq
  %v1959 = vshrl.u32 %v1958, 7
  %v1960 = vsub.s32 %v1957, %v1959
  %v1961 = vrot.slane %v1953, %v1960
  %1963 = vset.pattern.permute.xlu0 0
  %1964 = vperm.xlu0 %1963, %v103
  %v1965 = vpop.permute.xlu0 %1964
  %v1968 = vunpack.c.l.s4 839922192
  %v1969 = vunpack.c.0.s8 %v1968
  %v1970 = vlaneseq
  %v1971 = vshrl.u32 %v1970, 7
  %v1972 = vsub.s32 %v1969, %v1971
  %v1973 = vrot.slane %v1965, %v1972
  %1975 = vset.pattern.permute.xlu0 0
  %1976 = vperm.xlu0 %1975, %v104
  %v1977 = vpop.permute.xlu0 %1976
  %v1980 = vunpack.c.l.s4 839922192
  %v1981 = vunpack.c.0.s8 %v1980
  %v1982 = vlaneseq
  %v1983 = vshrl.u32 %v1982, 7
  %v1984 = vsub.s32 %v1981, %v1983
  %v1985 = vrot.slane %v1977, %v1984
  %1987 = vset.pattern.permute.xlu0 0
  %1988 = vperm.xlu0 %1987, %v105
  %v1989 = vpop.permute.xlu0 %1988
  %v1992 = vunpack.c.l.s4 839922192
  %v1993 = vunpack.c.0.s8 %v1992
  %v1994 = vlaneseq
  %v1995 = vshrl.u32 %v1994, 7
  %v1996 = vsub.s32 %v1993, %v1995
  %v1997 = vrot.slane %v1989, %v1996
  %1999 = vset.pattern.permute.xlu0 0
  %2000 = vperm.xlu0 %1999, %v106
  %v2001 = vpop.permute.xlu0 %2000
  %v2004 = vunpack.c.l.s4 839922192
  %v2005 = vunpack.c.0.s8 %v2004
  %v2006 = vlaneseq
  %v2007 = vshrl.u32 %v2006, 7
  %v2008 = vsub.s32 %v2005, %v2007
  %v2009 = vrot.slane %v2001, %v2008
  %2011 = vset.pattern.permute.xlu0 0
  %2012 = vperm.xlu0 %2011, %v107
  %v2013 = vpop.permute.xlu0 %2012
  %v2016 = vunpack.c.l.s4 839922192
  %v2017 = vunpack.c.0.s8 %v2016
  %v2018 = vlaneseq
  %v2019 = vshrl.u32 %v2018, 7
  %v2020 = vsub.s32 %v2017, %v2019
  %v2021 = vrot.slane %v2013, %v2020
  %2023 = vset.pattern.permute.xlu0 0
  %2024 = vperm.xlu0 %2023, %v108
  %v2025 = vpop.permute.xlu0 %2024
  %v2028 = vunpack.c.l.s4 839922192
  %v2029 = vunpack.c.0.s8 %v2028
  %v2030 = vlaneseq
  %v2031 = vshrl.u32 %v2030, 7
  %v2032 = vsub.s32 %v2029, %v2031
  %v2033 = vrot.slane %v2025, %v2032
  %2035 = vset.pattern.permute.xlu0 0
  %2036 = vperm.xlu0 %2035, %v109
  %v2037 = vpop.permute.xlu0 %2036
  %v2040 = vunpack.c.l.s4 839922192
  %v2041 = vunpack.c.0.s8 %v2040
  %v2042 = vlaneseq
  %v2043 = vshrl.u32 %v2042, 7
  %v2044 = vsub.s32 %v2041, %v2043
  %v2045 = vrot.slane %v2037, %v2044
  %2047 = vset.pattern.permute.xlu0 0
  %2048 = vperm.xlu0 %2047, %v110
  %v2049 = vpop.permute.xlu0 %2048
  %v2052 = vunpack.c.l.s4 839922192
  %v2053 = vunpack.c.0.s8 %v2052
  %v2054 = vlaneseq
  %v2055 = vshrl.u32 %v2054, 7
  %v2056 = vsub.s32 %v2053, %v2055
  %v2057 = vrot.slane %v2049, %v2056
  %2059 = vset.pattern.permute.xlu0 0
  %2060 = vperm.xlu0 %2059, %v111
  %v2061 = vpop.permute.xlu0 %2060
  %v2064 = vunpack.c.l.s4 839922192
  %v2065 = vunpack.c.0.s8 %v2064
  %v2066 = vlaneseq
  %v2067 = vshrl.u32 %v2066, 7
  %v2068 = vsub.s32 %v2065, %v2067
  %v2069 = vrot.slane %v2061, %v2068
  %2071 = vset.pattern.permute.xlu0 0
  %2072 = vperm.xlu0 %2071, %v112
  %v2073 = vpop.permute.xlu0 %2072
  %v2076 = vunpack.c.l.s4 839922192
  %v2077 = vunpack.c.0.s8 %v2076
  %v2078 = vlaneseq
  %v2079 = vshrl.u32 %v2078, 7
  %v2080 = vsub.s32 %v2077, %v2079
  %v2081 = vrot.slane %v2073, %v2080
  %2083 = vset.pattern.permute.xlu0 0
  %2084 = vperm.xlu0 %2083, %v113
  %v2085 = vpop.permute.xlu0 %2084
  %v2088 = vunpack.c.l.s4 839922192
  %v2089 = vunpack.c.0.s8 %v2088
  %v2090 = vlaneseq
  %v2091 = vshrl.u32 %v2090, 7
  %v2092 = vsub.s32 %v2089, %v2091
  %v2093 = vrot.slane %v2085, %v2092
  %2095 = vset.pattern.permute.xlu0 0
  %2096 = vperm.xlu0 %2095, %v114
  %v2097 = vpop.permute.xlu0 %2096
  %v2100 = vunpack.c.l.s4 839922192
  %v2101 = vunpack.c.0.s8 %v2100
  %v2102 = vlaneseq
  %v2103 = vshrl.u32 %v2102, 7
  %v2104 = vsub.s32 %v2101, %v2103
  %v2105 = vrot.slane %v2097, %v2104
  %2107 = vset.pattern.permute.xlu0 0
  %2108 = vperm.xlu0 %2107, %v115
  %v2109 = vpop.permute.xlu0 %2108
  %v2112 = vunpack.c.l.s4 839922192
  %v2113 = vunpack.c.0.s8 %v2112
  %v2114 = vlaneseq
  %v2115 = vshrl.u32 %v2114, 7
  %v2116 = vsub.s32 %v2113, %v2115
  %v2117 = vrot.slane %v2109, %v2116
  %2119 = vset.pattern.permute.xlu0 0
  %2120 = vperm.xlu0 %2119, %v116
  %v2121 = vpop.permute.xlu0 %2120
  %v2124 = vunpack.c.l.s4 839922192
  %v2125 = vunpack.c.0.s8 %v2124
  %v2126 = vlaneseq
  %v2127 = vshrl.u32 %v2126, 7
  %v2128 = vsub.s32 %v2125, %v2127
  %v2129 = vrot.slane %v2121, %v2128
  %2131 = vset.pattern.permute.xlu0 0
  %2132 = vperm.xlu0 %2131, %v117
  %v2133 = vpop.permute.xlu0 %2132
  %v2136 = vunpack.c.l.s4 839922192
  %v2137 = vunpack.c.0.s8 %v2136
  %v2138 = vlaneseq
  %v2139 = vshrl.u32 %v2138, 7
  %v2140 = vsub.s32 %v2137, %v2139
  %v2141 = vrot.slane %v2133, %v2140
  %2143 = vset.pattern.permute.xlu0 0
  %2144 = vperm.xlu0 %2143, %v118
  %v2145 = vpop.permute.xlu0 %2144
  %v2148 = vunpack.c.l.s4 839922192
  %v2149 = vunpack.c.0.s8 %v2148
  %v2150 = vlaneseq
  %v2151 = vshrl.u32 %v2150, 7
  %v2152 = vsub.s32 %v2149, %v2151
  %v2153 = vrot.slane %v2145, %v2152
  %2155 = vset.pattern.permute.xlu0 0
  %2156 = vperm.xlu0 %2155, %v119
  %v2157 = vpop.permute.xlu0 %2156
  %v2160 = vunpack.c.l.s4 839922192
  %v2161 = vunpack.c.0.s8 %v2160
  %v2162 = vlaneseq
  %v2163 = vshrl.u32 %v2162, 7
  %v2164 = vsub.s32 %v2161, %v2163
  %v2165 = vrot.slane %v2157, %v2164
  %2167 = vset.pattern.permute.xlu0 0
  %2168 = vperm.xlu0 %2167, %v120
  %v2169 = vpop.permute.xlu0 %2168
  %v2172 = vunpack.c.l.s4 839922192
  %v2173 = vunpack.c.0.s8 %v2172
  %v2174 = vlaneseq
  %v2175 = vshrl.u32 %v2174, 7
  %v2176 = vsub.s32 %v2173, %v2175
  %v2177 = vrot.slane %v2169, %v2176
  %2179 = vset.pattern.permute.xlu0 0
  %2180 = vperm.xlu0 %2179, %v121
  %v2181 = vpop.permute.xlu0 %2180
  %v2184 = vunpack.c.l.s4 839922192
  %v2185 = vunpack.c.0.s8 %v2184
  %v2186 = vlaneseq
  %v2187 = vshrl.u32 %v2186, 7
  %v2188 = vsub.s32 %v2185, %v2187
  %v2189 = vrot.slane %v2181, %v2188
  %2191 = vset.pattern.permute.xlu0 0
  %2192 = vperm.xlu0 %2191, %v122
  %v2193 = vpop.permute.xlu0 %2192
  %v2196 = vunpack.c.l.s4 839922192
  %v2197 = vunpack.c.0.s8 %v2196
  %v2198 = vlaneseq
  %v2199 = vshrl.u32 %v2198, 7
  %v2200 = vsub.s32 %v2197, %v2199
  %v2201 = vrot.slane %v2193, %v2200
  %2203 = vset.pattern.permute.xlu0 0
  %2204 = vperm.xlu0 %2203, %v123
  %v2205 = vpop.permute.xlu0 %2204
  %v2208 = vunpack.c.l.s4 839922192
  %v2209 = vunpack.c.0.s8 %v2208
  %v2210 = vlaneseq
  %v2211 = vshrl.u32 %v2210, 7
  %v2212 = vsub.s32 %v2209, %v2211
  %v2213 = vrot.slane %v2205, %v2212
  %2215 = vset.pattern.permute.xlu0 0
  %2216 = vperm.xlu0 %2215, %v124
  %v2217 = vpop.permute.xlu0 %2216
  %v2220 = vunpack.c.l.s4 839922192
  %v2221 = vunpack.c.0.s8 %v2220
  %v2222 = vlaneseq
  %v2223 = vshrl.u32 %v2222, 7
  %v2224 = vsub.s32 %v2221, %v2223
  %v2225 = vrot.slane %v2217, %v2224
  %2227 = vset.pattern.permute.xlu0 0
  %2228 = vperm.xlu0 %2227, %v125
  %v2229 = vpop.permute.xlu0 %2228
  %v2232 = vunpack.c.l.s4 839922192
  %v2233 = vunpack.c.0.s8 %v2232
  %v2234 = vlaneseq
  %v2235 = vshrl.u32 %v2234, 7
  %v2236 = vsub.s32 %v2233, %v2235
  %v2237 = vrot.slane %v2229, %v2236
  %2239 = vset.pattern.permute.xlu0 0
  %2240 = vperm.xlu0 %2239, %v126
  %v2241 = vpop.permute.xlu0 %2240
  %v2244 = vunpack.c.l.s4 839922192
  %v2245 = vunpack.c.0.s8 %v2244
  %v2246 = vlaneseq
  %v2247 = vshrl.u32 %v2246, 7
  %v2248 = vsub.s32 %v2245, %v2247
  %v2249 = vrot.slane %v2241, %v2248
  %2251 = vset.pattern.permute.xlu0 0
  %2252 = vperm.xlu0 %2251, %v127
  %v2253 = vpop.permute.xlu0 %2252
  %v2256 = vunpack.c.l.s4 839922192
  %v2257 = vunpack.c.0.s8 %v2256
  %v2258 = vlaneseq
  %v2259 = vshrl.u32 %v2258, 7
  %v2260 = vsub.s32 %v2257, %v2259
  %v2261 = vrot.slane %v2253, %v2260
  %2263 = vset.pattern.permute.xlu0 0
  %2264 = vperm.xlu0 %2263, %v128
  %v2265 = vpop.permute.xlu0 %2264
  %v2268 = vunpack.c.l.s4 839922192
  %v2269 = vunpack.c.0.s8 %v2268
  %v2270 = vlaneseq
  %v2271 = vshrl.u32 %v2270, 7
  %v2272 = vsub.s32 %v2269, %v2271
  %v2273 = vrot.slane %v2265, %v2272
  %2275 = vset.pattern.permute.xlu0 0
  %2276 = vperm.xlu0 %2275, %v129
  %v2277 = vpop.permute.xlu0 %2276
  %v2280 = vunpack.c.l.s4 839922192
  %v2281 = vunpack.c.0.s8 %v2280
  %v2282 = vlaneseq
  %v2283 = vshrl.u32 %v2282, 7
  %v2284 = vsub.s32 %v2281, %v2283
  %v2285 = vrot.slane %v2277, %v2284
  %2287 = vset.pattern.permute.xlu0 0
  %2288 = vperm.xlu0 %2287, %v130
  %v2289 = vpop.permute.xlu0 %2288
  %v2292 = vunpack.c.l.s4 839922192
  %v2293 = vunpack.c.0.s8 %v2292
  %v2294 = vlaneseq
  %v2295 = vshrl.u32 %v2294, 7
  %v2296 = vsub.s32 %v2293, %v2295
  %v2297 = vrot.slane %v2289, %v2296
  %2299 = vset.pattern.permute.xlu0 0
  %2300 = vperm.xlu0 %2299, %v131
  %v2301 = vpop.permute.xlu0 %2300
  %v2304 = vunpack.c.l.s4 839922192
  %v2305 = vunpack.c.0.s8 %v2304
  %v2306 = vlaneseq
  %v2307 = vshrl.u32 %v2306, 7
  %v2308 = vsub.s32 %v2305, %v2307
  %v2309 = vrot.slane %v2301, %v2308
  %2311 = vset.pattern.permute.xlu0 0
  %2312 = vperm.xlu0 %2311, %v132
  %v2313 = vpop.permute.xlu0 %2312
  %v2316 = vunpack.c.l.s4 839922192
  %v2317 = vunpack.c.0.s8 %v2316
  %v2318 = vlaneseq
  %v2319 = vshrl.u32 %v2318, 7
  %v2320 = vsub.s32 %v2317, %v2319
  %v2321 = vrot.slane %v2313, %v2320
  %2323 = vset.pattern.permute.xlu0 0
  %2324 = vperm.xlu0 %2323, %v133
  %v2325 = vpop.permute.xlu0 %2324
  %v2328 = vunpack.c.l.s4 839922192
  %v2329 = vunpack.c.0.s8 %v2328
  %v2330 = vlaneseq
  %v2331 = vshrl.u32 %v2330, 7
  %v2332 = vsub.s32 %v2329, %v2331
  %v2333 = vrot.slane %v2325, %v2332
  %2335 = vset.pattern.permute.xlu0 0
  %2336 = vperm.xlu0 %2335, %v134
  %v2337 = vpop.permute.xlu0 %2336
  %v2340 = vunpack.c.l.s4 839922192
  %v2341 = vunpack.c.0.s8 %v2340
  %v2342 = vlaneseq
  %v2343 = vshrl.u32 %v2342, 7
  %v2344 = vsub.s32 %v2341, %v2343
  %v2345 = vrot.slane %v2337, %v2344
  %2347 = vset.pattern.permute.xlu0 0
  %2348 = vperm.xlu0 %2347, %v135
  %v2349 = vpop.permute.xlu0 %2348
  %v2352 = vunpack.c.l.s4 839922192
  %v2353 = vunpack.c.0.s8 %v2352
  %v2354 = vlaneseq
  %v2355 = vshrl.u32 %v2354, 7
  %v2356 = vsub.s32 %v2353, %v2355
  %v2357 = vrot.slane %v2349, %v2356
  %2359 = vset.pattern.permute.xlu0 0
  %2360 = vperm.xlu0 %2359, %v136
  %v2361 = vpop.permute.xlu0 %2360
  %v2364 = vunpack.c.l.s4 839922192
  %v2365 = vunpack.c.0.s8 %v2364
  %v2366 = vlaneseq
  %v2367 = vshrl.u32 %v2366, 7
  %v2368 = vsub.s32 %v2365, %v2367
  %v2369 = vrot.slane %v2361, %v2368
  %2371 = vset.pattern.permute.xlu0 0
  %2372 = vperm.xlu0 %2371, %v137
  %v2373 = vpop.permute.xlu0 %2372
  %v2376 = vunpack.c.l.s4 839922192
  %v2377 = vunpack.c.0.s8 %v2376
  %v2378 = vlaneseq
  %v2379 = vshrl.u32 %v2378, 7
  %v2380 = vsub.s32 %v2377, %v2379
  %v2381 = vrot.slane %v2373, %v2380
  %2383 = vset.pattern.permute.xlu0 0
  %2384 = vperm.xlu0 %2383, %v138
  %v2385 = vpop.permute.xlu0 %2384
  %v2388 = vunpack.c.l.s4 839922192
  %v2389 = vunpack.c.0.s8 %v2388
  %v2390 = vlaneseq
  %v2391 = vshrl.u32 %v2390, 7
  %v2392 = vsub.s32 %v2389, %v2391
  %v2393 = vrot.slane %v2385, %v2392
  %2395 = vset.pattern.permute.xlu0 0
  %2396 = vperm.xlu0 %2395, %v139
  %v2397 = vpop.permute.xlu0 %2396
  %v2400 = vunpack.c.l.s4 839922192
  %v2401 = vunpack.c.0.s8 %v2400
  %v2402 = vlaneseq
  %v2403 = vshrl.u32 %v2402, 7
  %v2404 = vsub.s32 %v2401, %v2403
  %v2405 = vrot.slane %v2397, %v2404
  %2407 = vset.pattern.permute.xlu0 0
  %2408 = vperm.xlu0 %2407, %v140
  %v2409 = vpop.permute.xlu0 %2408
  %v2412 = vunpack.c.l.s4 839922192
  %v2413 = vunpack.c.0.s8 %v2412
  %v2414 = vlaneseq
  %v2415 = vshrl.u32 %v2414, 7
  %v2416 = vsub.s32 %v2413, %v2415
  %v2417 = vrot.slane %v2409, %v2416
  %2419 = vset.pattern.permute.xlu0 0
  %2420 = vperm.xlu0 %2419, %v141
  %v2421 = vpop.permute.xlu0 %2420
  %v2424 = vunpack.c.l.s4 839922192
  %v2425 = vunpack.c.0.s8 %v2424
  %v2426 = vlaneseq
  %v2427 = vshrl.u32 %v2426, 7
  %v2428 = vsub.s32 %v2425, %v2427
  %v2429 = vrot.slane %v2421, %v2428
  %2431 = vset.pattern.permute.xlu0 0
  %2432 = vperm.xlu0 %2431, %v142
  %v2433 = vpop.permute.xlu0 %2432
  %v2436 = vunpack.c.l.s4 839922192
  %v2437 = vunpack.c.0.s8 %v2436
  %v2438 = vlaneseq
  %v2439 = vshrl.u32 %v2438, 7
  %v2440 = vsub.s32 %v2437, %v2439
  %v2441 = vrot.slane %v2433, %v2440
  %2443 = vset.pattern.permute.xlu0 0
  %2444 = vperm.xlu0 %2443, %v143
  %v2445 = vpop.permute.xlu0 %2444
  %v2448 = vunpack.c.l.s4 839922192
  %v2449 = vunpack.c.0.s8 %v2448
  %v2450 = vlaneseq
  %v2451 = vshrl.u32 %v2450, 7
  %v2452 = vsub.s32 %v2449, %v2451
  %v2453 = vrot.slane %v2445, %v2452
  %2455 = vset.pattern.permute.xlu0 0
  %2456 = vperm.xlu0 %2455, %v144
  %v2457 = vpop.permute.xlu0 %2456
  %v2460 = vunpack.c.l.s4 839922192
  %v2461 = vunpack.c.0.s8 %v2460
  %v2462 = vlaneseq
  %v2463 = vshrl.u32 %v2462, 7
  %v2464 = vsub.s32 %v2461, %v2463
  %v2465 = vrot.slane %v2457, %v2464
  %2467 = vset.pattern.permute.xlu0 0
  %2468 = vperm.xlu0 %2467, %v145
  %v2469 = vpop.permute.xlu0 %2468
  %v2472 = vunpack.c.l.s4 839922192
  %v2473 = vunpack.c.0.s8 %v2472
  %v2474 = vlaneseq
  %v2475 = vshrl.u32 %v2474, 7
  %v2476 = vsub.s32 %v2473, %v2475
  %v2477 = vrot.slane %v2469, %v2476
  %2479 = vset.pattern.permute.xlu0 0
  %2480 = vperm.xlu0 %2479, %v146
  %v2481 = vpop.permute.xlu0 %2480
  %v2484 = vunpack.c.l.s4 839922192
  %v2485 = vunpack.c.0.s8 %v2484
  %v2486 = vlaneseq
  %v2487 = vshrl.u32 %v2486, 7
  %v2488 = vsub.s32 %v2485, %v2487
  %v2489 = vrot.slane %v2481, %v2488
  %2491 = vset.pattern.permute.xlu0 0
  %2492 = vperm.xlu0 %2491, %v147
  %v2493 = vpop.permute.xlu0 %2492
  %v2496 = vunpack.c.l.s4 839922192
  %v2497 = vunpack.c.0.s8 %v2496
  %v2498 = vlaneseq
  %v2499 = vshrl.u32 %v2498, 7
  %v2500 = vsub.s32 %v2497, %v2499
  %v2501 = vrot.slane %v2493, %v2500
  %2503 = vset.pattern.permute.xlu0 0
  %2504 = vperm.xlu0 %2503, %v148
  %v2505 = vpop.permute.xlu0 %2504
  %v2508 = vunpack.c.l.s4 839922192
  %v2509 = vunpack.c.0.s8 %v2508
  %v2510 = vlaneseq
  %v2511 = vshrl.u32 %v2510, 7
  %v2512 = vsub.s32 %v2509, %v2511
  %v2513 = vrot.slane %v2505, %v2512
  %2515 = vset.pattern.permute.xlu0 0
  %2516 = vperm.xlu0 %2515, %v149
  %v2517 = vpop.permute.xlu0 %2516
  %v2520 = vunpack.c.l.s4 839922192
  %v2521 = vunpack.c.0.s8 %v2520
  %v2522 = vlaneseq
  %v2523 = vshrl.u32 %v2522, 7
  %v2524 = vsub.s32 %v2521, %v2523
  %v2525 = vrot.slane %v2517, %v2524
  %2527 = vset.pattern.permute.xlu0 0
  %2528 = vperm.xlu0 %2527, %v150
  %v2529 = vpop.permute.xlu0 %2528
  %v2532 = vunpack.c.l.s4 839922192
  %v2533 = vunpack.c.0.s8 %v2532
  %v2534 = vlaneseq
  %v2535 = vshrl.u32 %v2534, 7
  %v2536 = vsub.s32 %v2533, %v2535
  %v2537 = vrot.slane %v2529, %v2536
  %2539 = vset.pattern.permute.xlu0 0
  %2540 = vperm.xlu0 %2539, %v151
  %v2541 = vpop.permute.xlu0 %2540
  %v2544 = vunpack.c.l.s4 839922192
  %v2545 = vunpack.c.0.s8 %v2544
  %v2546 = vlaneseq
  %v2547 = vshrl.u32 %v2546, 7
  %v2548 = vsub.s32 %v2545, %v2547
  %v2549 = vrot.slane %v2541, %v2548
  %2551 = vset.pattern.permute.xlu0 0
  %2552 = vperm.xlu0 %2551, %v152
  %v2553 = vpop.permute.xlu0 %2552
  %v2556 = vunpack.c.l.s4 839922192
  %v2557 = vunpack.c.0.s8 %v2556
  %v2558 = vlaneseq
  %v2559 = vshrl.u32 %v2558, 7
  %v2560 = vsub.s32 %v2557, %v2559
  %v2561 = vrot.slane %v2553, %v2560
  %2563 = vset.pattern.permute.xlu0 0
  %2564 = vperm.xlu0 %2563, %v153
  %v2565 = vpop.permute.xlu0 %2564
  %v2568 = vunpack.c.l.s4 839922192
  %v2569 = vunpack.c.0.s8 %v2568
  %v2570 = vlaneseq
  %v2571 = vshrl.u32 %v2570, 7
  %v2572 = vsub.s32 %v2569, %v2571
  %v2573 = vrot.slane %v2565, %v2572
  %2575 = vset.pattern.permute.xlu0 0
  %2576 = vperm.xlu0 %2575, %v154
  %v2577 = vpop.permute.xlu0 %2576
  %v2580 = vunpack.c.l.s4 839922192
  %v2581 = vunpack.c.0.s8 %v2580
  %v2582 = vlaneseq
  %v2583 = vshrl.u32 %v2582, 7
  %v2584 = vsub.s32 %v2581, %v2583
  %v2585 = vrot.slane %v2577, %v2584
  %2587 = vset.pattern.permute.xlu0 0
  %2588 = vperm.xlu0 %2587, %v155
  %v2589 = vpop.permute.xlu0 %2588
  %v2592 = vunpack.c.l.s4 839922192
  %v2593 = vunpack.c.0.s8 %v2592
  %v2594 = vlaneseq
  %v2595 = vshrl.u32 %v2594, 7
  %v2596 = vsub.s32 %v2593, %v2595
  %v2597 = vrot.slane %v2589, %v2596
  %2599 = vset.pattern.permute.xlu0 0
  %2600 = vperm.xlu0 %2599, %v156
  %v2601 = vpop.permute.xlu0 %2600
  %v2604 = vunpack.c.l.s4 839922192
  %v2605 = vunpack.c.0.s8 %v2604
  %v2606 = vlaneseq
  %v2607 = vshrl.u32 %v2606, 7
  %v2608 = vsub.s32 %v2605, %v2607
  %v2609 = vrot.slane %v2601, %v2608
  %2611 = vset.pattern.permute.xlu0 0
  %2612 = vperm.xlu0 %2611, %v157
  %v2613 = vpop.permute.xlu0 %2612
  %v2616 = vunpack.c.l.s4 839922192
  %v2617 = vunpack.c.0.s8 %v2616
  %v2618 = vlaneseq
  %v2619 = vshrl.u32 %v2618, 7
  %v2620 = vsub.s32 %v2617, %v2619
  %v2621 = vrot.slane %v2613, %v2620
  %2623 = vset.pattern.permute.xlu0 0
  %2624 = vperm.xlu0 %2623, %v158
  %v2625 = vpop.permute.xlu0 %2624
  %v2628 = vunpack.c.l.s4 839922192
  %v2629 = vunpack.c.0.s8 %v2628
  %v2630 = vlaneseq
  %v2631 = vshrl.u32 %v2630, 7
  %v2632 = vsub.s32 %v2629, %v2631
  %v2633 = vrot.slane %v2625, %v2632
  %2635 = vset.pattern.permute.xlu0 0
  %2636 = vperm.xlu0 %2635, %v159
  %v2637 = vpop.permute.xlu0 %2636
  %v2640 = vunpack.c.l.s4 839922192
  %v2641 = vunpack.c.0.s8 %v2640
  %v2642 = vlaneseq
  %v2643 = vshrl.u32 %v2642, 7
  %v2644 = vsub.s32 %v2641, %v2643
  %v2645 = vrot.slane %v2637, %v2644
  %2647 = vset.pattern.permute.xlu0 0
  %2648 = vperm.xlu0 %2647, %v160
  %v2649 = vpop.permute.xlu0 %2648
  %v2652 = vunpack.c.l.s4 839922192
  %v2653 = vunpack.c.0.s8 %v2652
  %v2654 = vlaneseq
  %v2655 = vshrl.u32 %v2654, 7
  %v2656 = vsub.s32 %v2653, %v2655
  %v2657 = vrot.slane %v2649, %v2656
  %2659 = vset.pattern.permute.xlu0 0
  %2660 = vperm.xlu0 %2659, %v161
  %v2661 = vpop.permute.xlu0 %2660
  %v2664 = vunpack.c.l.s4 839922192
  %v2665 = vunpack.c.0.s8 %v2664
  %v2666 = vlaneseq
  %v2667 = vshrl.u32 %v2666, 7
  %v2668 = vsub.s32 %v2665, %v2667
  %v2669 = vrot.slane %v2661, %v2668
  %2671 = vset.pattern.permute.xlu0 0
  %2672 = vperm.xlu0 %2671, %v162
  %v2673 = vpop.permute.xlu0 %2672
  %v2676 = vunpack.c.l.s4 839922192
  %v2677 = vunpack.c.0.s8 %v2676
  %v2678 = vlaneseq
  %v2679 = vshrl.u32 %v2678, 7
  %v2680 = vsub.s32 %v2677, %v2679
  %v2681 = vrot.slane %v2673, %v2680
  %2683 = vset.pattern.permute.xlu0 0
  %2684 = vperm.xlu0 %2683, %v163
  %v2685 = vpop.permute.xlu0 %2684
  %v2688 = vunpack.c.l.s4 839922192
  %v2689 = vunpack.c.0.s8 %v2688
  %v2690 = vlaneseq
  %v2691 = vshrl.u32 %v2690, 7
  %v2692 = vsub.s32 %v2689, %v2691
  %v2693 = vrot.slane %v2685, %v2692
  %2695 = vset.pattern.permute.xlu0 0
  %2696 = vperm.xlu0 %2695, %v164
  %v2697 = vpop.permute.xlu0 %2696
  %v2700 = vunpack.c.l.s4 839922192
  %v2701 = vunpack.c.0.s8 %v2700
  %v2702 = vlaneseq
  %v2703 = vshrl.u32 %v2702, 7
  %v2704 = vsub.s32 %v2701, %v2703
  %v2705 = vrot.slane %v2697, %v2704
  %2707 = vset.pattern.permute.xlu0 0
  %2708 = vperm.xlu0 %2707, %v165
  %v2709 = vpop.permute.xlu0 %2708
  %v2712 = vunpack.c.l.s4 839922192
  %v2713 = vunpack.c.0.s8 %v2712
  %v2714 = vlaneseq
  %v2715 = vshrl.u32 %v2714, 7
  %v2716 = vsub.s32 %v2713, %v2715
  %v2717 = vrot.slane %v2709, %v2716
  %2719 = vset.pattern.permute.xlu0 0
  %2720 = vperm.xlu0 %2719, %v166
  %v2721 = vpop.permute.xlu0 %2720
  %v2724 = vunpack.c.l.s4 839922192
  %v2725 = vunpack.c.0.s8 %v2724
  %v2726 = vlaneseq
  %v2727 = vshrl.u32 %v2726, 7
  %v2728 = vsub.s32 %v2725, %v2727
  %v2729 = vrot.slane %v2721, %v2728
  %2731 = vset.pattern.permute.xlu0 0
  %2732 = vperm.xlu0 %2731, %v167
  %v2733 = vpop.permute.xlu0 %2732
  %v2736 = vunpack.c.l.s4 839922192
  %v2737 = vunpack.c.0.s8 %v2736
  %v2738 = vlaneseq
  %v2739 = vshrl.u32 %v2738, 7
  %v2740 = vsub.s32 %v2737, %v2739
  %v2741 = vrot.slane %v2733, %v2740
  %2743 = vset.pattern.permute.xlu0 0
  %2744 = vperm.xlu0 %2743, %v168
  %v2745 = vpop.permute.xlu0 %2744
  %v2748 = vunpack.c.l.s4 839922192
  %v2749 = vunpack.c.0.s8 %v2748
  %v2750 = vlaneseq
  %v2751 = vshrl.u32 %v2750, 7
  %v2752 = vsub.s32 %v2749, %v2751
  %v2753 = vrot.slane %v2745, %v2752
  %2755 = vset.pattern.permute.xlu0 0
  %2756 = vperm.xlu0 %2755, %v169
  %v2757 = vpop.permute.xlu0 %2756
  %v2760 = vunpack.c.l.s4 839922192
  %v2761 = vunpack.c.0.s8 %v2760
  %v2762 = vlaneseq
  %v2763 = vshrl.u32 %v2762, 7
  %v2764 = vsub.s32 %v2761, %v2763
  %v2765 = vrot.slane %v2757, %v2764
  %2767 = vset.pattern.permute.xlu0 0
  %2768 = vperm.xlu0 %2767, %v170
  %v2769 = vpop.permute.xlu0 %2768
  %v2772 = vunpack.c.l.s4 839922192
  %v2773 = vunpack.c.0.s8 %v2772
  %v2774 = vlaneseq
  %v2775 = vshrl.u32 %v2774, 7
  %v2776 = vsub.s32 %v2773, %v2775
  %v2777 = vrot.slane %v2769, %v2776
  %2779 = vset.pattern.permute.xlu0 0
  %2780 = vperm.xlu0 %2779, %v171
  %v2781 = vpop.permute.xlu0 %2780
  %v2784 = vunpack.c.l.s4 839922192
  %v2785 = vunpack.c.0.s8 %v2784
  %v2786 = vlaneseq
  %v2787 = vshrl.u32 %v2786, 7
  %v2788 = vsub.s32 %v2785, %v2787
  %v2789 = vrot.slane %v2781, %v2788
  %2791 = vset.pattern.permute.xlu0 0
  %2792 = vperm.xlu0 %2791, %v172
  %v2793 = vpop.permute.xlu0 %2792
  %v2796 = vunpack.c.l.s4 839922192
  %v2797 = vunpack.c.0.s8 %v2796
  %v2798 = vlaneseq
  %v2799 = vshrl.u32 %v2798, 7
  %v2800 = vsub.s32 %v2797, %v2799
  %v2801 = vrot.slane %v2793, %v2800
  %2803 = vset.pattern.permute.xlu0 0
  %2804 = vperm.xlu0 %2803, %v173
  %v2805 = vpop.permute.xlu0 %2804
  %v2808 = vunpack.c.l.s4 839922192
  %v2809 = vunpack.c.0.s8 %v2808
  %v2810 = vlaneseq
  %v2811 = vshrl.u32 %v2810, 7
  %v2812 = vsub.s32 %v2809, %v2811
  %v2813 = vrot.slane %v2805, %v2812
  %2815 = vset.pattern.permute.xlu0 0
  %2816 = vperm.xlu0 %2815, %v174
  %v2817 = vpop.permute.xlu0 %2816
  %v2820 = vunpack.c.l.s4 839922192
  %v2821 = vunpack.c.0.s8 %v2820
  %v2822 = vlaneseq
  %v2823 = vshrl.u32 %v2822, 7
  %v2824 = vsub.s32 %v2821, %v2823
  %v2825 = vrot.slane %v2817, %v2824
  %2827 = vset.pattern.permute.xlu0 0
  %2828 = vperm.xlu0 %2827, %v175
  %v2829 = vpop.permute.xlu0 %2828
  %v2832 = vunpack.c.l.s4 839922192
  %v2833 = vunpack.c.0.s8 %v2832
  %v2834 = vlaneseq
  %v2835 = vshrl.u32 %v2834, 7
  %v2836 = vsub.s32 %v2833, %v2835
  %v2837 = vrot.slane %v2829, %v2836
  %2839 = vset.pattern.permute.xlu0 0
  %2840 = vperm.xlu0 %2839, %v176
  %v2841 = vpop.permute.xlu0 %2840
  %v2844 = vunpack.c.l.s4 839922192
  %v2845 = vunpack.c.0.s8 %v2844
  %v2846 = vlaneseq
  %v2847 = vshrl.u32 %v2846, 7
  %v2848 = vsub.s32 %v2845, %v2847
  %v2849 = vrot.slane %v2841, %v2848
  %2851 = vset.pattern.permute.xlu0 0
  %2852 = vperm.xlu0 %2851, %v177
  %v2853 = vpop.permute.xlu0 %2852
  %v2856 = vunpack.c.l.s4 839922192
  %v2857 = vunpack.c.0.s8 %v2856
  %v2858 = vlaneseq
  %v2859 = vshrl.u32 %v2858, 7
  %v2860 = vsub.s32 %v2857, %v2859
  %v2861 = vrot.slane %v2853, %v2860
  %2863 = vset.pattern.permute.xlu0 0
  %2864 = vperm.xlu0 %2863, %v178
  %v2865 = vpop.permute.xlu0 %2864
  %v2868 = vunpack.c.l.s4 839922192
  %v2869 = vunpack.c.0.s8 %v2868
  %v2870 = vlaneseq
  %v2871 = vshrl.u32 %v2870, 7
  %v2872 = vsub.s32 %v2869, %v2871
  %v2873 = vrot.slane %v2865, %v2872
  %2875 = vset.pattern.permute.xlu0 0
  %2876 = vperm.xlu0 %2875, %v179
  %v2877 = vpop.permute.xlu0 %2876
  %v2880 = vunpack.c.l.s4 839922192
  %v2881 = vunpack.c.0.s8 %v2880
  %v2882 = vlaneseq
  %v2883 = vshrl.u32 %v2882, 7
  %v2884 = vsub.s32 %v2881, %v2883
  %v2885 = vrot.slane %v2877, %v2884
  %2887 = vset.pattern.permute.xlu0 0
  %2888 = vperm.xlu0 %2887, %v180
  %v2889 = vpop.permute.xlu0 %2888
  %v2892 = vunpack.c.l.s4 839922192
  %v2893 = vunpack.c.0.s8 %v2892
  %v2894 = vlaneseq
  %v2895 = vshrl.u32 %v2894, 7
  %v2896 = vsub.s32 %v2893, %v2895
  %v2897 = vrot.slane %v2889, %v2896
  %2899 = vset.pattern.permute.xlu0 0
  %2900 = vperm.xlu0 %2899, %v181
  %v2901 = vpop.permute.xlu0 %2900
  %v2904 = vunpack.c.l.s4 839922192
  %v2905 = vunpack.c.0.s8 %v2904
  %v2906 = vlaneseq
  %v2907 = vshrl.u32 %v2906, 7
  %v2908 = vsub.s32 %v2905, %v2907
  %v2909 = vrot.slane %v2901, %v2908
  %2911 = vset.pattern.permute.xlu0 0
  %2912 = vperm.xlu0 %2911, %v182
  %v2913 = vpop.permute.xlu0 %2912
  %v2916 = vunpack.c.l.s4 839922192
  %v2917 = vunpack.c.0.s8 %v2916
  %v2918 = vlaneseq
  %v2919 = vshrl.u32 %v2918, 7
  %v2920 = vsub.s32 %v2917, %v2919
  %v2921 = vrot.slane %v2913, %v2920
  %2923 = vset.pattern.permute.xlu0 0
  %2924 = vperm.xlu0 %2923, %v183
  %v2925 = vpop.permute.xlu0 %2924
  %v2928 = vunpack.c.l.s4 839922192
  %v2929 = vunpack.c.0.s8 %v2928
  %v2930 = vlaneseq
  %v2931 = vshrl.u32 %v2930, 7
  %v2932 = vsub.s32 %v2929, %v2931
  %v2933 = vrot.slane %v2925, %v2932
  %2935 = vset.pattern.permute.xlu0 0
  %2936 = vperm.xlu0 %2935, %v184
  %v2937 = vpop.permute.xlu0 %2936
  %v2940 = vunpack.c.l.s4 839922192
  %v2941 = vunpack.c.0.s8 %v2940
  %v2942 = vlaneseq
  %v2943 = vshrl.u32 %v2942, 7
  %v2944 = vsub.s32 %v2941, %v2943
  %v2945 = vrot.slane %v2937, %v2944
  %2947 = vset.pattern.permute.xlu0 0
  %2948 = vperm.xlu0 %2947, %v185
  %v2949 = vpop.permute.xlu0 %2948
  %v2952 = vunpack.c.l.s4 839922192
  %v2953 = vunpack.c.0.s8 %v2952
  %v2954 = vlaneseq
  %v2955 = vshrl.u32 %v2954, 7
  %v2956 = vsub.s32 %v2953, %v2955
  %v2957 = vrot.slane %v2949, %v2956
  %2959 = vset.pattern.permute.xlu0 0
  %2960 = vperm.xlu0 %2959, %v186
  %v2961 = vpop.permute.xlu0 %2960
  %v2964 = vunpack.c.l.s4 839922192
  %v2965 = vunpack.c.0.s8 %v2964
  %v2966 = vlaneseq
  %v2967 = vshrl.u32 %v2966, 7
  %v2968 = vsub.s32 %v2965, %v2967
  %v2969 = vrot.slane %v2961, %v2968
  %2971 = vset.pattern.permute.xlu0 0
  %2972 = vperm.xlu0 %2971, %v187
  %v2973 = vpop.permute.xlu0 %2972
  %v2976 = vunpack.c.l.s4 839922192
  %v2977 = vunpack.c.0.s8 %v2976
  %v2978 = vlaneseq
  %v2979 = vshrl.u32 %v2978, 7
  %v2980 = vsub.s32 %v2977, %v2979
  %v2981 = vrot.slane %v2973, %v2980
  %2983 = vset.pattern.permute.xlu0 0
  %2984 = vperm.xlu0 %2983, %v188
  %v2985 = vpop.permute.xlu0 %2984
  %v2988 = vunpack.c.l.s4 839922192
  %v2989 = vunpack.c.0.s8 %v2988
  %v2990 = vlaneseq
  %v2991 = vshrl.u32 %v2990, 7
  %v2992 = vsub.s32 %v2989, %v2991
  %v2993 = vrot.slane %v2985, %v2992
  %2995 = vset.pattern.permute.xlu0 0
  %2996 = vperm.xlu0 %2995, %v189
  %v2997 = vpop.permute.xlu0 %2996
  %v3000 = vunpack.c.l.s4 839922192
  %v3001 = vunpack.c.0.s8 %v3000
  %v3002 = vlaneseq
  %v3003 = vshrl.u32 %v3002, 7
  %v3004 = vsub.s32 %v3001, %v3003
  %v3005 = vrot.slane %v2997, %v3004
  %3007 = vset.pattern.permute.xlu0 0
  %3008 = vperm.xlu0 %3007, %v190
  %v3009 = vpop.permute.xlu0 %3008
  %v3012 = vunpack.c.l.s4 839922192
  %v3013 = vunpack.c.0.s8 %v3012
  %v3014 = vlaneseq
  %v3015 = vshrl.u32 %v3014, 7
  %v3016 = vsub.s32 %v3013, %v3015
  %v3017 = vrot.slane %v3009, %v3016
  %3019 = vset.pattern.permute.xlu0 0
  %3020 = vperm.xlu0 %3019, %v191
  %v3021 = vpop.permute.xlu0 %3020
  %v3024 = vunpack.c.l.s4 839922192
  %v3025 = vunpack.c.0.s8 %v3024
  %v3026 = vlaneseq
  %v3027 = vshrl.u32 %v3026, 7
  %v3028 = vsub.s32 %v3025, %v3027
  %v3029 = vrot.slane %v3021, %v3028
  %3031 = vset.pattern.permute.xlu0 0
  %3032 = vperm.xlu0 %3031, %v192
  %v3033 = vpop.permute.xlu0 %3032
  %v3036 = vunpack.c.l.s4 839922192
  %v3037 = vunpack.c.0.s8 %v3036
  %v3038 = vlaneseq
  %v3039 = vshrl.u32 %v3038, 7
  %v3040 = vsub.s32 %v3037, %v3039
  %v3041 = vrot.slane %v3033, %v3040
  %3043 = vset.pattern.permute.xlu0 0
  %3044 = vperm.xlu0 %3043, %v193
  %v3045 = vpop.permute.xlu0 %3044
  %v3048 = vunpack.c.l.s4 839922192
  %v3049 = vunpack.c.0.s8 %v3048
  %v3050 = vlaneseq
  %v3051 = vshrl.u32 %v3050, 7
  %v3052 = vsub.s32 %v3049, %v3051
  %v3053 = vrot.slane %v3045, %v3052
  %3055 = vset.pattern.permute.xlu0 0
  %3056 = vperm.xlu0 %3055, %v194
  %v3057 = vpop.permute.xlu0 %3056
  %v3060 = vunpack.c.l.s4 839922192
  %v3061 = vunpack.c.0.s8 %v3060
  %v3062 = vlaneseq
  %v3063 = vshrl.u32 %v3062, 7
  %v3064 = vsub.s32 %v3061, %v3063
  %v3065 = vrot.slane %v3057, %v3064
  %3067 = vset.pattern.permute.xlu0 0
  %3068 = vperm.xlu0 %3067, %v195
  %v3069 = vpop.permute.xlu0 %3068
  %v3072 = vunpack.c.l.s4 839922192
  %v3073 = vunpack.c.0.s8 %v3072
  %v3074 = vlaneseq
  %v3075 = vshrl.u32 %v3074, 7
  %v3076 = vsub.s32 %v3073, %v3075
  %v3077 = vrot.slane %v3069, %v3076
  %3079 = vset.pattern.permute.xlu0 0
  %3080 = vperm.xlu0 %3079, %v196
  %v3081 = vpop.permute.xlu0 %3080
  %v3084 = vunpack.c.l.s4 839922192
  %v3085 = vunpack.c.0.s8 %v3084
  %v3086 = vlaneseq
  %v3087 = vshrl.u32 %v3086, 7
  %v3088 = vsub.s32 %v3085, %v3087
  %v3089 = vrot.slane %v3081, %v3088
  %3091 = vset.pattern.permute.xlu0 0
  %3092 = vperm.xlu0 %3091, %v197
  %v3093 = vpop.permute.xlu0 %3092
  %v3096 = vunpack.c.l.s4 839922192
  %v3097 = vunpack.c.0.s8 %v3096
  %v3098 = vlaneseq
  %v3099 = vshrl.u32 %v3098, 7
  %v3100 = vsub.s32 %v3097, %v3099
  %v3101 = vrot.slane %v3093, %v3100
  %3103 = vset.pattern.permute.xlu0 0
  %3104 = vperm.xlu0 %3103, %v198
  %v3105 = vpop.permute.xlu0 %3104
  %v3108 = vunpack.c.l.s4 839922192
  %v3109 = vunpack.c.0.s8 %v3108
  %v3110 = vlaneseq
  %v3111 = vshrl.u32 %v3110, 7
  %v3112 = vsub.s32 %v3109, %v3111
  %v3113 = vrot.slane %v3105, %v3112
  %3115 = vset.pattern.permute.xlu0 0
  %3116 = vperm.xlu0 %3115, %v199
  %v3117 = vpop.permute.xlu0 %3116
  %v3120 = vunpack.c.l.s4 839922192
  %v3121 = vunpack.c.0.s8 %v3120
  %v3122 = vlaneseq
  %v3123 = vshrl.u32 %v3122, 7
  %v3124 = vsub.s32 %v3121, %v3123
  %v3125 = vrot.slane %v3117, %v3124
  %3127 = vset.pattern.permute.xlu0 0
  %3128 = vperm.xlu0 %3127, %v200
  %v3129 = vpop.permute.xlu0 %3128
  %v3132 = vunpack.c.l.s4 839922192
  %v3133 = vunpack.c.0.s8 %v3132
  %v3134 = vlaneseq
  %v3135 = vshrl.u32 %v3134, 7
  %v3136 = vsub.s32 %v3133, %v3135
  %v3137 = vrot.slane %v3129, %v3136
  %3139 = vset.pattern.permute.xlu0 0
  %3140 = vperm.xlu0 %3139, %v201
  %v3141 = vpop.permute.xlu0 %3140
  %v3144 = vunpack.c.l.s4 839922192
  %v3145 = vunpack.c.0.s8 %v3144
  %v3146 = vlaneseq
  %v3147 = vshrl.u32 %v3146, 7
  %v3148 = vsub.s32 %v3145, %v3147
  %v3149 = vrot.slane %v3141, %v3148
  %3151 = vset.pattern.permute.xlu0 0
  %3152 = vperm.xlu0 %3151, %v202
  %v3153 = vpop.permute.xlu0 %3152
  %v3156 = vunpack.c.l.s4 839922192
  %v3157 = vunpack.c.0.s8 %v3156
  %v3158 = vlaneseq
  %v3159 = vshrl.u32 %v3158, 7
  %v3160 = vsub.s32 %v3157, %v3159
  %v3161 = vrot.slane %v3153, %v3160
  %3163 = vset.pattern.permute.xlu0 0
  %3164 = vperm.xlu0 %3163, %v203
  %v3165 = vpop.permute.xlu0 %3164
  %v3168 = vunpack.c.l.s4 839922192
  %v3169 = vunpack.c.0.s8 %v3168
  %v3170 = vlaneseq
  %v3171 = vshrl.u32 %v3170, 7
  %v3172 = vsub.s32 %v3169, %v3171
  %v3173 = vrot.slane %v3165, %v3172
  %3175 = vset.pattern.permute.xlu0 0
  %3176 = vperm.xlu0 %3175, %v204
  %v3177 = vpop.permute.xlu0 %3176
  %v3180 = vunpack.c.l.s4 839922192
  %v3181 = vunpack.c.0.s8 %v3180
  %v3182 = vlaneseq
  %v3183 = vshrl.u32 %v3182, 7
  %v3184 = vsub.s32 %v3181, %v3183
  %v3185 = vrot.slane %v3177, %v3184
  %3187 = vset.pattern.permute.xlu0 0
  %3188 = vperm.xlu0 %3187, %v205
  %v3189 = vpop.permute.xlu0 %3188
  %v3192 = vunpack.c.l.s4 839922192
  %v3193 = vunpack.c.0.s8 %v3192
  %v3194 = vlaneseq
  %v3195 = vshrl.u32 %v3194, 7
  %v3196 = vsub.s32 %v3193, %v3195
  %v3197 = vrot.slane %v3189, %v3196
  %3199 = vset.pattern.permute.xlu0 0
  %3200 = vperm.xlu0 %3199, %v206
  %v3201 = vpop.permute.xlu0 %3200
  %v3204 = vunpack.c.l.s4 839922192
  %v3205 = vunpack.c.0.s8 %v3204
  %v3206 = vlaneseq
  %v3207 = vshrl.u32 %v3206, 7
  %v3208 = vsub.s32 %v3205, %v3207
  %v3209 = vrot.slane %v3201, %v3208
  %3211 = vset.pattern.permute.xlu0 0
  %3212 = vperm.xlu0 %3211, %v207
  %v3213 = vpop.permute.xlu0 %3212
  %v3216 = vunpack.c.l.s4 839922192
  %v3217 = vunpack.c.0.s8 %v3216
  %v3218 = vlaneseq
  %v3219 = vshrl.u32 %v3218, 7
  %v3220 = vsub.s32 %v3217, %v3219
  %v3221 = vrot.slane %v3213, %v3220
  %3223 = vset.pattern.permute.xlu0 0
  %3224 = vperm.xlu0 %3223, %v208
  %v3225 = vpop.permute.xlu0 %3224
  %v3228 = vunpack.c.l.s4 839922192
  %v3229 = vunpack.c.0.s8 %v3228
  %v3230 = vlaneseq
  %v3231 = vshrl.u32 %v3230, 7
  %v3232 = vsub.s32 %v3229, %v3231
  %v3233 = vrot.slane %v3225, %v3232
  %3235 = vset.pattern.permute.xlu0 0
  %3236 = vperm.xlu0 %3235, %v209
  %v3237 = vpop.permute.xlu0 %3236
  %v3240 = vunpack.c.l.s4 839922192
  %v3241 = vunpack.c.0.s8 %v3240
  %v3242 = vlaneseq
  %v3243 = vshrl.u32 %v3242, 7
  %v3244 = vsub.s32 %v3241, %v3243
  %v3245 = vrot.slane %v3237, %v3244
  %3247 = vset.pattern.permute.xlu0 0
  %3248 = vperm.xlu0 %3247, %v210
  %v3249 = vpop.permute.xlu0 %3248
  %v3252 = vunpack.c.l.s4 839922192
  %v3253 = vunpack.c.0.s8 %v3252
  %v3254 = vlaneseq
  %v3255 = vshrl.u32 %v3254, 7
  %v3256 = vsub.s32 %v3253, %v3255
  %v3257 = vrot.slane %v3249, %v3256
  %3259 = vset.pattern.permute.xlu0 0
  %3260 = vperm.xlu0 %3259, %v211
  %v3261 = vpop.permute.xlu0 %3260
  %v3264 = vunpack.c.l.s4 839922192
  %v3265 = vunpack.c.0.s8 %v3264
  %v3266 = vlaneseq
  %v3267 = vshrl.u32 %v3266, 7
  %v3268 = vsub.s32 %v3265, %v3267
  %v3269 = vrot.slane %v3261, %v3268
  %3271 = vset.pattern.permute.xlu0 0
  %3272 = vperm.xlu0 %3271, %v212
  %v3273 = vpop.permute.xlu0 %3272
  %v3276 = vunpack.c.l.s4 839922192
  %v3277 = vunpack.c.0.s8 %v3276
  %v3278 = vlaneseq
  %v3279 = vshrl.u32 %v3278, 7
  %v3280 = vsub.s32 %v3277, %v3279
  %v3281 = vrot.slane %v3273, %v3280
  %3283 = vset.pattern.permute.xlu0 0
  %3284 = vperm.xlu0 %3283, %v213
  %v3285 = vpop.permute.xlu0 %3284
  %v3288 = vunpack.c.l.s4 839922192
  %v3289 = vunpack.c.0.s8 %v3288
  %v3290 = vlaneseq
  %v3291 = vshrl.u32 %v3290, 7
  %v3292 = vsub.s32 %v3289, %v3291
  %v3293 = vrot.slane %v3285, %v3292
  %3295 = vset.pattern.permute.xlu0 0
  %3296 = vperm.xlu0 %3295, %v214
  %v3297 = vpop.permute.xlu0 %3296
  %v3300 = vunpack.c.l.s4 839922192
  %v3301 = vunpack.c.0.s8 %v3300
  %v3302 = vlaneseq
  %v3303 = vshrl.u32 %v3302, 7
  %v3304 = vsub.s32 %v3301, %v3303
  %v3305 = vrot.slane %v3297, %v3304
  %3307 = vset.pattern.permute.xlu0 0
  %3308 = vperm.xlu0 %3307, %v215
  %v3309 = vpop.permute.xlu0 %3308
  %v3312 = vunpack.c.l.s4 839922192
  %v3313 = vunpack.c.0.s8 %v3312
  %v3314 = vlaneseq
  %v3315 = vshrl.u32 %v3314, 7
  %v3316 = vsub.s32 %v3313, %v3315
  %v3317 = vrot.slane %v3309, %v3316
  %3319 = vset.pattern.permute.xlu0 0
  %3320 = vperm.xlu0 %3319, %v216
  %v3321 = vpop.permute.xlu0 %3320
  %v3324 = vunpack.c.l.s4 839922192
  %v3325 = vunpack.c.0.s8 %v3324
  %v3326 = vlaneseq
  %v3327 = vshrl.u32 %v3326, 7
  %v3328 = vsub.s32 %v3325, %v3327
  %v3329 = vrot.slane %v3321, %v3328
  %3331 = vset.pattern.permute.xlu0 0
  %3332 = vperm.xlu0 %3331, %v217
  %v3333 = vpop.permute.xlu0 %3332
  %v3336 = vunpack.c.l.s4 839922192
  %v3337 = vunpack.c.0.s8 %v3336
  %v3338 = vlaneseq
  %v3339 = vshrl.u32 %v3338, 7
  %v3340 = vsub.s32 %v3337, %v3339
  %v3341 = vrot.slane %v3333, %v3340
  %3343 = vset.pattern.permute.xlu0 0
  %3344 = vperm.xlu0 %3343, %v218
  %v3345 = vpop.permute.xlu0 %3344
  %v3348 = vunpack.c.l.s4 839922192
  %v3349 = vunpack.c.0.s8 %v3348
  %v3350 = vlaneseq
  %v3351 = vshrl.u32 %v3350, 7
  %v3352 = vsub.s32 %v3349, %v3351
  %v3353 = vrot.slane %v3345, %v3352
  %3355 = vset.pattern.permute.xlu0 0
  %3356 = vperm.xlu0 %3355, %v219
  %v3357 = vpop.permute.xlu0 %3356
  %v3360 = vunpack.c.l.s4 839922192
  %v3361 = vunpack.c.0.s8 %v3360
  %v3362 = vlaneseq
  %v3363 = vshrl.u32 %v3362, 7
  %v3364 = vsub.s32 %v3361, %v3363
  %v3365 = vrot.slane %v3357, %v3364
  %3367 = vset.pattern.permute.xlu0 0
  %3368 = vperm.xlu0 %3367, %v220
  %v3369 = vpop.permute.xlu0 %3368
  %v3372 = vunpack.c.l.s4 839922192
  %v3373 = vunpack.c.0.s8 %v3372
  %v3374 = vlaneseq
  %v3375 = vshrl.u32 %v3374, 7
  %v3376 = vsub.s32 %v3373, %v3375
  %v3377 = vrot.slane %v3369, %v3376
  %3379 = vset.pattern.permute.xlu0 0
  %3380 = vperm.xlu0 %3379, %v221
  %v3381 = vpop.permute.xlu0 %3380
  %v3384 = vunpack.c.l.s4 839922192
  %v3385 = vunpack.c.0.s8 %v3384
  %v3386 = vlaneseq
  %v3387 = vshrl.u32 %v3386, 7
  %v3388 = vsub.s32 %v3385, %v3387
  %v3389 = vrot.slane %v3381, %v3388
  %3391 = vset.pattern.permute.xlu0 0
  %3392 = vperm.xlu0 %3391, %v222
  %v3393 = vpop.permute.xlu0 %3392
  %v3396 = vunpack.c.l.s4 839922192
  %v3397 = vunpack.c.0.s8 %v3396
  %v3398 = vlaneseq
  %v3399 = vshrl.u32 %v3398, 7
  %v3400 = vsub.s32 %v3397, %v3399
  %v3401 = vrot.slane %v3393, %v3400
  %3403 = vset.pattern.permute.xlu0 0
  %3404 = vperm.xlu0 %3403, %v223
  %v3405 = vpop.permute.xlu0 %3404
  %v3408 = vunpack.c.l.s4 839922192
  %v3409 = vunpack.c.0.s8 %v3408
  %v3410 = vlaneseq
  %v3411 = vshrl.u32 %v3410, 7
  %v3412 = vsub.s32 %v3409, %v3411
  %v3413 = vrot.slane %v3405, %v3412
  %3415 = vset.pattern.permute.xlu0 0
  %3416 = vperm.xlu0 %3415, %v224
  %v3417 = vpop.permute.xlu0 %3416
  %v3420 = vunpack.c.l.s4 839922192
  %v3421 = vunpack.c.0.s8 %v3420
  %v3422 = vlaneseq
  %v3423 = vshrl.u32 %v3422, 7
  %v3424 = vsub.s32 %v3421, %v3423
  %v3425 = vrot.slane %v3417, %v3424
  %3427 = vset.pattern.permute.xlu0 0
  %3428 = vperm.xlu0 %3427, %v225
  %v3429 = vpop.permute.xlu0 %3428
  %v3432 = vunpack.c.l.s4 839922192
  %v3433 = vunpack.c.0.s8 %v3432
  %v3434 = vlaneseq
  %v3435 = vshrl.u32 %v3434, 7
  %v3436 = vsub.s32 %v3433, %v3435
  %v3437 = vrot.slane %v3429, %v3436
  %3439 = vset.pattern.permute.xlu0 0
  %3440 = vperm.xlu0 %3439, %v226
  %v3441 = vpop.permute.xlu0 %3440
  %v3444 = vunpack.c.l.s4 839922192
  %v3445 = vunpack.c.0.s8 %v3444
  %v3446 = vlaneseq
  %v3447 = vshrl.u32 %v3446, 7
  %v3448 = vsub.s32 %v3445, %v3447
  %v3449 = vrot.slane %v3441, %v3448
  %3451 = vset.pattern.permute.xlu0 0
  %3452 = vperm.xlu0 %3451, %v227
  %v3453 = vpop.permute.xlu0 %3452
  %v3456 = vunpack.c.l.s4 839922192
  %v3457 = vunpack.c.0.s8 %v3456
  %v3458 = vlaneseq
  %v3459 = vshrl.u32 %v3458, 7
  %v3460 = vsub.s32 %v3457, %v3459
  %v3461 = vrot.slane %v3453, %v3460
  %3463 = vset.pattern.permute.xlu0 0
  %3464 = vperm.xlu0 %3463, %v228
  %v3465 = vpop.permute.xlu0 %3464
  %v3468 = vunpack.c.l.s4 839922192
  %v3469 = vunpack.c.0.s8 %v3468
  %v3470 = vlaneseq
  %v3471 = vshrl.u32 %v3470, 7
  %v3472 = vsub.s32 %v3469, %v3471
  %v3473 = vrot.slane %v3465, %v3472
  %3475 = vset.pattern.permute.xlu0 0
  %3476 = vperm.xlu0 %3475, %v229
  %v3477 = vpop.permute.xlu0 %3476
  %v3480 = vunpack.c.l.s4 839922192
  %v3481 = vunpack.c.0.s8 %v3480
  %v3482 = vlaneseq
  %v3483 = vshrl.u32 %v3482, 7
  %v3484 = vsub.s32 %v3481, %v3483
  %v3485 = vrot.slane %v3477, %v3484
  %3487 = vset.pattern.permute.xlu0 0
  %3488 = vperm.xlu0 %3487, %v230
  %v3489 = vpop.permute.xlu0 %3488
  %v3492 = vunpack.c.l.s4 839922192
  %v3493 = vunpack.c.0.s8 %v3492
  %v3494 = vlaneseq
  %v3495 = vshrl.u32 %v3494, 7
  %v3496 = vsub.s32 %v3493, %v3495
  %v3497 = vrot.slane %v3489, %v3496
  %3499 = vset.pattern.permute.xlu0 0
  %3500 = vperm.xlu0 %3499, %v231
  %v3501 = vpop.permute.xlu0 %3500
  %v3504 = vunpack.c.l.s4 839922192
  %v3505 = vunpack.c.0.s8 %v3504
  %v3506 = vlaneseq
  %v3507 = vshrl.u32 %v3506, 7
  %v3508 = vsub.s32 %v3505, %v3507
  %v3509 = vrot.slane %v3501, %v3508
  %3511 = vset.pattern.permute.xlu0 0
  %3512 = vperm.xlu0 %3511, %v232
  %v3513 = vpop.permute.xlu0 %3512
  %v3516 = vunpack.c.l.s4 839922192
  %v3517 = vunpack.c.0.s8 %v3516
  %v3518 = vlaneseq
  %v3519 = vshrl.u32 %v3518, 7
  %v3520 = vsub.s32 %v3517, %v3519
  %v3521 = vrot.slane %v3513, %v3520
  %3523 = vset.pattern.permute.xlu0 0
  %3524 = vperm.xlu0 %3523, %v233
  %v3525 = vpop.permute.xlu0 %3524
  %v3528 = vunpack.c.l.s4 839922192
  %v3529 = vunpack.c.0.s8 %v3528
  %v3530 = vlaneseq
  %v3531 = vshrl.u32 %v3530, 7
  %v3532 = vsub.s32 %v3529, %v3531
  %v3533 = vrot.slane %v3525, %v3532
  %3535 = vset.pattern.permute.xlu0 0
  %3536 = vperm.xlu0 %3535, %v234
  %v3537 = vpop.permute.xlu0 %3536
  %v3540 = vunpack.c.l.s4 839922192
  %v3541 = vunpack.c.0.s8 %v3540
  %v3542 = vlaneseq
  %v3543 = vshrl.u32 %v3542, 7
  %v3544 = vsub.s32 %v3541, %v3543
  %v3545 = vrot.slane %v3537, %v3544
  %3547 = vset.pattern.permute.xlu0 0
  %3548 = vperm.xlu0 %3547, %v235
  %v3549 = vpop.permute.xlu0 %3548
  %v3552 = vunpack.c.l.s4 839922192
  %v3553 = vunpack.c.0.s8 %v3552
  %v3554 = vlaneseq
  %v3555 = vshrl.u32 %v3554, 7
  %v3556 = vsub.s32 %v3553, %v3555
  %v3557 = vrot.slane %v3549, %v3556
  %3559 = vset.pattern.permute.xlu0 0
  %3560 = vperm.xlu0 %3559, %v236
  %v3561 = vpop.permute.xlu0 %3560
  %v3564 = vunpack.c.l.s4 839922192
  %v3565 = vunpack.c.0.s8 %v3564
  %v3566 = vlaneseq
  %v3567 = vshrl.u32 %v3566, 7
  %v3568 = vsub.s32 %v3565, %v3567
  %v3569 = vrot.slane %v3561, %v3568
  %3571 = vset.pattern.permute.xlu0 0
  %3572 = vperm.xlu0 %3571, %v237
  %v3573 = vpop.permute.xlu0 %3572
  %v3576 = vunpack.c.l.s4 839922192
  %v3577 = vunpack.c.0.s8 %v3576
  %v3578 = vlaneseq
  %v3579 = vshrl.u32 %v3578, 7
  %v3580 = vsub.s32 %v3577, %v3579
  %v3581 = vrot.slane %v3573, %v3580
  %3583 = vset.pattern.permute.xlu0 0
  %3584 = vperm.xlu0 %3583, %v238
  %v3585 = vpop.permute.xlu0 %3584
  %v3588 = vunpack.c.l.s4 839922192
  %v3589 = vunpack.c.0.s8 %v3588
  %v3590 = vlaneseq
  %v3591 = vshrl.u32 %v3590, 7
  %v3592 = vsub.s32 %v3589, %v3591
  %v3593 = vrot.slane %v3585, %v3592
  %3595 = vset.pattern.permute.xlu0 0
  %3596 = vperm.xlu0 %3595, %v239
  %v3597 = vpop.permute.xlu0 %3596
  %v3600 = vunpack.c.l.s4 839922192
  %v3601 = vunpack.c.0.s8 %v3600
  %v3602 = vlaneseq
  %v3603 = vshrl.u32 %v3602, 7
  %v3604 = vsub.s32 %v3601, %v3603
  %v3605 = vrot.slane %v3597, %v3604
  %3607 = vset.pattern.permute.xlu0 0
  %3608 = vperm.xlu0 %3607, %v240
  %v3609 = vpop.permute.xlu0 %3608
  %v3612 = vunpack.c.l.s4 839922192
  %v3613 = vunpack.c.0.s8 %v3612
  %v3614 = vlaneseq
  %v3615 = vshrl.u32 %v3614, 7
  %v3616 = vsub.s32 %v3613, %v3615
  %v3617 = vrot.slane %v3609, %v3616
  %3619 = vset.pattern.permute.xlu0 0
  %3620 = vperm.xlu0 %3619, %v241
  %v3621 = vpop.permute.xlu0 %3620
  %v3624 = vunpack.c.l.s4 839922192
  %v3625 = vunpack.c.0.s8 %v3624
  %v3626 = vlaneseq
  %v3627 = vshrl.u32 %v3626, 7
  %v3628 = vsub.s32 %v3625, %v3627
  %v3629 = vrot.slane %v3621, %v3628
  %3631 = vset.pattern.permute.xlu0 0
  %3632 = vperm.xlu0 %3631, %v242
  %v3633 = vpop.permute.xlu0 %3632
  %v3636 = vunpack.c.l.s4 839922192
  %v3637 = vunpack.c.0.s8 %v3636
  %v3638 = vlaneseq
  %v3639 = vshrl.u32 %v3638, 7
  %v3640 = vsub.s32 %v3637, %v3639
  %v3641 = vrot.slane %v3633, %v3640
  %3643 = vset.pattern.permute.xlu0 0
  %3644 = vperm.xlu0 %3643, %v243
  %v3645 = vpop.permute.xlu0 %3644
  %v3648 = vunpack.c.l.s4 839922192
  %v3649 = vunpack.c.0.s8 %v3648
  %v3650 = vlaneseq
  %v3651 = vshrl.u32 %v3650, 7
  %v3652 = vsub.s32 %v3649, %v3651
  %v3653 = vrot.slane %v3645, %v3652
  %3655 = vset.pattern.permute.xlu0 0
  %3656 = vperm.xlu0 %3655, %v244
  %v3657 = vpop.permute.xlu0 %3656
  %v3660 = vunpack.c.l.s4 839922192
  %v3661 = vunpack.c.0.s8 %v3660
  %v3662 = vlaneseq
  %v3663 = vshrl.u32 %v3662, 7
  %v3664 = vsub.s32 %v3661, %v3663
  %v3665 = vrot.slane %v3657, %v3664
  %3667 = vset.pattern.permute.xlu0 0
  %3668 = vperm.xlu0 %3667, %v245
  %v3669 = vpop.permute.xlu0 %3668
  %v3672 = vunpack.c.l.s4 839922192
  %v3673 = vunpack.c.0.s8 %v3672
  %v3674 = vlaneseq
  %v3675 = vshrl.u32 %v3674, 7
  %v3676 = vsub.s32 %v3673, %v3675
  %v3677 = vrot.slane %v3669, %v3676
  %3679 = vset.pattern.permute.xlu0 0
  %3680 = vperm.xlu0 %3679, %v246
  %v3681 = vpop.permute.xlu0 %3680
  %v3684 = vunpack.c.l.s4 839922192
  %v3685 = vunpack.c.0.s8 %v3684
  %v3686 = vlaneseq
  %v3687 = vshrl.u32 %v3686, 7
  %v3688 = vsub.s32 %v3685, %v3687
  %v3689 = vrot.slane %v3681, %v3688
  %3691 = vset.pattern.permute.xlu0 0
  %3692 = vperm.xlu0 %3691, %v247
  %v3693 = vpop.permute.xlu0 %3692
  %v3696 = vunpack.c.l.s4 839922192
  %v3697 = vunpack.c.0.s8 %v3696
  %v3698 = vlaneseq
  %v3699 = vshrl.u32 %v3698, 7
  %v3700 = vsub.s32 %v3697, %v3699
  %v3701 = vrot.slane %v3693, %v3700
  %3703 = vset.pattern.permute.xlu0 0
  %3704 = vperm.xlu0 %3703, %v248
  %v3705 = vpop.permute.xlu0 %3704
  %v3708 = vunpack.c.l.s4 839922192
  %v3709 = vunpack.c.0.s8 %v3708
  %v3710 = vlaneseq
  %v3711 = vshrl.u32 %v3710, 7
  %v3712 = vsub.s32 %v3709, %v3711
  %v3713 = vrot.slane %v3705, %v3712
  %3715 = vset.pattern.permute.xlu0 0
  %3716 = vperm.xlu0 %3715, %v249
  %v3717 = vpop.permute.xlu0 %3716
  %v3720 = vunpack.c.l.s4 839922192
  %v3721 = vunpack.c.0.s8 %v3720
  %v3722 = vlaneseq
  %v3723 = vshrl.u32 %v3722, 7
  %v3724 = vsub.s32 %v3721, %v3723
  %v3725 = vrot.slane %v3717, %v3724
  %3727 = vset.pattern.permute.xlu0 0
  %3728 = vperm.xlu0 %3727, %v250
  %v3729 = vpop.permute.xlu0 %3728
  %v3732 = vunpack.c.l.s4 839922192
  %v3733 = vunpack.c.0.s8 %v3732
  %v3734 = vlaneseq
  %v3735 = vshrl.u32 %v3734, 7
  %v3736 = vsub.s32 %v3733, %v3735
  %v3737 = vrot.slane %v3729, %v3736
  %3739 = vset.pattern.permute.xlu0 0
  %3740 = vperm.xlu0 %3739, %v251
  %v3741 = vpop.permute.xlu0 %3740
  %v3744 = vunpack.c.l.s4 839922192
  %v3745 = vunpack.c.0.s8 %v3744
  %v3746 = vlaneseq
  %v3747 = vshrl.u32 %v3746, 7
  %v3748 = vsub.s32 %v3745, %v3747
  %v3749 = vrot.slane %v3741, %v3748
  %3751 = vset.pattern.permute.xlu0 0
  %3752 = vperm.xlu0 %3751, %v252
  %v3753 = vpop.permute.xlu0 %3752
  %v3756 = vunpack.c.l.s4 839922192
  %v3757 = vunpack.c.0.s8 %v3756
  %v3758 = vlaneseq
  %v3759 = vshrl.u32 %v3758, 7
  %v3760 = vsub.s32 %v3757, %v3759
  %v3761 = vrot.slane %v3753, %v3760
  %3763 = vset.pattern.permute.xlu0 0
  %3764 = vperm.xlu0 %3763, %v253
  %v3765 = vpop.permute.xlu0 %3764
  %v3768 = vunpack.c.l.s4 839922192
  %v3769 = vunpack.c.0.s8 %v3768
  %v3770 = vlaneseq
  %v3771 = vshrl.u32 %v3770, 7
  %v3772 = vsub.s32 %v3769, %v3771
  %v3773 = vrot.slane %v3765, %v3772
  %3775 = vset.pattern.permute.xlu0 0
  %3776 = vperm.xlu0 %3775, %v254
  %v3777 = vpop.permute.xlu0 %3776
  %v3780 = vunpack.c.l.s4 839922192
  %v3781 = vunpack.c.0.s8 %v3780
  %v3782 = vlaneseq
  %v3783 = vshrl.u32 %v3782, 7
  %v3784 = vsub.s32 %v3781, %v3783
  %v3785 = vrot.slane %v3777, %v3784
  %3787 = vset.pattern.permute.xlu0 0
  %3788 = vperm.xlu0 %3787, %v255
  %v3789 = vpop.permute.xlu0 %3788
  %v3792 = vunpack.c.l.s4 839922192
  %v3793 = vunpack.c.0.s8 %v3792
  %v3794 = vlaneseq
  %v3795 = vshrl.u32 %v3794, 7
  %v3796 = vsub.s32 %v3793, %v3795
  %v3797 = vrot.slane %v3789, %v3796
  %3799 = vset.pattern.permute.xlu0 0
  %3800 = vperm.xlu0 %3799, %v256
  %v3801 = vpop.permute.xlu0 %3800
  %v3804 = vunpack.c.l.s4 839922192
  %v3805 = vunpack.c.0.s8 %v3804
  %v3806 = vlaneseq
  %v3807 = vshrl.u32 %v3806, 7
  %v3808 = vsub.s32 %v3805, %v3807
  %v3809 = vrot.slane %v3801, %v3808
  %3811 = vset.pattern.permute.xlu0 0
  %3812 = vperm.xlu0 %3811, %v257
  %v3813 = vpop.permute.xlu0 %3812
  %v3816 = vunpack.c.l.s4 839922192
  %v3817 = vunpack.c.0.s8 %v3816
  %v3818 = vlaneseq
  %v3819 = vshrl.u32 %v3818, 7
  %v3820 = vsub.s32 %v3817, %v3819
  %v3821 = vrot.slane %v3813, %v3820
  %3823 = vset.pattern.permute.xlu0 0
  %3824 = vperm.xlu0 %3823, %v258
  %v3825 = vpop.permute.xlu0 %3824
  %v3828 = vunpack.c.l.s4 839922192
  %v3829 = vunpack.c.0.s8 %v3828
  %v3830 = vlaneseq
  %v3831 = vshrl.u32 %v3830, 7
  %v3832 = vsub.s32 %v3829, %v3831
  %v3833 = vrot.slane %v3825, %v3832
  %3835 = vset.pattern.permute.xlu0 0
  %3836 = vperm.xlu0 %3835, %v259
  %v3837 = vpop.permute.xlu0 %3836
  %v3840 = vunpack.c.l.s4 839922192
  %v3841 = vunpack.c.0.s8 %v3840
  %v3842 = vlaneseq
  %v3843 = vshrl.u32 %v3842, 7
  %v3844 = vsub.s32 %v3841, %v3843
  %v3845 = vrot.slane %v3837, %v3844
  %3847 = vset.pattern.permute.xlu0 0
  %3848 = vperm.xlu0 %3847, %v260
  %v3849 = vpop.permute.xlu0 %3848
  %v3852 = vunpack.c.l.s4 839922192
  %v3853 = vunpack.c.0.s8 %v3852
  %v3854 = vlaneseq
  %v3855 = vshrl.u32 %v3854, 7
  %v3856 = vsub.s32 %v3853, %v3855
  %v3857 = vrot.slane %v3849, %v3856
  %3859 = vset.pattern.permute.xlu0 0
  %3860 = vperm.xlu0 %3859, %v261
  %v3861 = vpop.permute.xlu0 %3860
  %v3864 = vunpack.c.l.s4 839922192
  %v3865 = vunpack.c.0.s8 %v3864
  %v3866 = vlaneseq
  %v3867 = vshrl.u32 %v3866, 7
  %v3868 = vsub.s32 %v3865, %v3867
  %v3869 = vrot.slane %v3861, %v3868
  %3871 = vset.pattern.permute.xlu0 0
  %3872 = vperm.xlu0 %3871, %v262
  %v3873 = vpop.permute.xlu0 %3872
  %v3876 = vunpack.c.l.s4 839922192
  %v3877 = vunpack.c.0.s8 %v3876
  %v3878 = vlaneseq
  %v3879 = vshrl.u32 %v3878, 7
  %v3880 = vsub.s32 %v3877, %v3879
  %v3881 = vrot.slane %v3873, %v3880
  %3883 = vset.pattern.permute.xlu0 0
  %3884 = vperm.xlu0 %3883, %v263
  %v3885 = vpop.permute.xlu0 %3884
  %v3888 = vunpack.c.l.s4 839922192
  %v3889 = vunpack.c.0.s8 %v3888
  %v3890 = vlaneseq
  %v3891 = vshrl.u32 %v3890, 7
  %v3892 = vsub.s32 %v3889, %v3891
  %v3893 = vrot.slane %v3885, %v3892
  %3895 = vset.pattern.permute.xlu0 0
  %3896 = vperm.xlu0 %3895, %v264
  %v3897 = vpop.permute.xlu0 %3896
  %v3900 = vunpack.c.l.s4 839922192
  %v3901 = vunpack.c.0.s8 %v3900
  %v3902 = vlaneseq
  %v3903 = vshrl.u32 %v3902, 7
  %v3904 = vsub.s32 %v3901, %v3903
  %v3905 = vrot.slane %v3897, %v3904
  %3907 = vset.pattern.permute.xlu0 0
  %3908 = vperm.xlu0 %3907, %v265
  %v3909 = vpop.permute.xlu0 %3908
  %v3912 = vunpack.c.l.s4 839922192
  %v3913 = vunpack.c.0.s8 %v3912
  %v3914 = vlaneseq
  %v3915 = vshrl.u32 %v3914, 7
  %v3916 = vsub.s32 %v3913, %v3915
  %v3917 = vrot.slane %v3909, %v3916
  %3919 = vset.pattern.permute.xlu0 0
  %3920 = vperm.xlu0 %3919, %v266
  %v3921 = vpop.permute.xlu0 %3920
  %v3924 = vunpack.c.l.s4 839922192
  %v3925 = vunpack.c.0.s8 %v3924
  %v3926 = vlaneseq
  %v3927 = vshrl.u32 %v3926, 7
  %v3928 = vsub.s32 %v3925, %v3927
  %v3929 = vrot.slane %v3921, %v3928
  %3931 = vset.pattern.permute.xlu0 0
  %3932 = vperm.xlu0 %3931, %v267
  %v3933 = vpop.permute.xlu0 %3932
  %v3936 = vunpack.c.l.s4 839922192
  %v3937 = vunpack.c.0.s8 %v3936
  %v3938 = vlaneseq
  %v3939 = vshrl.u32 %v3938, 7
  %v3940 = vsub.s32 %v3937, %v3939
  %v3941 = vrot.slane %v3933, %v3940
  %3943 = vset.pattern.permute.xlu0 0
  %3944 = vperm.xlu0 %3943, %v268
  %v3945 = vpop.permute.xlu0 %3944
  %v3948 = vunpack.c.l.s4 839922192
  %v3949 = vunpack.c.0.s8 %v3948
  %v3950 = vlaneseq
  %v3951 = vshrl.u32 %v3950, 7
  %v3952 = vsub.s32 %v3949, %v3951
  %v3953 = vrot.slane %v3945, %v3952
  %3955 = vset.pattern.permute.xlu0 0
  %3956 = vperm.xlu0 %3955, %v269
  %v3957 = vpop.permute.xlu0 %3956
  %v3960 = vunpack.c.l.s4 839922192
  %v3961 = vunpack.c.0.s8 %v3960
  %v3962 = vlaneseq
  %v3963 = vshrl.u32 %v3962, 7
  %v3964 = vsub.s32 %v3961, %v3963
  %v3965 = vrot.slane %v3957, %v3964
  %3967 = vset.pattern.permute.xlu0 0
  %3968 = vperm.xlu0 %3967, %v270
  %v3969 = vpop.permute.xlu0 %3968
  %v3972 = vunpack.c.l.s4 839922192
  %v3973 = vunpack.c.0.s8 %v3972
  %v3974 = vlaneseq
  %v3975 = vshrl.u32 %v3974, 7
  %v3976 = vsub.s32 %v3973, %v3975
  %v3977 = vrot.slane %v3969, %v3976
  %3979 = vset.pattern.permute.xlu0 0
  %3980 = vperm.xlu0 %3979, %v271
  %v3981 = vpop.permute.xlu0 %3980
  %v3984 = vunpack.c.l.s4 839922192
  %v3985 = vunpack.c.0.s8 %v3984
  %v3986 = vlaneseq
  %v3987 = vshrl.u32 %v3986, 7
  %v3988 = vsub.s32 %v3985, %v3987
  %v3989 = vrot.slane %v3981, %v3988
  %3991 = vset.pattern.permute.xlu0 0
  %3992 = vperm.xlu0 %3991, %v272
  %v3993 = vpop.permute.xlu0 %3992
  %v3996 = vunpack.c.l.s4 839922192
  %v3997 = vunpack.c.0.s8 %v3996
  %v3998 = vlaneseq
  %v3999 = vshrl.u32 %v3998, 7
  %v4000 = vsub.s32 %v3997, %v3999
  %v4001 = vrot.slane %v3993, %v4000
  %4003 = vset.pattern.permute.xlu0 0
  %4004 = vperm.xlu0 %4003, %v273
  %v4005 = vpop.permute.xlu0 %4004
  %v4008 = vunpack.c.l.s4 839922192
  %v4009 = vunpack.c.0.s8 %v4008
  %v4010 = vlaneseq
  %v4011 = vshrl.u32 %v4010, 7
  %v4012 = vsub.s32 %v4009, %v4011
  %v4013 = vrot.slane %v4005, %v4012
  %4015 = vset.pattern.permute.xlu0 0
  %4016 = vperm.xlu0 %4015, %v274
  %v4017 = vpop.permute.xlu0 %4016
  %v4020 = vunpack.c.l.s4 839922192
  %v4021 = vunpack.c.0.s8 %v4020
  %v4022 = vlaneseq
  %v4023 = vshrl.u32 %v4022, 7
  %v4024 = vsub.s32 %v4021, %v4023
  %v4025 = vrot.slane %v4017, %v4024
  %4027 = vset.pattern.permute.xlu0 0
  %4028 = vperm.xlu0 %4027, %v275
  %v4029 = vpop.permute.xlu0 %4028
  %v4032 = vunpack.c.l.s4 839922192
  %v4033 = vunpack.c.0.s8 %v4032
  %v4034 = vlaneseq
  %v4035 = vshrl.u32 %v4034, 7
  %v4036 = vsub.s32 %v4033, %v4035
  %v4037 = vrot.slane %v4029, %v4036
  %4039 = vset.pattern.permute.xlu0 0
  %4040 = vperm.xlu0 %4039, %v276
  %v4041 = vpop.permute.xlu0 %4040
  %v4044 = vunpack.c.l.s4 839922192
  %v4045 = vunpack.c.0.s8 %v4044
  %v4046 = vlaneseq
  %v4047 = vshrl.u32 %v4046, 7
  %v4048 = vsub.s32 %v4045, %v4047
  %v4049 = vrot.slane %v4041, %v4048
  %4051 = vset.pattern.permute.xlu0 0
  %4052 = vperm.xlu0 %4051, %v277
  %v4053 = vpop.permute.xlu0 %4052
  %v4056 = vunpack.c.l.s4 839922192
  %v4057 = vunpack.c.0.s8 %v4056
  %v4058 = vlaneseq
  %v4059 = vshrl.u32 %v4058, 7
  %v4060 = vsub.s32 %v4057, %v4059
  %v4061 = vrot.slane %v4053, %v4060
  %4063 = vset.pattern.permute.xlu0 0
  %4064 = vperm.xlu0 %4063, %v278
  %v4065 = vpop.permute.xlu0 %4064
  %v4068 = vunpack.c.l.s4 839922192
  %v4069 = vunpack.c.0.s8 %v4068
  %v4070 = vlaneseq
  %v4071 = vshrl.u32 %v4070, 7
  %v4072 = vsub.s32 %v4069, %v4071
  %v4073 = vrot.slane %v4065, %v4072
  %4075 = vset.pattern.permute.xlu0 0
  %4076 = vperm.xlu0 %4075, %v279
  %v4077 = vpop.permute.xlu0 %4076
  %v4080 = vunpack.c.l.s4 839922192
  %v4081 = vunpack.c.0.s8 %v4080
  %v4082 = vlaneseq
  %v4083 = vshrl.u32 %v4082, 7
  %v4084 = vsub.s32 %v4081, %v4083
  %v4085 = vrot.slane %v4077, %v4084
  %4087 = vset.pattern.permute.xlu0 0
  %4088 = vperm.xlu0 %4087, %v280
  %v4089 = vpop.permute.xlu0 %4088
  %v4092 = vunpack.c.l.s4 839922192
  %v4093 = vunpack.c.0.s8 %v4092
  %v4094 = vlaneseq
  %v4095 = vshrl.u32 %v4094, 7
  %v4096 = vsub.s32 %v4093, %v4095
  %v4097 = vrot.slane %v4089, %v4096
  %4099 = vset.pattern.permute.xlu0 0
  %4100 = vperm.xlu0 %4099, %v281
  %v4101 = vpop.permute.xlu0 %4100
  %v4104 = vunpack.c.l.s4 839922192
  %v4105 = vunpack.c.0.s8 %v4104
  %v4106 = vlaneseq
  %v4107 = vshrl.u32 %v4106, 7
  %v4108 = vsub.s32 %v4105, %v4107
  %v4109 = vrot.slane %v4101, %v4108
  %4111 = vset.pattern.permute.xlu0 0
  %4112 = vperm.xlu0 %4111, %v282
  %v4113 = vpop.permute.xlu0 %4112
  %v4116 = vunpack.c.l.s4 839922192
  %v4117 = vunpack.c.0.s8 %v4116
  %v4118 = vlaneseq
  %v4119 = vshrl.u32 %v4118, 7
  %v4120 = vsub.s32 %v4117, %v4119
  %v4121 = vrot.slane %v4113, %v4120
  %4123 = vset.pattern.permute.xlu0 0
  %4124 = vperm.xlu0 %4123, %v283
  %v4125 = vpop.permute.xlu0 %4124
  %v4128 = vunpack.c.l.s4 839922192
  %v4129 = vunpack.c.0.s8 %v4128
  %v4130 = vlaneseq
  %v4131 = vshrl.u32 %v4130, 7
  %v4132 = vsub.s32 %v4129, %v4131
  %v4133 = vrot.slane %v4125, %v4132
  %4135 = vset.pattern.permute.xlu0 0
  %4136 = vperm.xlu0 %4135, %v284
  %v4137 = vpop.permute.xlu0 %4136
  %v4140 = vunpack.c.l.s4 839922192
  %v4141 = vunpack.c.0.s8 %v4140
  %v4142 = vlaneseq
  %v4143 = vshrl.u32 %v4142, 7
  %v4144 = vsub.s32 %v4141, %v4143
  %v4145 = vrot.slane %v4137, %v4144
  %4147 = vset.pattern.permute.xlu0 0
  %4148 = vperm.xlu0 %4147, %v285
  %v4149 = vpop.permute.xlu0 %4148
  %v4152 = vunpack.c.l.s4 839922192
  %v4153 = vunpack.c.0.s8 %v4152
  %v4154 = vlaneseq
  %v4155 = vshrl.u32 %v4154, 7
  %v4156 = vsub.s32 %v4153, %v4155
  %v4157 = vrot.slane %v4149, %v4156
  %4159 = vset.pattern.permute.xlu0 0
  %4160 = vperm.xlu0 %4159, %v286
  %v4161 = vpop.permute.xlu0 %4160
  %v4164 = vunpack.c.l.s4 839922192
  %v4165 = vunpack.c.0.s8 %v4164
  %v4166 = vlaneseq
  %v4167 = vshrl.u32 %v4166, 7
  %v4168 = vsub.s32 %v4165, %v4167
  %v4169 = vrot.slane %v4161, %v4168
  %4171 = vset.pattern.permute.xlu0 0
  %4172 = vperm.xlu0 %4171, %v287
  %v4173 = vpop.permute.xlu0 %4172
  %v4176 = vunpack.c.l.s4 839922192
  %v4177 = vunpack.c.0.s8 %v4176
  %v4178 = vlaneseq
  %v4179 = vshrl.u32 %v4178, 7
  %v4180 = vsub.s32 %v4177, %v4179
  %v4181 = vrot.slane %v4173, %v4180
  %4183 = vset.pattern.permute.xlu0 0
  %4184 = vperm.xlu0 %4183, %v288
  %v4185 = vpop.permute.xlu0 %4184
  %v4188 = vunpack.c.l.s4 839922192
  %v4189 = vunpack.c.0.s8 %v4188
  %v4190 = vlaneseq
  %v4191 = vshrl.u32 %v4190, 7
  %v4192 = vsub.s32 %v4189, %v4191
  %v4193 = vrot.slane %v4185, %v4192
  %4195 = vset.pattern.permute.xlu0 0
  %4196 = vperm.xlu0 %4195, %v289
  %v4197 = vpop.permute.xlu0 %4196
  %v4200 = vunpack.c.l.s4 839922192
  %v4201 = vunpack.c.0.s8 %v4200
  %v4202 = vlaneseq
  %v4203 = vshrl.u32 %v4202, 7
  %v4204 = vsub.s32 %v4201, %v4203
  %v4205 = vrot.slane %v4197, %v4204
  %4207 = vset.pattern.permute.xlu0 0
  %4208 = vperm.xlu0 %4207, %v290
  %v4209 = vpop.permute.xlu0 %4208
  %v4212 = vunpack.c.l.s4 839922192
  %v4213 = vunpack.c.0.s8 %v4212
  %v4214 = vlaneseq
  %v4215 = vshrl.u32 %v4214, 7
  %v4216 = vsub.s32 %v4213, %v4215
  %v4217 = vrot.slane %v4209, %v4216
  %4219 = vset.pattern.permute.xlu0 0
  %4220 = vperm.xlu0 %4219, %v291
  %v4221 = vpop.permute.xlu0 %4220
  %v4224 = vunpack.c.l.s4 839922192
  %v4225 = vunpack.c.0.s8 %v4224
  %v4226 = vlaneseq
  %v4227 = vshrl.u32 %v4226, 7
  %v4228 = vsub.s32 %v4225, %v4227
  %v4229 = vrot.slane %v4221, %v4228
  %4231 = vset.pattern.permute.xlu0 0
  %4232 = vperm.xlu0 %4231, %v292
  %v4233 = vpop.permute.xlu0 %4232
  %v4236 = vunpack.c.l.s4 839922192
  %v4237 = vunpack.c.0.s8 %v4236
  %v4238 = vlaneseq
  %v4239 = vshrl.u32 %v4238, 7
  %v4240 = vsub.s32 %v4237, %v4239
  %v4241 = vrot.slane %v4233, %v4240
  %4243 = vset.pattern.permute.xlu0 0
  %4244 = vperm.xlu0 %4243, %v293
  %v4245 = vpop.permute.xlu0 %4244
  %v4248 = vunpack.c.l.s4 839922192
  %v4249 = vunpack.c.0.s8 %v4248
  %v4250 = vlaneseq
  %v4251 = vshrl.u32 %v4250, 7
  %v4252 = vsub.s32 %v4249, %v4251
  %v4253 = vrot.slane %v4245, %v4252
  %4255 = vset.pattern.permute.xlu0 0
  %4256 = vperm.xlu0 %4255, %v294
  %v4257 = vpop.permute.xlu0 %4256
  %v4260 = vunpack.c.l.s4 839922192
  %v4261 = vunpack.c.0.s8 %v4260
  %v4262 = vlaneseq
  %v4263 = vshrl.u32 %v4262, 7
  %v4264 = vsub.s32 %v4261, %v4263
  %v4265 = vrot.slane %v4257, %v4264
  %4267 = vset.pattern.permute.xlu0 0
  %4268 = vperm.xlu0 %4267, %v295
  %v4269 = vpop.permute.xlu0 %4268
  %v4272 = vunpack.c.l.s4 839922192
  %v4273 = vunpack.c.0.s8 %v4272
  %v4274 = vlaneseq
  %v4275 = vshrl.u32 %v4274, 7
  %v4276 = vsub.s32 %v4273, %v4275
  %v4277 = vrot.slane %v4269, %v4276
  %4279 = vset.pattern.permute.xlu0 0
  %4280 = vperm.xlu0 %4279, %v296
  %v4281 = vpop.permute.xlu0 %4280
  %v4284 = vunpack.c.l.s4 839922192
  %v4285 = vunpack.c.0.s8 %v4284
  %v4286 = vlaneseq
  %v4287 = vshrl.u32 %v4286, 7
  %v4288 = vsub.s32 %v4285, %v4287
  %v4289 = vrot.slane %v4281, %v4288
  %4291 = vset.pattern.permute.xlu0 0
  %4292 = vperm.xlu0 %4291, %v297
  %v4293 = vpop.permute.xlu0 %4292
  %v4296 = vunpack.c.l.s4 839922192
  %v4297 = vunpack.c.0.s8 %v4296
  %v4298 = vlaneseq
  %v4299 = vshrl.u32 %v4298, 7
  %v4300 = vsub.s32 %v4297, %v4299
  %v4301 = vrot.slane %v4293, %v4300
  %4303 = vset.pattern.permute.xlu0 0
  %4304 = vperm.xlu0 %4303, %v298
  %v4305 = vpop.permute.xlu0 %4304
  %v4308 = vunpack.c.l.s4 839922192
  %v4309 = vunpack.c.0.s8 %v4308
  %v4310 = vlaneseq
  %v4311 = vshrl.u32 %v4310, 7
  %v4312 = vsub.s32 %v4309, %v4311
  %v4313 = vrot.slane %v4305, %v4312
  %4315 = vset.pattern.permute.xlu0 0
  %4316 = vperm.xlu0 %4315, %v299
  %v4317 = vpop.permute.xlu0 %4316
  %v4320 = vunpack.c.l.s4 839922192
  %v4321 = vunpack.c.0.s8 %v4320
  %v4322 = vlaneseq
  %v4323 = vshrl.u32 %v4322, 7
  %v4324 = vsub.s32 %v4321, %v4323
  %v4325 = vrot.slane %v4317, %v4324
  %4327 = vset.pattern.permute.xlu0 0
  %4328 = vperm.xlu0 %4327, %v300
  %v4329 = vpop.permute.xlu0 %4328
  %v4332 = vunpack.c.l.s4 839922192
  %v4333 = vunpack.c.0.s8 %v4332
  %v4334 = vlaneseq
  %v4335 = vshrl.u32 %v4334, 7
  %v4336 = vsub.s32 %v4333, %v4335
  %v4337 = vrot.slane %v4329, %v4336
  %4339 = vset.pattern.permute.xlu0 0
  %4340 = vperm.xlu0 %4339, %v301
  %v4341 = vpop.permute.xlu0 %4340
  %v4344 = vunpack.c.l.s4 839922192
  %v4345 = vunpack.c.0.s8 %v4344
  %v4346 = vlaneseq
  %v4347 = vshrl.u32 %v4346, 7
  %v4348 = vsub.s32 %v4345, %v4347
  %v4349 = vrot.slane %v4341, %v4348
  %4351 = vset.pattern.permute.xlu0 0
  %4352 = vperm.xlu0 %4351, %v302
  %v4353 = vpop.permute.xlu0 %4352
  %v4356 = vunpack.c.l.s4 839922192
  %v4357 = vunpack.c.0.s8 %v4356
  %v4358 = vlaneseq
  %v4359 = vshrl.u32 %v4358, 7
  %v4360 = vsub.s32 %v4357, %v4359
  %v4361 = vrot.slane %v4353, %v4360
  %4363 = vset.pattern.permute.xlu0 0
  %4364 = vperm.xlu0 %4363, %v303
  %v4365 = vpop.permute.xlu0 %4364
  %v4368 = vunpack.c.l.s4 839922192
  %v4369 = vunpack.c.0.s8 %v4368
  %v4370 = vlaneseq
  %v4371 = vshrl.u32 %v4370, 7
  %v4372 = vsub.s32 %v4369, %v4371
  %v4373 = vrot.slane %v4365, %v4372
  %4375 = vset.pattern.permute.xlu0 0
  %4376 = vperm.xlu0 %4375, %v304
  %v4377 = vpop.permute.xlu0 %4376
  %v4380 = vunpack.c.l.s4 839922192
  %v4381 = vunpack.c.0.s8 %v4380
  %v4382 = vlaneseq
  %v4383 = vshrl.u32 %v4382, 7
  %v4384 = vsub.s32 %v4381, %v4383
  %v4385 = vrot.slane %v4377, %v4384
  %4387 = vset.pattern.permute.xlu0 0
  %4388 = vperm.xlu0 %4387, %v305
  %v4389 = vpop.permute.xlu0 %4388
  %v4392 = vunpack.c.l.s4 839922192
  %v4393 = vunpack.c.0.s8 %v4392
  %v4394 = vlaneseq
  %v4395 = vshrl.u32 %v4394, 7
  %v4396 = vsub.s32 %v4393, %v4395
  %v4397 = vrot.slane %v4389, %v4396
  %4399 = vset.pattern.permute.xlu0 0
  %4400 = vperm.xlu0 %4399, %v306
  %v4401 = vpop.permute.xlu0 %4400
  %v4404 = vunpack.c.l.s4 839922192
  %v4405 = vunpack.c.0.s8 %v4404
  %v4406 = vlaneseq
  %v4407 = vshrl.u32 %v4406, 7
  %v4408 = vsub.s32 %v4405, %v4407
  %v4409 = vrot.slane %v4401, %v4408
  %4411 = vset.pattern.permute.xlu0 0
  %4412 = vperm.xlu0 %4411, %v307
  %v4413 = vpop.permute.xlu0 %4412
  %v4416 = vunpack.c.l.s4 839922192
  %v4417 = vunpack.c.0.s8 %v4416
  %v4418 = vlaneseq
  %v4419 = vshrl.u32 %v4418, 7
  %v4420 = vsub.s32 %v4417, %v4419
  %v4421 = vrot.slane %v4413, %v4420
  %4423 = vset.pattern.permute.xlu0 0
  %4424 = vperm.xlu0 %4423, %v308
  %v4425 = vpop.permute.xlu0 %4424
  %v4428 = vunpack.c.l.s4 839922192
  %v4429 = vunpack.c.0.s8 %v4428
  %v4430 = vlaneseq
  %v4431 = vshrl.u32 %v4430, 7
  %v4432 = vsub.s32 %v4429, %v4431
  %v4433 = vrot.slane %v4425, %v4432
  %4435 = vset.pattern.permute.xlu0 0
  %4436 = vperm.xlu0 %4435, %v309
  %v4437 = vpop.permute.xlu0 %4436
  %v4440 = vunpack.c.l.s4 839922192
  %v4441 = vunpack.c.0.s8 %v4440
  %v4442 = vlaneseq
  %v4443 = vshrl.u32 %v4442, 7
  %v4444 = vsub.s32 %v4441, %v4443
  %v4445 = vrot.slane %v4437, %v4444
  %4447 = vset.pattern.permute.xlu0 0
  %4448 = vperm.xlu0 %4447, %v310
  %v4449 = vpop.permute.xlu0 %4448
  %v4452 = vunpack.c.l.s4 839922192
  %v4453 = vunpack.c.0.s8 %v4452
  %v4454 = vlaneseq
  %v4455 = vshrl.u32 %v4454, 7
  %v4456 = vsub.s32 %v4453, %v4455
  %v4457 = vrot.slane %v4449, %v4456
  %4459 = vset.pattern.permute.xlu0 0
  %4460 = vperm.xlu0 %4459, %v311
  %v4461 = vpop.permute.xlu0 %4460
  %v4464 = vunpack.c.l.s4 839922192
  %v4465 = vunpack.c.0.s8 %v4464
  %v4466 = vlaneseq
  %v4467 = vshrl.u32 %v4466, 7
  %v4468 = vsub.s32 %v4465, %v4467
  %v4469 = vrot.slane %v4461, %v4468
  %4471 = vset.pattern.permute.xlu0 0
  %4472 = vperm.xlu0 %4471, %v312
  %v4473 = vpop.permute.xlu0 %4472
  %v4476 = vunpack.c.l.s4 839922192
  %v4477 = vunpack.c.0.s8 %v4476
  %v4478 = vlaneseq
  %v4479 = vshrl.u32 %v4478, 7
  %v4480 = vsub.s32 %v4477, %v4479
  %v4481 = vrot.slane %v4473, %v4480
  %4483 = vset.pattern.permute.xlu0 0
  %4484 = vperm.xlu0 %4483, %v313
  %v4485 = vpop.permute.xlu0 %4484
  %v4488 = vunpack.c.l.s4 839922192
  %v4489 = vunpack.c.0.s8 %v4488
  %v4490 = vlaneseq
  %v4491 = vshrl.u32 %v4490, 7
  %v4492 = vsub.s32 %v4489, %v4491
  %v4493 = vrot.slane %v4485, %v4492
  %4495 = vset.pattern.permute.xlu0 0
  %4496 = vperm.xlu0 %4495, %v314
  %v4497 = vpop.permute.xlu0 %4496
  %v4500 = vunpack.c.l.s4 839922192
  %v4501 = vunpack.c.0.s8 %v4500
  %v4502 = vlaneseq
  %v4503 = vshrl.u32 %v4502, 7
  %v4504 = vsub.s32 %v4501, %v4503
  %v4505 = vrot.slane %v4497, %v4504
  %4507 = vset.pattern.permute.xlu0 0
  %4508 = vperm.xlu0 %4507, %v315
  %v4509 = vpop.permute.xlu0 %4508
  %v4512 = vunpack.c.l.s4 839922192
  %v4513 = vunpack.c.0.s8 %v4512
  %v4514 = vlaneseq
  %v4515 = vshrl.u32 %v4514, 7
  %v4516 = vsub.s32 %v4513, %v4515
  %v4517 = vrot.slane %v4509, %v4516
  %4519 = vset.pattern.permute.xlu0 0
  %4520 = vperm.xlu0 %4519, %v316
  %v4521 = vpop.permute.xlu0 %4520
  %v4524 = vunpack.c.l.s4 839922192
  %v4525 = vunpack.c.0.s8 %v4524
  %v4526 = vlaneseq
  %v4527 = vshrl.u32 %v4526, 7
  %v4528 = vsub.s32 %v4525, %v4527
  %v4529 = vrot.slane %v4521, %v4528
  %4531 = vset.pattern.permute.xlu0 0
  %4532 = vperm.xlu0 %4531, %v317
  %v4533 = vpop.permute.xlu0 %4532
  %v4536 = vunpack.c.l.s4 839922192
  %v4537 = vunpack.c.0.s8 %v4536
  %v4538 = vlaneseq
  %v4539 = vshrl.u32 %v4538, 7
  %v4540 = vsub.s32 %v4537, %v4539
  %v4541 = vrot.slane %v4533, %v4540
  %4543 = vset.pattern.permute.xlu0 0
  %4544 = vperm.xlu0 %4543, %v318
  %v4545 = vpop.permute.xlu0 %4544
  %v4548 = vunpack.c.l.s4 839922192
  %v4549 = vunpack.c.0.s8 %v4548
  %v4550 = vlaneseq
  %v4551 = vshrl.u32 %v4550, 7
  %v4552 = vsub.s32 %v4549, %v4551
  %v4553 = vrot.slane %v4545, %v4552
  %4555 = vset.pattern.permute.xlu0 0
  %4556 = vperm.xlu0 %4555, %v319
  %v4557 = vpop.permute.xlu0 %4556
  %v4560 = vunpack.c.l.s4 839922192
  %v4561 = vunpack.c.0.s8 %v4560
  %v4562 = vlaneseq
  %v4563 = vshrl.u32 %v4562, 7
  %v4564 = vsub.s32 %v4561, %v4563
  %v4565 = vrot.slane %v4557, %v4564
  %4567 = vset.pattern.permute.xlu0 0
  %4568 = vperm.xlu0 %4567, %v320
  %v4569 = vpop.permute.xlu0 %4568
  %v4572 = vunpack.c.l.s4 839922192
  %v4573 = vunpack.c.0.s8 %v4572
  %v4574 = vlaneseq
  %v4575 = vshrl.u32 %v4574, 7
  %v4576 = vsub.s32 %v4573, %v4575
  %v4577 = vrot.slane %v4569, %v4576
  %4579 = vset.pattern.permute.xlu0 0
  %4580 = vperm.xlu0 %4579, %v321
  %v4581 = vpop.permute.xlu0 %4580
  %v4584 = vunpack.c.l.s4 839922192
  %v4585 = vunpack.c.0.s8 %v4584
  %v4586 = vlaneseq
  %v4587 = vshrl.u32 %v4586, 7
  %v4588 = vsub.s32 %v4585, %v4587
  %v4589 = vrot.slane %v4581, %v4588
  %4591 = vset.pattern.permute.xlu0 0
  %4592 = vperm.xlu0 %4591, %v322
  %v4593 = vpop.permute.xlu0 %4592
  %v4596 = vunpack.c.l.s4 839922192
  %v4597 = vunpack.c.0.s8 %v4596
  %v4598 = vlaneseq
  %v4599 = vshrl.u32 %v4598, 7
  %v4600 = vsub.s32 %v4597, %v4599
  %v4601 = vrot.slane %v4593, %v4600
  %4603 = vset.pattern.permute.xlu0 0
  %4604 = vperm.xlu0 %4603, %v323
  %v4605 = vpop.permute.xlu0 %4604
  %v4608 = vunpack.c.l.s4 839922192
  %v4609 = vunpack.c.0.s8 %v4608
  %v4610 = vlaneseq
  %v4611 = vshrl.u32 %v4610, 7
  %v4612 = vsub.s32 %v4609, %v4611
  %v4613 = vrot.slane %v4605, %v4612
  %4615 = vset.pattern.permute.xlu0 0
  %4616 = vperm.xlu0 %4615, %v324
  %v4617 = vpop.permute.xlu0 %4616
  %v4620 = vunpack.c.l.s4 839922192
  %v4621 = vunpack.c.0.s8 %v4620
  %v4622 = vlaneseq
  %v4623 = vshrl.u32 %v4622, 7
  %v4624 = vsub.s32 %v4621, %v4623
  %v4625 = vrot.slane %v4617, %v4624
  %4627 = vset.pattern.permute.xlu0 0
  %4628 = vperm.xlu0 %4627, %v325
  %v4629 = vpop.permute.xlu0 %4628
  %v4632 = vunpack.c.l.s4 839922192
  %v4633 = vunpack.c.0.s8 %v4632
  %v4634 = vlaneseq
  %v4635 = vshrl.u32 %v4634, 7
  %v4636 = vsub.s32 %v4633, %v4635
  %v4637 = vrot.slane %v4629, %v4636
  %4639 = vset.pattern.permute.xlu0 0
  %4640 = vperm.xlu0 %4639, %v326
  %v4641 = vpop.permute.xlu0 %4640
  %v4644 = vunpack.c.l.s4 839922192
  %v4645 = vunpack.c.0.s8 %v4644
  %v4646 = vlaneseq
  %v4647 = vshrl.u32 %v4646, 7
  %v4648 = vsub.s32 %v4645, %v4647
  %v4649 = vrot.slane %v4641, %v4648
  %4651 = vset.pattern.permute.xlu0 0
  %4652 = vperm.xlu0 %4651, %v327
  %v4653 = vpop.permute.xlu0 %4652
  %v4656 = vunpack.c.l.s4 839922192
  %v4657 = vunpack.c.0.s8 %v4656
  %v4658 = vlaneseq
  %v4659 = vshrl.u32 %v4658, 7
  %v4660 = vsub.s32 %v4657, %v4659
  %v4661 = vrot.slane %v4653, %v4660
  %4663 = vset.pattern.permute.xlu0 0
  %4664 = vperm.xlu0 %4663, %v328
  %v4665 = vpop.permute.xlu0 %4664
  %v4668 = vunpack.c.l.s4 839922192
  %v4669 = vunpack.c.0.s8 %v4668
  %v4670 = vlaneseq
  %v4671 = vshrl.u32 %v4670, 7
  %v4672 = vsub.s32 %v4669, %v4671
  %v4673 = vrot.slane %v4665, %v4672
  %4675 = vset.pattern.permute.xlu0 0
  %4676 = vperm.xlu0 %4675, %v329
  %v4677 = vpop.permute.xlu0 %4676
  %v4680 = vunpack.c.l.s4 839922192
  %v4681 = vunpack.c.0.s8 %v4680
  %v4682 = vlaneseq
  %v4683 = vshrl.u32 %v4682, 7
  %v4684 = vsub.s32 %v4681, %v4683
  %v4685 = vrot.slane %v4677, %v4684
  %4687 = vset.pattern.permute.xlu0 0
  %4688 = vperm.xlu0 %4687, %v330
  %v4689 = vpop.permute.xlu0 %4688
  %v4692 = vunpack.c.l.s4 839922192
  %v4693 = vunpack.c.0.s8 %v4692
  %v4694 = vlaneseq
  %v4695 = vshrl.u32 %v4694, 7
  %v4696 = vsub.s32 %v4693, %v4695
  %v4697 = vrot.slane %v4689, %v4696
  %4699 = vset.pattern.permute.xlu0 0
  %4700 = vperm.xlu0 %4699, %v331
  %v4701 = vpop.permute.xlu0 %4700
  %v4704 = vunpack.c.l.s4 839922192
  %v4705 = vunpack.c.0.s8 %v4704
  %v4706 = vlaneseq
  %v4707 = vshrl.u32 %v4706, 7
  %v4708 = vsub.s32 %v4705, %v4707
  %v4709 = vrot.slane %v4701, %v4708
  %4711 = vset.pattern.permute.xlu0 0
  %4712 = vperm.xlu0 %4711, %v332
  %v4713 = vpop.permute.xlu0 %4712
  %v4716 = vunpack.c.l.s4 839922192
  %v4717 = vunpack.c.0.s8 %v4716
  %v4718 = vlaneseq
  %v4719 = vshrl.u32 %v4718, 7
  %v4720 = vsub.s32 %v4717, %v4719
  %v4721 = vrot.slane %v4713, %v4720
  %4723 = vset.pattern.permute.xlu0 0
  %4724 = vperm.xlu0 %4723, %v333
  %v4725 = vpop.permute.xlu0 %4724
  %v4728 = vunpack.c.l.s4 839922192
  %v4729 = vunpack.c.0.s8 %v4728
  %v4730 = vlaneseq
  %v4731 = vshrl.u32 %v4730, 7
  %v4732 = vsub.s32 %v4729, %v4731
  %v4733 = vrot.slane %v4725, %v4732
  %4735 = vset.pattern.permute.xlu0 0
  %4736 = vperm.xlu0 %4735, %v334
  %v4737 = vpop.permute.xlu0 %4736
  %v4740 = vunpack.c.l.s4 839922192
  %v4741 = vunpack.c.0.s8 %v4740
  %v4742 = vlaneseq
  %v4743 = vshrl.u32 %v4742, 7
  %v4744 = vsub.s32 %v4741, %v4743
  %v4745 = vrot.slane %v4737, %v4744
  %4747 = vset.pattern.permute.xlu0 0
  %4748 = vperm.xlu0 %4747, %v335
  %v4749 = vpop.permute.xlu0 %4748
  %v4752 = vunpack.c.l.s4 839922192
  %v4753 = vunpack.c.0.s8 %v4752
  %v4754 = vlaneseq
  %v4755 = vshrl.u32 %v4754, 7
  %v4756 = vsub.s32 %v4753, %v4755
  %v4757 = vrot.slane %v4749, %v4756
  %4759 = vset.pattern.permute.xlu0 0
  %4760 = vperm.xlu0 %4759, %v336
  %v4761 = vpop.permute.xlu0 %4760
  %v4764 = vunpack.c.l.s4 839922192
  %v4765 = vunpack.c.0.s8 %v4764
  %v4766 = vlaneseq
  %v4767 = vshrl.u32 %v4766, 7
  %v4768 = vsub.s32 %v4765, %v4767
  %v4769 = vrot.slane %v4761, %v4768
  %4771 = vset.pattern.permute.xlu0 0
  %4772 = vperm.xlu0 %4771, %v337
  %v4773 = vpop.permute.xlu0 %4772
  %v4776 = vunpack.c.l.s4 839922192
  %v4777 = vunpack.c.0.s8 %v4776
  %v4778 = vlaneseq
  %v4779 = vshrl.u32 %v4778, 7
  %v4780 = vsub.s32 %v4777, %v4779
  %v4781 = vrot.slane %v4773, %v4780
  %4783 = vset.pattern.permute.xlu0 0
  %4784 = vperm.xlu0 %4783, %v338
  %v4785 = vpop.permute.xlu0 %4784
  %v4788 = vunpack.c.l.s4 839922192
  %v4789 = vunpack.c.0.s8 %v4788
  %v4790 = vlaneseq
  %v4791 = vshrl.u32 %v4790, 7
  %v4792 = vsub.s32 %v4789, %v4791
  %v4793 = vrot.slane %v4785, %v4792
  %4795 = vset.pattern.permute.xlu0 0
  %4796 = vperm.xlu0 %4795, %v339
  %v4797 = vpop.permute.xlu0 %4796
  %v4800 = vunpack.c.l.s4 839922192
  %v4801 = vunpack.c.0.s8 %v4800
  %v4802 = vlaneseq
  %v4803 = vshrl.u32 %v4802, 7
  %v4804 = vsub.s32 %v4801, %v4803
  %v4805 = vrot.slane %v4797, %v4804
  %4807 = vset.pattern.permute.xlu0 0
  %4808 = vperm.xlu0 %4807, %v340
  %v4809 = vpop.permute.xlu0 %4808
  %v4812 = vunpack.c.l.s4 839922192
  %v4813 = vunpack.c.0.s8 %v4812
  %v4814 = vlaneseq
  %v4815 = vshrl.u32 %v4814, 7
  %v4816 = vsub.s32 %v4813, %v4815
  %v4817 = vrot.slane %v4809, %v4816
  %4819 = vset.pattern.permute.xlu0 0
  %4820 = vperm.xlu0 %4819, %v341
  %v4821 = vpop.permute.xlu0 %4820
  %v4824 = vunpack.c.l.s4 839922192
  %v4825 = vunpack.c.0.s8 %v4824
  %v4826 = vlaneseq
  %v4827 = vshrl.u32 %v4826, 7
  %v4828 = vsub.s32 %v4825, %v4827
  %v4829 = vrot.slane %v4821, %v4828
  %4831 = vset.pattern.permute.xlu0 0
  %4832 = vperm.xlu0 %4831, %v342
  %v4833 = vpop.permute.xlu0 %4832
  %v4836 = vunpack.c.l.s4 839922192
  %v4837 = vunpack.c.0.s8 %v4836
  %v4838 = vlaneseq
  %v4839 = vshrl.u32 %v4838, 7
  %v4840 = vsub.s32 %v4837, %v4839
  %v4841 = vrot.slane %v4833, %v4840
  %4843 = vset.pattern.permute.xlu0 0
  %4844 = vperm.xlu0 %4843, %v343
  %v4845 = vpop.permute.xlu0 %4844
  %v4848 = vunpack.c.l.s4 839922192
  %v4849 = vunpack.c.0.s8 %v4848
  %v4850 = vlaneseq
  %v4851 = vshrl.u32 %v4850, 7
  %v4852 = vsub.s32 %v4849, %v4851
  %v4853 = vrot.slane %v4845, %v4852
  %4855 = vset.pattern.permute.xlu0 0
  %4856 = vperm.xlu0 %4855, %v344
  %v4857 = vpop.permute.xlu0 %4856
  %v4860 = vunpack.c.l.s4 839922192
  %v4861 = vunpack.c.0.s8 %v4860
  %v4862 = vlaneseq
  %v4863 = vshrl.u32 %v4862, 7
  %v4864 = vsub.s32 %v4861, %v4863
  %v4865 = vrot.slane %v4857, %v4864
  %4867 = vset.pattern.permute.xlu0 0
  %4868 = vperm.xlu0 %4867, %v345
  %v4869 = vpop.permute.xlu0 %4868
  %v4872 = vunpack.c.l.s4 839922192
  %v4873 = vunpack.c.0.s8 %v4872
  %v4874 = vlaneseq
  %v4875 = vshrl.u32 %v4874, 7
  %v4876 = vsub.s32 %v4873, %v4875
  %v4877 = vrot.slane %v4869, %v4876
  %4879 = vset.pattern.permute.xlu0 0
  %4880 = vperm.xlu0 %4879, %v346
  %v4881 = vpop.permute.xlu0 %4880
  %v4884 = vunpack.c.l.s4 839922192
  %v4885 = vunpack.c.0.s8 %v4884
  %v4886 = vlaneseq
  %v4887 = vshrl.u32 %v4886, 7
  %v4888 = vsub.s32 %v4885, %v4887
  %v4889 = vrot.slane %v4881, %v4888
  %4891 = vset.pattern.permute.xlu0 0
  %4892 = vperm.xlu0 %4891, %v347
  %v4893 = vpop.permute.xlu0 %4892
  %v4896 = vunpack.c.l.s4 839922192
  %v4897 = vunpack.c.0.s8 %v4896
  %v4898 = vlaneseq
  %v4899 = vshrl.u32 %v4898, 7
  %v4900 = vsub.s32 %v4897, %v4899
  %v4901 = vrot.slane %v4893, %v4900
  %4903 = vset.pattern.permute.xlu0 0
  %4904 = vperm.xlu0 %4903, %v348
  %v4905 = vpop.permute.xlu0 %4904
  %v4908 = vunpack.c.l.s4 839922192
  %v4909 = vunpack.c.0.s8 %v4908
  %v4910 = vlaneseq
  %v4911 = vshrl.u32 %v4910, 7
  %v4912 = vsub.s32 %v4909, %v4911
  %v4913 = vrot.slane %v4905, %v4912
  %4915 = vset.pattern.permute.xlu0 0
  %4916 = vperm.xlu0 %4915, %v349
  %v4917 = vpop.permute.xlu0 %4916
  %v4920 = vunpack.c.l.s4 839922192
  %v4921 = vunpack.c.0.s8 %v4920
  %v4922 = vlaneseq
  %v4923 = vshrl.u32 %v4922, 7
  %v4924 = vsub.s32 %v4921, %v4923
  %v4925 = vrot.slane %v4917, %v4924
  %4927 = vset.pattern.permute.xlu0 0
  %4928 = vperm.xlu0 %4927, %v350
  %v4929 = vpop.permute.xlu0 %4928
  %v4932 = vunpack.c.l.s4 839922192
  %v4933 = vunpack.c.0.s8 %v4932
  %v4934 = vlaneseq
  %v4935 = vshrl.u32 %v4934, 7
  %v4936 = vsub.s32 %v4933, %v4935
  %v4937 = vrot.slane %v4929, %v4936
  %4939 = vset.pattern.permute.xlu0 0
  %4940 = vperm.xlu0 %4939, %v351
  %v4941 = vpop.permute.xlu0 %4940
  %v4944 = vunpack.c.l.s4 839922192
  %v4945 = vunpack.c.0.s8 %v4944
  %v4946 = vlaneseq
  %v4947 = vshrl.u32 %v4946, 7
  %v4948 = vsub.s32 %v4945, %v4947
  %v4949 = vrot.slane %v4941, %v4948
  %4951 = vset.pattern.permute.xlu0 0
  %4952 = vperm.xlu0 %4951, %v352
  %v4953 = vpop.permute.xlu0 %4952
  %v4956 = vunpack.c.l.s4 839922192
  %v4957 = vunpack.c.0.s8 %v4956
  %v4958 = vlaneseq
  %v4959 = vshrl.u32 %v4958, 7
  %v4960 = vsub.s32 %v4957, %v4959
  %v4961 = vrot.slane %v4953, %v4960
  %4963 = vset.pattern.permute.xlu0 0
  %4964 = vperm.xlu0 %4963, %v353
  %v4965 = vpop.permute.xlu0 %4964
  %v4968 = vunpack.c.l.s4 839922192
  %v4969 = vunpack.c.0.s8 %v4968
  %v4970 = vlaneseq
  %v4971 = vshrl.u32 %v4970, 7
  %v4972 = vsub.s32 %v4969, %v4971
  %v4973 = vrot.slane %v4965, %v4972
  %4975 = vset.pattern.permute.xlu0 0
  %4976 = vperm.xlu0 %4975, %v354
  %v4977 = vpop.permute.xlu0 %4976
  %v4980 = vunpack.c.l.s4 839922192
  %v4981 = vunpack.c.0.s8 %v4980
  %v4982 = vlaneseq
  %v4983 = vshrl.u32 %v4982, 7
  %v4984 = vsub.s32 %v4981, %v4983
  %v4985 = vrot.slane %v4977, %v4984
  %4987 = vset.pattern.permute.xlu0 0
  %4988 = vperm.xlu0 %4987, %v355
  %v4989 = vpop.permute.xlu0 %4988
  %v4992 = vunpack.c.l.s4 839922192
  %v4993 = vunpack.c.0.s8 %v4992
  %v4994 = vlaneseq
  %v4995 = vshrl.u32 %v4994, 7
  %v4996 = vsub.s32 %v4993, %v4995
  %v4997 = vrot.slane %v4989, %v4996
  %4999 = vset.pattern.permute.xlu0 0
  %5000 = vperm.xlu0 %4999, %v356
  %v5001 = vpop.permute.xlu0 %5000
  %v5004 = vunpack.c.l.s4 839922192
  %v5005 = vunpack.c.0.s8 %v5004
  %v5006 = vlaneseq
  %v5007 = vshrl.u32 %v5006, 7
  %v5008 = vsub.s32 %v5005, %v5007
  %v5009 = vrot.slane %v5001, %v5008
  %5011 = vset.pattern.permute.xlu0 0
  %5012 = vperm.xlu0 %5011, %v357
  %v5013 = vpop.permute.xlu0 %5012
  %v5016 = vunpack.c.l.s4 839922192
  %v5017 = vunpack.c.0.s8 %v5016
  %v5018 = vlaneseq
  %v5019 = vshrl.u32 %v5018, 7
  %v5020 = vsub.s32 %v5017, %v5019
  %v5021 = vrot.slane %v5013, %v5020
  %5023 = vset.pattern.permute.xlu0 0
  %5024 = vperm.xlu0 %5023, %v358
  %v5025 = vpop.permute.xlu0 %5024
  %v5028 = vunpack.c.l.s4 839922192
  %v5029 = vunpack.c.0.s8 %v5028
  %v5030 = vlaneseq
  %v5031 = vshrl.u32 %v5030, 7
  %v5032 = vsub.s32 %v5029, %v5031
  %v5033 = vrot.slane %v5025, %v5032
  %5035 = vset.pattern.permute.xlu0 0
  %5036 = vperm.xlu0 %5035, %v359
  %v5037 = vpop.permute.xlu0 %5036
  %v5040 = vunpack.c.l.s4 839922192
  %v5041 = vunpack.c.0.s8 %v5040
  %v5042 = vlaneseq
  %v5043 = vshrl.u32 %v5042, 7
  %v5044 = vsub.s32 %v5041, %v5043
  %v5045 = vrot.slane %v5037, %v5044
  %5047 = vset.pattern.permute.xlu0 0
  %5048 = vperm.xlu0 %5047, %v360
  %v5049 = vpop.permute.xlu0 %5048
  %v5052 = vunpack.c.l.s4 839922192
  %v5053 = vunpack.c.0.s8 %v5052
  %v5054 = vlaneseq
  %v5055 = vshrl.u32 %v5054, 7
  %v5056 = vsub.s32 %v5053, %v5055
  %v5057 = vrot.slane %v5049, %v5056
  %5059 = vset.pattern.permute.xlu0 0
  %5060 = vperm.xlu0 %5059, %v361
  %v5061 = vpop.permute.xlu0 %5060
  %v5064 = vunpack.c.l.s4 839922192
  %v5065 = vunpack.c.0.s8 %v5064
  %v5066 = vlaneseq
  %v5067 = vshrl.u32 %v5066, 7
  %v5068 = vsub.s32 %v5065, %v5067
  %v5069 = vrot.slane %v5061, %v5068
  %5071 = vset.pattern.permute.xlu0 0
  %5072 = vperm.xlu0 %5071, %v362
  %v5073 = vpop.permute.xlu0 %5072
  %v5076 = vunpack.c.l.s4 839922192
  %v5077 = vunpack.c.0.s8 %v5076
  %v5078 = vlaneseq
  %v5079 = vshrl.u32 %v5078, 7
  %v5080 = vsub.s32 %v5077, %v5079
  %v5081 = vrot.slane %v5073, %v5080
  %5083 = vset.pattern.permute.xlu0 0
  %5084 = vperm.xlu0 %5083, %v363
  %v5085 = vpop.permute.xlu0 %5084
  %v5088 = vunpack.c.l.s4 839922192
  %v5089 = vunpack.c.0.s8 %v5088
  %v5090 = vlaneseq
  %v5091 = vshrl.u32 %v5090, 7
  %v5092 = vsub.s32 %v5089, %v5091
  %v5093 = vrot.slane %v5085, %v5092
  %5095 = vset.pattern.permute.xlu0 0
  %5096 = vperm.xlu0 %5095, %v364
  %v5097 = vpop.permute.xlu0 %5096
  %v5100 = vunpack.c.l.s4 839922192
  %v5101 = vunpack.c.0.s8 %v5100
  %v5102 = vlaneseq
  %v5103 = vshrl.u32 %v5102, 7
  %v5104 = vsub.s32 %v5101, %v5103
  %v5105 = vrot.slane %v5097, %v5104
  %5107 = vset.pattern.permute.xlu0 0
  %5108 = vperm.xlu0 %5107, %v365
  %v5109 = vpop.permute.xlu0 %5108
  %v5112 = vunpack.c.l.s4 839922192
  %v5113 = vunpack.c.0.s8 %v5112
  %v5114 = vlaneseq
  %v5115 = vshrl.u32 %v5114, 7
  %v5116 = vsub.s32 %v5113, %v5115
  %v5117 = vrot.slane %v5109, %v5116
  %5119 = vset.pattern.permute.xlu0 0
  %5120 = vperm.xlu0 %5119, %v366
  %v5121 = vpop.permute.xlu0 %5120
  %v5124 = vunpack.c.l.s4 839922192
  %v5125 = vunpack.c.0.s8 %v5124
  %v5126 = vlaneseq
  %v5127 = vshrl.u32 %v5126, 7
  %v5128 = vsub.s32 %v5125, %v5127
  %v5129 = vrot.slane %v5121, %v5128
  %5131 = vset.pattern.permute.xlu0 0
  %5132 = vperm.xlu0 %5131, %v367
  %v5133 = vpop.permute.xlu0 %5132
  %v5136 = vunpack.c.l.s4 839922192
  %v5137 = vunpack.c.0.s8 %v5136
  %v5138 = vlaneseq
  %v5139 = vshrl.u32 %v5138, 7
  %v5140 = vsub.s32 %v5137, %v5139
  %v5141 = vrot.slane %v5133, %v5140
  %5143 = vset.pattern.permute.xlu0 0
  %5144 = vperm.xlu0 %5143, %v368
  %v5145 = vpop.permute.xlu0 %5144
  %v5148 = vunpack.c.l.s4 839922192
  %v5149 = vunpack.c.0.s8 %v5148
  %v5150 = vlaneseq
  %v5151 = vshrl.u32 %v5150, 7
  %v5152 = vsub.s32 %v5149, %v5151
  %v5153 = vrot.slane %v5145, %v5152
  %5155 = vset.pattern.permute.xlu0 0
  %5156 = vperm.xlu0 %5155, %v369
  %v5157 = vpop.permute.xlu0 %5156
  %v5160 = vunpack.c.l.s4 839922192
  %v5161 = vunpack.c.0.s8 %v5160
  %v5162 = vlaneseq
  %v5163 = vshrl.u32 %v5162, 7
  %v5164 = vsub.s32 %v5161, %v5163
  %v5165 = vrot.slane %v5157, %v5164
  %5167 = vset.pattern.permute.xlu0 0
  %5168 = vperm.xlu0 %5167, %v370
  %v5169 = vpop.permute.xlu0 %5168
  %v5172 = vunpack.c.l.s4 839922192
  %v5173 = vunpack.c.0.s8 %v5172
  %v5174 = vlaneseq
  %v5175 = vshrl.u32 %v5174, 7
  %v5176 = vsub.s32 %v5173, %v5175
  %v5177 = vrot.slane %v5169, %v5176
  %5179 = vset.pattern.permute.xlu0 0
  %5180 = vperm.xlu0 %5179, %v371
  %v5181 = vpop.permute.xlu0 %5180
  %v5184 = vunpack.c.l.s4 839922192
  %v5185 = vunpack.c.0.s8 %v5184
  %v5186 = vlaneseq
  %v5187 = vshrl.u32 %v5186, 7
  %v5188 = vsub.s32 %v5185, %v5187
  %v5189 = vrot.slane %v5181, %v5188
  %5191 = vset.pattern.permute.xlu0 0
  %5192 = vperm.xlu0 %5191, %v372
  %v5193 = vpop.permute.xlu0 %5192
  %v5196 = vunpack.c.l.s4 839922192
  %v5197 = vunpack.c.0.s8 %v5196
  %v5198 = vlaneseq
  %v5199 = vshrl.u32 %v5198, 7
  %v5200 = vsub.s32 %v5197, %v5199
  %v5201 = vrot.slane %v5193, %v5200
  %5203 = vset.pattern.permute.xlu0 0
  %5204 = vperm.xlu0 %5203, %v373
  %v5205 = vpop.permute.xlu0 %5204
  %v5208 = vunpack.c.l.s4 839922192
  %v5209 = vunpack.c.0.s8 %v5208
  %v5210 = vlaneseq
  %v5211 = vshrl.u32 %v5210, 7
  %v5212 = vsub.s32 %v5209, %v5211
  %v5213 = vrot.slane %v5205, %v5212
  %5215 = vset.pattern.permute.xlu0 0
  %5216 = vperm.xlu0 %5215, %v374
  %v5217 = vpop.permute.xlu0 %5216
  %v5220 = vunpack.c.l.s4 839922192
  %v5221 = vunpack.c.0.s8 %v5220
  %v5222 = vlaneseq
  %v5223 = vshrl.u32 %v5222, 7
  %v5224 = vsub.s32 %v5221, %v5223
  %v5225 = vrot.slane %v5217, %v5224
  %5227 = vset.pattern.permute.xlu0 0
  %5228 = vperm.xlu0 %5227, %v375
  %v5229 = vpop.permute.xlu0 %5228
  %v5232 = vunpack.c.l.s4 839922192
  %v5233 = vunpack.c.0.s8 %v5232
  %v5234 = vlaneseq
  %v5235 = vshrl.u32 %v5234, 7
  %v5236 = vsub.s32 %v5233, %v5235
  %v5237 = vrot.slane %v5229, %v5236
  %5239 = vset.pattern.permute.xlu0 0
  %5240 = vperm.xlu0 %5239, %v376
  %v5241 = vpop.permute.xlu0 %5240
  %v5244 = vunpack.c.l.s4 839922192
  %v5245 = vunpack.c.0.s8 %v5244
  %v5246 = vlaneseq
  %v5247 = vshrl.u32 %v5246, 7
  %v5248 = vsub.s32 %v5245, %v5247
  %v5249 = vrot.slane %v5241, %v5248
  %5251 = vset.pattern.permute.xlu0 0
  %5252 = vperm.xlu0 %5251, %v377
  %v5253 = vpop.permute.xlu0 %5252
  %v5256 = vunpack.c.l.s4 839922192
  %v5257 = vunpack.c.0.s8 %v5256
  %v5258 = vlaneseq
  %v5259 = vshrl.u32 %v5258, 7
  %v5260 = vsub.s32 %v5257, %v5259
  %v5261 = vrot.slane %v5253, %v5260
  %5263 = vset.pattern.permute.xlu0 0
  %5264 = vperm.xlu0 %5263, %v378
  %v5265 = vpop.permute.xlu0 %5264
  %v5268 = vunpack.c.l.s4 839922192
  %v5269 = vunpack.c.0.s8 %v5268
  %v5270 = vlaneseq
  %v5271 = vshrl.u32 %v5270, 7
  %v5272 = vsub.s32 %v5269, %v5271
  %v5273 = vrot.slane %v5265, %v5272
  %5275 = vset.pattern.permute.xlu0 0
  %5276 = vperm.xlu0 %5275, %v379
  %v5277 = vpop.permute.xlu0 %5276
  %v5280 = vunpack.c.l.s4 839922192
  %v5281 = vunpack.c.0.s8 %v5280
  %v5282 = vlaneseq
  %v5283 = vshrl.u32 %v5282, 7
  %v5284 = vsub.s32 %v5281, %v5283
  %v5285 = vrot.slane %v5277, %v5284
  %5287 = vset.pattern.permute.xlu0 0
  %5288 = vperm.xlu0 %5287, %v380
  %v5289 = vpop.permute.xlu0 %5288
  %v5292 = vunpack.c.l.s4 839922192
  %v5293 = vunpack.c.0.s8 %v5292
  %v5294 = vlaneseq
  %v5295 = vshrl.u32 %v5294, 7
  %v5296 = vsub.s32 %v5293, %v5295
  %v5297 = vrot.slane %v5289, %v5296
  %5299 = vset.pattern.permute.xlu0 0
  %5300 = vperm.xlu0 %5299, %v381
  %v5301 = vpop.permute.xlu0 %5300
  %v5304 = vunpack.c.l.s4 839922192
  %v5305 = vunpack.c.0.s8 %v5304
  %v5306 = vlaneseq
  %v5307 = vshrl.u32 %v5306, 7
  %v5308 = vsub.s32 %v5305, %v5307
  %v5309 = vrot.slane %v5301, %v5308
  %5311 = vset.pattern.permute.xlu0 0
  %5312 = vperm.xlu0 %5311, %v382
  %v5313 = vpop.permute.xlu0 %5312
  %v5316 = vunpack.c.l.s4 839922192
  %v5317 = vunpack.c.0.s8 %v5316
  %v5318 = vlaneseq
  %v5319 = vshrl.u32 %v5318, 7
  %v5320 = vsub.s32 %v5317, %v5319
  %v5321 = vrot.slane %v5313, %v5320
  %5323 = vset.pattern.permute.xlu0 0
  %5324 = vperm.xlu0 %5323, %v383
  %v5325 = vpop.permute.xlu0 %5324
  %v5328 = vunpack.c.l.s4 839922192
  %v5329 = vunpack.c.0.s8 %v5328
  %v5330 = vlaneseq
  %v5331 = vshrl.u32 %v5330, 7
  %v5332 = vsub.s32 %v5329, %v5331
  %v5333 = vrot.slane %v5325, %v5332
  %5335 = vset.pattern.permute.xlu0 0
  %5336 = vperm.xlu0 %5335, %v384
  %v5337 = vpop.permute.xlu0 %5336
  %v5340 = vunpack.c.l.s4 839922192
  %v5341 = vunpack.c.0.s8 %v5340
  %v5342 = vlaneseq
  %v5343 = vshrl.u32 %v5342, 7
  %v5344 = vsub.s32 %v5341, %v5343
  %v5345 = vrot.slane %v5337, %v5344
  %5347 = vset.pattern.permute.xlu0 0
  %5348 = vperm.xlu0 %5347, %v385
  %v5349 = vpop.permute.xlu0 %5348
  %v5352 = vunpack.c.l.s4 839922192
  %v5353 = vunpack.c.0.s8 %v5352
  %v5354 = vlaneseq
  %v5355 = vshrl.u32 %v5354, 7
  %v5356 = vsub.s32 %v5353, %v5355
  %v5357 = vrot.slane %v5349, %v5356
  %5359 = vset.pattern.permute.xlu0 0
  %5360 = vperm.xlu0 %5359, %v386
  %v5361 = vpop.permute.xlu0 %5360
  %v5364 = vunpack.c.l.s4 839922192
  %v5365 = vunpack.c.0.s8 %v5364
  %v5366 = vlaneseq
  %v5367 = vshrl.u32 %v5366, 7
  %v5368 = vsub.s32 %v5365, %v5367
  %v5369 = vrot.slane %v5361, %v5368
  %5371 = vset.pattern.permute.xlu0 0
  %5372 = vperm.xlu0 %5371, %v387
  %v5373 = vpop.permute.xlu0 %5372
  %v5376 = vunpack.c.l.s4 839922192
  %v5377 = vunpack.c.0.s8 %v5376
  %v5378 = vlaneseq
  %v5379 = vshrl.u32 %v5378, 7
  %v5380 = vsub.s32 %v5377, %v5379
  %v5381 = vrot.slane %v5373, %v5380
  %5383 = vset.pattern.permute.xlu0 0
  %5384 = vperm.xlu0 %5383, %v388
  %v5385 = vpop.permute.xlu0 %5384
  %v5388 = vunpack.c.l.s4 839922192
  %v5389 = vunpack.c.0.s8 %v5388
  %v5390 = vlaneseq
  %v5391 = vshrl.u32 %v5390, 7
  %v5392 = vsub.s32 %v5389, %v5391
  %v5393 = vrot.slane %v5385, %v5392
  %5395 = vset.pattern.permute.xlu0 0
  %5396 = vperm.xlu0 %5395, %v389
  %v5397 = vpop.permute.xlu0 %5396
  %v5400 = vunpack.c.l.s4 839922192
  %v5401 = vunpack.c.0.s8 %v5400
  %v5402 = vlaneseq
  %v5403 = vshrl.u32 %v5402, 7
  %v5404 = vsub.s32 %v5401, %v5403
  %v5405 = vrot.slane %v5397, %v5404
  %5407 = vset.pattern.permute.xlu0 0
  %5408 = vperm.xlu0 %5407, %v390
  %v5409 = vpop.permute.xlu0 %5408
  %v5412 = vunpack.c.l.s4 839922192
  %v5413 = vunpack.c.0.s8 %v5412
  %v5414 = vlaneseq
  %v5415 = vshrl.u32 %v5414, 7
  %v5416 = vsub.s32 %v5413, %v5415
  %v5417 = vrot.slane %v5409, %v5416
  %5419 = vset.pattern.permute.xlu0 0
  %5420 = vperm.xlu0 %5419, %v391
  %v5421 = vpop.permute.xlu0 %5420
  %v5424 = vunpack.c.l.s4 839922192
  %v5425 = vunpack.c.0.s8 %v5424
  %v5426 = vlaneseq
  %v5427 = vshrl.u32 %v5426, 7
  %v5428 = vsub.s32 %v5425, %v5427
  %v5429 = vrot.slane %v5421, %v5428
  %5431 = vset.pattern.permute.xlu0 0
  %5432 = vperm.xlu0 %5431, %v392
  %v5433 = vpop.permute.xlu0 %5432
  %v5436 = vunpack.c.l.s4 839922192
  %v5437 = vunpack.c.0.s8 %v5436
  %v5438 = vlaneseq
  %v5439 = vshrl.u32 %v5438, 7
  %v5440 = vsub.s32 %v5437, %v5439
  %v5441 = vrot.slane %v5433, %v5440
  %5443 = vset.pattern.permute.xlu0 0
  %5444 = vperm.xlu0 %5443, %v393
  %v5445 = vpop.permute.xlu0 %5444
  %v5448 = vunpack.c.l.s4 839922192
  %v5449 = vunpack.c.0.s8 %v5448
  %v5450 = vlaneseq
  %v5451 = vshrl.u32 %v5450, 7
  %v5452 = vsub.s32 %v5449, %v5451
  %v5453 = vrot.slane %v5445, %v5452
  %5455 = vset.pattern.permute.xlu0 0
  %5456 = vperm.xlu0 %5455, %v394
  %v5457 = vpop.permute.xlu0 %5456
  %v5460 = vunpack.c.l.s4 839922192
  %v5461 = vunpack.c.0.s8 %v5460
  %v5462 = vlaneseq
  %v5463 = vshrl.u32 %v5462, 7
  %v5464 = vsub.s32 %v5461, %v5463
  %v5465 = vrot.slane %v5457, %v5464
  %5467 = vset.pattern.permute.xlu0 0
  %5468 = vperm.xlu0 %5467, %v395
  %v5469 = vpop.permute.xlu0 %5468
  %v5472 = vunpack.c.l.s4 839922192
  %v5473 = vunpack.c.0.s8 %v5472
  %v5474 = vlaneseq
  %v5475 = vshrl.u32 %v5474, 7
  %v5476 = vsub.s32 %v5473, %v5475
  %v5477 = vrot.slane %v5469, %v5476
  %5479 = vset.pattern.permute.xlu0 0
  %5480 = vperm.xlu0 %5479, %v396
  %v5481 = vpop.permute.xlu0 %5480
  %v5484 = vunpack.c.l.s4 839922192
  %v5485 = vunpack.c.0.s8 %v5484
  %v5486 = vlaneseq
  %v5487 = vshrl.u32 %v5486, 7
  %v5488 = vsub.s32 %v5485, %v5487
  %v5489 = vrot.slane %v5481, %v5488
  %5491 = vset.pattern.permute.xlu0 0
  %5492 = vperm.xlu0 %5491, %v397
  %v5493 = vpop.permute.xlu0 %5492
  %v5496 = vunpack.c.l.s4 839922192
  %v5497 = vunpack.c.0.s8 %v5496
  %v5498 = vlaneseq
  %v5499 = vshrl.u32 %v5498, 7
  %v5500 = vsub.s32 %v5497, %v5499
  %v5501 = vrot.slane %v5493, %v5500
  %5503 = vset.pattern.permute.xlu0 0
  %5504 = vperm.xlu0 %5503, %v398
  %v5505 = vpop.permute.xlu0 %5504
  %v5508 = vunpack.c.l.s4 839922192
  %v5509 = vunpack.c.0.s8 %v5508
  %v5510 = vlaneseq
  %v5511 = vshrl.u32 %v5510, 7
  %v5512 = vsub.s32 %v5509, %v5511
  %v5513 = vrot.slane %v5505, %v5512
  %5515 = vset.pattern.permute.xlu0 0
  %5516 = vperm.xlu0 %5515, %v399
  %v5517 = vpop.permute.xlu0 %5516
  %v5520 = vunpack.c.l.s4 839922192
  %v5521 = vunpack.c.0.s8 %v5520
  %v5522 = vlaneseq
  %v5523 = vshrl.u32 %v5522, 7
  %v5524 = vsub.s32 %v5521, %v5523
  %v5525 = vrot.slane %v5517, %v5524
  %5527 = vset.pattern.permute.xlu0 0
  %5528 = vperm.xlu0 %5527, %v400
  %v5529 = vpop.permute.xlu0 %5528
  %v5532 = vunpack.c.l.s4 839922192
  %v5533 = vunpack.c.0.s8 %v5532
  %v5534 = vlaneseq
  %v5535 = vshrl.u32 %v5534, 7
  %v5536 = vsub.s32 %v5533, %v5535
  %v5537 = vrot.slane %v5529, %v5536
  %5539 = vset.pattern.permute.xlu0 0
  %5540 = vperm.xlu0 %5539, %v401
  %v5541 = vpop.permute.xlu0 %5540
  %v5544 = vunpack.c.l.s4 839922192
  %v5545 = vunpack.c.0.s8 %v5544
  %v5546 = vlaneseq
  %v5547 = vshrl.u32 %v5546, 7
  %v5548 = vsub.s32 %v5545, %v5547
  %v5549 = vrot.slane %v5541, %v5548
  %5551 = vset.pattern.permute.xlu0 0
  %5552 = vperm.xlu0 %5551, %v402
  %v5553 = vpop.permute.xlu0 %5552
  %v5556 = vunpack.c.l.s4 839922192
  %v5557 = vunpack.c.0.s8 %v5556
  %v5558 = vlaneseq
  %v5559 = vshrl.u32 %v5558, 7
  %v5560 = vsub.s32 %v5557, %v5559
  %v5561 = vrot.slane %v5553, %v5560
  %5563 = vset.pattern.permute.xlu0 0
  %5564 = vperm.xlu0 %5563, %v403
  %v5565 = vpop.permute.xlu0 %5564
  %v5568 = vunpack.c.l.s4 839922192
  %v5569 = vunpack.c.0.s8 %v5568
  %v5570 = vlaneseq
  %v5571 = vshrl.u32 %v5570, 7
  %v5572 = vsub.s32 %v5569, %v5571
  %v5573 = vrot.slane %v5565, %v5572
  %5575 = vset.pattern.permute.xlu0 0
  %5576 = vperm.xlu0 %5575, %v404
  %v5577 = vpop.permute.xlu0 %5576
  %v5580 = vunpack.c.l.s4 839922192
  %v5581 = vunpack.c.0.s8 %v5580
  %v5582 = vlaneseq
  %v5583 = vshrl.u32 %v5582, 7
  %v5584 = vsub.s32 %v5581, %v5583
  %v5585 = vrot.slane %v5577, %v5584
  %5587 = vset.pattern.permute.xlu0 0
  %5588 = vperm.xlu0 %5587, %v405
  %v5589 = vpop.permute.xlu0 %5588
  %v5592 = vunpack.c.l.s4 839922192
  %v5593 = vunpack.c.0.s8 %v5592
  %v5594 = vlaneseq
  %v5595 = vshrl.u32 %v5594, 7
  %v5596 = vsub.s32 %v5593, %v5595
  %v5597 = vrot.slane %v5589, %v5596
  %5599 = vset.pattern.permute.xlu0 0
  %5600 = vperm.xlu0 %5599, %v406
  %v5601 = vpop.permute.xlu0 %5600
  %v5604 = vunpack.c.l.s4 839922192
  %v5605 = vunpack.c.0.s8 %v5604
  %v5606 = vlaneseq
  %v5607 = vshrl.u32 %v5606, 7
  %v5608 = vsub.s32 %v5605, %v5607
  %v5609 = vrot.slane %v5601, %v5608
  %5611 = vset.pattern.permute.xlu0 0
  %5612 = vperm.xlu0 %5611, %v407
  %v5613 = vpop.permute.xlu0 %5612
  %v5616 = vunpack.c.l.s4 839922192
  %v5617 = vunpack.c.0.s8 %v5616
  %v5618 = vlaneseq
  %v5619 = vshrl.u32 %v5618, 7
  %v5620 = vsub.s32 %v5617, %v5619
  %v5621 = vrot.slane %v5613, %v5620
  %5623 = vset.pattern.permute.xlu0 0
  %5624 = vperm.xlu0 %5623, %v408
  %v5625 = vpop.permute.xlu0 %5624
  %v5628 = vunpack.c.l.s4 839922192
  %v5629 = vunpack.c.0.s8 %v5628
  %v5630 = vlaneseq
  %v5631 = vshrl.u32 %v5630, 7
  %v5632 = vsub.s32 %v5629, %v5631
  %v5633 = vrot.slane %v5625, %v5632
  %5635 = vset.pattern.permute.xlu0 0
  %5636 = vperm.xlu0 %5635, %v409
  %v5637 = vpop.permute.xlu0 %5636
  %v5640 = vunpack.c.l.s4 839922192
  %v5641 = vunpack.c.0.s8 %v5640
  %v5642 = vlaneseq
  %v5643 = vshrl.u32 %v5642, 7
  %v5644 = vsub.s32 %v5641, %v5643
  %v5645 = vrot.slane %v5637, %v5644
  %5647 = vset.pattern.permute.xlu0 0
  %5648 = vperm.xlu0 %5647, %v410
  %v5649 = vpop.permute.xlu0 %5648
  %v5652 = vunpack.c.l.s4 839922192
  %v5653 = vunpack.c.0.s8 %v5652
  %v5654 = vlaneseq
  %v5655 = vshrl.u32 %v5654, 7
  %v5656 = vsub.s32 %v5653, %v5655
  %v5657 = vrot.slane %v5649, %v5656
  %5659 = vset.pattern.permute.xlu0 0
  %5660 = vperm.xlu0 %5659, %v411
  %v5661 = vpop.permute.xlu0 %5660
  %v5664 = vunpack.c.l.s4 839922192
  %v5665 = vunpack.c.0.s8 %v5664
  %v5666 = vlaneseq
  %v5667 = vshrl.u32 %v5666, 7
  %v5668 = vsub.s32 %v5665, %v5667
  %v5669 = vrot.slane %v5661, %v5668
  %5671 = vset.pattern.permute.xlu0 0
  %5672 = vperm.xlu0 %5671, %v412
  %v5673 = vpop.permute.xlu0 %5672
  %v5676 = vunpack.c.l.s4 839922192
  %v5677 = vunpack.c.0.s8 %v5676
  %v5678 = vlaneseq
  %v5679 = vshrl.u32 %v5678, 7
  %v5680 = vsub.s32 %v5677, %v5679
  %v5681 = vrot.slane %v5673, %v5680
  %5683 = vset.pattern.permute.xlu0 0
  %5684 = vperm.xlu0 %5683, %v413
  %v5685 = vpop.permute.xlu0 %5684
  %v5688 = vunpack.c.l.s4 839922192
  %v5689 = vunpack.c.0.s8 %v5688
  %v5690 = vlaneseq
  %v5691 = vshrl.u32 %v5690, 7
  %v5692 = vsub.s32 %v5689, %v5691
  %v5693 = vrot.slane %v5685, %v5692
  %5695 = vset.pattern.permute.xlu0 0
  %5696 = vperm.xlu0 %5695, %v414
  %v5697 = vpop.permute.xlu0 %5696
  %v5700 = vunpack.c.l.s4 839922192
  %v5701 = vunpack.c.0.s8 %v5700
  %v5702 = vlaneseq
  %v5703 = vshrl.u32 %v5702, 7
  %v5704 = vsub.s32 %v5701, %v5703
  %v5705 = vrot.slane %v5697, %v5704
  %5707 = vset.pattern.permute.xlu0 0
  %5708 = vperm.xlu0 %5707, %v415
  %v5709 = vpop.permute.xlu0 %5708
  %v5712 = vunpack.c.l.s4 839922192
  %v5713 = vunpack.c.0.s8 %v5712
  %v5714 = vlaneseq
  %v5715 = vshrl.u32 %v5714, 7
  %v5716 = vsub.s32 %v5713, %v5715
  %v5717 = vrot.slane %v5709, %v5716
  %5719 = vset.pattern.permute.xlu0 0
  %5720 = vperm.xlu0 %5719, %v416
  %v5721 = vpop.permute.xlu0 %5720
  %v5724 = vunpack.c.l.s4 839922192
  %v5725 = vunpack.c.0.s8 %v5724
  %v5726 = vlaneseq
  %v5727 = vshrl.u32 %v5726, 7
  %v5728 = vsub.s32 %v5725, %v5727
  %v5729 = vrot.slane %v5721, %v5728
  %5731 = vset.pattern.permute.xlu0 0
  %5732 = vperm.xlu0 %5731, %v417
  %v5733 = vpop.permute.xlu0 %5732
  %v5736 = vunpack.c.l.s4 839922192
  %v5737 = vunpack.c.0.s8 %v5736
  %v5738 = vlaneseq
  %v5739 = vshrl.u32 %v5738, 7
  %v5740 = vsub.s32 %v5737, %v5739
  %v5741 = vrot.slane %v5733, %v5740
  %5743 = vset.pattern.permute.xlu0 0
  %5744 = vperm.xlu0 %5743, %v418
  %v5745 = vpop.permute.xlu0 %5744
  %v5748 = vunpack.c.l.s4 839922192
  %v5749 = vunpack.c.0.s8 %v5748
  %v5750 = vlaneseq
  %v5751 = vshrl.u32 %v5750, 7
  %v5752 = vsub.s32 %v5749, %v5751
  %v5753 = vrot.slane %v5745, %v5752
  %5755 = vset.pattern.permute.xlu0 0
  %5756 = vperm.xlu0 %5755, %v419
  %v5757 = vpop.permute.xlu0 %5756
  %v5760 = vunpack.c.l.s4 839922192
  %v5761 = vunpack.c.0.s8 %v5760
  %v5762 = vlaneseq
  %v5763 = vshrl.u32 %v5762, 7
  %v5764 = vsub.s32 %v5761, %v5763
  %v5765 = vrot.slane %v5757, %v5764
  %5767 = vset.pattern.permute.xlu0 0
  %5768 = vperm.xlu0 %5767, %v420
  %v5769 = vpop.permute.xlu0 %5768
  %v5772 = vunpack.c.l.s4 839922192
  %v5773 = vunpack.c.0.s8 %v5772
  %v5774 = vlaneseq
  %v5775 = vshrl.u32 %v5774, 7
  %v5776 = vsub.s32 %v5773, %v5775
  %v5777 = vrot.slane %v5769, %v5776
  %5779 = vset.pattern.permute.xlu0 0
  %5780 = vperm.xlu0 %5779, %v421
  %v5781 = vpop.permute.xlu0 %5780
  %v5784 = vunpack.c.l.s4 839922192
  %v5785 = vunpack.c.0.s8 %v5784
  %v5786 = vlaneseq
  %v5787 = vshrl.u32 %v5786, 7
  %v5788 = vsub.s32 %v5785, %v5787
  %v5789 = vrot.slane %v5781, %v5788
  %5791 = vset.pattern.permute.xlu0 0
  %5792 = vperm.xlu0 %5791, %v422
  %v5793 = vpop.permute.xlu0 %5792
  %v5796 = vunpack.c.l.s4 839922192
  %v5797 = vunpack.c.0.s8 %v5796
  %v5798 = vlaneseq
  %v5799 = vshrl.u32 %v5798, 7
  %v5800 = vsub.s32 %v5797, %v5799
  %v5801 = vrot.slane %v5793, %v5800
  %5803 = vset.pattern.permute.xlu0 0
  %5804 = vperm.xlu0 %5803, %v423
  %v5805 = vpop.permute.xlu0 %5804
  %v5808 = vunpack.c.l.s4 839922192
  %v5809 = vunpack.c.0.s8 %v5808
  %v5810 = vlaneseq
  %v5811 = vshrl.u32 %v5810, 7
  %v5812 = vsub.s32 %v5809, %v5811
  %v5813 = vrot.slane %v5805, %v5812
  %5815 = vset.pattern.permute.xlu0 0
  %5816 = vperm.xlu0 %5815, %v424
  %v5817 = vpop.permute.xlu0 %5816
  %v5820 = vunpack.c.l.s4 839922192
  %v5821 = vunpack.c.0.s8 %v5820
  %v5822 = vlaneseq
  %v5823 = vshrl.u32 %v5822, 7
  %v5824 = vsub.s32 %v5821, %v5823
  %v5825 = vrot.slane %v5817, %v5824
  %5827 = vset.pattern.permute.xlu0 0
  %5828 = vperm.xlu0 %5827, %v425
  %v5829 = vpop.permute.xlu0 %5828
  %v5832 = vunpack.c.l.s4 839922192
  %v5833 = vunpack.c.0.s8 %v5832
  %v5834 = vlaneseq
  %v5835 = vshrl.u32 %v5834, 7
  %v5836 = vsub.s32 %v5833, %v5835
  %v5837 = vrot.slane %v5829, %v5836
  %5839 = vset.pattern.permute.xlu0 0
  %5840 = vperm.xlu0 %5839, %v426
  %v5841 = vpop.permute.xlu0 %5840
  %v5844 = vunpack.c.l.s4 839922192
  %v5845 = vunpack.c.0.s8 %v5844
  %v5846 = vlaneseq
  %v5847 = vshrl.u32 %v5846, 7
  %v5848 = vsub.s32 %v5845, %v5847
  %v5849 = vrot.slane %v5841, %v5848
  %5851 = vset.pattern.permute.xlu0 0
  %5852 = vperm.xlu0 %5851, %v427
  %v5853 = vpop.permute.xlu0 %5852
  %v5856 = vunpack.c.l.s4 839922192
  %v5857 = vunpack.c.0.s8 %v5856
  %v5858 = vlaneseq
  %v5859 = vshrl.u32 %v5858, 7
  %v5860 = vsub.s32 %v5857, %v5859
  %v5861 = vrot.slane %v5853, %v5860
  %5863 = vset.pattern.permute.xlu0 0
  %5864 = vperm.xlu0 %5863, %v428
  %v5865 = vpop.permute.xlu0 %5864
  %v5868 = vunpack.c.l.s4 839922192
  %v5869 = vunpack.c.0.s8 %v5868
  %v5870 = vlaneseq
  %v5871 = vshrl.u32 %v5870, 7
  %v5872 = vsub.s32 %v5869, %v5871
  %v5873 = vrot.slane %v5865, %v5872
  %5875 = vset.pattern.permute.xlu0 0
  %5876 = vperm.xlu0 %5875, %v429
  %v5877 = vpop.permute.xlu0 %5876
  %v5880 = vunpack.c.l.s4 839922192
  %v5881 = vunpack.c.0.s8 %v5880
  %v5882 = vlaneseq
  %v5883 = vshrl.u32 %v5882, 7
  %v5884 = vsub.s32 %v5881, %v5883
  %v5885 = vrot.slane %v5877, %v5884
  %5887 = vset.pattern.permute.xlu0 0
  %5888 = vperm.xlu0 %5887, %v430
  %v5889 = vpop.permute.xlu0 %5888
  %v5892 = vunpack.c.l.s4 839922192
  %v5893 = vunpack.c.0.s8 %v5892
  %v5894 = vlaneseq
  %v5895 = vshrl.u32 %v5894, 7
  %v5896 = vsub.s32 %v5893, %v5895
  %v5897 = vrot.slane %v5889, %v5896
  %5899 = vset.pattern.permute.xlu0 0
  %5900 = vperm.xlu0 %5899, %v431
  %v5901 = vpop.permute.xlu0 %5900
  %v5904 = vunpack.c.l.s4 839922192
  %v5905 = vunpack.c.0.s8 %v5904
  %v5906 = vlaneseq
  %v5907 = vshrl.u32 %v5906, 7
  %v5908 = vsub.s32 %v5905, %v5907
  %v5909 = vrot.slane %v5901, %v5908
  %5911 = vset.pattern.permute.xlu0 0
  %5912 = vperm.xlu0 %5911, %v432
  %v5913 = vpop.permute.xlu0 %5912
  %v5916 = vunpack.c.l.s4 839922192
  %v5917 = vunpack.c.0.s8 %v5916
  %v5918 = vlaneseq
  %v5919 = vshrl.u32 %v5918, 7
  %v5920 = vsub.s32 %v5917, %v5919
  %v5921 = vrot.slane %v5913, %v5920
  %5923 = vset.pattern.permute.xlu0 0
  %5924 = vperm.xlu0 %5923, %v433
  %v5925 = vpop.permute.xlu0 %5924
  %v5928 = vunpack.c.l.s4 839922192
  %v5929 = vunpack.c.0.s8 %v5928
  %v5930 = vlaneseq
  %v5931 = vshrl.u32 %v5930, 7
  %v5932 = vsub.s32 %v5929, %v5931
  %v5933 = vrot.slane %v5925, %v5932
  %5935 = vset.pattern.permute.xlu0 0
  %5936 = vperm.xlu0 %5935, %v434
  %v5937 = vpop.permute.xlu0 %5936
  %v5940 = vunpack.c.l.s4 839922192
  %v5941 = vunpack.c.0.s8 %v5940
  %v5942 = vlaneseq
  %v5943 = vshrl.u32 %v5942, 7
  %v5944 = vsub.s32 %v5941, %v5943
  %v5945 = vrot.slane %v5937, %v5944
  %5947 = vset.pattern.permute.xlu0 0
  %5948 = vperm.xlu0 %5947, %v435
  %v5949 = vpop.permute.xlu0 %5948
  %v5952 = vunpack.c.l.s4 839922192
  %v5953 = vunpack.c.0.s8 %v5952
  %v5954 = vlaneseq
  %v5955 = vshrl.u32 %v5954, 7
  %v5956 = vsub.s32 %v5953, %v5955
  %v5957 = vrot.slane %v5949, %v5956
  %5959 = vset.pattern.permute.xlu0 0
  %5960 = vperm.xlu0 %5959, %v436
  %v5961 = vpop.permute.xlu0 %5960
  %v5964 = vunpack.c.l.s4 839922192
  %v5965 = vunpack.c.0.s8 %v5964
  %v5966 = vlaneseq
  %v5967 = vshrl.u32 %v5966, 7
  %v5968 = vsub.s32 %v5965, %v5967
  %v5969 = vrot.slane %v5961, %v5968
  %5971 = vset.pattern.permute.xlu0 0
  %5972 = vperm.xlu0 %5971, %v437
  %v5973 = vpop.permute.xlu0 %5972
  %v5976 = vunpack.c.l.s4 839922192
  %v5977 = vunpack.c.0.s8 %v5976
  %v5978 = vlaneseq
  %v5979 = vshrl.u32 %v5978, 7
  %v5980 = vsub.s32 %v5977, %v5979
  %v5981 = vrot.slane %v5973, %v5980
  %5983 = vset.pattern.permute.xlu0 0
  %5984 = vperm.xlu0 %5983, %v438
  %v5985 = vpop.permute.xlu0 %5984
  %v5988 = vunpack.c.l.s4 839922192
  %v5989 = vunpack.c.0.s8 %v5988
  %v5990 = vlaneseq
  %v5991 = vshrl.u32 %v5990, 7
  %v5992 = vsub.s32 %v5989, %v5991
  %v5993 = vrot.slane %v5985, %v5992
  %5995 = vset.pattern.permute.xlu0 0
  %5996 = vperm.xlu0 %5995, %v439
  %v5997 = vpop.permute.xlu0 %5996
  %v6000 = vunpack.c.l.s4 839922192
  %v6001 = vunpack.c.0.s8 %v6000
  %v6002 = vlaneseq
  %v6003 = vshrl.u32 %v6002, 7
  %v6004 = vsub.s32 %v6001, %v6003
  %v6005 = vrot.slane %v5997, %v6004
  %6007 = vset.pattern.permute.xlu0 0
  %6008 = vperm.xlu0 %6007, %v440
  %v6009 = vpop.permute.xlu0 %6008
  %v6012 = vunpack.c.l.s4 839922192
  %v6013 = vunpack.c.0.s8 %v6012
  %v6014 = vlaneseq
  %v6015 = vshrl.u32 %v6014, 7
  %v6016 = vsub.s32 %v6013, %v6015
  %v6017 = vrot.slane %v6009, %v6016
  %6019 = vset.pattern.permute.xlu0 0
  %6020 = vperm.xlu0 %6019, %v441
  %v6021 = vpop.permute.xlu0 %6020
  %v6024 = vunpack.c.l.s4 839922192
  %v6025 = vunpack.c.0.s8 %v6024
  %v6026 = vlaneseq
  %v6027 = vshrl.u32 %v6026, 7
  %v6028 = vsub.s32 %v6025, %v6027
  %v6029 = vrot.slane %v6021, %v6028
  %6031 = vset.pattern.permute.xlu0 0
  %6032 = vperm.xlu0 %6031, %v442
  %v6033 = vpop.permute.xlu0 %6032
  %v6036 = vunpack.c.l.s4 839922192
  %v6037 = vunpack.c.0.s8 %v6036
  %v6038 = vlaneseq
  %v6039 = vshrl.u32 %v6038, 7
  %v6040 = vsub.s32 %v6037, %v6039
  %v6041 = vrot.slane %v6033, %v6040
  %6043 = vset.pattern.permute.xlu0 0
  %6044 = vperm.xlu0 %6043, %v443
  %v6045 = vpop.permute.xlu0 %6044
  %v6048 = vunpack.c.l.s4 839922192
  %v6049 = vunpack.c.0.s8 %v6048
  %v6050 = vlaneseq
  %v6051 = vshrl.u32 %v6050, 7
  %v6052 = vsub.s32 %v6049, %v6051
  %v6053 = vrot.slane %v6045, %v6052
  %6055 = vset.pattern.permute.xlu0 0
  %6056 = vperm.xlu0 %6055, %v444
  %v6057 = vpop.permute.xlu0 %6056
  %v6060 = vunpack.c.l.s4 839922192
  %v6061 = vunpack.c.0.s8 %v6060
  %v6062 = vlaneseq
  %v6063 = vshrl.u32 %v6062, 7
  %v6064 = vsub.s32 %v6061, %v6063
  %v6065 = vrot.slane %v6057, %v6064
  %6067 = vset.pattern.permute.xlu0 0
  %6068 = vperm.xlu0 %6067, %v445
  %v6069 = vpop.permute.xlu0 %6068
  %v6072 = vunpack.c.l.s4 839922192
  %v6073 = vunpack.c.0.s8 %v6072
  %v6074 = vlaneseq
  %v6075 = vshrl.u32 %v6074, 7
  %v6076 = vsub.s32 %v6073, %v6075
  %v6077 = vrot.slane %v6069, %v6076
  %6079 = vset.pattern.permute.xlu0 0
  %6080 = vperm.xlu0 %6079, %v446
  %v6081 = vpop.permute.xlu0 %6080
  %v6084 = vunpack.c.l.s4 839922192
  %v6085 = vunpack.c.0.s8 %v6084
  %v6086 = vlaneseq
  %v6087 = vshrl.u32 %v6086, 7
  %v6088 = vsub.s32 %v6085, %v6087
  %v6089 = vrot.slane %v6081, %v6088
  %6091 = vset.pattern.permute.xlu0 0
  %6092 = vperm.xlu0 %6091, %v447
  %v6093 = vpop.permute.xlu0 %6092
  %v6096 = vunpack.c.l.s4 839922192
  %v6097 = vunpack.c.0.s8 %v6096
  %v6098 = vlaneseq
  %v6099 = vshrl.u32 %v6098, 7
  %v6100 = vsub.s32 %v6097, %v6099
  %v6101 = vrot.slane %v6093, %v6100
  %6103 = vset.pattern.permute.xlu0 0
  %6104 = vperm.xlu0 %6103, %v448
  %v6105 = vpop.permute.xlu0 %6104
  %v6108 = vunpack.c.l.s4 839922192
  %v6109 = vunpack.c.0.s8 %v6108
  %v6110 = vlaneseq
  %v6111 = vshrl.u32 %v6110, 7
  %v6112 = vsub.s32 %v6109, %v6111
  %v6113 = vrot.slane %v6105, %v6112
  %6115 = vset.pattern.permute.xlu0 0
  %6116 = vperm.xlu0 %6115, %v449
  %v6117 = vpop.permute.xlu0 %6116
  %v6120 = vunpack.c.l.s4 839922192
  %v6121 = vunpack.c.0.s8 %v6120
  %v6122 = vlaneseq
  %v6123 = vshrl.u32 %v6122, 7
  %v6124 = vsub.s32 %v6121, %v6123
  %v6125 = vrot.slane %v6117, %v6124
  %6127 = vset.pattern.permute.xlu0 0
  %6128 = vperm.xlu0 %6127, %v450
  %v6129 = vpop.permute.xlu0 %6128
  %v6132 = vunpack.c.l.s4 839922192
  %v6133 = vunpack.c.0.s8 %v6132
  %v6134 = vlaneseq
  %v6135 = vshrl.u32 %v6134, 7
  %v6136 = vsub.s32 %v6133, %v6135
  %v6137 = vrot.slane %v6129, %v6136
  %6139 = vset.pattern.permute.xlu0 0
  %6140 = vperm.xlu0 %6139, %v451
  %v6141 = vpop.permute.xlu0 %6140
  %v6144 = vunpack.c.l.s4 839922192
  %v6145 = vunpack.c.0.s8 %v6144
  %v6146 = vlaneseq
  %v6147 = vshrl.u32 %v6146, 7
  %v6148 = vsub.s32 %v6145, %v6147
  %v6149 = vrot.slane %v6141, %v6148
  %6151 = vset.pattern.permute.xlu0 0
  %6152 = vperm.xlu0 %6151, %v452
  %v6153 = vpop.permute.xlu0 %6152
  %v6156 = vunpack.c.l.s4 839922192
  %v6157 = vunpack.c.0.s8 %v6156
  %v6158 = vlaneseq
  %v6159 = vshrl.u32 %v6158, 7
  %v6160 = vsub.s32 %v6157, %v6159
  %v6161 = vrot.slane %v6153, %v6160
  %6163 = vset.pattern.permute.xlu0 0
  %6164 = vperm.xlu0 %6163, %v453
  %v6165 = vpop.permute.xlu0 %6164
  %v6168 = vunpack.c.l.s4 839922192
  %v6169 = vunpack.c.0.s8 %v6168
  %v6170 = vlaneseq
  %v6171 = vshrl.u32 %v6170, 7
  %v6172 = vsub.s32 %v6169, %v6171
  %v6173 = vrot.slane %v6165, %v6172
  %6175 = vset.pattern.permute.xlu0 0
  %6176 = vperm.xlu0 %6175, %v454
  %v6177 = vpop.permute.xlu0 %6176
  %v6180 = vunpack.c.l.s4 839922192
  %v6181 = vunpack.c.0.s8 %v6180
  %v6182 = vlaneseq
  %v6183 = vshrl.u32 %v6182, 7
  %v6184 = vsub.s32 %v6181, %v6183
  %v6185 = vrot.slane %v6177, %v6184
  %6187 = vset.pattern.permute.xlu0 0
  %6188 = vperm.xlu0 %6187, %v455
  %v6189 = vpop.permute.xlu0 %6188
  %v6192 = vunpack.c.l.s4 839922192
  %v6193 = vunpack.c.0.s8 %v6192
  %v6194 = vlaneseq
  %v6195 = vshrl.u32 %v6194, 7
  %v6196 = vsub.s32 %v6193, %v6195
  %v6197 = vrot.slane %v6189, %v6196
  %6199 = vset.pattern.permute.xlu0 0
  %6200 = vperm.xlu0 %6199, %v456
  %v6201 = vpop.permute.xlu0 %6200
  %v6204 = vunpack.c.l.s4 839922192
  %v6205 = vunpack.c.0.s8 %v6204
  %v6206 = vlaneseq
  %v6207 = vshrl.u32 %v6206, 7
  %v6208 = vsub.s32 %v6205, %v6207
  %v6209 = vrot.slane %v6201, %v6208
  %6211 = vset.pattern.permute.xlu0 0
  %6212 = vperm.xlu0 %6211, %v457
  %v6213 = vpop.permute.xlu0 %6212
  %v6216 = vunpack.c.l.s4 839922192
  %v6217 = vunpack.c.0.s8 %v6216
  %v6218 = vlaneseq
  %v6219 = vshrl.u32 %v6218, 7
  %v6220 = vsub.s32 %v6217, %v6219
  %v6221 = vrot.slane %v6213, %v6220
  %6223 = vset.pattern.permute.xlu0 0
  %6224 = vperm.xlu0 %6223, %v458
  %v6225 = vpop.permute.xlu0 %6224
  %v6228 = vunpack.c.l.s4 839922192
  %v6229 = vunpack.c.0.s8 %v6228
  %v6230 = vlaneseq
  %v6231 = vshrl.u32 %v6230, 7
  %v6232 = vsub.s32 %v6229, %v6231
  %v6233 = vrot.slane %v6225, %v6232
  %6235 = vset.pattern.permute.xlu0 0
  %6236 = vperm.xlu0 %6235, %v459
  %v6237 = vpop.permute.xlu0 %6236
  %v6240 = vunpack.c.l.s4 839922192
  %v6241 = vunpack.c.0.s8 %v6240
  %v6242 = vlaneseq
  %v6243 = vshrl.u32 %v6242, 7
  %v6244 = vsub.s32 %v6241, %v6243
  %v6245 = vrot.slane %v6237, %v6244
  %6247 = vset.pattern.permute.xlu0 0
  %6248 = vperm.xlu0 %6247, %v460
  %v6249 = vpop.permute.xlu0 %6248
  %v6252 = vunpack.c.l.s4 839922192
  %v6253 = vunpack.c.0.s8 %v6252
  %v6254 = vlaneseq
  %v6255 = vshrl.u32 %v6254, 7
  %v6256 = vsub.s32 %v6253, %v6255
  %v6257 = vrot.slane %v6249, %v6256
  %6259 = vset.pattern.permute.xlu0 0
  %6260 = vperm.xlu0 %6259, %v461
  %v6261 = vpop.permute.xlu0 %6260
  %v6264 = vunpack.c.l.s4 839922192
  %v6265 = vunpack.c.0.s8 %v6264
  %v6266 = vlaneseq
  %v6267 = vshrl.u32 %v6266, 7
  %v6268 = vsub.s32 %v6265, %v6267
  %v6269 = vrot.slane %v6261, %v6268
  %6271 = vset.pattern.permute.xlu0 0
  %6272 = vperm.xlu0 %6271, %v462
  %v6273 = vpop.permute.xlu0 %6272
  %v6276 = vunpack.c.l.s4 839922192
  %v6277 = vunpack.c.0.s8 %v6276
  %v6278 = vlaneseq
  %v6279 = vshrl.u32 %v6278, 7
  %v6280 = vsub.s32 %v6277, %v6279
  %v6281 = vrot.slane %v6273, %v6280
  %6283 = vset.pattern.permute.xlu0 0
  %6284 = vperm.xlu0 %6283, %v463
  %v6285 = vpop.permute.xlu0 %6284
  %v6288 = vunpack.c.l.s4 839922192
  %v6289 = vunpack.c.0.s8 %v6288
  %v6290 = vlaneseq
  %v6291 = vshrl.u32 %v6290, 7
  %v6292 = vsub.s32 %v6289, %v6291
  %v6293 = vrot.slane %v6285, %v6292
  %6295 = vset.pattern.permute.xlu0 0
  %6296 = vperm.xlu0 %6295, %v464
  %v6297 = vpop.permute.xlu0 %6296
  %v6300 = vunpack.c.l.s4 839922192
  %v6301 = vunpack.c.0.s8 %v6300
  %v6302 = vlaneseq
  %v6303 = vshrl.u32 %v6302, 7
  %v6304 = vsub.s32 %v6301, %v6303
  %v6305 = vrot.slane %v6297, %v6304
  %6307 = vset.pattern.permute.xlu0 0
  %6308 = vperm.xlu0 %6307, %v465
  %v6309 = vpop.permute.xlu0 %6308
  %v6312 = vunpack.c.l.s4 839922192
  %v6313 = vunpack.c.0.s8 %v6312
  %v6314 = vlaneseq
  %v6315 = vshrl.u32 %v6314, 7
  %v6316 = vsub.s32 %v6313, %v6315
  %v6317 = vrot.slane %v6309, %v6316
  %6319 = vset.pattern.permute.xlu0 0
  %6320 = vperm.xlu0 %6319, %v466
  %v6321 = vpop.permute.xlu0 %6320
  %v6324 = vunpack.c.l.s4 839922192
  %v6325 = vunpack.c.0.s8 %v6324
  %v6326 = vlaneseq
  %v6327 = vshrl.u32 %v6326, 7
  %v6328 = vsub.s32 %v6325, %v6327
  %v6329 = vrot.slane %v6321, %v6328
  %6331 = vset.pattern.permute.xlu0 0
  %6332 = vperm.xlu0 %6331, %v467
  %v6333 = vpop.permute.xlu0 %6332
  %v6336 = vunpack.c.l.s4 839922192
  %v6337 = vunpack.c.0.s8 %v6336
  %v6338 = vlaneseq
  %v6339 = vshrl.u32 %v6338, 7
  %v6340 = vsub.s32 %v6337, %v6339
  %v6341 = vrot.slane %v6333, %v6340
  %6343 = vset.pattern.permute.xlu0 0
  %6344 = vperm.xlu0 %6343, %v468
  %v6345 = vpop.permute.xlu0 %6344
  %v6348 = vunpack.c.l.s4 839922192
  %v6349 = vunpack.c.0.s8 %v6348
  %v6350 = vlaneseq
  %v6351 = vshrl.u32 %v6350, 7
  %v6352 = vsub.s32 %v6349, %v6351
  %v6353 = vrot.slane %v6345, %v6352
  %6355 = vset.pattern.permute.xlu0 0
  %6356 = vperm.xlu0 %6355, %v469
  %v6357 = vpop.permute.xlu0 %6356
  %v6360 = vunpack.c.l.s4 839922192
  %v6361 = vunpack.c.0.s8 %v6360
  %v6362 = vlaneseq
  %v6363 = vshrl.u32 %v6362, 7
  %v6364 = vsub.s32 %v6361, %v6363
  %v6365 = vrot.slane %v6357, %v6364
  %6367 = vset.pattern.permute.xlu0 0
  %6368 = vperm.xlu0 %6367, %v470
  %v6369 = vpop.permute.xlu0 %6368
  %v6372 = vunpack.c.l.s4 839922192
  %v6373 = vunpack.c.0.s8 %v6372
  %v6374 = vlaneseq
  %v6375 = vshrl.u32 %v6374, 7
  %v6376 = vsub.s32 %v6373, %v6375
  %v6377 = vrot.slane %v6369, %v6376
  %6379 = vset.pattern.permute.xlu0 0
  %6380 = vperm.xlu0 %6379, %v471
  %v6381 = vpop.permute.xlu0 %6380
  %v6384 = vunpack.c.l.s4 839922192
  %v6385 = vunpack.c.0.s8 %v6384
  %v6386 = vlaneseq
  %v6387 = vshrl.u32 %v6386, 7
  %v6388 = vsub.s32 %v6385, %v6387
  %v6389 = vrot.slane %v6381, %v6388
  %6391 = vset.pattern.permute.xlu0 0
  %6392 = vperm.xlu0 %6391, %v472
  %v6393 = vpop.permute.xlu0 %6392
  %v6396 = vunpack.c.l.s4 839922192
  %v6397 = vunpack.c.0.s8 %v6396
  %v6398 = vlaneseq
  %v6399 = vshrl.u32 %v6398, 7
  %v6400 = vsub.s32 %v6397, %v6399
  %v6401 = vrot.slane %v6393, %v6400
  %6403 = vset.pattern.permute.xlu0 0
  %6404 = vperm.xlu0 %6403, %v473
  %v6405 = vpop.permute.xlu0 %6404
  %v6408 = vunpack.c.l.s4 839922192
  %v6409 = vunpack.c.0.s8 %v6408
  %v6410 = vlaneseq
  %v6411 = vshrl.u32 %v6410, 7
  %v6412 = vsub.s32 %v6409, %v6411
  %v6413 = vrot.slane %v6405, %v6412
  %6415 = vset.pattern.permute.xlu0 0
  %6416 = vperm.xlu0 %6415, %v474
  %v6417 = vpop.permute.xlu0 %6416
  %v6420 = vunpack.c.l.s4 839922192
  %v6421 = vunpack.c.0.s8 %v6420
  %v6422 = vlaneseq
  %v6423 = vshrl.u32 %v6422, 7
  %v6424 = vsub.s32 %v6421, %v6423
  %v6425 = vrot.slane %v6417, %v6424
  %6427 = vset.pattern.permute.xlu0 0
  %6428 = vperm.xlu0 %6427, %v475
  %v6429 = vpop.permute.xlu0 %6428
  %v6432 = vunpack.c.l.s4 839922192
  %v6433 = vunpack.c.0.s8 %v6432
  %v6434 = vlaneseq
  %v6435 = vshrl.u32 %v6434, 7
  %v6436 = vsub.s32 %v6433, %v6435
  %v6437 = vrot.slane %v6429, %v6436
  %6439 = vset.pattern.permute.xlu0 0
  %6440 = vperm.xlu0 %6439, %v476
  %v6441 = vpop.permute.xlu0 %6440
  %v6444 = vunpack.c.l.s4 839922192
  %v6445 = vunpack.c.0.s8 %v6444
  %v6446 = vlaneseq
  %v6447 = vshrl.u32 %v6446, 7
  %v6448 = vsub.s32 %v6445, %v6447
  %v6449 = vrot.slane %v6441, %v6448
  %6451 = vset.pattern.permute.xlu0 0
  %6452 = vperm.xlu0 %6451, %v477
  %v6453 = vpop.permute.xlu0 %6452
  %v6456 = vunpack.c.l.s4 839922192
  %v6457 = vunpack.c.0.s8 %v6456
  %v6458 = vlaneseq
  %v6459 = vshrl.u32 %v6458, 7
  %v6460 = vsub.s32 %v6457, %v6459
  %v6461 = vrot.slane %v6453, %v6460
  %6463 = vset.pattern.permute.xlu0 0
  %6464 = vperm.xlu0 %6463, %v478
  %v6465 = vpop.permute.xlu0 %6464
  %v6468 = vunpack.c.l.s4 839922192
  %v6469 = vunpack.c.0.s8 %v6468
  %v6470 = vlaneseq
  %v6471 = vshrl.u32 %v6470, 7
  %v6472 = vsub.s32 %v6469, %v6471
  %v6473 = vrot.slane %v6465, %v6472
  %6475 = vset.pattern.permute.xlu0 0
  %6476 = vperm.xlu0 %6475, %v479
  %v6477 = vpop.permute.xlu0 %6476
  %v6480 = vunpack.c.l.s4 839922192
  %v6481 = vunpack.c.0.s8 %v6480
  %v6482 = vlaneseq
  %v6483 = vshrl.u32 %v6482, 7
  %v6484 = vsub.s32 %v6481, %v6483
  %v6485 = vrot.slane %v6477, %v6484
  %6487 = vset.pattern.permute.xlu0 0
  %6488 = vperm.xlu0 %6487, %v480
  %v6489 = vpop.permute.xlu0 %6488
  %v6492 = vunpack.c.l.s4 839922192
  %v6493 = vunpack.c.0.s8 %v6492
  %v6494 = vlaneseq
  %v6495 = vshrl.u32 %v6494, 7
  %v6496 = vsub.s32 %v6493, %v6495
  %v6497 = vrot.slane %v6489, %v6496
  %6499 = vset.pattern.permute.xlu0 0
  %6500 = vperm.xlu0 %6499, %v481
  %v6501 = vpop.permute.xlu0 %6500
  %v6504 = vunpack.c.l.s4 839922192
  %v6505 = vunpack.c.0.s8 %v6504
  %v6506 = vlaneseq
  %v6507 = vshrl.u32 %v6506, 7
  %v6508 = vsub.s32 %v6505, %v6507
  %v6509 = vrot.slane %v6501, %v6508
  %6511 = vset.pattern.permute.xlu0 0
  %6512 = vperm.xlu0 %6511, %v482
  %v6513 = vpop.permute.xlu0 %6512
  %v6516 = vunpack.c.l.s4 839922192
  %v6517 = vunpack.c.0.s8 %v6516
  %v6518 = vlaneseq
  %v6519 = vshrl.u32 %v6518, 7
  %v6520 = vsub.s32 %v6517, %v6519
  %v6521 = vrot.slane %v6513, %v6520
  %6523 = vset.pattern.permute.xlu0 0
  %6524 = vperm.xlu0 %6523, %v483
  %v6525 = vpop.permute.xlu0 %6524
  %v6528 = vunpack.c.l.s4 839922192
  %v6529 = vunpack.c.0.s8 %v6528
  %v6530 = vlaneseq
  %v6531 = vshrl.u32 %v6530, 7
  %v6532 = vsub.s32 %v6529, %v6531
  %v6533 = vrot.slane %v6525, %v6532
  %6535 = vset.pattern.permute.xlu0 0
  %6536 = vperm.xlu0 %6535, %v484
  %v6537 = vpop.permute.xlu0 %6536
  %v6540 = vunpack.c.l.s4 839922192
  %v6541 = vunpack.c.0.s8 %v6540
  %v6542 = vlaneseq
  %v6543 = vshrl.u32 %v6542, 7
  %v6544 = vsub.s32 %v6541, %v6543
  %v6545 = vrot.slane %v6537, %v6544
  %6547 = vset.pattern.permute.xlu0 0
  %6548 = vperm.xlu0 %6547, %v485
  %v6549 = vpop.permute.xlu0 %6548
  %v6552 = vunpack.c.l.s4 839922192
  %v6553 = vunpack.c.0.s8 %v6552
  %v6554 = vlaneseq
  %v6555 = vshrl.u32 %v6554, 7
  %v6556 = vsub.s32 %v6553, %v6555
  %v6557 = vrot.slane %v6549, %v6556
  %6559 = vset.pattern.permute.xlu0 0
  %6560 = vperm.xlu0 %6559, %v486
  %v6561 = vpop.permute.xlu0 %6560
  %v6564 = vunpack.c.l.s4 839922192
  %v6565 = vunpack.c.0.s8 %v6564
  %v6566 = vlaneseq
  %v6567 = vshrl.u32 %v6566, 7
  %v6568 = vsub.s32 %v6565, %v6567
  %v6569 = vrot.slane %v6561, %v6568
  %6571 = vset.pattern.permute.xlu0 0
  %6572 = vperm.xlu0 %6571, %v487
  %v6573 = vpop.permute.xlu0 %6572
  %v6576 = vunpack.c.l.s4 839922192
  %v6577 = vunpack.c.0.s8 %v6576
  %v6578 = vlaneseq
  %v6579 = vshrl.u32 %v6578, 7
  %v6580 = vsub.s32 %v6577, %v6579
  %v6581 = vrot.slane %v6573, %v6580
  %6583 = vset.pattern.permute.xlu0 0
  %6584 = vperm.xlu0 %6583, %v488
  %v6585 = vpop.permute.xlu0 %6584
  %v6588 = vunpack.c.l.s4 839922192
  %v6589 = vunpack.c.0.s8 %v6588
  %v6590 = vlaneseq
  %v6591 = vshrl.u32 %v6590, 7
  %v6592 = vsub.s32 %v6589, %v6591
  %v6593 = vrot.slane %v6585, %v6592
  %6595 = vset.pattern.permute.xlu0 0
  %6596 = vperm.xlu0 %6595, %v489
  %v6597 = vpop.permute.xlu0 %6596
  %v6600 = vunpack.c.l.s4 839922192
  %v6601 = vunpack.c.0.s8 %v6600
  %v6602 = vlaneseq
  %v6603 = vshrl.u32 %v6602, 7
  %v6604 = vsub.s32 %v6601, %v6603
  %v6605 = vrot.slane %v6597, %v6604
  %6607 = vset.pattern.permute.xlu0 0
  %6608 = vperm.xlu0 %6607, %v490
  %v6609 = vpop.permute.xlu0 %6608
  %v6612 = vunpack.c.l.s4 839922192
  %v6613 = vunpack.c.0.s8 %v6612
  %v6614 = vlaneseq
  %v6615 = vshrl.u32 %v6614, 7
  %v6616 = vsub.s32 %v6613, %v6615
  %v6617 = vrot.slane %v6609, %v6616
  %6619 = vset.pattern.permute.xlu0 0
  %6620 = vperm.xlu0 %6619, %v491
  %v6621 = vpop.permute.xlu0 %6620
  %v6624 = vunpack.c.l.s4 839922192
  %v6625 = vunpack.c.0.s8 %v6624
  %v6626 = vlaneseq
  %v6627 = vshrl.u32 %v6626, 7
  %v6628 = vsub.s32 %v6625, %v6627
  %v6629 = vrot.slane %v6621, %v6628
  %6631 = vset.pattern.permute.xlu0 0
  %6632 = vperm.xlu0 %6631, %v492
  %v6633 = vpop.permute.xlu0 %6632
  %v6636 = vunpack.c.l.s4 839922192
  %v6637 = vunpack.c.0.s8 %v6636
  %v6638 = vlaneseq
  %v6639 = vshrl.u32 %v6638, 7
  %v6640 = vsub.s32 %v6637, %v6639
  %v6641 = vrot.slane %v6633, %v6640
  %6643 = vset.pattern.permute.xlu0 0
  %6644 = vperm.xlu0 %6643, %v493
  %v6645 = vpop.permute.xlu0 %6644
  %v6648 = vunpack.c.l.s4 839922192
  %v6649 = vunpack.c.0.s8 %v6648
  %v6650 = vlaneseq
  %v6651 = vshrl.u32 %v6650, 7
  %v6652 = vsub.s32 %v6649, %v6651
  %v6653 = vrot.slane %v6645, %v6652
  %6655 = vset.pattern.permute.xlu0 0
  %6656 = vperm.xlu0 %6655, %v494
  %v6657 = vpop.permute.xlu0 %6656
  %v6660 = vunpack.c.l.s4 839922192
  %v6661 = vunpack.c.0.s8 %v6660
  %v6662 = vlaneseq
  %v6663 = vshrl.u32 %v6662, 7
  %v6664 = vsub.s32 %v6661, %v6663
  %v6665 = vrot.slane %v6657, %v6664
  %6667 = vset.pattern.permute.xlu0 0
  %6668 = vperm.xlu0 %6667, %v495
  %v6669 = vpop.permute.xlu0 %6668
  %v6672 = vunpack.c.l.s4 839922192
  %v6673 = vunpack.c.0.s8 %v6672
  %v6674 = vlaneseq
  %v6675 = vshrl.u32 %v6674, 7
  %v6676 = vsub.s32 %v6673, %v6675
  %v6677 = vrot.slane %v6669, %v6676
  %6679 = vset.pattern.permute.xlu0 0
  %6680 = vperm.xlu0 %6679, %v496
  %v6681 = vpop.permute.xlu0 %6680
  %v6684 = vunpack.c.l.s4 839922192
  %v6685 = vunpack.c.0.s8 %v6684
  %v6686 = vlaneseq
  %v6687 = vshrl.u32 %v6686, 7
  %v6688 = vsub.s32 %v6685, %v6687
  %v6689 = vrot.slane %v6681, %v6688
  %6691 = vset.pattern.permute.xlu0 0
  %6692 = vperm.xlu0 %6691, %v497
  %v6693 = vpop.permute.xlu0 %6692
  %v6696 = vunpack.c.l.s4 839922192
  %v6697 = vunpack.c.0.s8 %v6696
  %v6698 = vlaneseq
  %v6699 = vshrl.u32 %v6698, 7
  %v6700 = vsub.s32 %v6697, %v6699
  %v6701 = vrot.slane %v6693, %v6700
  %6703 = vset.pattern.permute.xlu0 0
  %6704 = vperm.xlu0 %6703, %v498
  %v6705 = vpop.permute.xlu0 %6704
  %v6708 = vunpack.c.l.s4 839922192
  %v6709 = vunpack.c.0.s8 %v6708
  %v6710 = vlaneseq
  %v6711 = vshrl.u32 %v6710, 7
  %v6712 = vsub.s32 %v6709, %v6711
  %v6713 = vrot.slane %v6705, %v6712
  %6715 = vset.pattern.permute.xlu0 0
  %6716 = vperm.xlu0 %6715, %v499
  %v6717 = vpop.permute.xlu0 %6716
  %v6720 = vunpack.c.l.s4 839922192
  %v6721 = vunpack.c.0.s8 %v6720
  %v6722 = vlaneseq
  %v6723 = vshrl.u32 %v6722, 7
  %v6724 = vsub.s32 %v6721, %v6723
  %v6725 = vrot.slane %v6717, %v6724
  %6727 = vset.pattern.permute.xlu0 0
  %6728 = vperm.xlu0 %6727, %v500
  %v6729 = vpop.permute.xlu0 %6728
  %v6732 = vunpack.c.l.s4 839922192
  %v6733 = vunpack.c.0.s8 %v6732
  %v6734 = vlaneseq
  %v6735 = vshrl.u32 %v6734, 7
  %v6736 = vsub.s32 %v6733, %v6735
  %v6737 = vrot.slane %v6729, %v6736
  %6739 = vset.pattern.permute.xlu0 0
  %6740 = vperm.xlu0 %6739, %v501
  %v6741 = vpop.permute.xlu0 %6740
  %v6744 = vunpack.c.l.s4 839922192
  %v6745 = vunpack.c.0.s8 %v6744
  %v6746 = vlaneseq
  %v6747 = vshrl.u32 %v6746, 7
  %v6748 = vsub.s32 %v6745, %v6747
  %v6749 = vrot.slane %v6741, %v6748
  %6751 = vset.pattern.permute.xlu0 0
  %6752 = vperm.xlu0 %6751, %v502
  %v6753 = vpop.permute.xlu0 %6752
  %v6756 = vunpack.c.l.s4 839922192
  %v6757 = vunpack.c.0.s8 %v6756
  %v6758 = vlaneseq
  %v6759 = vshrl.u32 %v6758, 7
  %v6760 = vsub.s32 %v6757, %v6759
  %v6761 = vrot.slane %v6753, %v6760
  %6763 = vset.pattern.permute.xlu0 0
  %6764 = vperm.xlu0 %6763, %v503
  %v6765 = vpop.permute.xlu0 %6764
  %v6768 = vunpack.c.l.s4 839922192
  %v6769 = vunpack.c.0.s8 %v6768
  %v6770 = vlaneseq
  %v6771 = vshrl.u32 %v6770, 7
  %v6772 = vsub.s32 %v6769, %v6771
  %v6773 = vrot.slane %v6765, %v6772
  %6775 = vset.pattern.permute.xlu0 0
  %6776 = vperm.xlu0 %6775, %v504
  %v6777 = vpop.permute.xlu0 %6776
  %v6780 = vunpack.c.l.s4 839922192
  %v6781 = vunpack.c.0.s8 %v6780
  %v6782 = vlaneseq
  %v6783 = vshrl.u32 %v6782, 7
  %v6784 = vsub.s32 %v6781, %v6783
  %v6785 = vrot.slane %v6777, %v6784
  %6787 = vset.pattern.permute.xlu0 0
  %6788 = vperm.xlu0 %6787, %v505
  %v6789 = vpop.permute.xlu0 %6788
  %v6792 = vunpack.c.l.s4 839922192
  %v6793 = vunpack.c.0.s8 %v6792
  %v6794 = vlaneseq
  %v6795 = vshrl.u32 %v6794, 7
  %v6796 = vsub.s32 %v6793, %v6795
  %v6797 = vrot.slane %v6789, %v6796
  %6799 = vset.pattern.permute.xlu0 0
  %6800 = vperm.xlu0 %6799, %v506
  %v6801 = vpop.permute.xlu0 %6800
  %v6804 = vunpack.c.l.s4 839922192
  %v6805 = vunpack.c.0.s8 %v6804
  %v6806 = vlaneseq
  %v6807 = vshrl.u32 %v6806, 7
  %v6808 = vsub.s32 %v6805, %v6807
  %v6809 = vrot.slane %v6801, %v6808
  %6811 = vset.pattern.permute.xlu0 0
  %6812 = vperm.xlu0 %6811, %v507
  %v6813 = vpop.permute.xlu0 %6812
  %v6816 = vunpack.c.l.s4 839922192
  %v6817 = vunpack.c.0.s8 %v6816
  %v6818 = vlaneseq
  %v6819 = vshrl.u32 %v6818, 7
  %v6820 = vsub.s32 %v6817, %v6819
  %v6821 = vrot.slane %v6813, %v6820
  %6823 = vset.pattern.permute.xlu0 0
  %6824 = vperm.xlu0 %6823, %v508
  %v6825 = vpop.permute.xlu0 %6824
  %v6828 = vunpack.c.l.s4 839922192
  %v6829 = vunpack.c.0.s8 %v6828
  %v6830 = vlaneseq
  %v6831 = vshrl.u32 %v6830, 7
  %v6832 = vsub.s32 %v6829, %v6831
  %v6833 = vrot.slane %v6825, %v6832
  %6835 = vset.pattern.permute.xlu0 0
  %6836 = vperm.xlu0 %6835, %v509
  %v6837 = vpop.permute.xlu0 %6836
  %v6840 = vunpack.c.l.s4 839922192
  %v6841 = vunpack.c.0.s8 %v6840
  %v6842 = vlaneseq
  %v6843 = vshrl.u32 %v6842, 7
  %v6844 = vsub.s32 %v6841, %v6843
  %v6845 = vrot.slane %v6837, %v6844
  %6847 = vset.pattern.permute.xlu0 0
  %6848 = vperm.xlu0 %6847, %v510
  %v6849 = vpop.permute.xlu0 %6848
  %v6852 = vunpack.c.l.s4 839922192
  %v6853 = vunpack.c.0.s8 %v6852
  %v6854 = vlaneseq
  %v6855 = vshrl.u32 %v6854, 7
  %v6856 = vsub.s32 %v6853, %v6855
  %v6857 = vrot.slane %v6849, %v6856
  %6859 = vset.pattern.permute.xlu0 0
  %6860 = vperm.xlu0 %6859, %v511
  %v6861 = vpop.permute.xlu0 %6860
  %v6864 = vunpack.c.l.s4 839922192
  %v6865 = vunpack.c.0.s8 %v6864
  %v6866 = vlaneseq
  %v6867 = vshrl.u32 %v6866, 7
  %v6868 = vsub.s32 %v6865, %v6867
  %v6869 = vrot.slane %v6861, %v6868
  %6871 = vset.pattern.permute.xlu0 0
  %6872 = vperm.xlu0 %6871, %v512
  %v6873 = vpop.permute.xlu0 %6872
  %v6876 = vunpack.c.l.s4 839922192
  %v6877 = vunpack.c.0.s8 %v6876
  %v6878 = vlaneseq
  %v6879 = vshrl.u32 %v6878, 7
  %v6880 = vsub.s32 %v6877, %v6879
  %v6881 = vrot.slane %v6873, %v6880
  %6883 = vset.pattern.permute.xlu0 0
  %6884 = vperm.xlu0 %6883, %v513
  %v6885 = vpop.permute.xlu0 %6884
  %v6888 = vunpack.c.l.s4 839922192
  %v6889 = vunpack.c.0.s8 %v6888
  %v6890 = vlaneseq
  %v6891 = vshrl.u32 %v6890, 7
  %v6892 = vsub.s32 %v6889, %v6891
  %v6893 = vrot.slane %v6885, %v6892
  %6895 = vset.pattern.permute.xlu0 0
  %6896 = vperm.xlu0 %6895, %v514
  %v6897 = vpop.permute.xlu0 %6896
  %v6900 = vunpack.c.l.s4 839922192
  %v6901 = vunpack.c.0.s8 %v6900
  %v6902 = vlaneseq
  %v6903 = vshrl.u32 %v6902, 7
  %v6904 = vsub.s32 %v6901, %v6903
  %v6905 = vrot.slane %v6897, %v6904
  %6907 = vset.pattern.permute.xlu0 0
  %6908 = vperm.xlu0 %6907, %v515
  %v6909 = vpop.permute.xlu0 %6908
  %v6912 = vunpack.c.l.s4 839922192
  %v6913 = vunpack.c.0.s8 %v6912
  %v6914 = vlaneseq
  %v6915 = vshrl.u32 %v6914, 7
  %v6916 = vsub.s32 %v6913, %v6915
  %v6917 = vrot.slane %v6909, %v6916
  %6919 = vset.pattern.permute.xlu0 0
  %6920 = vperm.xlu0 %6919, %v516
  %v6921 = vpop.permute.xlu0 %6920
  %v6924 = vunpack.c.l.s4 839922192
  %v6925 = vunpack.c.0.s8 %v6924
  %v6926 = vlaneseq
  %v6927 = vshrl.u32 %v6926, 7
  %v6928 = vsub.s32 %v6925, %v6927
  %v6929 = vrot.slane %v6921, %v6928
  %6931 = vset.pattern.permute.xlu0 0
  %6932 = vperm.xlu0 %6931, %v517
  %v6933 = vpop.permute.xlu0 %6932
  %v6936 = vunpack.c.l.s4 839922192
  %v6937 = vunpack.c.0.s8 %v6936
  %v6938 = vlaneseq
  %v6939 = vshrl.u32 %v6938, 7
  %v6940 = vsub.s32 %v6937, %v6939
  %v6941 = vrot.slane %v6933, %v6940
  %6943 = vset.pattern.permute.xlu0 0
  %6944 = vperm.xlu0 %6943, %v518
  %v6945 = vpop.permute.xlu0 %6944
  %v6948 = vunpack.c.l.s4 839922192
  %v6949 = vunpack.c.0.s8 %v6948
  %v6950 = vlaneseq
  %v6951 = vshrl.u32 %v6950, 7
  %v6952 = vsub.s32 %v6949, %v6951
  %v6953 = vrot.slane %v6945, %v6952
  %6955 = vset.pattern.permute.xlu0 0
  %6956 = vperm.xlu0 %6955, %v519
  %v6957 = vpop.permute.xlu0 %6956
  %v6960 = vunpack.c.l.s4 839922192
  %v6961 = vunpack.c.0.s8 %v6960
  %v6962 = vlaneseq
  %v6963 = vshrl.u32 %v6962, 7
  %v6964 = vsub.s32 %v6961, %v6963
  %v6965 = vrot.slane %v6957, %v6964
  %6967 = vset.pattern.permute.xlu0 0
  %6968 = vperm.xlu0 %6967, %v520
  %v6969 = vpop.permute.xlu0 %6968
  %v6972 = vunpack.c.l.s4 839922192
  %v6973 = vunpack.c.0.s8 %v6972
  %v6974 = vlaneseq
  %v6975 = vshrl.u32 %v6974, 7
  %v6976 = vsub.s32 %v6973, %v6975
  %v6977 = vrot.slane %v6969, %v6976
  %6979 = vset.pattern.permute.xlu0 0
  %6980 = vperm.xlu0 %6979, %v521
  %v6981 = vpop.permute.xlu0 %6980
  %v6984 = vunpack.c.l.s4 839922192
  %v6985 = vunpack.c.0.s8 %v6984
  %v6986 = vlaneseq
  %v6987 = vshrl.u32 %v6986, 7
  %v6988 = vsub.s32 %v6985, %v6987
  %v6989 = vrot.slane %v6981, %v6988
  %6991 = vset.pattern.permute.xlu0 0
  %6992 = vperm.xlu0 %6991, %v522
  %v6993 = vpop.permute.xlu0 %6992
  %v6996 = vunpack.c.l.s4 839922192
  %v6997 = vunpack.c.0.s8 %v6996
  %v6998 = vlaneseq
  %v6999 = vshrl.u32 %v6998, 7
  %v7000 = vsub.s32 %v6997, %v6999
  %v7001 = vrot.slane %v6993, %v7000
  %7003 = vset.pattern.permute.xlu0 0
  %7004 = vperm.xlu0 %7003, %v523
  %v7005 = vpop.permute.xlu0 %7004
  %v7008 = vunpack.c.l.s4 839922192
  %v7009 = vunpack.c.0.s8 %v7008
  %v7010 = vlaneseq
  %v7011 = vshrl.u32 %v7010, 7
  %v7012 = vsub.s32 %v7009, %v7011
  %v7013 = vrot.slane %v7005, %v7012
  %7015 = vset.pattern.permute.xlu0 0
  %7016 = vperm.xlu0 %7015, %v524
  %v7017 = vpop.permute.xlu0 %7016
  %v7020 = vunpack.c.l.s4 839922192
  %v7021 = vunpack.c.0.s8 %v7020
  %v7022 = vlaneseq
  %v7023 = vshrl.u32 %v7022, 7
  %v7024 = vsub.s32 %v7021, %v7023
  %v7025 = vrot.slane %v7017, %v7024
  %7027 = vset.pattern.permute.xlu0 0
  %7028 = vperm.xlu0 %7027, %v525
  %v7029 = vpop.permute.xlu0 %7028
  %v7032 = vunpack.c.l.s4 839922192
  %v7033 = vunpack.c.0.s8 %v7032
  %v7034 = vlaneseq
  %v7035 = vshrl.u32 %v7034, 7
  %v7036 = vsub.s32 %v7033, %v7035
  %v7037 = vrot.slane %v7029, %v7036
  %7039 = vset.pattern.permute.xlu0 0
  %7040 = vperm.xlu0 %7039, %v526
  %v7041 = vpop.permute.xlu0 %7040
  %v7044 = vunpack.c.l.s4 839922192
  %v7045 = vunpack.c.0.s8 %v7044
  %v7046 = vlaneseq
  %v7047 = vshrl.u32 %v7046, 7
  %v7048 = vsub.s32 %v7045, %v7047
  %v7049 = vrot.slane %v7041, %v7048
  %7051 = vset.pattern.permute.xlu0 0
  %7052 = vperm.xlu0 %7051, %v527
  %v7053 = vpop.permute.xlu0 %7052
  %v7056 = vunpack.c.l.s4 839922192
  %v7057 = vunpack.c.0.s8 %v7056
  %v7058 = vlaneseq
  %v7059 = vshrl.u32 %v7058, 7
  %v7060 = vsub.s32 %v7057, %v7059
  %v7061 = vrot.slane %v7053, %v7060
  %7063 = vset.pattern.permute.xlu0 0
  %7064 = vperm.xlu0 %7063, %v528
  %v7065 = vpop.permute.xlu0 %7064
  %v7068 = vunpack.c.l.s4 839922192
  %v7069 = vunpack.c.0.s8 %v7068
  %v7070 = vlaneseq
  %v7071 = vshrl.u32 %v7070, 7
  %v7072 = vsub.s32 %v7069, %v7071
  %v7073 = vrot.slane %v7065, %v7072
  %7075 = vset.pattern.permute.xlu0 0
  %7076 = vperm.xlu0 %7075, %v529
  %v7077 = vpop.permute.xlu0 %7076
  %v7080 = vunpack.c.l.s4 839922192
  %v7081 = vunpack.c.0.s8 %v7080
  %v7082 = vlaneseq
  %v7083 = vshrl.u32 %v7082, 7
  %v7084 = vsub.s32 %v7081, %v7083
  %v7085 = vrot.slane %v7077, %v7084
  %7087 = vset.pattern.permute.xlu0 0
  %7088 = vperm.xlu0 %7087, %v530
  %v7089 = vpop.permute.xlu0 %7088
  %v7092 = vunpack.c.l.s4 839922192
  %v7093 = vunpack.c.0.s8 %v7092
  %v7094 = vlaneseq
  %v7095 = vshrl.u32 %v7094, 7
  %v7096 = vsub.s32 %v7093, %v7095
  %v7097 = vrot.slane %v7089, %v7096
  %7099 = vset.pattern.permute.xlu0 0
  %7100 = vperm.xlu0 %7099, %v531
  %v7101 = vpop.permute.xlu0 %7100
  %v7104 = vunpack.c.l.s4 839922192
  %v7105 = vunpack.c.0.s8 %v7104
  %v7106 = vlaneseq
  %v7107 = vshrl.u32 %v7106, 7
  %v7108 = vsub.s32 %v7105, %v7107
  %v7109 = vrot.slane %v7101, %v7108
  %7111 = vset.pattern.permute.xlu0 0
  %7112 = vperm.xlu0 %7111, %v532
  %v7113 = vpop.permute.xlu0 %7112
  %v7116 = vunpack.c.l.s4 839922192
  %v7117 = vunpack.c.0.s8 %v7116
  %v7118 = vlaneseq
  %v7119 = vshrl.u32 %v7118, 7
  %v7120 = vsub.s32 %v7117, %v7119
  %v7121 = vrot.slane %v7113, %v7120
  %7123 = vset.pattern.permute.xlu0 0
  %7124 = vperm.xlu0 %7123, %v533
  %v7125 = vpop.permute.xlu0 %7124
  %v7128 = vunpack.c.l.s4 839922192
  %v7129 = vunpack.c.0.s8 %v7128
  %v7130 = vlaneseq
  %v7131 = vshrl.u32 %v7130, 7
  %v7132 = vsub.s32 %v7129, %v7131
  %v7133 = vrot.slane %v7125, %v7132
  %7135 = vset.pattern.permute.xlu0 0
  %7136 = vperm.xlu0 %7135, %v534
  %v7137 = vpop.permute.xlu0 %7136
  %v7140 = vunpack.c.l.s4 839922192
  %v7141 = vunpack.c.0.s8 %v7140
  %v7142 = vlaneseq
  %v7143 = vshrl.u32 %v7142, 7
  %v7144 = vsub.s32 %v7141, %v7143
  %v7145 = vrot.slane %v7137, %v7144
  %7147 = vset.pattern.permute.xlu0 0
  %7148 = vperm.xlu0 %7147, %v535
  %v7149 = vpop.permute.xlu0 %7148
  %v7152 = vunpack.c.l.s4 839922192
  %v7153 = vunpack.c.0.s8 %v7152
  %v7154 = vlaneseq
  %v7155 = vshrl.u32 %v7154, 7
  %v7156 = vsub.s32 %v7153, %v7155
  %v7157 = vrot.slane %v7149, %v7156
  %7159 = vset.pattern.permute.xlu0 0
  %7160 = vperm.xlu0 %7159, %v536
  %v7161 = vpop.permute.xlu0 %7160
  %v7164 = vunpack.c.l.s4 839922192
  %v7165 = vunpack.c.0.s8 %v7164
  %v7166 = vlaneseq
  %v7167 = vshrl.u32 %v7166, 7
  %v7168 = vsub.s32 %v7165, %v7167
  %v7169 = vrot.slane %v7161, %v7168
  %7171 = vset.pattern.permute.xlu0 0
  %7172 = vperm.xlu0 %7171, %v537
  %v7173 = vpop.permute.xlu0 %7172
  %v7176 = vunpack.c.l.s4 839922192
  %v7177 = vunpack.c.0.s8 %v7176
  %v7178 = vlaneseq
  %v7179 = vshrl.u32 %v7178, 7
  %v7180 = vsub.s32 %v7177, %v7179
  %v7181 = vrot.slane %v7173, %v7180
  %7183 = vset.pattern.permute.xlu0 0
  %7184 = vperm.xlu0 %7183, %v538
  %v7185 = vpop.permute.xlu0 %7184
  %v7188 = vunpack.c.l.s4 839922192
  %v7189 = vunpack.c.0.s8 %v7188
  %v7190 = vlaneseq
  %v7191 = vshrl.u32 %v7190, 7
  %v7192 = vsub.s32 %v7189, %v7191
  %v7193 = vrot.slane %v7185, %v7192
  %7195 = vset.pattern.permute.xlu0 0
  %7196 = vperm.xlu0 %7195, %v539
  %v7197 = vpop.permute.xlu0 %7196
  %v7200 = vunpack.c.l.s4 839922192
  %v7201 = vunpack.c.0.s8 %v7200
  %v7202 = vlaneseq
  %v7203 = vshrl.u32 %v7202, 7
  %v7204 = vsub.s32 %v7201, %v7203
  %v7205 = vrot.slane %v7197, %v7204
  %7207 = vset.pattern.permute.xlu0 0
  %7208 = vperm.xlu0 %7207, %v540
  %v7209 = vpop.permute.xlu0 %7208
  %v7212 = vunpack.c.l.s4 839922192
  %v7213 = vunpack.c.0.s8 %v7212
  %v7214 = vlaneseq
  %v7215 = vshrl.u32 %v7214, 7
  %v7216 = vsub.s32 %v7213, %v7215
  %v7217 = vrot.slane %v7209, %v7216
  %7219 = vset.pattern.permute.xlu0 0
  %7220 = vperm.xlu0 %7219, %v541
  %v7221 = vpop.permute.xlu0 %7220
  %v7224 = vunpack.c.l.s4 839922192
  %v7225 = vunpack.c.0.s8 %v7224
  %v7226 = vlaneseq
  %v7227 = vshrl.u32 %v7226, 7
  %v7228 = vsub.s32 %v7225, %v7227
  %v7229 = vrot.slane %v7221, %v7228
  %v7230 = vmul.bf16 %v1097, %v574
  %v7231 = vmul.bf16 %v1109, %v575
  %v7232 = vmul.bf16 %v1121, %v576
  %v7233 = vmul.bf16 %v1133, %v577
  %v7234 = vmul.bf16 %v1145, %v578
  %v7235 = vmul.bf16 %v1157, %v579
  %v7236 = vmul.bf16 %v1169, %v580
  %v7237 = vmul.bf16 %v1181, %v581
  %v7238 = vmul.bf16 %v1193, %v582
  %v7239 = vmul.bf16 %v1205, %v583
  %v7240 = vmul.bf16 %v1217, %v584
  %v7241 = vmul.bf16 %v1229, %v585
  %v7242 = vmul.bf16 %v1241, %v586
  %v7243 = vmul.bf16 %v1253, %v587
  %v7244 = vmul.bf16 %v1265, %v588
  %v7245 = vmul.bf16 %v1277, %v589
  %v7246 = vmul.bf16 %v1289, %v590
  %v7247 = vmul.bf16 %v1301, %v591
  %v7248 = vmul.bf16 %v1313, %v592
  %v7249 = vmul.bf16 %v1325, %v593
  %v7250 = vmul.bf16 %v1337, %v594
  %v7251 = vmul.bf16 %v1349, %v595
  %v7252 = vmul.bf16 %v1361, %v596
  %v7253 = vmul.bf16 %v1373, %v597
  %v7254 = vmul.bf16 %v1385, %v598
  %v7255 = vmul.bf16 %v1397, %v599
  %v7256 = vmul.bf16 %v1409, %v600
  %v7257 = vmul.bf16 %v1421, %v601
  %v7258 = vmul.bf16 %v1433, %v602
  %v7259 = vmul.bf16 %v1445, %v603
  %v7260 = vmul.bf16 %v1457, %v604
  %v7261 = vmul.bf16 %v1469, %v605
  %v7262 = vmul.bf16 %v1481, %v606
  %v7263 = vmul.bf16 %v1493, %v607
  %v7264 = vmul.bf16 %v1505, %v608
  %v7265 = vmul.bf16 %v1517, %v609
  %v7266 = vmul.bf16 %v1529, %v610
  %v7267 = vmul.bf16 %v1541, %v611
  %v7268 = vmul.bf16 %v1553, %v612
  %v7269 = vmul.bf16 %v1565, %v613
  %v7270 = vmul.bf16 %v1577, %v614
  %v7271 = vmul.bf16 %v1589, %v615
  %v7272 = vmul.bf16 %v1601, %v616
  %v7273 = vmul.bf16 %v1613, %v617
  %v7274 = vmul.bf16 %v1625, %v618
  %v7275 = vmul.bf16 %v1637, %v619
  %v7276 = vmul.bf16 %v1649, %v620
  %v7277 = vmul.bf16 %v1661, %v621
  %v7278 = vmul.bf16 %v1673, %v622
  %v7279 = vmul.bf16 %v1685, %v623
  %v7280 = vmul.bf16 %v1697, %v624
  %v7281 = vmul.bf16 %v1709, %v625
  %v7282 = vmul.bf16 %v1721, %v626
  %v7283 = vmul.bf16 %v1733, %v627
  %v7284 = vmul.bf16 %v1745, %v628
  %v7285 = vmul.bf16 %v1757, %v629
  %v7286 = vmul.bf16 %v1769, %v630
  %v7287 = vmul.bf16 %v1781, %v631
  %v7288 = vmul.bf16 %v1793, %v632
  %v7289 = vmul.bf16 %v1805, %v633
  %v7290 = vmul.bf16 %v1817, %v634
  %v7291 = vmul.bf16 %v1829, %v635
  %v7292 = vmul.bf16 %v1841, %v636
  %v7293 = vmul.bf16 %v1853, %v637
  %v7294 = vmul.bf16 %v1865, %v638
  %v7295 = vmul.bf16 %v1877, %v639
  %v7296 = vmul.bf16 %v1889, %v640
  %v7297 = vmul.bf16 %v1901, %v641
  %v7298 = vmul.bf16 %v1913, %v642
  %v7299 = vmul.bf16 %v1925, %v643
  %v7300 = vmul.bf16 %v1937, %v644
  %v7301 = vmul.bf16 %v1949, %v645
  %v7302 = vmul.bf16 %v1961, %v646
  %v7303 = vmul.bf16 %v1973, %v647
  %v7304 = vmul.bf16 %v1985, %v648
  %v7305 = vmul.bf16 %v1997, %v649
  %v7306 = vmul.bf16 %v2009, %v650
  %v7307 = vmul.bf16 %v2021, %v651
  %v7308 = vmul.bf16 %v2033, %v652
  %v7309 = vmul.bf16 %v2045, %v653
  %v7310 = vmul.bf16 %v2057, %v654
  %v7311 = vmul.bf16 %v2069, %v655
  %v7312 = vmul.bf16 %v2081, %v656
  %v7313 = vmul.bf16 %v2093, %v657
  %v7314 = vmul.bf16 %v2105, %v658
  %v7315 = vmul.bf16 %v2117, %v659
  %v7316 = vmul.bf16 %v2129, %v660
  %v7317 = vmul.bf16 %v2141, %v661
  %v7318 = vmul.bf16 %v2153, %v662
  %v7319 = vmul.bf16 %v2165, %v663
  %v7320 = vmul.bf16 %v2177, %v664
  %v7321 = vmul.bf16 %v2189, %v665
  %v7322 = vmul.bf16 %v2201, %v666
  %v7323 = vmul.bf16 %v2213, %v667
  %v7324 = vmul.bf16 %v2225, %v668
  %v7325 = vmul.bf16 %v2237, %v669
  %v7326 = vmul.bf16 %v2249, %v670
  %v7327 = vmul.bf16 %v2261, %v671
  %v7328 = vmul.bf16 %v2273, %v672
  %v7329 = vmul.bf16 %v2285, %v673
  %v7330 = vmul.bf16 %v2297, %v674
  %v7331 = vmul.bf16 %v2309, %v675
  %v7332 = vmul.bf16 %v2321, %v676
  %v7333 = vmul.bf16 %v2333, %v677
  %v7334 = vmul.bf16 %v2345, %v678
  %v7335 = vmul.bf16 %v2357, %v679
  %v7336 = vmul.bf16 %v2369, %v680
  %v7337 = vmul.bf16 %v2381, %v681
  %v7338 = vmul.bf16 %v2393, %v682
  %v7339 = vmul.bf16 %v2405, %v683
  %v7340 = vmul.bf16 %v2417, %v684
  %v7341 = vmul.bf16 %v2429, %v685
  %v7342 = vmul.bf16 %v2441, %v686
  %v7343 = vmul.bf16 %v2453, %v687
  %v7344 = vmul.bf16 %v2465, %v688
  %v7345 = vmul.bf16 %v2477, %v689
  %v7346 = vmul.bf16 %v2489, %v690
  %v7347 = vmul.bf16 %v2501, %v691
  %v7348 = vmul.bf16 %v2513, %v692
  %v7349 = vmul.bf16 %v2525, %v693
  %v7350 = vmul.bf16 %v2537, %v694
  %v7351 = vmul.bf16 %v2549, %v695
  %v7352 = vmul.bf16 %v2561, %v696
  %v7353 = vmul.bf16 %v2573, %v697
  %v7354 = vmul.bf16 %v2585, %v698
  %v7355 = vmul.bf16 %v2597, %v699
  %v7356 = vmul.bf16 %v2609, %v700
  %v7357 = vmul.bf16 %v2621, %v701
  %v7358 = vmul.bf16 %v2633, %v702
  %v7359 = vmul.bf16 %v2645, %v703
  %v7360 = vmul.bf16 %v2657, %v704
  %v7361 = vmul.bf16 %v2669, %v705
  %v7362 = vmul.bf16 %v2681, %v706
  %v7363 = vmul.bf16 %v2693, %v707
  %v7364 = vmul.bf16 %v2705, %v708
  %v7365 = vmul.bf16 %v2717, %v709
  %v7366 = vmul.bf16 %v2729, %v710
  %v7367 = vmul.bf16 %v2741, %v711
  %v7368 = vmul.bf16 %v2753, %v712
  %v7369 = vmul.bf16 %v2765, %v713
  %v7370 = vmul.bf16 %v2777, %v714
  %v7371 = vmul.bf16 %v2789, %v715
  %v7372 = vmul.bf16 %v2801, %v716
  %v7373 = vmul.bf16 %v2813, %v717
  %v7374 = vmul.bf16 %v2825, %v718
  %v7375 = vmul.bf16 %v2837, %v719
  %v7376 = vmul.bf16 %v2849, %v720
  %v7377 = vmul.bf16 %v2861, %v721
  %v7378 = vmul.bf16 %v2873, %v722
  %v7379 = vmul.bf16 %v2885, %v723
  %v7380 = vmul.bf16 %v2897, %v724
  %v7381 = vmul.bf16 %v2909, %v725
  %v7382 = vmul.bf16 %v2921, %v726
  %v7383 = vmul.bf16 %v2933, %v727
  %v7384 = vmul.bf16 %v2945, %v728
  %v7385 = vmul.bf16 %v2957, %v729
  %v7386 = vmul.bf16 %v2969, %v730
  %v7387 = vmul.bf16 %v2981, %v731
  %v7388 = vmul.bf16 %v2993, %v732
  %v7389 = vmul.bf16 %v3005, %v733
  %v7390 = vmul.bf16 %v3017, %v734
  %v7391 = vmul.bf16 %v3029, %v735
  %v7392 = vmul.bf16 %v3041, %v736
  %v7393 = vmul.bf16 %v3053, %v737
  %v7394 = vmul.bf16 %v3065, %v738
  %v7395 = vmul.bf16 %v3077, %v739
  %v7396 = vmul.bf16 %v3089, %v740
  %v7397 = vmul.bf16 %v3101, %v741
  %v7398 = vmul.bf16 %v3113, %v742
  %v7399 = vmul.bf16 %v3125, %v743
  %v7400 = vmul.bf16 %v3137, %v744
  %v7401 = vmul.bf16 %v3149, %v745
  %v7402 = vmul.bf16 %v3161, %v746
  %v7403 = vmul.bf16 %v3173, %v747
  %v7404 = vmul.bf16 %v3185, %v748
  %v7405 = vmul.bf16 %v3197, %v749
  %v7406 = vmul.bf16 %v3209, %v750
  %v7407 = vmul.bf16 %v3221, %v751
  %v7408 = vmul.bf16 %v3233, %v752
  %v7409 = vmul.bf16 %v3245, %v753
  %v7410 = vmul.bf16 %v3257, %v754
  %v7411 = vmul.bf16 %v3269, %v755
  %v7412 = vmul.bf16 %v3281, %v756
  %v7413 = vmul.bf16 %v3293, %v757
  %v7414 = vmul.bf16 %v3305, %v758
  %v7415 = vmul.bf16 %v3317, %v759
  %v7416 = vmul.bf16 %v3329, %v760
  %v7417 = vmul.bf16 %v3341, %v761
  %v7418 = vmul.bf16 %v3353, %v762
  %v7419 = vmul.bf16 %v3365, %v763
  %v7420 = vmul.bf16 %v3377, %v764
  %v7421 = vmul.bf16 %v3389, %v765
  %v7422 = vmul.bf16 %v3401, %v766
  %v7423 = vmul.bf16 %v3413, %v767
  %v7424 = vmul.bf16 %v3425, %v768
  %v7425 = vmul.bf16 %v3437, %v769
  %v7426 = vmul.bf16 %v3449, %v770
  %v7427 = vmul.bf16 %v3461, %v771
  %v7428 = vmul.bf16 %v3473, %v772
  %v7429 = vmul.bf16 %v3485, %v773
  %v7430 = vmul.bf16 %v3497, %v774
  %v7431 = vmul.bf16 %v3509, %v775
  %v7432 = vmul.bf16 %v3521, %v776
  %v7433 = vmul.bf16 %v3533, %v777
  %v7434 = vmul.bf16 %v3545, %v778
  %v7435 = vmul.bf16 %v3557, %v779
  %v7436 = vmul.bf16 %v3569, %v780
  %v7437 = vmul.bf16 %v3581, %v781
  %v7438 = vmul.bf16 %v3593, %v782
  %v7439 = vmul.bf16 %v3605, %v783
  %v7440 = vmul.bf16 %v3617, %v784
  %v7441 = vmul.bf16 %v3629, %v785
  %v7442 = vmul.bf16 %v3641, %v786
  %v7443 = vmul.bf16 %v3653, %v787
  %v7444 = vmul.bf16 %v3665, %v788
  %v7445 = vmul.bf16 %v3677, %v789
  %v7446 = vmul.bf16 %v3689, %v790
  %v7447 = vmul.bf16 %v3701, %v791
  %v7448 = vmul.bf16 %v3713, %v792
  %v7449 = vmul.bf16 %v3725, %v793
  %v7450 = vmul.bf16 %v3737, %v794
  %v7451 = vmul.bf16 %v3749, %v795
  %v7452 = vmul.bf16 %v3761, %v796
  %v7453 = vmul.bf16 %v3773, %v797
  %v7454 = vmul.bf16 %v3785, %v798
  %v7455 = vmul.bf16 %v3797, %v799
  %v7456 = vmul.bf16 %v3809, %v800
  %v7457 = vmul.bf16 %v3821, %v801
  %v7458 = vmul.bf16 %v3833, %v802
  %v7459 = vmul.bf16 %v3845, %v803
  %v7460 = vmul.bf16 %v3857, %v804
  %v7461 = vmul.bf16 %v3869, %v805
  %v7462 = vmul.bf16 %v3881, %v806
  %v7463 = vmul.bf16 %v3893, %v807
  %v7464 = vmul.bf16 %v3905, %v808
  %v7465 = vmul.bf16 %v3917, %v809
  %v7466 = vmul.bf16 %v3929, %v810
  %v7467 = vmul.bf16 %v3941, %v811
  %v7468 = vmul.bf16 %v3953, %v812
  %v7469 = vmul.bf16 %v3965, %v813
  %v7470 = vmul.bf16 %v3977, %v814
  %v7471 = vmul.bf16 %v3989, %v815
  %v7472 = vmul.bf16 %v4001, %v816
  %v7473 = vmul.bf16 %v4013, %v817
  %v7474 = vmul.bf16 %v4025, %v818
  %v7475 = vmul.bf16 %v4037, %v819
  %v7476 = vmul.bf16 %v4049, %v820
  %v7477 = vmul.bf16 %v4061, %v821
  %v7478 = vmul.bf16 %v4073, %v822
  %v7479 = vmul.bf16 %v4085, %v823
  %v7480 = vmul.bf16 %v4097, %v824
  %v7481 = vmul.bf16 %v4109, %v825
  %v7482 = vmul.bf16 %v4121, %v826
  %v7483 = vmul.bf16 %v4133, %v827
  %v7484 = vmul.bf16 %v4145, %v828
  %v7485 = vmul.bf16 %v4157, %v829
  %v7486 = vmul.bf16 %v4169, %v830
  %v7487 = vmul.bf16 %v4181, %v831
  %v7488 = vmul.bf16 %v4193, %v832
  %v7489 = vmul.bf16 %v4205, %v833
  %v7490 = vmul.bf16 %v4217, %v834
  %v7491 = vmul.bf16 %v4229, %v835
  %v7492 = vmul.bf16 %v4241, %v836
  %v7493 = vmul.bf16 %v4253, %v837
  %v7494 = vmul.bf16 %v4265, %v838
  %v7495 = vmul.bf16 %v4277, %v839
  %v7496 = vmul.bf16 %v4289, %v840
  %v7497 = vmul.bf16 %v4301, %v841
  %v7498 = vmul.bf16 %v4313, %v842
  %v7499 = vmul.bf16 %v4325, %v843
  %v7500 = vmul.bf16 %v4337, %v844
  %v7501 = vmul.bf16 %v4349, %v845
  %v7502 = vmul.bf16 %v4361, %v846
  %v7503 = vmul.bf16 %v4373, %v847
  %v7504 = vmul.bf16 %v4385, %v848
  %v7505 = vmul.bf16 %v4397, %v849
  %v7506 = vmul.bf16 %v4409, %v850
  %v7507 = vmul.bf16 %v4421, %v851
  %v7508 = vmul.bf16 %v4433, %v852
  %v7509 = vmul.bf16 %v4445, %v853
  %v7510 = vmul.bf16 %v4457, %v854
  %v7511 = vmul.bf16 %v4469, %v855
  %v7512 = vmul.bf16 %v4481, %v856
  %v7513 = vmul.bf16 %v4493, %v857
  %v7514 = vmul.bf16 %v4505, %v858
  %v7515 = vmul.bf16 %v4517, %v859
  %v7516 = vmul.bf16 %v4529, %v860
  %v7517 = vmul.bf16 %v4541, %v861
  %v7518 = vmul.bf16 %v4553, %v862
  %v7519 = vmul.bf16 %v4565, %v863
  %v7520 = vmul.bf16 %v4577, %v864
  %v7521 = vmul.bf16 %v4589, %v865
  %v7522 = vmul.bf16 %v4601, %v866
  %v7523 = vmul.bf16 %v4613, %v867
  %v7524 = vmul.bf16 %v4625, %v868
  %v7525 = vmul.bf16 %v4637, %v869
  %v7526 = vmul.bf16 %v4649, %v870
  %v7527 = vmul.bf16 %v4661, %v871
  %v7528 = vmul.bf16 %v4673, %v872
  %v7529 = vmul.bf16 %v4685, %v873
  %v7530 = vmul.bf16 %v4697, %v874
  %v7531 = vmul.bf16 %v4709, %v875
  %v7532 = vmul.bf16 %v4721, %v876
  %v7533 = vmul.bf16 %v4733, %v877
  %v7534 = vmul.bf16 %v4745, %v878
  %v7535 = vmul.bf16 %v4757, %v879
  %v7536 = vmul.bf16 %v4769, %v880
  %v7537 = vmul.bf16 %v4781, %v881
  %v7538 = vmul.bf16 %v4793, %v882
  %v7539 = vmul.bf16 %v4805, %v883
  %v7540 = vmul.bf16 %v4817, %v884
  %v7541 = vmul.bf16 %v4829, %v885
  %v7542 = vmul.bf16 %v4841, %v886
  %v7543 = vmul.bf16 %v4853, %v887
  %v7544 = vmul.bf16 %v4865, %v888
  %v7545 = vmul.bf16 %v4877, %v889
  %v7546 = vmul.bf16 %v4889, %v890
  %v7547 = vmul.bf16 %v4901, %v891
  %v7548 = vmul.bf16 %v4913, %v892
  %v7549 = vmul.bf16 %v4925, %v893
  %v7550 = vmul.bf16 %v4937, %v894
  %v7551 = vmul.bf16 %v4949, %v895
  %v7552 = vmul.bf16 %v4961, %v896
  %v7553 = vmul.bf16 %v4973, %v897
  %v7554 = vmul.bf16 %v4985, %v898
  %v7555 = vmul.bf16 %v4997, %v899
  %v7556 = vmul.bf16 %v5009, %v900
  %v7557 = vmul.bf16 %v5021, %v901
  %v7558 = vmul.bf16 %v5033, %v902
  %v7559 = vmul.bf16 %v5045, %v903
  %v7560 = vmul.bf16 %v5057, %v904
  %v7561 = vmul.bf16 %v5069, %v905
  %v7562 = vmul.bf16 %v5081, %v906
  %v7563 = vmul.bf16 %v5093, %v907
  %v7564 = vmul.bf16 %v5105, %v908
  %v7565 = vmul.bf16 %v5117, %v909
  %v7566 = vmul.bf16 %v5129, %v910
  %v7567 = vmul.bf16 %v5141, %v911
  %v7568 = vmul.bf16 %v5153, %v912
  %v7569 = vmul.bf16 %v5165, %v913
  %v7570 = vmul.bf16 %v5177, %v914
  %v7571 = vmul.bf16 %v5189, %v915
  %v7572 = vmul.bf16 %v5201, %v916
  %v7573 = vmul.bf16 %v5213, %v917
  %v7574 = vmul.bf16 %v5225, %v918
  %v7575 = vmul.bf16 %v5237, %v919
  %v7576 = vmul.bf16 %v5249, %v920
  %v7577 = vmul.bf16 %v5261, %v921
  %v7578 = vmul.bf16 %v5273, %v922
  %v7579 = vmul.bf16 %v5285, %v923
  %v7580 = vmul.bf16 %v5297, %v924
  %v7581 = vmul.bf16 %v5309, %v925
  %v7582 = vmul.bf16 %v5321, %v926
  %v7583 = vmul.bf16 %v5333, %v927
  %v7584 = vmul.bf16 %v5345, %v928
  %v7585 = vmul.bf16 %v5357, %v929
  %v7586 = vmul.bf16 %v5369, %v930
  %v7587 = vmul.bf16 %v5381, %v931
  %v7588 = vmul.bf16 %v5393, %v932
  %v7589 = vmul.bf16 %v5405, %v933
  %v7590 = vmul.bf16 %v5417, %v934
  %v7591 = vmul.bf16 %v5429, %v935
  %v7592 = vmul.bf16 %v5441, %v936
  %v7593 = vmul.bf16 %v5453, %v937
  %v7594 = vmul.bf16 %v5465, %v938
  %v7595 = vmul.bf16 %v5477, %v939
  %v7596 = vmul.bf16 %v5489, %v940
  %v7597 = vmul.bf16 %v5501, %v941
  %v7598 = vmul.bf16 %v5513, %v942
  %v7599 = vmul.bf16 %v5525, %v943
  %v7600 = vmul.bf16 %v5537, %v944
  %v7601 = vmul.bf16 %v5549, %v945
  %v7602 = vmul.bf16 %v5561, %v946
  %v7603 = vmul.bf16 %v5573, %v947
  %v7604 = vmul.bf16 %v5585, %v948
  %v7605 = vmul.bf16 %v5597, %v949
  %v7606 = vmul.bf16 %v5609, %v950
  %v7607 = vmul.bf16 %v5621, %v951
  %v7608 = vmul.bf16 %v5633, %v952
  %v7609 = vmul.bf16 %v5645, %v953
  %v7610 = vmul.bf16 %v5657, %v954
  %v7611 = vmul.bf16 %v5669, %v955
  %v7612 = vmul.bf16 %v5681, %v956
  %v7613 = vmul.bf16 %v5693, %v957
  %v7614 = vmul.bf16 %v5705, %v958
  %v7615 = vmul.bf16 %v5717, %v959
  %v7616 = vmul.bf16 %v5729, %v960
  %v7617 = vmul.bf16 %v5741, %v961
  %v7618 = vmul.bf16 %v5753, %v962
  %v7619 = vmul.bf16 %v5765, %v963
  %v7620 = vmul.bf16 %v5777, %v964
  %v7621 = vmul.bf16 %v5789, %v965
  %v7622 = vmul.bf16 %v5801, %v966
  %v7623 = vmul.bf16 %v5813, %v967
  %v7624 = vmul.bf16 %v5825, %v968
  %v7625 = vmul.bf16 %v5837, %v969
  %v7626 = vmul.bf16 %v5849, %v970
  %v7627 = vmul.bf16 %v5861, %v971
  %v7628 = vmul.bf16 %v5873, %v972
  %v7629 = vmul.bf16 %v5885, %v973
  %v7630 = vmul.bf16 %v5897, %v974
  %v7631 = vmul.bf16 %v5909, %v975
  %v7632 = vmul.bf16 %v5921, %v976
  %v7633 = vmul.bf16 %v5933, %v977
  %v7634 = vmul.bf16 %v5945, %v978
  %v7635 = vmul.bf16 %v5957, %v979
  %v7636 = vmul.bf16 %v5969, %v980
  %v7637 = vmul.bf16 %v5981, %v981
  %v7638 = vmul.bf16 %v5993, %v982
  %v7639 = vmul.bf16 %v6005, %v983
  %v7640 = vmul.bf16 %v6017, %v984
  %v7641 = vmul.bf16 %v6029, %v985
  %v7642 = vmul.bf16 %v6041, %v986
  %v7643 = vmul.bf16 %v6053, %v987
  %v7644 = vmul.bf16 %v6065, %v988
  %v7645 = vmul.bf16 %v6077, %v989
  %v7646 = vmul.bf16 %v6089, %v990
  %v7647 = vmul.bf16 %v6101, %v991
  %v7648 = vmul.bf16 %v6113, %v992
  %v7649 = vmul.bf16 %v6125, %v993
  %v7650 = vmul.bf16 %v6137, %v994
  %v7651 = vmul.bf16 %v6149, %v995
  %v7652 = vmul.bf16 %v6161, %v996
  %v7653 = vmul.bf16 %v6173, %v997
  %v7654 = vmul.bf16 %v6185, %v998
  %v7655 = vmul.bf16 %v6197, %v999
  %v7656 = vmul.bf16 %v6209, %v1000
  %v7657 = vmul.bf16 %v6221, %v1001
  %v7658 = vmul.bf16 %v6233, %v1002
  %v7659 = vmul.bf16 %v6245, %v1003
  %v7660 = vmul.bf16 %v6257, %v1004
  %v7661 = vmul.bf16 %v6269, %v1005
  %v7662 = vmul.bf16 %v6281, %v1006
  %v7663 = vmul.bf16 %v6293, %v1007
  %v7664 = vmul.bf16 %v6305, %v1008
  %v7665 = vmul.bf16 %v6317, %v1009
  %v7666 = vmul.bf16 %v6329, %v1010
  %v7667 = vmul.bf16 %v6341, %v1011
  %v7668 = vmul.bf16 %v6353, %v1012
  %v7669 = vmul.bf16 %v6365, %v1013
  %v7670 = vmul.bf16 %v6377, %v1014
  %v7671 = vmul.bf16 %v6389, %v1015
  %v7672 = vmul.bf16 %v6401, %v1016
  %v7673 = vmul.bf16 %v6413, %v1017
  %v7674 = vmul.bf16 %v6425, %v1018
  %v7675 = vmul.bf16 %v6437, %v1019
  %v7676 = vmul.bf16 %v6449, %v1020
  %v7677 = vmul.bf16 %v6461, %v1021
  %v7678 = vmul.bf16 %v6473, %v1022
  %v7679 = vmul.bf16 %v6485, %v1023
  %v7680 = vmul.bf16 %v6497, %v1024
  %v7681 = vmul.bf16 %v6509, %v1025
  %v7682 = vmul.bf16 %v6521, %v1026
  %v7683 = vmul.bf16 %v6533, %v1027
  %v7684 = vmul.bf16 %v6545, %v1028
  %v7685 = vmul.bf16 %v6557, %v1029
  %v7686 = vmul.bf16 %v6569, %v1030
  %v7687 = vmul.bf16 %v6581, %v1031
  %v7688 = vmul.bf16 %v6593, %v1032
  %v7689 = vmul.bf16 %v6605, %v1033
  %v7690 = vmul.bf16 %v6617, %v1034
  %v7691 = vmul.bf16 %v6629, %v1035
  %v7692 = vmul.bf16 %v6641, %v1036
  %v7693 = vmul.bf16 %v6653, %v1037
  %v7694 = vmul.bf16 %v6665, %v1038
  %v7695 = vmul.bf16 %v6677, %v1039
  %v7696 = vmul.bf16 %v6689, %v1040
  %v7697 = vmul.bf16 %v6701, %v1041
  %v7698 = vmul.bf16 %v6713, %v1042
  %v7699 = vmul.bf16 %v6725, %v1043
  %v7700 = vmul.bf16 %v6737, %v1044
  %v7701 = vmul.bf16 %v6749, %v1045
  %v7702 = vmul.bf16 %v6761, %v1046
  %v7703 = vmul.bf16 %v6773, %v1047
  %v7704 = vmul.bf16 %v6785, %v1048
  %v7705 = vmul.bf16 %v6797, %v1049
  %v7706 = vmul.bf16 %v6809, %v1050
  %v7707 = vmul.bf16 %v6821, %v1051
  %v7708 = vmul.bf16 %v6833, %v1052
  %v7709 = vmul.bf16 %v6845, %v1053
  %v7710 = vmul.bf16 %v6857, %v1054
  %v7711 = vmul.bf16 %v6869, %v1055
  %v7712 = vmul.bf16 %v6881, %v1056
  %v7713 = vmul.bf16 %v6893, %v1057
  %v7714 = vmul.bf16 %v6905, %v1058
  %v7715 = vmul.bf16 %v6917, %v1059
  %v7716 = vmul.bf16 %v6929, %v1060
  %v7717 = vmul.bf16 %v6941, %v1061
  %v7718 = vmul.bf16 %v6953, %v1062
  %v7719 = vmul.bf16 %v6965, %v1063
  %v7720 = vmul.bf16 %v6977, %v1064
  %v7721 = vmul.bf16 %v6989, %v1065
  %v7722 = vmul.bf16 %v7001, %v1066
  %v7723 = vmul.bf16 %v7013, %v1067
  %v7724 = vmul.bf16 %v7025, %v1068
  %v7725 = vmul.bf16 %v7037, %v1069
  %v7726 = vmul.bf16 %v7049, %v1070
  %v7727 = vmul.bf16 %v7061, %v1071
  %v7728 = vmul.bf16 %v7073, %v1072
  %v7729 = vmul.bf16 %v7085, %v1073
  %v7730 = vmul.bf16 %v7097, %v1074
  %v7731 = vmul.bf16 %v7109, %v1075
  %v7732 = vmul.bf16 %v7121, %v1076
  %v7733 = vmul.bf16 %v7133, %v1077
  %v7734 = vmul.bf16 %v7145, %v1078
  %v7735 = vmul.bf16 %v7157, %v1079
  %v7736 = vmul.bf16 %v7169, %v1080
  %v7737 = vmul.bf16 %v7181, %v1081
  %v7738 = vmul.bf16 %v7193, %v1082
  %v7739 = vmul.bf16 %v7205, %v1083
  %v7740 = vmul.bf16 %v7217, %v1084
  %v7741 = vmul.bf16 %v7229, %v1085
  %v7742 = vld [vmem:[%s3] sm:$0xf]
  %v7743 = vld [vmem:[%s3 + $0x4] sm:$0xf]
  %v7744 = vld [vmem:[%s3 + $0x8] sm:$0xf]
  %v7745 = vld [vmem:[%s3 + $0xc] sm:$0xf]
  %v7746 = vld [vmem:[%s3 + $0x10] sm:$0xf]
  %v7747 = vld [vmem:[%s3 + $0x14] sm:$0xf]
  %v7748 = vld [vmem:[%s3 + $0x18] sm:$0xf]
  %v7749 = vld [vmem:[%s3 + $0x1c] sm:$0xf]
  %v7750 = vld [vmem:[%s3 + $0x20] sm:$0xf]
  %v7751 = vld [vmem:[%s3 + $0x24] sm:$0xf]
  %v7752 = vld [vmem:[%s3 + $0x28] sm:$0xf]
  %v7753 = vld [vmem:[%s3 + $0x2c] sm:$0xf]
  %v7754 = vld [vmem:[%s3 + $0x30] sm:$0xf]
  %v7755 = vld [vmem:[%s3 + $0x34] sm:$0xf]
  %v7756 = vld [vmem:[%s3 + $0x38] sm:$0xf]
  %v7757 = vld [vmem:[%s3 + $0x3c] sm:$0xf]
  %v7758 = vld [vmem:[%s3 + $0x40] sm:$0xf]
  %v7759 = vld [vmem:[%s3 + $0x44] sm:$0xf]
  %v7760 = vld [vmem:[%s3 + $0x48] sm:$0xf]
  %v7761 = vld [vmem:[%s3 + $0x4c] sm:$0xf]
  %v7762 = vld [vmem:[%s3 + $0x50] sm:$0xf]
  %v7763 = vld [vmem:[%s3 + $0x54] sm:$0xf]
  %v7764 = vld [vmem:[%s3 + $0x58] sm:$0xf]
  %v7765 = vld [vmem:[%s3 + $0x5c] sm:$0xf]
  %v7766 = vld [vmem:[%s3 + $0x60] sm:$0xf]
  %v7767 = vld [vmem:[%s3 + $0x64] sm:$0xf]
  %v7768 = vld [vmem:[%s3 + $0x68] sm:$0xf]
  %v7769 = vld [vmem:[%s3 + $0x6c] sm:$0xf]
  %v7770 = vld [vmem:[%s3 + $0x70] sm:$0xf]
  %v7771 = vld [vmem:[%s3 + $0x74] sm:$0xf]
  %v7772 = vld [vmem:[%s3 + $0x78] sm:$0xf]
  %v7773 = vld [vmem:[%s3 + $0x7c] sm:$0xf]
  %v7774 = vld [vmem:[%s3 + $0x80] sm:$0xf]
  %v7775 = vld [vmem:[%s3 + $0x84] sm:$0xf]
  %v7776 = vld [vmem:[%s3 + $0x88] sm:$0xf]
  %v7777 = vld [vmem:[%s3 + $0x8c] sm:$0xf]
  %v7778 = vld [vmem:[%s3 + $0x90] sm:$0xf]
  %v7779 = vld [vmem:[%s3 + $0x94] sm:$0xf]
  %v7780 = vld [vmem:[%s3 + $0x98] sm:$0xf]
  %v7781 = vld [vmem:[%s3 + $0x9c] sm:$0xf]
  %v7782 = vld [vmem:[%s3 + $0xa0] sm:$0xf]
  %v7783 = vld [vmem:[%s3 + $0xa4] sm:$0xf]
  %v7784 = vld [vmem:[%s3 + $0xa8] sm:$0xf]
  %v7785 = vld [vmem:[%s3 + $0xac] sm:$0xf]
  %v7786 = vld [vmem:[%s3 + $0xb0] sm:$0xf]
  %v7787 = vld [vmem:[%s3 + $0xb4] sm:$0xf]
  %v7788 = vld [vmem:[%s3 + $0xb8] sm:$0xf]
  %v7789 = vld [vmem:[%s3 + $0xbc] sm:$0xf]
  %v7790 = vld [vmem:[%s3 + $0xc0] sm:$0xf]
  %v7791 = vld [vmem:[%s3 + $0xc4] sm:$0xf]
  %v7792 = vld [vmem:[%s3 + $0xc8] sm:$0xf]
  %v7793 = vld [vmem:[%s3 + $0xcc] sm:$0xf]
  %v7794 = vld [vmem:[%s3 + $0xd0] sm:$0xf]
  %v7795 = vld [vmem:[%s3 + $0xd4] sm:$0xf]
  %v7796 = vld [vmem:[%s3 + $0xd8] sm:$0xf]
  %v7797 = vld [vmem:[%s3 + $0xdc] sm:$0xf]
  %v7798 = vld [vmem:[%s3 + $0xe0] sm:$0xf]
  %v7799 = vld [vmem:[%s3 + $0xe4] sm:$0xf]
  %v7800 = vld [vmem:[%s3 + $0xe8] sm:$0xf]
  %v7801 = vld [vmem:[%s3 + $0xec] sm:$0xf]
  %v7802 = vld [vmem:[%s3 + $0xf0] sm:$0xf]
  %v7803 = vld [vmem:[%s3 + $0xf4] sm:$0xf]
  %v7804 = vld [vmem:[%s3 + $0xf8] sm:$0xf]
  %v7805 = vld [vmem:[%s3 + $0xfc] sm:$0xf]
  %v7806 = vld [vmem:[%s3 + $0x100] sm:$0xf]
  %v7807 = vld [vmem:[%s3 + $0x104] sm:$0xf]
  %v7808 = vld [vmem:[%s3 + $0x108] sm:$0xf]
  %v7809 = vld [vmem:[%s3 + $0x10c] sm:$0xf]
  %v7810 = vld [vmem:[%s3 + $0x110] sm:$0xf]
  %v7811 = vld [vmem:[%s3 + $0x114] sm:$0xf]
  %v7812 = vld [vmem:[%s3 + $0x118] sm:$0xf]
  %v7813 = vld [vmem:[%s3 + $0x11c] sm:$0xf]
  %v7814 = vld [vmem:[%s3 + $0x120] sm:$0xf]
  %v7815 = vld [vmem:[%s3 + $0x124] sm:$0xf]
  %v7816 = vld [vmem:[%s3 + $0x128] sm:$0xf]
  %v7817 = vld [vmem:[%s3 + $0x12c] sm:$0xf]
  %v7818 = vld [vmem:[%s3 + $0x130] sm:$0xf]
  %v7819 = vld [vmem:[%s3 + $0x134] sm:$0xf]
  %v7820 = vld [vmem:[%s3 + $0x138] sm:$0xf]
  %v7821 = vld [vmem:[%s3 + $0x13c] sm:$0xf]
  %v7822 = vld [vmem:[%s3 + $0x140] sm:$0xf]
  %v7823 = vld [vmem:[%s3 + $0x144] sm:$0xf]
  %v7824 = vld [vmem:[%s3 + $0x148] sm:$0xf]
  %v7825 = vld [vmem:[%s3 + $0x14c] sm:$0xf]
  %v7826 = vld [vmem:[%s3 + $0x150] sm:$0xf]
  %v7827 = vld [vmem:[%s3 + $0x154] sm:$0xf]
  %v7828 = vld [vmem:[%s3 + $0x158] sm:$0xf]
  %v7829 = vld [vmem:[%s3 + $0x15c] sm:$0xf]
  %v7830 = vld [vmem:[%s3 + $0x160] sm:$0xf]
  %v7831 = vld [vmem:[%s3 + $0x164] sm:$0xf]
  %v7832 = vld [vmem:[%s3 + $0x168] sm:$0xf]
  %v7833 = vld [vmem:[%s3 + $0x16c] sm:$0xf]
  %v7834 = vld [vmem:[%s3 + $0x170] sm:$0xf]
  %v7835 = vld [vmem:[%s3 + $0x174] sm:$0xf]
  %v7836 = vld [vmem:[%s3 + $0x178] sm:$0xf]
  %v7837 = vld [vmem:[%s3 + $0x17c] sm:$0xf]
  %v7838 = vld [vmem:[%s3 + $0x180] sm:$0xf]
  %v7839 = vld [vmem:[%s3 + $0x184] sm:$0xf]
  %v7840 = vld [vmem:[%s3 + $0x188] sm:$0xf]
  %v7841 = vld [vmem:[%s3 + $0x18c] sm:$0xf]
  %v7842 = vld [vmem:[%s3 + $0x190] sm:$0xf]
  %v7843 = vld [vmem:[%s3 + $0x194] sm:$0xf]
  %v7844 = vld [vmem:[%s3 + $0x198] sm:$0xf]
  %v7845 = vld [vmem:[%s3 + $0x19c] sm:$0xf]
  %v7846 = vld [vmem:[%s3 + $0x1a0] sm:$0xf]
  %v7847 = vld [vmem:[%s3 + $0x1a4] sm:$0xf]
  %v7848 = vld [vmem:[%s3 + $0x1a8] sm:$0xf]
  %v7849 = vld [vmem:[%s3 + $0x1ac] sm:$0xf]
  %v7850 = vld [vmem:[%s3 + $0x1b0] sm:$0xf]
  %v7851 = vld [vmem:[%s3 + $0x1b4] sm:$0xf]
  %v7852 = vld [vmem:[%s3 + $0x1b8] sm:$0xf]
  %v7853 = vld [vmem:[%s3 + $0x1bc] sm:$0xf]
  %v7854 = vld [vmem:[%s3 + $0x1c0] sm:$0xf]
  %v7855 = vld [vmem:[%s3 + $0x1c4] sm:$0xf]
  %v7856 = vld [vmem:[%s3 + $0x1c8] sm:$0xf]
  %v7857 = vld [vmem:[%s3 + $0x1cc] sm:$0xf]
  %v7858 = vld [vmem:[%s3 + $0x1d0] sm:$0xf]
  %v7859 = vld [vmem:[%s3 + $0x1d4] sm:$0xf]
  %v7860 = vld [vmem:[%s3 + $0x1d8] sm:$0xf]
  %v7861 = vld [vmem:[%s3 + $0x1dc] sm:$0xf]
  %v7862 = vld [vmem:[%s3 + $0x1e0] sm:$0xf]
  %v7863 = vld [vmem:[%s3 + $0x1e4] sm:$0xf]
  %v7864 = vld [vmem:[%s3 + $0x1e8] sm:$0xf]
  %v7865 = vld [vmem:[%s3 + $0x1ec] sm:$0xf]
  %v7866 = vld [vmem:[%s3 + $0x1f0] sm:$0xf]
  %v7867 = vld [vmem:[%s3 + $0x1f4] sm:$0xf]
  %v7868 = vld [vmem:[%s3 + $0x1f8] sm:$0xf]
  %v7869 = vld [vmem:[%s3 + $0x1fc] sm:$0xf]
  %v7870 = vld [vmem:[%s3 + $0x200] sm:$0xf]
  %v7871 = vld [vmem:[%s3 + $0x204] sm:$0xf]
  %v7872 = vld [vmem:[%s3 + $0x208] sm:$0xf]
  %v7873 = vld [vmem:[%s3 + $0x20c] sm:$0xf]
  %v7874 = vld [vmem:[%s3 + $0x210] sm:$0xf]
  %v7875 = vld [vmem:[%s3 + $0x214] sm:$0xf]
  %v7876 = vld [vmem:[%s3 + $0x218] sm:$0xf]
  %v7877 = vld [vmem:[%s3 + $0x21c] sm:$0xf]
  %v7878 = vld [vmem:[%s3 + $0x220] sm:$0xf]
  %v7879 = vld [vmem:[%s3 + $0x224] sm:$0xf]
  %v7880 = vld [vmem:[%s3 + $0x228] sm:$0xf]
  %v7881 = vld [vmem:[%s3 + $0x22c] sm:$0xf]
  %v7882 = vld [vmem:[%s3 + $0x230] sm:$0xf]
  %v7883 = vld [vmem:[%s3 + $0x234] sm:$0xf]
  %v7884 = vld [vmem:[%s3 + $0x238] sm:$0xf]
  %v7885 = vld [vmem:[%s3 + $0x23c] sm:$0xf]
  %v7886 = vld [vmem:[%s3 + $0x240] sm:$0xf]
  %v7887 = vld [vmem:[%s3 + $0x244] sm:$0xf]
  %v7888 = vld [vmem:[%s3 + $0x248] sm:$0xf]
  %v7889 = vld [vmem:[%s3 + $0x24c] sm:$0xf]
  %v7890 = vld [vmem:[%s3 + $0x250] sm:$0xf]
  %v7891 = vld [vmem:[%s3 + $0x254] sm:$0xf]
  %v7892 = vld [vmem:[%s3 + $0x258] sm:$0xf]
  %v7893 = vld [vmem:[%s3 + $0x25c] sm:$0xf]
  %v7894 = vld [vmem:[%s3 + $0x260] sm:$0xf]
  %v7895 = vld [vmem:[%s3 + $0x264] sm:$0xf]
  %v7896 = vld [vmem:[%s3 + $0x268] sm:$0xf]
  %v7897 = vld [vmem:[%s3 + $0x26c] sm:$0xf]
  %v7898 = vld [vmem:[%s3 + $0x270] sm:$0xf]
  %v7899 = vld [vmem:[%s3 + $0x274] sm:$0xf]
  %v7900 = vld [vmem:[%s3 + $0x278] sm:$0xf]
  %v7901 = vld [vmem:[%s3 + $0x27c] sm:$0xf]
  %v7902 = vld [vmem:[%s3 + $0x280] sm:$0xf]
  %v7903 = vld [vmem:[%s3 + $0x284] sm:$0xf]
  %v7904 = vld [vmem:[%s3 + $0x288] sm:$0xf]
  %v7905 = vld [vmem:[%s3 + $0x28c] sm:$0xf]
  %v7906 = vld [vmem:[%s3 + $0x290] sm:$0xf]
  %v7907 = vld [vmem:[%s3 + $0x294] sm:$0xf]
  %v7908 = vld [vmem:[%s3 + $0x298] sm:$0xf]
  %v7909 = vld [vmem:[%s3 + $0x29c] sm:$0xf]
  %v7910 = vld [vmem:[%s3 + $0x2a0] sm:$0xf]
  %v7911 = vld [vmem:[%s3 + $0x2a4] sm:$0xf]
  %v7912 = vld [vmem:[%s3 + $0x2a8] sm:$0xf]
  %v7913 = vld [vmem:[%s3 + $0x2ac] sm:$0xf]
  %v7914 = vld [vmem:[%s3 + $0x2b0] sm:$0xf]
  %v7915 = vld [vmem:[%s3 + $0x2b4] sm:$0xf]
  %v7916 = vld [vmem:[%s3 + $0x2b8] sm:$0xf]
  %v7917 = vld [vmem:[%s3 + $0x2bc] sm:$0xf]
  %v7918 = vld [vmem:[%s3 + $0x2c0] sm:$0xf]
  %v7919 = vld [vmem:[%s3 + $0x2c4] sm:$0xf]
  %v7920 = vld [vmem:[%s3 + $0x2c8] sm:$0xf]
  %v7921 = vld [vmem:[%s3 + $0x2cc] sm:$0xf]
  %v7922 = vld [vmem:[%s3 + $0x2d0] sm:$0xf]
  %v7923 = vld [vmem:[%s3 + $0x2d4] sm:$0xf]
  %v7924 = vld [vmem:[%s3 + $0x2d8] sm:$0xf]
  %v7925 = vld [vmem:[%s3 + $0x2dc] sm:$0xf]
  %v7926 = vld [vmem:[%s3 + $0x2e0] sm:$0xf]
  %v7927 = vld [vmem:[%s3 + $0x2e4] sm:$0xf]
  %v7928 = vld [vmem:[%s3 + $0x2e8] sm:$0xf]
  %v7929 = vld [vmem:[%s3 + $0x2ec] sm:$0xf]
  %v7930 = vld [vmem:[%s3 + $0x2f0] sm:$0xf]
  %v7931 = vld [vmem:[%s3 + $0x2f4] sm:$0xf]
  %v7932 = vld [vmem:[%s3 + $0x2f8] sm:$0xf]
  %v7933 = vld [vmem:[%s3 + $0x2fc] sm:$0xf]
  %v7934 = vld [vmem:[%s3 + $0x300] sm:$0xf]
  %v7935 = vld [vmem:[%s3 + $0x304] sm:$0xf]
  %v7936 = vld [vmem:[%s3 + $0x308] sm:$0xf]
  %v7937 = vld [vmem:[%s3 + $0x30c] sm:$0xf]
  %v7938 = vld [vmem:[%s3 + $0x310] sm:$0xf]
  %v7939 = vld [vmem:[%s3 + $0x314] sm:$0xf]
  %v7940 = vld [vmem:[%s3 + $0x318] sm:$0xf]
  %v7941 = vld [vmem:[%s3 + $0x31c] sm:$0xf]
  %v7942 = vld [vmem:[%s3 + $0x320] sm:$0xf]
  %v7943 = vld [vmem:[%s3 + $0x324] sm:$0xf]
  %v7944 = vld [vmem:[%s3 + $0x328] sm:$0xf]
  %v7945 = vld [vmem:[%s3 + $0x32c] sm:$0xf]
  %v7946 = vld [vmem:[%s3 + $0x330] sm:$0xf]
  %v7947 = vld [vmem:[%s3 + $0x334] sm:$0xf]
  %v7948 = vld [vmem:[%s3 + $0x338] sm:$0xf]
  %v7949 = vld [vmem:[%s3 + $0x33c] sm:$0xf]
  %v7950 = vld [vmem:[%s3 + $0x340] sm:$0xf]
  %v7951 = vld [vmem:[%s3 + $0x344] sm:$0xf]
  %v7952 = vld [vmem:[%s3 + $0x348] sm:$0xf]
  %v7953 = vld [vmem:[%s3 + $0x34c] sm:$0xf]
  %v7954 = vld [vmem:[%s3 + $0x350] sm:$0xf]
  %v7955 = vld [vmem:[%s3 + $0x354] sm:$0xf]
  %v7956 = vld [vmem:[%s3 + $0x358] sm:$0xf]
  %v7957 = vld [vmem:[%s3 + $0x35c] sm:$0xf]
  %v7958 = vld [vmem:[%s3 + $0x360] sm:$0xf]
  %v7959 = vld [vmem:[%s3 + $0x364] sm:$0xf]
  %v7960 = vld [vmem:[%s3 + $0x368] sm:$0xf]
  %v7961 = vld [vmem:[%s3 + $0x36c] sm:$0xf]
  %v7962 = vld [vmem:[%s3 + $0x370] sm:$0xf]
  %v7963 = vld [vmem:[%s3 + $0x374] sm:$0xf]
  %v7964 = vld [vmem:[%s3 + $0x378] sm:$0xf]
  %v7965 = vld [vmem:[%s3 + $0x37c] sm:$0xf]
  %v7966 = vld [vmem:[%s3 + $0x380] sm:$0xf]
  %v7967 = vld [vmem:[%s3 + $0x384] sm:$0xf]
  %v7968 = vld [vmem:[%s3 + $0x388] sm:$0xf]
  %v7969 = vld [vmem:[%s3 + $0x38c] sm:$0xf]
  %v7970 = vld [vmem:[%s3 + $0x390] sm:$0xf]
  %v7971 = vld [vmem:[%s3 + $0x394] sm:$0xf]
  %v7972 = vld [vmem:[%s3 + $0x398] sm:$0xf]
  %v7973 = vld [vmem:[%s3 + $0x39c] sm:$0xf]
  %v7974 = vld [vmem:[%s3 + $0x3a0] sm:$0xf]
  %v7975 = vld [vmem:[%s3 + $0x3a4] sm:$0xf]
  %v7976 = vld [vmem:[%s3 + $0x3a8] sm:$0xf]
  %v7977 = vld [vmem:[%s3 + $0x3ac] sm:$0xf]
  %v7978 = vld [vmem:[%s3 + $0x3b0] sm:$0xf]
  %v7979 = vld [vmem:[%s3 + $0x3b4] sm:$0xf]
  %v7980 = vld [vmem:[%s3 + $0x3b8] sm:$0xf]
  %v7981 = vld [vmem:[%s3 + $0x3bc] sm:$0xf]
  %v7982 = vld [vmem:[%s3 + $0x3c0] sm:$0xf]
  %v7983 = vld [vmem:[%s3 + $0x3c4] sm:$0xf]
  %v7984 = vld [vmem:[%s3 + $0x3c8] sm:$0xf]
  %v7985 = vld [vmem:[%s3 + $0x3cc] sm:$0xf]
  %v7986 = vld [vmem:[%s3 + $0x3d0] sm:$0xf]
  %v7987 = vld [vmem:[%s3 + $0x3d4] sm:$0xf]
  %v7988 = vld [vmem:[%s3 + $0x3d8] sm:$0xf]
  %v7989 = vld [vmem:[%s3 + $0x3dc] sm:$0xf]
  %v7990 = vld [vmem:[%s3 + $0x3e0] sm:$0xf]
  %v7991 = vld [vmem:[%s3 + $0x3e4] sm:$0xf]
  %v7992 = vld [vmem:[%s3 + $0x3e8] sm:$0xf]
  %v7993 = vld [vmem:[%s3 + $0x3ec] sm:$0xf]
  %v7994 = vld [vmem:[%s3 + $0x3f0] sm:$0xf]
  %v7995 = vld [vmem:[%s3 + $0x3f4] sm:$0xf]
  %v7996 = vld [vmem:[%s3 + $0x3f8] sm:$0xf]
  %v7997 = vld [vmem:[%s3 + $0x3fc] sm:$0xf]
  %v7998 = vld [vmem:[%s3 + $0x400] sm:$0xf]
  %v7999 = vld [vmem:[%s3 + $0x404] sm:$0xf]
  %v8000 = vld [vmem:[%s3 + $0x408] sm:$0xf]
  %v8001 = vld [vmem:[%s3 + $0x40c] sm:$0xf]
  %v8002 = vld [vmem:[%s3 + $0x410] sm:$0xf]
  %v8003 = vld [vmem:[%s3 + $0x414] sm:$0xf]
  %v8004 = vld [vmem:[%s3 + $0x418] sm:$0xf]
  %v8005 = vld [vmem:[%s3 + $0x41c] sm:$0xf]
  %v8006 = vld [vmem:[%s3 + $0x420] sm:$0xf]
  %v8007 = vld [vmem:[%s3 + $0x424] sm:$0xf]
  %v8008 = vld [vmem:[%s3 + $0x428] sm:$0xf]
  %v8009 = vld [vmem:[%s3 + $0x42c] sm:$0xf]
  %v8010 = vld [vmem:[%s3 + $0x430] sm:$0xf]
  %v8011 = vld [vmem:[%s3 + $0x434] sm:$0xf]
  %v8012 = vld [vmem:[%s3 + $0x438] sm:$0xf]
  %v8013 = vld [vmem:[%s3 + $0x43c] sm:$0xf]
  %v8014 = vld [vmem:[%s3 + $0x440] sm:$0xf]
  %v8015 = vld [vmem:[%s3 + $0x444] sm:$0xf]
  %v8016 = vld [vmem:[%s3 + $0x448] sm:$0xf]
  %v8017 = vld [vmem:[%s3 + $0x44c] sm:$0xf]
  %v8018 = vld [vmem:[%s3 + $0x450] sm:$0xf]
  %v8019 = vld [vmem:[%s3 + $0x454] sm:$0xf]
  %v8020 = vld [vmem:[%s3 + $0x458] sm:$0xf]
  %v8021 = vld [vmem:[%s3 + $0x45c] sm:$0xf]
  %v8022 = vld [vmem:[%s3 + $0x460] sm:$0xf]
  %v8023 = vld [vmem:[%s3 + $0x464] sm:$0xf]
  %v8024 = vld [vmem:[%s3 + $0x468] sm:$0xf]
  %v8025 = vld [vmem:[%s3 + $0x46c] sm:$0xf]
  %v8026 = vld [vmem:[%s3 + $0x470] sm:$0xf]
  %v8027 = vld [vmem:[%s3 + $0x474] sm:$0xf]
  %v8028 = vld [vmem:[%s3 + $0x478] sm:$0xf]
  %v8029 = vld [vmem:[%s3 + $0x47c] sm:$0xf]
  %v8030 = vld [vmem:[%s3 + $0x480] sm:$0xf]
  %v8031 = vld [vmem:[%s3 + $0x484] sm:$0xf]
  %v8032 = vld [vmem:[%s3 + $0x488] sm:$0xf]
  %v8033 = vld [vmem:[%s3 + $0x48c] sm:$0xf]
  %v8034 = vld [vmem:[%s3 + $0x490] sm:$0xf]
  %v8035 = vld [vmem:[%s3 + $0x494] sm:$0xf]
  %v8036 = vld [vmem:[%s3 + $0x498] sm:$0xf]
  %v8037 = vld [vmem:[%s3 + $0x49c] sm:$0xf]
  %v8038 = vld [vmem:[%s3 + $0x4a0] sm:$0xf]
  %v8039 = vld [vmem:[%s3 + $0x4a4] sm:$0xf]
  %v8040 = vld [vmem:[%s3 + $0x4a8] sm:$0xf]
  %v8041 = vld [vmem:[%s3 + $0x4ac] sm:$0xf]
  %v8042 = vld [vmem:[%s3 + $0x4b0] sm:$0xf]
  %v8043 = vld [vmem:[%s3 + $0x4b4] sm:$0xf]
  %v8044 = vld [vmem:[%s3 + $0x4b8] sm:$0xf]
  %v8045 = vld [vmem:[%s3 + $0x4bc] sm:$0xf]
  %v8046 = vld [vmem:[%s3 + $0x4c0] sm:$0xf]
  %v8047 = vld [vmem:[%s3 + $0x4c4] sm:$0xf]
  %v8048 = vld [vmem:[%s3 + $0x4c8] sm:$0xf]
  %v8049 = vld [vmem:[%s3 + $0x4cc] sm:$0xf]
  %v8050 = vld [vmem:[%s3 + $0x4d0] sm:$0xf]
  %v8051 = vld [vmem:[%s3 + $0x4d4] sm:$0xf]
  %v8052 = vld [vmem:[%s3 + $0x4d8] sm:$0xf]
  %v8053 = vld [vmem:[%s3 + $0x4dc] sm:$0xf]
  %v8054 = vld [vmem:[%s3 + $0x4e0] sm:$0xf]
  %v8055 = vld [vmem:[%s3 + $0x4e4] sm:$0xf]
  %v8056 = vld [vmem:[%s3 + $0x4e8] sm:$0xf]
  %v8057 = vld [vmem:[%s3 + $0x4ec] sm:$0xf]
  %v8058 = vld [vmem:[%s3 + $0x4f0] sm:$0xf]
  %v8059 = vld [vmem:[%s3 + $0x4f4] sm:$0xf]
  %v8060 = vld [vmem:[%s3 + $0x4f8] sm:$0xf]
  %v8061 = vld [vmem:[%s3 + $0x4fc] sm:$0xf]
  %v8062 = vld [vmem:[%s3 + $0x500] sm:$0xf]
  %v8063 = vld [vmem:[%s3 + $0x504] sm:$0xf]
  %v8064 = vld [vmem:[%s3 + $0x508] sm:$0xf]
  %v8065 = vld [vmem:[%s3 + $0x50c] sm:$0xf]
  %v8066 = vld [vmem:[%s3 + $0x510] sm:$0xf]
  %v8067 = vld [vmem:[%s3 + $0x514] sm:$0xf]
  %v8068 = vld [vmem:[%s3 + $0x518] sm:$0xf]
  %v8069 = vld [vmem:[%s3 + $0x51c] sm:$0xf]
  %v8070 = vld [vmem:[%s3 + $0x520] sm:$0xf]
  %v8071 = vld [vmem:[%s3 + $0x524] sm:$0xf]
  %v8072 = vld [vmem:[%s3 + $0x528] sm:$0xf]
  %v8073 = vld [vmem:[%s3 + $0x52c] sm:$0xf]
  %v8074 = vld [vmem:[%s3 + $0x530] sm:$0xf]
  %v8075 = vld [vmem:[%s3 + $0x534] sm:$0xf]
  %v8076 = vld [vmem:[%s3 + $0x538] sm:$0xf]
  %v8077 = vld [vmem:[%s3 + $0x53c] sm:$0xf]
  %v8078 = vld [vmem:[%s3 + $0x540] sm:$0xf]
  %v8079 = vld [vmem:[%s3 + $0x544] sm:$0xf]
  %v8080 = vld [vmem:[%s3 + $0x548] sm:$0xf]
  %v8081 = vld [vmem:[%s3 + $0x54c] sm:$0xf]
  %v8082 = vld [vmem:[%s3 + $0x550] sm:$0xf]
  %v8083 = vld [vmem:[%s3 + $0x554] sm:$0xf]
  %v8084 = vld [vmem:[%s3 + $0x558] sm:$0xf]
  %v8085 = vld [vmem:[%s3 + $0x55c] sm:$0xf]
  %v8086 = vld [vmem:[%s3 + $0x560] sm:$0xf]
  %v8087 = vld [vmem:[%s3 + $0x564] sm:$0xf]
  %v8088 = vld [vmem:[%s3 + $0x568] sm:$0xf]
  %v8089 = vld [vmem:[%s3 + $0x56c] sm:$0xf]
  %v8090 = vld [vmem:[%s3 + $0x570] sm:$0xf]
  %v8091 = vld [vmem:[%s3 + $0x574] sm:$0xf]
  %v8092 = vld [vmem:[%s3 + $0x578] sm:$0xf]
  %v8093 = vld [vmem:[%s3 + $0x57c] sm:$0xf]
  %v8094 = vld [vmem:[%s3 + $0x580] sm:$0xf]
  %v8095 = vld [vmem:[%s3 + $0x584] sm:$0xf]
  %v8096 = vld [vmem:[%s3 + $0x588] sm:$0xf]
  %v8097 = vld [vmem:[%s3 + $0x58c] sm:$0xf]
  %v8098 = vld [vmem:[%s3 + $0x590] sm:$0xf]
  %v8099 = vld [vmem:[%s3 + $0x594] sm:$0xf]
  %v8100 = vld [vmem:[%s3 + $0x598] sm:$0xf]
  %v8101 = vld [vmem:[%s3 + $0x59c] sm:$0xf]
  %v8102 = vld [vmem:[%s3 + $0x5a0] sm:$0xf]
  %v8103 = vld [vmem:[%s3 + $0x5a4] sm:$0xf]
  %v8104 = vld [vmem:[%s3 + $0x5a8] sm:$0xf]
  %v8105 = vld [vmem:[%s3 + $0x5ac] sm:$0xf]
  %v8106 = vld [vmem:[%s3 + $0x5b0] sm:$0xf]
  %v8107 = vld [vmem:[%s3 + $0x5b4] sm:$0xf]
  %v8108 = vld [vmem:[%s3 + $0x5b8] sm:$0xf]
  %v8109 = vld [vmem:[%s3 + $0x5bc] sm:$0xf]
  %v8110 = vld [vmem:[%s3 + $0x5c0] sm:$0xf]
  %v8111 = vld [vmem:[%s3 + $0x5c4] sm:$0xf]
  %v8112 = vld [vmem:[%s3 + $0x5c8] sm:$0xf]
  %v8113 = vld [vmem:[%s3 + $0x5cc] sm:$0xf]
  %v8114 = vld [vmem:[%s3 + $0x5d0] sm:$0xf]
  %v8115 = vld [vmem:[%s3 + $0x5d4] sm:$0xf]
  %v8116 = vld [vmem:[%s3 + $0x5d8] sm:$0xf]
  %v8117 = vld [vmem:[%s3 + $0x5dc] sm:$0xf]
  %v8118 = vld [vmem:[%s3 + $0x5e0] sm:$0xf]
  %v8119 = vld [vmem:[%s3 + $0x5e4] sm:$0xf]
  %v8120 = vld [vmem:[%s3 + $0x5e8] sm:$0xf]
  %v8121 = vld [vmem:[%s3 + $0x5ec] sm:$0xf]
  %v8122 = vld [vmem:[%s3 + $0x5f0] sm:$0xf]
  %v8123 = vld [vmem:[%s3 + $0x5f4] sm:$0xf]
  %v8124 = vld [vmem:[%s3 + $0x5f8] sm:$0xf]
  %v8125 = vld [vmem:[%s3 + $0x5fc] sm:$0xf]
  %v8126 = vld [vmem:[%s3 + $0x600] sm:$0xf]
  %v8127 = vld [vmem:[%s3 + $0x604] sm:$0xf]
  %v8128 = vld [vmem:[%s3 + $0x608] sm:$0xf]
  %v8129 = vld [vmem:[%s3 + $0x60c] sm:$0xf]
  %v8130 = vld [vmem:[%s3 + $0x610] sm:$0xf]
  %v8131 = vld [vmem:[%s3 + $0x614] sm:$0xf]
  %v8132 = vld [vmem:[%s3 + $0x618] sm:$0xf]
  %v8133 = vld [vmem:[%s3 + $0x61c] sm:$0xf]
  %v8134 = vld [vmem:[%s3 + $0x620] sm:$0xf]
  %v8135 = vld [vmem:[%s3 + $0x624] sm:$0xf]
  %v8136 = vld [vmem:[%s3 + $0x628] sm:$0xf]
  %v8137 = vld [vmem:[%s3 + $0x62c] sm:$0xf]
  %v8138 = vld [vmem:[%s3 + $0x630] sm:$0xf]
  %v8139 = vld [vmem:[%s3 + $0x634] sm:$0xf]
  %v8140 = vld [vmem:[%s3 + $0x638] sm:$0xf]
  %v8141 = vld [vmem:[%s3 + $0x63c] sm:$0xf]
  %v8142 = vld [vmem:[%s3 + $0x640] sm:$0xf]
  %v8143 = vld [vmem:[%s3 + $0x644] sm:$0xf]
  %v8144 = vld [vmem:[%s3 + $0x648] sm:$0xf]
  %v8145 = vld [vmem:[%s3 + $0x64c] sm:$0xf]
  %v8146 = vld [vmem:[%s3 + $0x650] sm:$0xf]
  %v8147 = vld [vmem:[%s3 + $0x654] sm:$0xf]
  %v8148 = vld [vmem:[%s3 + $0x658] sm:$0xf]
  %v8149 = vld [vmem:[%s3 + $0x65c] sm:$0xf]
  %v8150 = vld [vmem:[%s3 + $0x660] sm:$0xf]
  %v8151 = vld [vmem:[%s3 + $0x664] sm:$0xf]
  %v8152 = vld [vmem:[%s3 + $0x668] sm:$0xf]
  %v8153 = vld [vmem:[%s3 + $0x66c] sm:$0xf]
  %v8154 = vld [vmem:[%s3 + $0x670] sm:$0xf]
  %v8155 = vld [vmem:[%s3 + $0x674] sm:$0xf]
  %v8156 = vld [vmem:[%s3 + $0x678] sm:$0xf]
  %v8157 = vld [vmem:[%s3 + $0x67c] sm:$0xf]
  %v8158 = vld [vmem:[%s3 + $0x680] sm:$0xf]
  %v8159 = vld [vmem:[%s3 + $0x684] sm:$0xf]
  %v8160 = vld [vmem:[%s3 + $0x688] sm:$0xf]
  %v8161 = vld [vmem:[%s3 + $0x68c] sm:$0xf]
  %v8162 = vld [vmem:[%s3 + $0x690] sm:$0xf]
  %v8163 = vld [vmem:[%s3 + $0x694] sm:$0xf]
  %v8164 = vld [vmem:[%s3 + $0x698] sm:$0xf]
  %v8165 = vld [vmem:[%s3 + $0x69c] sm:$0xf]
  %v8166 = vld [vmem:[%s3 + $0x6a0] sm:$0xf]
  %v8167 = vld [vmem:[%s3 + $0x6a4] sm:$0xf]
  %v8168 = vld [vmem:[%s3 + $0x6a8] sm:$0xf]
  %v8169 = vld [vmem:[%s3 + $0x6ac] sm:$0xf]
  %v8170 = vld [vmem:[%s3 + $0x6b0] sm:$0xf]
  %v8171 = vld [vmem:[%s3 + $0x6b4] sm:$0xf]
  %v8172 = vld [vmem:[%s3 + $0x6b8] sm:$0xf]
  %v8173 = vld [vmem:[%s3 + $0x6bc] sm:$0xf]
  %v8174 = vld [vmem:[%s3 + $0x6c0] sm:$0xf]
  %v8175 = vld [vmem:[%s3 + $0x6c4] sm:$0xf]
  %v8176 = vld [vmem:[%s3 + $0x6c8] sm:$0xf]
  %v8177 = vld [vmem:[%s3 + $0x6cc] sm:$0xf]
  %v8178 = vld [vmem:[%s3 + $0x6d0] sm:$0xf]
  %v8179 = vld [vmem:[%s3 + $0x6d4] sm:$0xf]
  %v8180 = vld [vmem:[%s3 + $0x6d8] sm:$0xf]
  %v8181 = vld [vmem:[%s3 + $0x6dc] sm:$0xf]
  %v8182 = vld [vmem:[%s3 + $0x6e0] sm:$0xf]
  %v8183 = vld [vmem:[%s3 + $0x6e4] sm:$0xf]
  %v8184 = vld [vmem:[%s3 + $0x6e8] sm:$0xf]
  %v8185 = vld [vmem:[%s3 + $0x6ec] sm:$0xf]
  %v8186 = vld [vmem:[%s3 + $0x6f0] sm:$0xf]
  %v8187 = vld [vmem:[%s3 + $0x6f4] sm:$0xf]
  %v8188 = vld [vmem:[%s3 + $0x6f8] sm:$0xf]
  %v8189 = vld [vmem:[%s3 + $0x6fc] sm:$0xf]
  %v8190 = vld [vmem:[%s3 + $0x700] sm:$0xf]
  %v8191 = vld [vmem:[%s3 + $0x704] sm:$0xf]
  %v8192 = vld [vmem:[%s3 + $0x708] sm:$0xf]
  %v8193 = vld [vmem:[%s3 + $0x70c] sm:$0xf]
  %v8194 = vld [vmem:[%s3 + $0x710] sm:$0xf]
  %v8195 = vld [vmem:[%s3 + $0x714] sm:$0xf]
  %v8196 = vld [vmem:[%s3 + $0x718] sm:$0xf]
  %v8197 = vld [vmem:[%s3 + $0x71c] sm:$0xf]
  %v8198 = vld [vmem:[%s3 + $0x720] sm:$0xf]
  %v8199 = vld [vmem:[%s3 + $0x724] sm:$0xf]
  %v8200 = vld [vmem:[%s3 + $0x728] sm:$0xf]
  %v8201 = vld [vmem:[%s3 + $0x72c] sm:$0xf]
  %v8202 = vld [vmem:[%s3 + $0x730] sm:$0xf]
  %v8203 = vld [vmem:[%s3 + $0x734] sm:$0xf]
  %v8204 = vld [vmem:[%s3 + $0x738] sm:$0xf]
  %v8205 = vld [vmem:[%s3 + $0x73c] sm:$0xf]
  %v8206 = vld [vmem:[%s3 + $0x740] sm:$0xf]
  %v8207 = vld [vmem:[%s3 + $0x744] sm:$0xf]
  %v8208 = vld [vmem:[%s3 + $0x748] sm:$0xf]
  %v8209 = vld [vmem:[%s3 + $0x74c] sm:$0xf]
  %v8210 = vld [vmem:[%s3 + $0x750] sm:$0xf]
  %v8211 = vld [vmem:[%s3 + $0x754] sm:$0xf]
  %v8212 = vld [vmem:[%s3 + $0x758] sm:$0xf]
  %v8213 = vld [vmem:[%s3 + $0x75c] sm:$0xf]
  %v8214 = vld [vmem:[%s3 + $0x760] sm:$0xf]
  %v8215 = vld [vmem:[%s3 + $0x764] sm:$0xf]
  %v8216 = vld [vmem:[%s3 + $0x768] sm:$0xf]
  %v8217 = vld [vmem:[%s3 + $0x76c] sm:$0xf]
  %v8218 = vld [vmem:[%s3 + $0x770] sm:$0xf]
  %v8219 = vld [vmem:[%s3 + $0x774] sm:$0xf]
  %v8220 = vld [vmem:[%s3 + $0x778] sm:$0xf]
  %v8221 = vld [vmem:[%s3 + $0x77c] sm:$0xf]
  %v8222 = vld [vmem:[%s3 + $0x780] sm:$0xf]
  %v8223 = vld [vmem:[%s3 + $0x784] sm:$0xf]
  %v8224 = vld [vmem:[%s3 + $0x788] sm:$0xf]
  %v8225 = vld [vmem:[%s3 + $0x78c] sm:$0xf]
  %v8226 = vld [vmem:[%s3 + $0x790] sm:$0xf]
  %v8227 = vld [vmem:[%s3 + $0x794] sm:$0xf]
  %v8228 = vld [vmem:[%s3 + $0x798] sm:$0xf]
  %v8229 = vld [vmem:[%s3 + $0x79c] sm:$0xf]
  %v8230 = vld [vmem:[%s3 + $0x7a0] sm:$0xf]
  %v8231 = vld [vmem:[%s3 + $0x7a4] sm:$0xf]
  %v8232 = vld [vmem:[%s3 + $0x7a8] sm:$0xf]
  %v8233 = vld [vmem:[%s3 + $0x7ac] sm:$0xf]
  %v8234 = vld [vmem:[%s3 + $0x7b0] sm:$0xf]
  %v8235 = vld [vmem:[%s3 + $0x7b4] sm:$0xf]
  %v8236 = vld [vmem:[%s3 + $0x7b8] sm:$0xf]
  %v8237 = vld [vmem:[%s3 + $0x7bc] sm:$0xf]
  %v8238 = vld [vmem:[%s3 + $0x7c0] sm:$0xf]
  %v8239 = vld [vmem:[%s3 + $0x7c4] sm:$0xf]
  %v8240 = vld [vmem:[%s3 + $0x7c8] sm:$0xf]
  %v8241 = vld [vmem:[%s3 + $0x7cc] sm:$0xf]
  %v8242 = vld [vmem:[%s3 + $0x7d0] sm:$0xf]
  %v8243 = vld [vmem:[%s3 + $0x7d4] sm:$0xf]
  %v8244 = vld [vmem:[%s3 + $0x7d8] sm:$0xf]
  %v8245 = vld [vmem:[%s3 + $0x7dc] sm:$0xf]
  %v8246 = vld [vmem:[%s3 + $0x7e0] sm:$0xf]
  %v8247 = vld [vmem:[%s3 + $0x7e4] sm:$0xf]
  %v8248 = vld [vmem:[%s3 + $0x7e8] sm:$0xf]
  %v8249 = vld [vmem:[%s3 + $0x7ec] sm:$0xf]
  %v8250 = vld [vmem:[%s3 + $0x7f0] sm:$0xf]
  %v8251 = vld [vmem:[%s3 + $0x7f4] sm:$0xf]
  %v8252 = vld [vmem:[%s3 + $0x7f8] sm:$0xf]
  %v8253 = vld [vmem:[%s3 + $0x7fc] sm:$0xf]
  %v8254 = vmul.bf16 %v1097, %v7742
  %v8255 = vmul.bf16 %v1109, %v7743
  %v8256 = vmul.bf16 %v1121, %v7744
  %v8257 = vmul.bf16 %v1133, %v7745
  %v8258 = vmul.bf16 %v1145, %v7746
  %v8259 = vmul.bf16 %v1157, %v7747
  %v8260 = vmul.bf16 %v1169, %v7748
  %v8261 = vmul.bf16 %v1181, %v7749
  %v8262 = vmul.bf16 %v1193, %v7750
  %v8263 = vmul.bf16 %v1205, %v7751
  %v8264 = vmul.bf16 %v1217, %v7752
  %v8265 = vmul.bf16 %v1229, %v7753
  %v8266 = vmul.bf16 %v1241, %v7754
  %v8267 = vmul.bf16 %v1253, %v7755
  %v8268 = vmul.bf16 %v1265, %v7756
  %v8269 = vmul.bf16 %v1277, %v7757
  %v8270 = vmul.bf16 %v1289, %v7758
  %v8271 = vmul.bf16 %v1301, %v7759
  %v8272 = vmul.bf16 %v1313, %v7760
  %v8273 = vmul.bf16 %v1325, %v7761
  %v8274 = vmul.bf16 %v1337, %v7762
  %v8275 = vmul.bf16 %v1349, %v7763
  %v8276 = vmul.bf16 %v1361, %v7764
  %v8277 = vmul.bf16 %v1373, %v7765
  %v8278 = vmul.bf16 %v1385, %v7766
  %v8279 = vmul.bf16 %v1397, %v7767
  %v8280 = vmul.bf16 %v1409, %v7768
  %v8281 = vmul.bf16 %v1421, %v7769
  %v8282 = vmul.bf16 %v1433, %v7770
  %v8283 = vmul.bf16 %v1445, %v7771
  %v8284 = vmul.bf16 %v1457, %v7772
  %v8285 = vmul.bf16 %v1469, %v7773
  %v8286 = vmul.bf16 %v1481, %v7774
  %v8287 = vmul.bf16 %v1493, %v7775
  %v8288 = vmul.bf16 %v1505, %v7776
  %v8289 = vmul.bf16 %v1517, %v7777
  %v8290 = vmul.bf16 %v1529, %v7778
  %v8291 = vmul.bf16 %v1541, %v7779
  %v8292 = vmul.bf16 %v1553, %v7780
  %v8293 = vmul.bf16 %v1565, %v7781
  %v8294 = vmul.bf16 %v1577, %v7782
  %v8295 = vmul.bf16 %v1589, %v7783
  %v8296 = vmul.bf16 %v1601, %v7784
  %v8297 = vmul.bf16 %v1613, %v7785
  %v8298 = vmul.bf16 %v1625, %v7786
  %v8299 = vmul.bf16 %v1637, %v7787
  %v8300 = vmul.bf16 %v1649, %v7788
  %v8301 = vmul.bf16 %v1661, %v7789
  %v8302 = vmul.bf16 %v1673, %v7790
  %v8303 = vmul.bf16 %v1685, %v7791
  %v8304 = vmul.bf16 %v1697, %v7792
  %v8305 = vmul.bf16 %v1709, %v7793
  %v8306 = vmul.bf16 %v1721, %v7794
  %v8307 = vmul.bf16 %v1733, %v7795
  %v8308 = vmul.bf16 %v1745, %v7796
  %v8309 = vmul.bf16 %v1757, %v7797
  %v8310 = vmul.bf16 %v1769, %v7798
  %v8311 = vmul.bf16 %v1781, %v7799
  %v8312 = vmul.bf16 %v1793, %v7800
  %v8313 = vmul.bf16 %v1805, %v7801
  %v8314 = vmul.bf16 %v1817, %v7802
  %v8315 = vmul.bf16 %v1829, %v7803
  %v8316 = vmul.bf16 %v1841, %v7804
  %v8317 = vmul.bf16 %v1853, %v7805
  %v8318 = vmul.bf16 %v1865, %v7806
  %v8319 = vmul.bf16 %v1877, %v7807
  %v8320 = vmul.bf16 %v1889, %v7808
  %v8321 = vmul.bf16 %v1901, %v7809
  %v8322 = vmul.bf16 %v1913, %v7810
  %v8323 = vmul.bf16 %v1925, %v7811
  %v8324 = vmul.bf16 %v1937, %v7812
  %v8325 = vmul.bf16 %v1949, %v7813
  %v8326 = vmul.bf16 %v1961, %v7814
  %v8327 = vmul.bf16 %v1973, %v7815
  %v8328 = vmul.bf16 %v1985, %v7816
  %v8329 = vmul.bf16 %v1997, %v7817
  %v8330 = vmul.bf16 %v2009, %v7818
  %v8331 = vmul.bf16 %v2021, %v7819
  %v8332 = vmul.bf16 %v2033, %v7820
  %v8333 = vmul.bf16 %v2045, %v7821
  %v8334 = vmul.bf16 %v2057, %v7822
  %v8335 = vmul.bf16 %v2069, %v7823
  %v8336 = vmul.bf16 %v2081, %v7824
  %v8337 = vmul.bf16 %v2093, %v7825
  %v8338 = vmul.bf16 %v2105, %v7826
  %v8339 = vmul.bf16 %v2117, %v7827
  %v8340 = vmul.bf16 %v2129, %v7828
  %v8341 = vmul.bf16 %v2141, %v7829
  %v8342 = vmul.bf16 %v2153, %v7830
  %v8343 = vmul.bf16 %v2165, %v7831
  %v8344 = vmul.bf16 %v2177, %v7832
  %v8345 = vmul.bf16 %v2189, %v7833
  %v8346 = vmul.bf16 %v2201, %v7834
  %v8347 = vmul.bf16 %v2213, %v7835
  %v8348 = vmul.bf16 %v2225, %v7836
  %v8349 = vmul.bf16 %v2237, %v7837
  %v8350 = vmul.bf16 %v2249, %v7838
  %v8351 = vmul.bf16 %v2261, %v7839
  %v8352 = vmul.bf16 %v2273, %v7840
  %v8353 = vmul.bf16 %v2285, %v7841
  %v8354 = vmul.bf16 %v2297, %v7842
  %v8355 = vmul.bf16 %v2309, %v7843
  %v8356 = vmul.bf16 %v2321, %v7844
  %v8357 = vmul.bf16 %v2333, %v7845
  %v8358 = vmul.bf16 %v2345, %v7846
  %v8359 = vmul.bf16 %v2357, %v7847
  %v8360 = vmul.bf16 %v2369, %v7848
  %v8361 = vmul.bf16 %v2381, %v7849
  %v8362 = vmul.bf16 %v2393, %v7850
  %v8363 = vmul.bf16 %v2405, %v7851
  %v8364 = vmul.bf16 %v2417, %v7852
  %v8365 = vmul.bf16 %v2429, %v7853
  %v8366 = vmul.bf16 %v2441, %v7854
  %v8367 = vmul.bf16 %v2453, %v7855
  %v8368 = vmul.bf16 %v2465, %v7856
  %v8369 = vmul.bf16 %v2477, %v7857
  %v8370 = vmul.bf16 %v2489, %v7858
  %v8371 = vmul.bf16 %v2501, %v7859
  %v8372 = vmul.bf16 %v2513, %v7860
  %v8373 = vmul.bf16 %v2525, %v7861
  %v8374 = vmul.bf16 %v2537, %v7862
  %v8375 = vmul.bf16 %v2549, %v7863
  %v8376 = vmul.bf16 %v2561, %v7864
  %v8377 = vmul.bf16 %v2573, %v7865
  %v8378 = vmul.bf16 %v2585, %v7866
  %v8379 = vmul.bf16 %v2597, %v7867
  %v8380 = vmul.bf16 %v2609, %v7868
  %v8381 = vmul.bf16 %v2621, %v7869
  %v8382 = vmul.bf16 %v2633, %v7870
  %v8383 = vmul.bf16 %v2645, %v7871
  %v8384 = vmul.bf16 %v2657, %v7872
  %v8385 = vmul.bf16 %v2669, %v7873
  %v8386 = vmul.bf16 %v2681, %v7874
  %v8387 = vmul.bf16 %v2693, %v7875
  %v8388 = vmul.bf16 %v2705, %v7876
  %v8389 = vmul.bf16 %v2717, %v7877
  %v8390 = vmul.bf16 %v2729, %v7878
  %v8391 = vmul.bf16 %v2741, %v7879
  %v8392 = vmul.bf16 %v2753, %v7880
  %v8393 = vmul.bf16 %v2765, %v7881
  %v8394 = vmul.bf16 %v2777, %v7882
  %v8395 = vmul.bf16 %v2789, %v7883
  %v8396 = vmul.bf16 %v2801, %v7884
  %v8397 = vmul.bf16 %v2813, %v7885
  %v8398 = vmul.bf16 %v2825, %v7886
  %v8399 = vmul.bf16 %v2837, %v7887
  %v8400 = vmul.bf16 %v2849, %v7888
  %v8401 = vmul.bf16 %v2861, %v7889
  %v8402 = vmul.bf16 %v2873, %v7890
  %v8403 = vmul.bf16 %v2885, %v7891
  %v8404 = vmul.bf16 %v2897, %v7892
  %v8405 = vmul.bf16 %v2909, %v7893
  %v8406 = vmul.bf16 %v2921, %v7894
  %v8407 = vmul.bf16 %v2933, %v7895
  %v8408 = vmul.bf16 %v2945, %v7896
  %v8409 = vmul.bf16 %v2957, %v7897
  %v8410 = vmul.bf16 %v2969, %v7898
  %v8411 = vmul.bf16 %v2981, %v7899
  %v8412 = vmul.bf16 %v2993, %v7900
  %v8413 = vmul.bf16 %v3005, %v7901
  %v8414 = vmul.bf16 %v3017, %v7902
  %v8415 = vmul.bf16 %v3029, %v7903
  %v8416 = vmul.bf16 %v3041, %v7904
  %v8417 = vmul.bf16 %v3053, %v7905
  %v8418 = vmul.bf16 %v3065, %v7906
  %v8419 = vmul.bf16 %v3077, %v7907
  %v8420 = vmul.bf16 %v3089, %v7908
  %v8421 = vmul.bf16 %v3101, %v7909
  %v8422 = vmul.bf16 %v3113, %v7910
  %v8423 = vmul.bf16 %v3125, %v7911
  %v8424 = vmul.bf16 %v3137, %v7912
  %v8425 = vmul.bf16 %v3149, %v7913
  %v8426 = vmul.bf16 %v3161, %v7914
  %v8427 = vmul.bf16 %v3173, %v7915
  %v8428 = vmul.bf16 %v3185, %v7916
  %v8429 = vmul.bf16 %v3197, %v7917
  %v8430 = vmul.bf16 %v3209, %v7918
  %v8431 = vmul.bf16 %v3221, %v7919
  %v8432 = vmul.bf16 %v3233, %v7920
  %v8433 = vmul.bf16 %v3245, %v7921
  %v8434 = vmul.bf16 %v3257, %v7922
  %v8435 = vmul.bf16 %v3269, %v7923
  %v8436 = vmul.bf16 %v3281, %v7924
  %v8437 = vmul.bf16 %v3293, %v7925
  %v8438 = vmul.bf16 %v3305, %v7926
  %v8439 = vmul.bf16 %v3317, %v7927
  %v8440 = vmul.bf16 %v3329, %v7928
  %v8441 = vmul.bf16 %v3341, %v7929
  %v8442 = vmul.bf16 %v3353, %v7930
  %v8443 = vmul.bf16 %v3365, %v7931
  %v8444 = vmul.bf16 %v3377, %v7932
  %v8445 = vmul.bf16 %v3389, %v7933
  %v8446 = vmul.bf16 %v3401, %v7934
  %v8447 = vmul.bf16 %v3413, %v7935
  %v8448 = vmul.bf16 %v3425, %v7936
  %v8449 = vmul.bf16 %v3437, %v7937
  %v8450 = vmul.bf16 %v3449, %v7938
  %v8451 = vmul.bf16 %v3461, %v7939
  %v8452 = vmul.bf16 %v3473, %v7940
  %v8453 = vmul.bf16 %v3485, %v7941
  %v8454 = vmul.bf16 %v3497, %v7942
  %v8455 = vmul.bf16 %v3509, %v7943
  %v8456 = vmul.bf16 %v3521, %v7944
  %v8457 = vmul.bf16 %v3533, %v7945
  %v8458 = vmul.bf16 %v3545, %v7946
  %v8459 = vmul.bf16 %v3557, %v7947
  %v8460 = vmul.bf16 %v3569, %v7948
  %v8461 = vmul.bf16 %v3581, %v7949
  %v8462 = vmul.bf16 %v3593, %v7950
  %v8463 = vmul.bf16 %v3605, %v7951
  %v8464 = vmul.bf16 %v3617, %v7952
  %v8465 = vmul.bf16 %v3629, %v7953
  %v8466 = vmul.bf16 %v3641, %v7954
  %v8467 = vmul.bf16 %v3653, %v7955
  %v8468 = vmul.bf16 %v3665, %v7956
  %v8469 = vmul.bf16 %v3677, %v7957
  %v8470 = vmul.bf16 %v3689, %v7958
  %v8471 = vmul.bf16 %v3701, %v7959
  %v8472 = vmul.bf16 %v3713, %v7960
  %v8473 = vmul.bf16 %v3725, %v7961
  %v8474 = vmul.bf16 %v3737, %v7962
  %v8475 = vmul.bf16 %v3749, %v7963
  %v8476 = vmul.bf16 %v3761, %v7964
  %v8477 = vmul.bf16 %v3773, %v7965
  %v8478 = vmul.bf16 %v3785, %v7966
  %v8479 = vmul.bf16 %v3797, %v7967
  %v8480 = vmul.bf16 %v3809, %v7968
  %v8481 = vmul.bf16 %v3821, %v7969
  %v8482 = vmul.bf16 %v3833, %v7970
  %v8483 = vmul.bf16 %v3845, %v7971
  %v8484 = vmul.bf16 %v3857, %v7972
  %v8485 = vmul.bf16 %v3869, %v7973
  %v8486 = vmul.bf16 %v3881, %v7974
  %v8487 = vmul.bf16 %v3893, %v7975
  %v8488 = vmul.bf16 %v3905, %v7976
  %v8489 = vmul.bf16 %v3917, %v7977
  %v8490 = vmul.bf16 %v3929, %v7978
  %v8491 = vmul.bf16 %v3941, %v7979
  %v8492 = vmul.bf16 %v3953, %v7980
  %v8493 = vmul.bf16 %v3965, %v7981
  %v8494 = vmul.bf16 %v3977, %v7982
  %v8495 = vmul.bf16 %v3989, %v7983
  %v8496 = vmul.bf16 %v4001, %v7984
  %v8497 = vmul.bf16 %v4013, %v7985
  %v8498 = vmul.bf16 %v4025, %v7986
  %v8499 = vmul.bf16 %v4037, %v7987
  %v8500 = vmul.bf16 %v4049, %v7988
  %v8501 = vmul.bf16 %v4061, %v7989
  %v8502 = vmul.bf16 %v4073, %v7990
  %v8503 = vmul.bf16 %v4085, %v7991
  %v8504 = vmul.bf16 %v4097, %v7992
  %v8505 = vmul.bf16 %v4109, %v7993
  %v8506 = vmul.bf16 %v4121, %v7994
  %v8507 = vmul.bf16 %v4133, %v7995
  %v8508 = vmul.bf16 %v4145, %v7996
  %v8509 = vmul.bf16 %v4157, %v7997
  %v8510 = vmul.bf16 %v4169, %v7998
  %v8511 = vmul.bf16 %v4181, %v7999
  %v8512 = vmul.bf16 %v4193, %v8000
  %v8513 = vmul.bf16 %v4205, %v8001
  %v8514 = vmul.bf16 %v4217, %v8002
  %v8515 = vmul.bf16 %v4229, %v8003
  %v8516 = vmul.bf16 %v4241, %v8004
  %v8517 = vmul.bf16 %v4253, %v8005
  %v8518 = vmul.bf16 %v4265, %v8006
  %v8519 = vmul.bf16 %v4277, %v8007
  %v8520 = vmul.bf16 %v4289, %v8008
  %v8521 = vmul.bf16 %v4301, %v8009
  %v8522 = vmul.bf16 %v4313, %v8010
  %v8523 = vmul.bf16 %v4325, %v8011
  %v8524 = vmul.bf16 %v4337, %v8012
  %v8525 = vmul.bf16 %v4349, %v8013
  %v8526 = vmul.bf16 %v4361, %v8014
  %v8527 = vmul.bf16 %v4373, %v8015
  %v8528 = vmul.bf16 %v4385, %v8016
  %v8529 = vmul.bf16 %v4397, %v8017
  %v8530 = vmul.bf16 %v4409, %v8018
  %v8531 = vmul.bf16 %v4421, %v8019
  %v8532 = vmul.bf16 %v4433, %v8020
  %v8533 = vmul.bf16 %v4445, %v8021
  %v8534 = vmul.bf16 %v4457, %v8022
  %v8535 = vmul.bf16 %v4469, %v8023
  %v8536 = vmul.bf16 %v4481, %v8024
  %v8537 = vmul.bf16 %v4493, %v8025
  %v8538 = vmul.bf16 %v4505, %v8026
  %v8539 = vmul.bf16 %v4517, %v8027
  %v8540 = vmul.bf16 %v4529, %v8028
  %v8541 = vmul.bf16 %v4541, %v8029
  %v8542 = vmul.bf16 %v4553, %v8030
  %v8543 = vmul.bf16 %v4565, %v8031
  %v8544 = vmul.bf16 %v4577, %v8032
  %v8545 = vmul.bf16 %v4589, %v8033
  %v8546 = vmul.bf16 %v4601, %v8034
  %v8547 = vmul.bf16 %v4613, %v8035
  %v8548 = vmul.bf16 %v4625, %v8036
  %v8549 = vmul.bf16 %v4637, %v8037
  %v8550 = vmul.bf16 %v4649, %v8038
  %v8551 = vmul.bf16 %v4661, %v8039
  %v8552 = vmul.bf16 %v4673, %v8040
  %v8553 = vmul.bf16 %v4685, %v8041
  %v8554 = vmul.bf16 %v4697, %v8042
  %v8555 = vmul.bf16 %v4709, %v8043
  %v8556 = vmul.bf16 %v4721, %v8044
  %v8557 = vmul.bf16 %v4733, %v8045
  %v8558 = vmul.bf16 %v4745, %v8046
  %v8559 = vmul.bf16 %v4757, %v8047
  %v8560 = vmul.bf16 %v4769, %v8048
  %v8561 = vmul.bf16 %v4781, %v8049
  %v8562 = vmul.bf16 %v4793, %v8050
  %v8563 = vmul.bf16 %v4805, %v8051
  %v8564 = vmul.bf16 %v4817, %v8052
  %v8565 = vmul.bf16 %v4829, %v8053
  %v8566 = vmul.bf16 %v4841, %v8054
  %v8567 = vmul.bf16 %v4853, %v8055
  %v8568 = vmul.bf16 %v4865, %v8056
  %v8569 = vmul.bf16 %v4877, %v8057
  %v8570 = vmul.bf16 %v4889, %v8058
  %v8571 = vmul.bf16 %v4901, %v8059
  %v8572 = vmul.bf16 %v4913, %v8060
  %v8573 = vmul.bf16 %v4925, %v8061
  %v8574 = vmul.bf16 %v4937, %v8062
  %v8575 = vmul.bf16 %v4949, %v8063
  %v8576 = vmul.bf16 %v4961, %v8064
  %v8577 = vmul.bf16 %v4973, %v8065
  %v8578 = vmul.bf16 %v4985, %v8066
  %v8579 = vmul.bf16 %v4997, %v8067
  %v8580 = vmul.bf16 %v5009, %v8068
  %v8581 = vmul.bf16 %v5021, %v8069
  %v8582 = vmul.bf16 %v5033, %v8070
  %v8583 = vmul.bf16 %v5045, %v8071
  %v8584 = vmul.bf16 %v5057, %v8072
  %v8585 = vmul.bf16 %v5069, %v8073
  %v8586 = vmul.bf16 %v5081, %v8074
  %v8587 = vmul.bf16 %v5093, %v8075
  %v8588 = vmul.bf16 %v5105, %v8076
  %v8589 = vmul.bf16 %v5117, %v8077
  %v8590 = vmul.bf16 %v5129, %v8078
  %v8591 = vmul.bf16 %v5141, %v8079
  %v8592 = vmul.bf16 %v5153, %v8080
  %v8593 = vmul.bf16 %v5165, %v8081
  %v8594 = vmul.bf16 %v5177, %v8082
  %v8595 = vmul.bf16 %v5189, %v8083
  %v8596 = vmul.bf16 %v5201, %v8084
  %v8597 = vmul.bf16 %v5213, %v8085
  %v8598 = vmul.bf16 %v5225, %v8086
  %v8599 = vmul.bf16 %v5237, %v8087
  %v8600 = vmul.bf16 %v5249, %v8088
  %v8601 = vmul.bf16 %v5261, %v8089
  %v8602 = vmul.bf16 %v5273, %v8090
  %v8603 = vmul.bf16 %v5285, %v8091
  %v8604 = vmul.bf16 %v5297, %v8092
  %v8605 = vmul.bf16 %v5309, %v8093
  %v8606 = vmul.bf16 %v5321, %v8094
  %v8607 = vmul.bf16 %v5333, %v8095
  %v8608 = vmul.bf16 %v5345, %v8096
  %v8609 = vmul.bf16 %v5357, %v8097
  %v8610 = vmul.bf16 %v5369, %v8098
  %v8611 = vmul.bf16 %v5381, %v8099
  %v8612 = vmul.bf16 %v5393, %v8100
  %v8613 = vmul.bf16 %v5405, %v8101
  %v8614 = vmul.bf16 %v5417, %v8102
  %v8615 = vmul.bf16 %v5429, %v8103
  %v8616 = vmul.bf16 %v5441, %v8104
  %v8617 = vmul.bf16 %v5453, %v8105
  %v8618 = vmul.bf16 %v5465, %v8106
  %v8619 = vmul.bf16 %v5477, %v8107
  %v8620 = vmul.bf16 %v5489, %v8108
  %v8621 = vmul.bf16 %v5501, %v8109
  %v8622 = vmul.bf16 %v5513, %v8110
  %v8623 = vmul.bf16 %v5525, %v8111
  %v8624 = vmul.bf16 %v5537, %v8112
  %v8625 = vmul.bf16 %v5549, %v8113
  %v8626 = vmul.bf16 %v5561, %v8114
  %v8627 = vmul.bf16 %v5573, %v8115
  %v8628 = vmul.bf16 %v5585, %v8116
  %v8629 = vmul.bf16 %v5597, %v8117
  %v8630 = vmul.bf16 %v5609, %v8118
  %v8631 = vmul.bf16 %v5621, %v8119
  %v8632 = vmul.bf16 %v5633, %v8120
  %v8633 = vmul.bf16 %v5645, %v8121
  %v8634 = vmul.bf16 %v5657, %v8122
  %v8635 = vmul.bf16 %v5669, %v8123
  %v8636 = vmul.bf16 %v5681, %v8124
  %v8637 = vmul.bf16 %v5693, %v8125
  %v8638 = vmul.bf16 %v5705, %v8126
  %v8639 = vmul.bf16 %v5717, %v8127
  %v8640 = vmul.bf16 %v5729, %v8128
  %v8641 = vmul.bf16 %v5741, %v8129
  %v8642 = vmul.bf16 %v5753, %v8130
  %v8643 = vmul.bf16 %v5765, %v8131
  %v8644 = vmul.bf16 %v5777, %v8132
  %v8645 = vmul.bf16 %v5789, %v8133
  %v8646 = vmul.bf16 %v5801, %v8134
  %v8647 = vmul.bf16 %v5813, %v8135
  %v8648 = vmul.bf16 %v5825, %v8136
  %v8649 = vmul.bf16 %v5837, %v8137
  %v8650 = vmul.bf16 %v5849, %v8138
  %v8651 = vmul.bf16 %v5861, %v8139
  %v8652 = vmul.bf16 %v5873, %v8140
  %v8653 = vmul.bf16 %v5885, %v8141
  %v8654 = vmul.bf16 %v5897, %v8142
  %v8655 = vmul.bf16 %v5909, %v8143
  %v8656 = vmul.bf16 %v5921, %v8144
  %v8657 = vmul.bf16 %v5933, %v8145
  %v8658 = vmul.bf16 %v5945, %v8146
  %v8659 = vmul.bf16 %v5957, %v8147
  %v8660 = vmul.bf16 %v5969, %v8148
  %v8661 = vmul.bf16 %v5981, %v8149
  %v8662 = vmul.bf16 %v5993, %v8150
  %v8663 = vmul.bf16 %v6005, %v8151
  %v8664 = vmul.bf16 %v6017, %v8152
  %v8665 = vmul.bf16 %v6029, %v8153
  %v8666 = vmul.bf16 %v6041, %v8154
  %v8667 = vmul.bf16 %v6053, %v8155
  %v8668 = vmul.bf16 %v6065, %v8156
  %v8669 = vmul.bf16 %v6077, %v8157
  %v8670 = vmul.bf16 %v6089, %v8158
  %v8671 = vmul.bf16 %v6101, %v8159
  %v8672 = vmul.bf16 %v6113, %v8160
  %v8673 = vmul.bf16 %v6125, %v8161
  %v8674 = vmul.bf16 %v6137, %v8162
  %v8675 = vmul.bf16 %v6149, %v8163
  %v8676 = vmul.bf16 %v6161, %v8164
  %v8677 = vmul.bf16 %v6173, %v8165
  %v8678 = vmul.bf16 %v6185, %v8166
  %v8679 = vmul.bf16 %v6197, %v8167
  %v8680 = vmul.bf16 %v6209, %v8168
  %v8681 = vmul.bf16 %v6221, %v8169
  %v8682 = vmul.bf16 %v6233, %v8170
  %v8683 = vmul.bf16 %v6245, %v8171
  %v8684 = vmul.bf16 %v6257, %v8172
  %v8685 = vmul.bf16 %v6269, %v8173
  %v8686 = vmul.bf16 %v6281, %v8174
  %v8687 = vmul.bf16 %v6293, %v8175
  %v8688 = vmul.bf16 %v6305, %v8176
  %v8689 = vmul.bf16 %v6317, %v8177
  %v8690 = vmul.bf16 %v6329, %v8178
  %v8691 = vmul.bf16 %v6341, %v8179
  %v8692 = vmul.bf16 %v6353, %v8180
  %v8693 = vmul.bf16 %v6365, %v8181
  %v8694 = vmul.bf16 %v6377, %v8182
  %v8695 = vmul.bf16 %v6389, %v8183
  %v8696 = vmul.bf16 %v6401, %v8184
  %v8697 = vmul.bf16 %v6413, %v8185
  %v8698 = vmul.bf16 %v6425, %v8186
  %v8699 = vmul.bf16 %v6437, %v8187
  %v8700 = vmul.bf16 %v6449, %v8188
  %v8701 = vmul.bf16 %v6461, %v8189
  %v8702 = vmul.bf16 %v6473, %v8190
  %v8703 = vmul.bf16 %v6485, %v8191
  %v8704 = vmul.bf16 %v6497, %v8192
  %v8705 = vmul.bf16 %v6509, %v8193
  %v8706 = vmul.bf16 %v6521, %v8194
  %v8707 = vmul.bf16 %v6533, %v8195
  %v8708 = vmul.bf16 %v6545, %v8196
  %v8709 = vmul.bf16 %v6557, %v8197
  %v8710 = vmul.bf16 %v6569, %v8198
  %v8711 = vmul.bf16 %v6581, %v8199
  %v8712 = vmul.bf16 %v6593, %v8200
  %v8713 = vmul.bf16 %v6605, %v8201
  %v8714 = vmul.bf16 %v6617, %v8202
  %v8715 = vmul.bf16 %v6629, %v8203
  %v8716 = vmul.bf16 %v6641, %v8204
  %v8717 = vmul.bf16 %v6653, %v8205
  %v8718 = vmul.bf16 %v6665, %v8206
  %v8719 = vmul.bf16 %v6677, %v8207
  %v8720 = vmul.bf16 %v6689, %v8208
  %v8721 = vmul.bf16 %v6701, %v8209
  %v8722 = vmul.bf16 %v6713, %v8210
  %v8723 = vmul.bf16 %v6725, %v8211
  %v8724 = vmul.bf16 %v6737, %v8212
  %v8725 = vmul.bf16 %v6749, %v8213
  %v8726 = vmul.bf16 %v6761, %v8214
  %v8727 = vmul.bf16 %v6773, %v8215
  %v8728 = vmul.bf16 %v6785, %v8216
  %v8729 = vmul.bf16 %v6797, %v8217
  %v8730 = vmul.bf16 %v6809, %v8218
  %v8731 = vmul.bf16 %v6821, %v8219
  %v8732 = vmul.bf16 %v6833, %v8220
  %v8733 = vmul.bf16 %v6845, %v8221
  %v8734 = vmul.bf16 %v6857, %v8222
  %v8735 = vmul.bf16 %v6869, %v8223
  %v8736 = vmul.bf16 %v6881, %v8224
  %v8737 = vmul.bf16 %v6893, %v8225
  %v8738 = vmul.bf16 %v6905, %v8226
  %v8739 = vmul.bf16 %v6917, %v8227
  %v8740 = vmul.bf16 %v6929, %v8228
  %v8741 = vmul.bf16 %v6941, %v8229
  %v8742 = vmul.bf16 %v6953, %v8230
  %v8743 = vmul.bf16 %v6965, %v8231
  %v8744 = vmul.bf16 %v6977, %v8232
  %v8745 = vmul.bf16 %v6989, %v8233
  %v8746 = vmul.bf16 %v7001, %v8234
  %v8747 = vmul.bf16 %v7013, %v8235
  %v8748 = vmul.bf16 %v7025, %v8236
  %v8749 = vmul.bf16 %v7037, %v8237
  %v8750 = vmul.bf16 %v7049, %v8238
  %v8751 = vmul.bf16 %v7061, %v8239
  %v8752 = vmul.bf16 %v7073, %v8240
  %v8753 = vmul.bf16 %v7085, %v8241
  %v8754 = vmul.bf16 %v7097, %v8242
  %v8755 = vmul.bf16 %v7109, %v8243
  %v8756 = vmul.bf16 %v7121, %v8244
  %v8757 = vmul.bf16 %v7133, %v8245
  %v8758 = vmul.bf16 %v7145, %v8246
  %v8759 = vmul.bf16 %v7157, %v8247
  %v8760 = vmul.bf16 %v7169, %v8248
  %v8761 = vmul.bf16 %v7181, %v8249
  %v8762 = vmul.bf16 %v7193, %v8250
  %v8763 = vmul.bf16 %v7205, %v8251
  %v8764 = vmul.bf16 %v7217, %v8252
  %v8765 = vmul.bf16 %v7229, %v8253
  %v8766 = vld [vmem:[#allocation2] sm:$0xff]
  %v8767 = vld [vmem:[#allocation2 + $0x8] sm:$0xff]
  %v8800 = vunpack.c.l.b16 %v542
  %v8801 = vunpack.c.h.b16 %v542
  %v8802 = vunpack.c.l.b16 %v543
  %v8803 = vunpack.c.h.b16 %v543
  %v8804 = vunpack.c.l.b16 %v544
  %v8805 = vunpack.c.h.b16 %v544
  %v8806 = vunpack.c.l.b16 %v545
  %v8807 = vunpack.c.h.b16 %v545
  %v8808 = vunpack.c.l.b16 %v546
  %v8809 = vunpack.c.h.b16 %v546
  %v8810 = vunpack.c.l.b16 %v547
  %v8811 = vunpack.c.h.b16 %v547
  %v8812 = vunpack.c.l.b16 %v548
  %v8813 = vunpack.c.h.b16 %v548
  %v8814 = vunpack.c.l.b16 %v549
  %v8815 = vunpack.c.h.b16 %v549
  %v8816 = vunpack.c.l.b16 %v550
  %v8817 = vunpack.c.h.b16 %v550
  %v8818 = vunpack.c.l.b16 %v551
  %v8819 = vunpack.c.h.b16 %v551
  %v8820 = vunpack.c.l.b16 %v552
  %v8821 = vunpack.c.h.b16 %v552
  %v8822 = vunpack.c.l.b16 %v553
  %v8823 = vunpack.c.h.b16 %v553
  %v8824 = vunpack.c.l.b16 %v554
  %v8825 = vunpack.c.h.b16 %v554
  %v8826 = vunpack.c.l.b16 %v555
  %v8827 = vunpack.c.h.b16 %v555
  %v8828 = vunpack.c.l.b16 %v556
  %v8829 = vunpack.c.h.b16 %v556
  %v8830 = vunpack.c.l.b16 %v557
  %v8831 = vunpack.c.h.b16 %v557
  %v8832 = vunpack.c.l.b16 %v558
  %v8833 = vunpack.c.h.b16 %v558
  %v8834 = vunpack.c.l.b16 %v559
  %v8835 = vunpack.c.h.b16 %v559
  %v8836 = vunpack.c.l.b16 %v560
  %v8837 = vunpack.c.h.b16 %v560
  %v8838 = vunpack.c.l.b16 %v561
  %v8839 = vunpack.c.h.b16 %v561
  %v8840 = vunpack.c.l.b16 %v562
  %v8841 = vunpack.c.h.b16 %v562
  %v8842 = vunpack.c.l.b16 %v563
  %v8843 = vunpack.c.h.b16 %v563
  %v8844 = vunpack.c.l.b16 %v564
  %v8845 = vunpack.c.h.b16 %v564
  %v8846 = vunpack.c.l.b16 %v565
  %v8847 = vunpack.c.h.b16 %v565
  %v8848 = vunpack.c.l.b16 %v566
  %v8849 = vunpack.c.h.b16 %v566
  %v8850 = vunpack.c.l.b16 %v567
  %v8851 = vunpack.c.h.b16 %v567
  %v8852 = vunpack.c.l.b16 %v568
  %v8853 = vunpack.c.h.b16 %v568
  %v8854 = vunpack.c.l.b16 %v569
  %v8855 = vunpack.c.h.b16 %v569
  %v8856 = vunpack.c.l.b16 %v570
  %v8857 = vunpack.c.h.b16 %v570
  %v8858 = vunpack.c.l.b16 %v571
  %v8859 = vunpack.c.h.b16 %v571
  %v8860 = vunpack.c.l.b16 %v572
  %v8861 = vunpack.c.h.b16 %v572
  %v8862 = vunpack.c.l.b16 %v573
  %v8863 = vunpack.c.h.b16 %v573
  %v8864 = vpack.c.b16 %v8832, %v8800
  %v8865 = vpack.c.b16 %v8833, %v8801
  %v8866 = vpack.c.b16 %v8834, %v8802
  %v8867 = vpack.c.b16 %v8835, %v8803
  %v8868 = vpack.c.b16 %v8836, %v8804
  %v8869 = vpack.c.b16 %v8837, %v8805
  %v8870 = vpack.c.b16 %v8838, %v8806
  %v8871 = vpack.c.b16 %v8839, %v8807
  %v8872 = vpack.c.b16 %v8840, %v8808
  %v8873 = vpack.c.b16 %v8841, %v8809
  %v8874 = vpack.c.b16 %v8842, %v8810
  %v8875 = vpack.c.b16 %v8843, %v8811
  %v8876 = vpack.c.b16 %v8844, %v8812
  %v8877 = vpack.c.b16 %v8845, %v8813
  %v8878 = vpack.c.b16 %v8846, %v8814
  %v8879 = vpack.c.b16 %v8847, %v8815
  %v8880 = vpack.c.b16 %v8848, %v8816
  %v8881 = vpack.c.b16 %v8849, %v8817
  %v8882 = vpack.c.b16 %v8850, %v8818
  %v8883 = vpack.c.b16 %v8851, %v8819
  %v8884 = vpack.c.b16 %v8852, %v8820
  %v8885 = vpack.c.b16 %v8853, %v8821
  %v8886 = vpack.c.b16 %v8854, %v8822
  %v8887 = vpack.c.b16 %v8855, %v8823
  %v8888 = vpack.c.b16 %v8856, %v8824
  %v8889 = vpack.c.b16 %v8857, %v8825
  %v8890 = vpack.c.b16 %v8858, %v8826
  %v8891 = vpack.c.b16 %v8859, %v8827
  %v8892 = vpack.c.b16 %v8860, %v8828
  %v8893 = vpack.c.b16 %v8861, %v8829
  %v8894 = vpack.c.b16 %v8862, %v8830
  %v8895 = vpack.c.b16 %v8863, %v8831
  %v9440 = vunpack.c.l.b16 %v7230
  %v9441 = vunpack.c.l.b16 %v7231
  %v9442 = vunpack.c.l.b16 %v7232
  %v9443 = vunpack.c.l.b16 %v7233
  %v9444 = vunpack.c.l.b16 %v7234
  %v9445 = vunpack.c.l.b16 %v7235
  %v9446 = vunpack.c.l.b16 %v7236
  %v9447 = vunpack.c.l.b16 %v7237
  %v9448 = vunpack.c.l.b16 %v7238
  %v9449 = vunpack.c.l.b16 %v7239
  %v9450 = vunpack.c.l.b16 %v7240
  %v9451 = vunpack.c.l.b16 %v7241
  %v9452 = vunpack.c.l.b16 %v7242
  %v9453 = vunpack.c.l.b16 %v7243
  %v9454 = vunpack.c.l.b16 %v7244
  %v9455 = vunpack.c.l.b16 %v7245
  %v9456 = vunpack.c.l.b16 %v7246
  %v9457 = vunpack.c.l.b16 %v7247
  %v9458 = vunpack.c.l.b16 %v7248
  %v9459 = vunpack.c.l.b16 %v7249
  %v9460 = vunpack.c.l.b16 %v7250
  %v9461 = vunpack.c.l.b16 %v7251
  %v9462 = vunpack.c.l.b16 %v7252
  %v9463 = vunpack.c.l.b16 %v7253
  %v9464 = vunpack.c.l.b16 %v7254
  %v9465 = vunpack.c.l.b16 %v7255
  %v9466 = vunpack.c.l.b16 %v7256
  %v9467 = vunpack.c.l.b16 %v7257
  %v9468 = vunpack.c.l.b16 %v7258
  %v9469 = vunpack.c.l.b16 %v7259
  %v9470 = vunpack.c.l.b16 %v7260
  %v9471 = vunpack.c.l.b16 %v7261
  %v9472 = vunpack.c.l.b16 %v7262
  %v9473 = vunpack.c.l.b16 %v7263
  %v9474 = vunpack.c.l.b16 %v7264
  %v9475 = vunpack.c.l.b16 %v7265
  %v9476 = vunpack.c.l.b16 %v7266
  %v9477 = vunpack.c.l.b16 %v7267
  %v9478 = vunpack.c.l.b16 %v7268
  %v9479 = vunpack.c.l.b16 %v7269
  %v9480 = vunpack.c.l.b16 %v7270
  %v9481 = vunpack.c.l.b16 %v7271
  %v9482 = vunpack.c.l.b16 %v7272
  %v9483 = vunpack.c.l.b16 %v7273
  %v9484 = vunpack.c.l.b16 %v7274
  %v9485 = vunpack.c.l.b16 %v7275
  %v9486 = vunpack.c.l.b16 %v7276
  %v9487 = vunpack.c.l.b16 %v7277
  %v9488 = vunpack.c.l.b16 %v7278
  %v9489 = vunpack.c.l.b16 %v7279
  %v9490 = vunpack.c.l.b16 %v7280
  %v9491 = vunpack.c.l.b16 %v7281
  %v9492 = vunpack.c.l.b16 %v7282
  %v9493 = vunpack.c.l.b16 %v7283
  %v9494 = vunpack.c.l.b16 %v7284
  %v9495 = vunpack.c.l.b16 %v7285
  %v9496 = vunpack.c.l.b16 %v7286
  %v9497 = vunpack.c.l.b16 %v7287
  %v9498 = vunpack.c.l.b16 %v7288
  %v9499 = vunpack.c.l.b16 %v7289
  %v9500 = vunpack.c.l.b16 %v7290
  %v9501 = vunpack.c.l.b16 %v7291
  %v9502 = vunpack.c.l.b16 %v7292
  %v9503 = vunpack.c.l.b16 %v7293
  %v9504 = vunpack.c.l.b16 %v7294
  %v9505 = vunpack.c.l.b16 %v7295
  %v9506 = vunpack.c.l.b16 %v7296
  %v9507 = vunpack.c.l.b16 %v7297
  %v9508 = vunpack.c.l.b16 %v7298
  %v9509 = vunpack.c.l.b16 %v7299
  %v9510 = vunpack.c.l.b16 %v7300
  %v9511 = vunpack.c.l.b16 %v7301
  %v9512 = vunpack.c.l.b16 %v7302
  %v9513 = vunpack.c.l.b16 %v7303
  %v9514 = vunpack.c.l.b16 %v7304
  %v9515 = vunpack.c.l.b16 %v7305
  %v9516 = vunpack.c.l.b16 %v7306
  %v9517 = vunpack.c.l.b16 %v7307
  %v9518 = vunpack.c.l.b16 %v7308
  %v9519 = vunpack.c.l.b16 %v7309
  %v9520 = vunpack.c.l.b16 %v7310
  %v9521 = vunpack.c.l.b16 %v7311
  %v9522 = vunpack.c.l.b16 %v7312
  %v9523 = vunpack.c.l.b16 %v7313
  %v9524 = vunpack.c.l.b16 %v7314
  %v9525 = vunpack.c.l.b16 %v7315
  %v9526 = vunpack.c.l.b16 %v7316
  %v9527 = vunpack.c.l.b16 %v7317
  %v9528 = vunpack.c.l.b16 %v7318
  %v9529 = vunpack.c.l.b16 %v7319
  %v9530 = vunpack.c.l.b16 %v7320
  %v9531 = vunpack.c.l.b16 %v7321
  %v9532 = vunpack.c.l.b16 %v7322
  %v9533 = vunpack.c.l.b16 %v7323
  %v9534 = vunpack.c.l.b16 %v7324
  %v9535 = vunpack.c.l.b16 %v7325
  %v9536 = vunpack.c.l.b16 %v7326
  %v9537 = vunpack.c.l.b16 %v7327
  %v9538 = vunpack.c.l.b16 %v7328
  %v9539 = vunpack.c.l.b16 %v7329
  %v9540 = vunpack.c.l.b16 %v7330
  %v9541 = vunpack.c.l.b16 %v7331
  %v9542 = vunpack.c.l.b16 %v7332
  %v9543 = vunpack.c.l.b16 %v7333
  %v9544 = vunpack.c.l.b16 %v7334
  %v9545 = vunpack.c.l.b16 %v7335
  %v9546 = vunpack.c.l.b16 %v7336
  %v9547 = vunpack.c.l.b16 %v7337
  %v9548 = vunpack.c.l.b16 %v7338
  %v9549 = vunpack.c.l.b16 %v7339
  %v9550 = vunpack.c.l.b16 %v7340
  %v9551 = vunpack.c.l.b16 %v7341
  %v9552 = vunpack.c.l.b16 %v7342
  %v9553 = vunpack.c.l.b16 %v7343
  %v9554 = vunpack.c.l.b16 %v7344
  %v9555 = vunpack.c.l.b16 %v7345
  %v9556 = vunpack.c.l.b16 %v7346
  %v9557 = vunpack.c.l.b16 %v7347
  %v9558 = vunpack.c.l.b16 %v7348
  %v9559 = vunpack.c.l.b16 %v7349
  %v9560 = vunpack.c.l.b16 %v7350
  %v9561 = vunpack.c.l.b16 %v7351
  %v9562 = vunpack.c.l.b16 %v7352
  %v9563 = vunpack.c.l.b16 %v7353
  %v9564 = vunpack.c.l.b16 %v7354
  %v9565 = vunpack.c.l.b16 %v7355
  %v9566 = vunpack.c.l.b16 %v7356
  %v9567 = vunpack.c.l.b16 %v7357
  %v9568 = vunpack.c.l.b16 %v7358
  %v9569 = vunpack.c.l.b16 %v7359
  %v9570 = vunpack.c.l.b16 %v7360
  %v9571 = vunpack.c.l.b16 %v7361
  %v9572 = vunpack.c.l.b16 %v7362
  %v9573 = vunpack.c.l.b16 %v7363
  %v9574 = vunpack.c.l.b16 %v7364
  %v9575 = vunpack.c.l.b16 %v7365
  %v9576 = vunpack.c.l.b16 %v7366
  %v9577 = vunpack.c.l.b16 %v7367
  %v9578 = vunpack.c.l.b16 %v7368
  %v9579 = vunpack.c.l.b16 %v7369
  %v9580 = vunpack.c.l.b16 %v7370
  %v9581 = vunpack.c.l.b16 %v7371
  %v9582 = vunpack.c.l.b16 %v7372
  %v9583 = vunpack.c.l.b16 %v7373
  %v9584 = vunpack.c.l.b16 %v7374
  %v9585 = vunpack.c.l.b16 %v7375
  %v9586 = vunpack.c.l.b16 %v7376
  %v9587 = vunpack.c.l.b16 %v7377
  %v9588 = vunpack.c.l.b16 %v7378
  %v9589 = vunpack.c.l.b16 %v7379
  %v9590 = vunpack.c.l.b16 %v7380
  %v9591 = vunpack.c.l.b16 %v7381
  %v9592 = vunpack.c.l.b16 %v7382
  %v9593 = vunpack.c.l.b16 %v7383
  %v9594 = vunpack.c.l.b16 %v7384
  %v9595 = vunpack.c.l.b16 %v7385
  %v9596 = vunpack.c.l.b16 %v7386
  %v9597 = vunpack.c.l.b16 %v7387
  %v9598 = vunpack.c.l.b16 %v7388
  %v9599 = vunpack.c.l.b16 %v7389
  %v9600 = vunpack.c.l.b16 %v7390
  %v9601 = vunpack.c.l.b16 %v7391
  %v9602 = vunpack.c.l.b16 %v7392
  %v9603 = vunpack.c.l.b16 %v7393
  %v9604 = vunpack.c.l.b16 %v7394
  %v9605 = vunpack.c.l.b16 %v7395
  %v9606 = vunpack.c.l.b16 %v7396
  %v9607 = vunpack.c.l.b16 %v7397
  %v9608 = vunpack.c.l.b16 %v7398
  %v9609 = vunpack.c.l.b16 %v7399
  %v9610 = vunpack.c.l.b16 %v7400
  %v9611 = vunpack.c.l.b16 %v7401
  %v9612 = vunpack.c.l.b16 %v7402
  %v9613 = vunpack.c.l.b16 %v7403
  %v9614 = vunpack.c.l.b16 %v7404
  %v9615 = vunpack.c.l.b16 %v7405
  %v9616 = vunpack.c.l.b16 %v7406
  %v9617 = vunpack.c.l.b16 %v7407
  %v9618 = vunpack.c.l.b16 %v7408
  %v9619 = vunpack.c.l.b16 %v7409
  %v9620 = vunpack.c.l.b16 %v7410
  %v9621 = vunpack.c.l.b16 %v7411
  %v9622 = vunpack.c.l.b16 %v7412
  %v9623 = vunpack.c.l.b16 %v7413
  %v9624 = vunpack.c.l.b16 %v7414
  %v9625 = vunpack.c.l.b16 %v7415
  %v9626 = vunpack.c.l.b16 %v7416
  %v9627 = vunpack.c.l.b16 %v7417
  %v9628 = vunpack.c.l.b16 %v7418
  %v9629 = vunpack.c.l.b16 %v7419
  %v9630 = vunpack.c.l.b16 %v7420
  %v9631 = vunpack.c.l.b16 %v7421
  %v9632 = vunpack.c.l.b16 %v7422
  %v9633 = vunpack.c.l.b16 %v7423
  %v9634 = vunpack.c.l.b16 %v7424
  %v9635 = vunpack.c.l.b16 %v7425
  %v9636 = vunpack.c.l.b16 %v7426
  %v9637 = vunpack.c.l.b16 %v7427
  %v9638 = vunpack.c.l.b16 %v7428
  %v9639 = vunpack.c.l.b16 %v7429
  %v9640 = vunpack.c.l.b16 %v7430
  %v9641 = vunpack.c.l.b16 %v7431
  %v9642 = vunpack.c.l.b16 %v7432
  %v9643 = vunpack.c.l.b16 %v7433
  %v9644 = vunpack.c.l.b16 %v7434
  %v9645 = vunpack.c.l.b16 %v7435
  %v9646 = vunpack.c.l.b16 %v7436
  %v9647 = vunpack.c.l.b16 %v7437
  %v9648 = vunpack.c.l.b16 %v7438
  %v9649 = vunpack.c.l.b16 %v7439
  %v9650 = vunpack.c.l.b16 %v7440
  %v9651 = vunpack.c.l.b16 %v7441
  %v9652 = vunpack.c.l.b16 %v7442
  %v9653 = vunpack.c.l.b16 %v7443
  %v9654 = vunpack.c.l.b16 %v7444
  %v9655 = vunpack.c.l.b16 %v7445
  %v9656 = vunpack.c.l.b16 %v7446
  %v9657 = vunpack.c.l.b16 %v7447
  %v9658 = vunpack.c.l.b16 %v7448
  %v9659 = vunpack.c.l.b16 %v7449
  %v9660 = vunpack.c.l.b16 %v7450
  %v9661 = vunpack.c.l.b16 %v7451
  %v9662 = vunpack.c.l.b16 %v7452
  %v9663 = vunpack.c.l.b16 %v7453
  %v9664 = vunpack.c.l.b16 %v7454
  %v9665 = vunpack.c.l.b16 %v7455
  %v9666 = vunpack.c.l.b16 %v7456
  %v9667 = vunpack.c.l.b16 %v7457
  %v9668 = vunpack.c.l.b16 %v7458
  %v9669 = vunpack.c.l.b16 %v7459
  %v9670 = vunpack.c.l.b16 %v7460
  %v9671 = vunpack.c.l.b16 %v7461
  %v9672 = vunpack.c.l.b16 %v7462
  %v9673 = vunpack.c.l.b16 %v7463
  %v9674 = vunpack.c.l.b16 %v7464
  %v9675 = vunpack.c.l.b16 %v7465
  %v9676 = vunpack.c.l.b16 %v7466
  %v9677 = vunpack.c.l.b16 %v7467
  %v9678 = vunpack.c.l.b16 %v7468
  %v9679 = vunpack.c.l.b16 %v7469
  %v9680 = vunpack.c.l.b16 %v7470
  %v9681 = vunpack.c.l.b16 %v7471
  %v9682 = vunpack.c.l.b16 %v7472
  %v9683 = vunpack.c.l.b16 %v7473
  %v9684 = vunpack.c.l.b16 %v7474
  %v9685 = vunpack.c.l.b16 %v7475
  %v9686 = vunpack.c.l.b16 %v7476
  %v9687 = vunpack.c.l.b16 %v7477
  %v9688 = vunpack.c.l.b16 %v7478
  %v9689 = vunpack.c.l.b16 %v7479
  %v9690 = vunpack.c.l.b16 %v7480
  %v9691 = vunpack.c.l.b16 %v7481
  %v9692 = vunpack.c.l.b16 %v7482
  %v9693 = vunpack.c.l.b16 %v7483
  %v9694 = vunpack.c.l.b16 %v7484
  %v9695 = vunpack.c.l.b16 %v7485
  %v9696 = vunpack.c.l.b16 %v7486
  %v9697 = vunpack.c.l.b16 %v7487
  %v9698 = vunpack.c.l.b16 %v7488
  %v9699 = vunpack.c.l.b16 %v7489
  %v9700 = vunpack.c.l.b16 %v7490
  %v9701 = vunpack.c.l.b16 %v7491
  %v9702 = vunpack.c.l.b16 %v7492
  %v9703 = vunpack.c.l.b16 %v7493
  %v9704 = vunpack.c.l.b16 %v7494
  %v9705 = vunpack.c.l.b16 %v7495
  %v9706 = vunpack.c.l.b16 %v7496
  %v9707 = vunpack.c.l.b16 %v7497
  %v9708 = vunpack.c.l.b16 %v7498
  %v9709 = vunpack.c.l.b16 %v7499
  %v9710 = vunpack.c.l.b16 %v7500
  %v9711 = vunpack.c.l.b16 %v7501
  %v9712 = vunpack.c.l.b16 %v7502
  %v9713 = vunpack.c.l.b16 %v7503
  %v9714 = vunpack.c.l.b16 %v7504
  %v9715 = vunpack.c.l.b16 %v7505
  %v9716 = vunpack.c.l.b16 %v7506
  %v9717 = vunpack.c.l.b16 %v7507
  %v9718 = vunpack.c.l.b16 %v7508
  %v9719 = vunpack.c.l.b16 %v7509
  %v9720 = vunpack.c.l.b16 %v7510
  %v9721 = vunpack.c.l.b16 %v7511
  %v9722 = vunpack.c.l.b16 %v7512
  %v9723 = vunpack.c.l.b16 %v7513
  %v9724 = vunpack.c.l.b16 %v7514
  %v9725 = vunpack.c.l.b16 %v7515
  %v9726 = vunpack.c.l.b16 %v7516
  %v9727 = vunpack.c.l.b16 %v7517
  %v9728 = vunpack.c.l.b16 %v7518
  %v9729 = vunpack.c.l.b16 %v7519
  %v9730 = vunpack.c.l.b16 %v7520
  %v9731 = vunpack.c.l.b16 %v7521
  %v9732 = vunpack.c.l.b16 %v7522
  %v9733 = vunpack.c.l.b16 %v7523
  %v9734 = vunpack.c.l.b16 %v7524
  %v9735 = vunpack.c.l.b16 %v7525
  %v9736 = vunpack.c.l.b16 %v7526
  %v9737 = vunpack.c.l.b16 %v7527
  %v9738 = vunpack.c.l.b16 %v7528
  %v9739 = vunpack.c.l.b16 %v7529
  %v9740 = vunpack.c.l.b16 %v7530
  %v9741 = vunpack.c.l.b16 %v7531
  %v9742 = vunpack.c.l.b16 %v7532
  %v9743 = vunpack.c.l.b16 %v7533
  %v9744 = vunpack.c.l.b16 %v7534
  %v9745 = vunpack.c.l.b16 %v7535
  %v9746 = vunpack.c.l.b16 %v7536
  %v9747 = vunpack.c.l.b16 %v7537
  %v9748 = vunpack.c.l.b16 %v7538
  %v9749 = vunpack.c.l.b16 %v7539
  %v9750 = vunpack.c.l.b16 %v7540
  %v9751 = vunpack.c.l.b16 %v7541
  %v9752 = vunpack.c.l.b16 %v7542
  %v9753 = vunpack.c.l.b16 %v7543
  %v9754 = vunpack.c.l.b16 %v7544
  %v9755 = vunpack.c.l.b16 %v7545
  %v9756 = vunpack.c.l.b16 %v7546
  %v9757 = vunpack.c.l.b16 %v7547
  %v9758 = vunpack.c.l.b16 %v7548
  %v9759 = vunpack.c.l.b16 %v7549
  %v9760 = vunpack.c.l.b16 %v7550
  %v9761 = vunpack.c.l.b16 %v7551
  %v9762 = vunpack.c.l.b16 %v7552
  %v9763 = vunpack.c.l.b16 %v7553
  %v9764 = vunpack.c.l.b16 %v7554
  %v9765 = vunpack.c.l.b16 %v7555
  %v9766 = vunpack.c.l.b16 %v7556
  %v9767 = vunpack.c.l.b16 %v7557
  %v9768 = vunpack.c.l.b16 %v7558
  %v9769 = vunpack.c.l.b16 %v7559
  %v9770 = vunpack.c.l.b16 %v7560
  %v9771 = vunpack.c.l.b16 %v7561
  %v9772 = vunpack.c.l.b16 %v7562
  %v9773 = vunpack.c.l.b16 %v7563
  %v9774 = vunpack.c.l.b16 %v7564
  %v9775 = vunpack.c.l.b16 %v7565
  %v9776 = vunpack.c.l.b16 %v7566
  %v9777 = vunpack.c.l.b16 %v7567
  %v9778 = vunpack.c.l.b16 %v7568
  %v9779 = vunpack.c.l.b16 %v7569
  %v9780 = vunpack.c.l.b16 %v7570
  %v9781 = vunpack.c.l.b16 %v7571
  %v9782 = vunpack.c.l.b16 %v7572
  %v9783 = vunpack.c.l.b16 %v7573
  %v9784 = vunpack.c.l.b16 %v7574
  %v9785 = vunpack.c.l.b16 %v7575
  %v9786 = vunpack.c.l.b16 %v7576
  %v9787 = vunpack.c.l.b16 %v7577
  %v9788 = vunpack.c.l.b16 %v7578
  %v9789 = vunpack.c.l.b16 %v7579
  %v9790 = vunpack.c.l.b16 %v7580
  %v9791 = vunpack.c.l.b16 %v7581
  %v9792 = vunpack.c.l.b16 %v7582
  %v9793 = vunpack.c.l.b16 %v7583
  %v9794 = vunpack.c.l.b16 %v7584
  %v9795 = vunpack.c.l.b16 %v7585
  %v9796 = vunpack.c.l.b16 %v7586
  %v9797 = vunpack.c.l.b16 %v7587
  %v9798 = vunpack.c.l.b16 %v7588
  %v9799 = vunpack.c.l.b16 %v7589
  %v9800 = vunpack.c.l.b16 %v7590
  %v9801 = vunpack.c.l.b16 %v7591
  %v9802 = vunpack.c.l.b16 %v7592
  %v9803 = vunpack.c.l.b16 %v7593
  %v9804 = vunpack.c.l.b16 %v7594
  %v9805 = vunpack.c.l.b16 %v7595
  %v9806 = vunpack.c.l.b16 %v7596
  %v9807 = vunpack.c.l.b16 %v7597
  %v9808 = vunpack.c.l.b16 %v7598
  %v9809 = vunpack.c.l.b16 %v7599
  %v9810 = vunpack.c.l.b16 %v7600
  %v9811 = vunpack.c.l.b16 %v7601
  %v9812 = vunpack.c.l.b16 %v7602
  %v9813 = vunpack.c.l.b16 %v7603
  %v9814 = vunpack.c.l.b16 %v7604
  %v9815 = vunpack.c.l.b16 %v7605
  %v9816 = vunpack.c.l.b16 %v7606
  %v9817 = vunpack.c.l.b16 %v7607
  %v9818 = vunpack.c.l.b16 %v7608
  %v9819 = vunpack.c.l.b16 %v7609
  %v9820 = vunpack.c.l.b16 %v7610
  %v9821 = vunpack.c.l.b16 %v7611
  %v9822 = vunpack.c.l.b16 %v7612
  %v9823 = vunpack.c.l.b16 %v7613
  %v9824 = vunpack.c.l.b16 %v7614
  %v9825 = vunpack.c.l.b16 %v7615
  %v9826 = vunpack.c.l.b16 %v7616
  %v9827 = vunpack.c.l.b16 %v7617
  %v9828 = vunpack.c.l.b16 %v7618
  %v9829 = vunpack.c.l.b16 %v7619
  %v9830 = vunpack.c.l.b16 %v7620
  %v9831 = vunpack.c.l.b16 %v7621
  %v9832 = vunpack.c.l.b16 %v7622
  %v9833 = vunpack.c.l.b16 %v7623
  %v9834 = vunpack.c.l.b16 %v7624
  %v9835 = vunpack.c.l.b16 %v7625
  %v9836 = vunpack.c.l.b16 %v7626
  %v9837 = vunpack.c.l.b16 %v7627
  %v9838 = vunpack.c.l.b16 %v7628
  %v9839 = vunpack.c.l.b16 %v7629
  %v9840 = vunpack.c.l.b16 %v7630
  %v9841 = vunpack.c.l.b16 %v7631
  %v9842 = vunpack.c.l.b16 %v7632
  %v9843 = vunpack.c.l.b16 %v7633
  %v9844 = vunpack.c.l.b16 %v7634
  %v9845 = vunpack.c.l.b16 %v7635
  %v9846 = vunpack.c.l.b16 %v7636
  %v9847 = vunpack.c.l.b16 %v7637
  %v9848 = vunpack.c.l.b16 %v7638
  %v9849 = vunpack.c.l.b16 %v7639
  %v9850 = vunpack.c.l.b16 %v7640
  %v9851 = vunpack.c.l.b16 %v7641
  %v9852 = vunpack.c.l.b16 %v7642
  %v9853 = vunpack.c.l.b16 %v7643
  %v9854 = vunpack.c.l.b16 %v7644
  %v9855 = vunpack.c.l.b16 %v7645
  %v9856 = vunpack.c.l.b16 %v7646
  %v9857 = vunpack.c.l.b16 %v7647
  %v9858 = vunpack.c.l.b16 %v7648
  %v9859 = vunpack.c.l.b16 %v7649
  %v9860 = vunpack.c.l.b16 %v7650
  %v9861 = vunpack.c.l.b16 %v7651
  %v9862 = vunpack.c.l.b16 %v7652
  %v9863 = vunpack.c.l.b16 %v7653
  %v9864 = vunpack.c.l.b16 %v7654
  %v9865 = vunpack.c.l.b16 %v7655
  %v9866 = vunpack.c.l.b16 %v7656
  %v9867 = vunpack.c.l.b16 %v7657
  %v9868 = vunpack.c.l.b16 %v7658
  %v9869 = vunpack.c.l.b16 %v7659
  %v9870 = vunpack.c.l.b16 %v7660
  %v9871 = vunpack.c.l.b16 %v7661
  %v9872 = vunpack.c.l.b16 %v7662
  %v9873 = vunpack.c.l.b16 %v7663
  %v9874 = vunpack.c.l.b16 %v7664
  %v9875 = vunpack.c.l.b16 %v7665
  %v9876 = vunpack.c.l.b16 %v7666
  %v9877 = vunpack.c.l.b16 %v7667
  %v9878 = vunpack.c.l.b16 %v7668
  %v9879 = vunpack.c.l.b16 %v7669
  %v9880 = vunpack.c.l.b16 %v7670
  %v9881 = vunpack.c.l.b16 %v7671
  %v9882 = vunpack.c.l.b16 %v7672
  %v9883 = vunpack.c.l.b16 %v7673
  %v9884 = vunpack.c.l.b16 %v7674
  %v9885 = vunpack.c.l.b16 %v7675
  %v9886 = vunpack.c.l.b16 %v7676
  %v9887 = vunpack.c.l.b16 %v7677
  %v9888 = vunpack.c.l.b16 %v7678
  %v9889 = vunpack.c.l.b16 %v7679
  %v9890 = vunpack.c.l.b16 %v7680
  %v9891 = vunpack.c.l.b16 %v7681
  %v9892 = vunpack.c.l.b16 %v7682
  %v9893 = vunpack.c.l.b16 %v7683
  %v9894 = vunpack.c.l.b16 %v7684
  %v9895 = vunpack.c.l.b16 %v7685
  %v9896 = vunpack.c.l.b16 %v7686
  %v9897 = vunpack.c.l.b16 %v7687
  %v9898 = vunpack.c.l.b16 %v7688
  %v9899 = vunpack.c.l.b16 %v7689
  %v9900 = vunpack.c.l.b16 %v7690
  %v9901 = vunpack.c.l.b16 %v7691
  %v9902 = vunpack.c.l.b16 %v7692
  %v9903 = vunpack.c.l.b16 %v7693
  %v9904 = vunpack.c.l.b16 %v7694
  %v9905 = vunpack.c.l.b16 %v7695
  %v9906 = vunpack.c.l.b16 %v7696
  %v9907 = vunpack.c.l.b16 %v7697
  %v9908 = vunpack.c.l.b16 %v7698
  %v9909 = vunpack.c.l.b16 %v7699
  %v9910 = vunpack.c.l.b16 %v7700
  %v9911 = vunpack.c.l.b16 %v7701
  %v9912 = vunpack.c.l.b16 %v7702
  %v9913 = vunpack.c.l.b16 %v7703
  %v9914 = vunpack.c.l.b16 %v7704
  %v9915 = vunpack.c.l.b16 %v7705
  %v9916 = vunpack.c.l.b16 %v7706
  %v9917 = vunpack.c.l.b16 %v7707
  %v9918 = vunpack.c.l.b16 %v7708
  %v9919 = vunpack.c.l.b16 %v7709
  %v9920 = vunpack.c.l.b16 %v7710
  %v9921 = vunpack.c.l.b16 %v7711
  %v9922 = vunpack.c.l.b16 %v7712
  %v9923 = vunpack.c.l.b16 %v7713
  %v9924 = vunpack.c.l.b16 %v7714
  %v9925 = vunpack.c.l.b16 %v7715
  %v9926 = vunpack.c.l.b16 %v7716
  %v9927 = vunpack.c.l.b16 %v7717
  %v9928 = vunpack.c.l.b16 %v7718
  %v9929 = vunpack.c.l.b16 %v7719
  %v9930 = vunpack.c.l.b16 %v7720
  %v9931 = vunpack.c.l.b16 %v7721
  %v9932 = vunpack.c.l.b16 %v7722
  %v9933 = vunpack.c.l.b16 %v7723
  %v9934 = vunpack.c.l.b16 %v7724
  %v9935 = vunpack.c.l.b16 %v7725
  %v9936 = vunpack.c.l.b16 %v7726
  %v9937 = vunpack.c.l.b16 %v7727
  %v9938 = vunpack.c.l.b16 %v7728
  %v9939 = vunpack.c.l.b16 %v7729
  %v9940 = vunpack.c.l.b16 %v7730
  %v9941 = vunpack.c.l.b16 %v7731
  %v9942 = vunpack.c.l.b16 %v7732
  %v9943 = vunpack.c.l.b16 %v7733
  %v9944 = vunpack.c.l.b16 %v7734
  %v9945 = vunpack.c.l.b16 %v7735
  %v9946 = vunpack.c.l.b16 %v7736
  %v9947 = vunpack.c.l.b16 %v7737
  %v9948 = vunpack.c.l.b16 %v7738
  %v9949 = vunpack.c.l.b16 %v7739
  %v9950 = vunpack.c.l.b16 %v7740
  %v9951 = vunpack.c.l.b16 %v7741
  %v9952 = vpack.c.b16 %v9441, %v9440
  %v9953 = vpack.c.b16 %v9443, %v9442
  %v9954 = vpack.c.b16 %v9445, %v9444
  %v9955 = vpack.c.b16 %v9447, %v9446
  %v9956 = vpack.c.b16 %v9449, %v9448
  %v9957 = vpack.c.b16 %v9451, %v9450
  %v9958 = vpack.c.b16 %v9453, %v9452
  %v9959 = vpack.c.b16 %v9455, %v9454
  %v9960 = vpack.c.b16 %v9457, %v9456
  %v9961 = vpack.c.b16 %v9459, %v9458
  %v9962 = vpack.c.b16 %v9461, %v9460
  %v9963 = vpack.c.b16 %v9463, %v9462
  %v9964 = vpack.c.b16 %v9465, %v9464
  %v9965 = vpack.c.b16 %v9467, %v9466
  %v9966 = vpack.c.b16 %v9469, %v9468
  %v9967 = vpack.c.b16 %v9471, %v9470
  %v9968 = vpack.c.b16 %v9473, %v9472
  %v9969 = vpack.c.b16 %v9475, %v9474
  %v9970 = vpack.c.b16 %v9477, %v9476
  %v9971 = vpack.c.b16 %v9479, %v9478
  %v9972 = vpack.c.b16 %v9481, %v9480
  %v9973 = vpack.c.b16 %v9483, %v9482
  %v9974 = vpack.c.b16 %v9485, %v9484
  %v9975 = vpack.c.b16 %v9487, %v9486
  %v9976 = vpack.c.b16 %v9489, %v9488
  %v9977 = vpack.c.b16 %v9491, %v9490
  %v9978 = vpack.c.b16 %v9493, %v9492
  %v9979 = vpack.c.b16 %v9495, %v9494
  %v9980 = vpack.c.b16 %v9497, %v9496
  %v9981 = vpack.c.b16 %v9499, %v9498
  %v9982 = vpack.c.b16 %v9501, %v9500
  %v9983 = vpack.c.b16 %v9503, %v9502
  %v9984 = vpack.c.b16 %v9505, %v9504
  %v9985 = vpack.c.b16 %v9507, %v9506
  %v9986 = vpack.c.b16 %v9509, %v9508
  %v9987 = vpack.c.b16 %v9511, %v9510
  %v9988 = vpack.c.b16 %v9513, %v9512
  %v9989 = vpack.c.b16 %v9515, %v9514
  %v9990 = vpack.c.b16 %v9517, %v9516
  %v9991 = vpack.c.b16 %v9519, %v9518
  %v9992 = vpack.c.b16 %v9521, %v9520
  %v9993 = vpack.c.b16 %v9523, %v9522
  %v9994 = vpack.c.b16 %v9525, %v9524
  %v9995 = vpack.c.b16 %v9527, %v9526
  %v9996 = vpack.c.b16 %v9529, %v9528
  %v9997 = vpack.c.b16 %v9531, %v9530
  %v9998 = vpack.c.b16 %v9533, %v9532
  %v9999 = vpack.c.b16 %v9535, %v9534
  %v10000 = vpack.c.b16 %v9537, %v9536
  %v10001 = vpack.c.b16 %v9539, %v9538
  %v10002 = vpack.c.b16 %v9541, %v9540
  %v10003 = vpack.c.b16 %v9543, %v9542
  %v10004 = vpack.c.b16 %v9545, %v9544
  %v10005 = vpack.c.b16 %v9547, %v9546
  %v10006 = vpack.c.b16 %v9549, %v9548
  %v10007 = vpack.c.b16 %v9551, %v9550
  %v10008 = vpack.c.b16 %v9553, %v9552
  %v10009 = vpack.c.b16 %v9555, %v9554
  %v10010 = vpack.c.b16 %v9557, %v9556
  %v10011 = vpack.c.b16 %v9559, %v9558
  %v10012 = vpack.c.b16 %v9561, %v9560
  %v10013 = vpack.c.b16 %v9563, %v9562
  %v10014 = vpack.c.b16 %v9565, %v9564
  %v10015 = vpack.c.b16 %v9567, %v9566
  %v10016 = vpack.c.b16 %v9569, %v9568
  %v10017 = vpack.c.b16 %v9571, %v9570
  %v10018 = vpack.c.b16 %v9573, %v9572
  %v10019 = vpack.c.b16 %v9575, %v9574
  %v10020 = vpack.c.b16 %v9577, %v9576
  %v10021 = vpack.c.b16 %v9579, %v9578
  %v10022 = vpack.c.b16 %v9581, %v9580
  %v10023 = vpack.c.b16 %v9583, %v9582
  %v10024 = vpack.c.b16 %v9585, %v9584
  %v10025 = vpack.c.b16 %v9587, %v9586
  %v10026 = vpack.c.b16 %v9589, %v9588
  %v10027 = vpack.c.b16 %v9591, %v9590
  %v10028 = vpack.c.b16 %v9593, %v9592
  %v10029 = vpack.c.b16 %v9595, %v9594
  %v10030 = vpack.c.b16 %v9597, %v9596
  %v10031 = vpack.c.b16 %v9599, %v9598
  %v10032 = vpack.c.b16 %v9601, %v9600
  %v10033 = vpack.c.b16 %v9603, %v9602
  %v10034 = vpack.c.b16 %v9605, %v9604
  %v10035 = vpack.c.b16 %v9607, %v9606
  %v10036 = vpack.c.b16 %v9609, %v9608
  %v10037 = vpack.c.b16 %v9611, %v9610
  %v10038 = vpack.c.b16 %v9613, %v9612
  %v10039 = vpack.c.b16 %v9615, %v9614
  %v10040 = vpack.c.b16 %v9617, %v9616
  %v10041 = vpack.c.b16 %v9619, %v9618
  %v10042 = vpack.c.b16 %v9621, %v9620
  %v10043 = vpack.c.b16 %v9623, %v9622
  %v10044 = vpack.c.b16 %v9625, %v9624
  %v10045 = vpack.c.b16 %v9627, %v9626
  %v10046 = vpack.c.b16 %v9629, %v9628
  %v10047 = vpack.c.b16 %v9631, %v9630
  %v10048 = vpack.c.b16 %v9633, %v9632
  %v10049 = vpack.c.b16 %v9635, %v9634
  %v10050 = vpack.c.b16 %v9637, %v9636
  %v10051 = vpack.c.b16 %v9639, %v9638
  %v10052 = vpack.c.b16 %v9641, %v9640
  %v10053 = vpack.c.b16 %v9643, %v9642
  %v10054 = vpack.c.b16 %v9645, %v9644
  %v10055 = vpack.c.b16 %v9647, %v9646
  %v10056 = vpack.c.b16 %v9649, %v9648
  %v10057 = vpack.c.b16 %v9651, %v9650
  %v10058 = vpack.c.b16 %v9653, %v9652
  %v10059 = vpack.c.b16 %v9655, %v9654
  %v10060 = vpack.c.b16 %v9657, %v9656
  %v10061 = vpack.c.b16 %v9659, %v9658
  %v10062 = vpack.c.b16 %v9661, %v9660
  %v10063 = vpack.c.b16 %v9663, %v9662
  %v10064 = vpack.c.b16 %v9665, %v9664
  %v10065 = vpack.c.b16 %v9667, %v9666
  %v10066 = vpack.c.b16 %v9669, %v9668
  %v10067 = vpack.c.b16 %v9671, %v9670
  %v10068 = vpack.c.b16 %v9673, %v9672
  %v10069 = vpack.c.b16 %v9675, %v9674
  %v10070 = vpack.c.b16 %v9677, %v9676
  %v10071 = vpack.c.b16 %v9679, %v9678
  %v10072 = vpack.c.b16 %v9681, %v9680
  %v10073 = vpack.c.b16 %v9683, %v9682
  %v10074 = vpack.c.b16 %v9685, %v9684
  %v10075 = vpack.c.b16 %v9687, %v9686
  %v10076 = vpack.c.b16 %v9689, %v9688
  %v10077 = vpack.c.b16 %v9691, %v9690
  %v10078 = vpack.c.b16 %v9693, %v9692
  %v10079 = vpack.c.b16 %v9695, %v9694
  %v10080 = vpack.c.b16 %v9697, %v9696
  %v10081 = vpack.c.b16 %v9699, %v9698
  %v10082 = vpack.c.b16 %v9701, %v9700
  %v10083 = vpack.c.b16 %v9703, %v9702
  %v10084 = vpack.c.b16 %v9705, %v9704
  %v10085 = vpack.c.b16 %v9707, %v9706
  %v10086 = vpack.c.b16 %v9709, %v9708
  %v10087 = vpack.c.b16 %v9711, %v9710
  %v10088 = vpack.c.b16 %v9713, %v9712
  %v10089 = vpack.c.b16 %v9715, %v9714
  %v10090 = vpack.c.b16 %v9717, %v9716
  %v10091 = vpack.c.b16 %v9719, %v9718
  %v10092 = vpack.c.b16 %v9721, %v9720
  %v10093 = vpack.c.b16 %v9723, %v9722
  %v10094 = vpack.c.b16 %v9725, %v9724
  %v10095 = vpack.c.b16 %v9727, %v9726
  %v10096 = vpack.c.b16 %v9729, %v9728
  %v10097 = vpack.c.b16 %v9731, %v9730
  %v10098 = vpack.c.b16 %v9733, %v9732
  %v10099 = vpack.c.b16 %v9735, %v9734
  %v10100 = vpack.c.b16 %v9737, %v9736
  %v10101 = vpack.c.b16 %v9739, %v9738
  %v10102 = vpack.c.b16 %v9741, %v9740
  %v10103 = vpack.c.b16 %v9743, %v9742
  %v10104 = vpack.c.b16 %v9745, %v9744
  %v10105 = vpack.c.b16 %v9747, %v9746
  %v10106 = vpack.c.b16 %v9749, %v9748
  %v10107 = vpack.c.b16 %v9751, %v9750
  %v10108 = vpack.c.b16 %v9753, %v9752
  %v10109 = vpack.c.b16 %v9755, %v9754
  %v10110 = vpack.c.b16 %v9757, %v9756
  %v10111 = vpack.c.b16 %v9759, %v9758
  %v10112 = vpack.c.b16 %v9761, %v9760
  %v10113 = vpack.c.b16 %v9763, %v9762
  %v10114 = vpack.c.b16 %v9765, %v9764
  %v10115 = vpack.c.b16 %v9767, %v9766
  %v10116 = vpack.c.b16 %v9769, %v9768
  %v10117 = vpack.c.b16 %v9771, %v9770
  %v10118 = vpack.c.b16 %v9773, %v9772
  %v10119 = vpack.c.b16 %v9775, %v9774
  %v10120 = vpack.c.b16 %v9777, %v9776
  %v10121 = vpack.c.b16 %v9779, %v9778
  %v10122 = vpack.c.b16 %v9781, %v9780
  %v10123 = vpack.c.b16 %v9783, %v9782
  %v10124 = vpack.c.b16 %v9785, %v9784
  %v10125 = vpack.c.b16 %v9787, %v9786
  %v10126 = vpack.c.b16 %v9789, %v9788
  %v10127 = vpack.c.b16 %v9791, %v9790
  %v10128 = vpack.c.b16 %v9793, %v9792
  %v10129 = vpack.c.b16 %v9795, %v9794
  %v10130 = vpack.c.b16 %v9797, %v9796
  %v10131 = vpack.c.b16 %v9799, %v9798
  %v10132 = vpack.c.b16 %v9801, %v9800
  %v10133 = vpack.c.b16 %v9803, %v9802
  %v10134 = vpack.c.b16 %v9805, %v9804
  %v10135 = vpack.c.b16 %v9807, %v9806
  %v10136 = vpack.c.b16 %v9809, %v9808
  %v10137 = vpack.c.b16 %v9811, %v9810
  %v10138 = vpack.c.b16 %v9813, %v9812
  %v10139 = vpack.c.b16 %v9815, %v9814
  %v10140 = vpack.c.b16 %v9817, %v9816
  %v10141 = vpack.c.b16 %v9819, %v9818
  %v10142 = vpack.c.b16 %v9821, %v9820
  %v10143 = vpack.c.b16 %v9823, %v9822
  %v10144 = vpack.c.b16 %v9825, %v9824
  %v10145 = vpack.c.b16 %v9827, %v9826
  %v10146 = vpack.c.b16 %v9829, %v9828
  %v10147 = vpack.c.b16 %v9831, %v9830
  %v10148 = vpack.c.b16 %v9833, %v9832
  %v10149 = vpack.c.b16 %v9835, %v9834
  %v10150 = vpack.c.b16 %v9837, %v9836
  %v10151 = vpack.c.b16 %v9839, %v9838
  %v10152 = vpack.c.b16 %v9841, %v9840
  %v10153 = vpack.c.b16 %v9843, %v9842
  %v10154 = vpack.c.b16 %v9845, %v9844
  %v10155 = vpack.c.b16 %v9847, %v9846
  %v10156 = vpack.c.b16 %v9849, %v9848
  %v10157 = vpack.c.b16 %v9851, %v9850
  %v10158 = vpack.c.b16 %v9853, %v9852
  %v10159 = vpack.c.b16 %v9855, %v9854
  %v10160 = vpack.c.b16 %v9857, %v9856
  %v10161 = vpack.c.b16 %v9859, %v9858
  %v10162 = vpack.c.b16 %v9861, %v9860
  %v10163 = vpack.c.b16 %v9863, %v9862
  %v10164 = vpack.c.b16 %v9865, %v9864
  %v10165 = vpack.c.b16 %v9867, %v9866
  %v10166 = vpack.c.b16 %v9869, %v9868
  %v10167 = vpack.c.b16 %v9871, %v9870
  %v10168 = vpack.c.b16 %v9873, %v9872
  %v10169 = vpack.c.b16 %v9875, %v9874
  %v10170 = vpack.c.b16 %v9877, %v9876
  %v10171 = vpack.c.b16 %v9879, %v9878
  %v10172 = vpack.c.b16 %v9881, %v9880
  %v10173 = vpack.c.b16 %v9883, %v9882
  %v10174 = vpack.c.b16 %v9885, %v9884
  %v10175 = vpack.c.b16 %v9887, %v9886
  %v10176 = vpack.c.b16 %v9889, %v9888
  %v10177 = vpack.c.b16 %v9891, %v9890
  %v10178 = vpack.c.b16 %v9893, %v9892
  %v10179 = vpack.c.b16 %v9895, %v9894
  %v10180 = vpack.c.b16 %v9897, %v9896
  %v10181 = vpack.c.b16 %v9899, %v9898
  %v10182 = vpack.c.b16 %v9901, %v9900
  %v10183 = vpack.c.b16 %v9903, %v9902
  %v10184 = vpack.c.b16 %v9905, %v9904
  %v10185 = vpack.c.b16 %v9907, %v9906
  %v10186 = vpack.c.b16 %v9909, %v9908
  %v10187 = vpack.c.b16 %v9911, %v9910
  %v10188 = vpack.c.b16 %v9913, %v9912
  %v10189 = vpack.c.b16 %v9915, %v9914
  %v10190 = vpack.c.b16 %v9917, %v9916
  %v10191 = vpack.c.b16 %v9919, %v9918
  %v10192 = vpack.c.b16 %v9921, %v9920
  %v10193 = vpack.c.b16 %v9923, %v9922
  %v10194 = vpack.c.b16 %v9925, %v9924
  %v10195 = vpack.c.b16 %v9927, %v9926
  %v10196 = vpack.c.b16 %v9929, %v9928
  %v10197 = vpack.c.b16 %v9931, %v9930
  %v10198 = vpack.c.b16 %v9933, %v9932
  %v10199 = vpack.c.b16 %v9935, %v9934
  %v10200 = vpack.c.b16 %v9937, %v9936
  %v10201 = vpack.c.b16 %v9939, %v9938
  %v10202 = vpack.c.b16 %v9941, %v9940
  %v10203 = vpack.c.b16 %v9943, %v9942
  %v10204 = vpack.c.b16 %v9945, %v9944
  %v10205 = vpack.c.b16 %v9947, %v9946
  %v10206 = vpack.c.b16 %v9949, %v9948
  %v10207 = vpack.c.b16 %v9951, %v9950
  %10464 = vmatprep.subr.bf16.mxu0 0
  %10465 = vmatpush1.bf16.msra.mxu0 %v9952
  %10466 = vmatprep.subr.bf16.mxu0 0
  %10467 = vmatpush1.bf16.msra.mxu0 %v9953
  %10468 = vmatprep.subr.bf16.mxu0 0
  %10469 = vmatpush1.bf16.msra.mxu0 %v9954
  %10470 = vmatprep.subr.bf16.mxu0 0
  %10471 = vmatpush1.bf16.msra.mxu0 %v9955
  %10472 = vmatprep.subr.bf16.mxu0 0
  %10473 = vmatpush1.bf16.msra.mxu0 %v9956
  %10474 = vmatprep.subr.bf16.mxu0 0
  %10475 = vmatpush1.bf16.msra.mxu0 %v9957
  %10476 = vmatprep.subr.bf16.mxu0 0
  %10477 = vmatpush1.bf16.msra.mxu0 %v9958
  %10478 = vmatprep.subr.bf16.mxu0 0
  %10479 = vmatpush1.bf16.msra.mxu0 %v9959
  %10480 = vmatprep.subr.bf16.mxu0 0
  %10481 = vmatpush1.bf16.msra.mxu0 %v9960
  %10482 = vmatprep.subr.bf16.mxu0 0
  %10483 = vmatpush1.bf16.msra.mxu0 %v9961
  %10484 = vmatprep.subr.bf16.mxu0 0
  %10485 = vmatpush1.bf16.msra.mxu0 %v9962
  %10486 = vmatprep.subr.bf16.mxu0 0
  %10487 = vmatpush1.bf16.msra.mxu0 %v9963
  %10488 = vmatprep.subr.bf16.mxu0 0
  %10489 = vmatpush1.bf16.msra.mxu0 %v9964
  %10490 = vmatprep.subr.bf16.mxu0 0
  %10491 = vmatpush1.bf16.msra.mxu0 %v9965
  %10492 = vmatprep.subr.bf16.mxu0 0
  %10493 = vmatpush1.bf16.msra.mxu0 %v9966
  %10494 = vmatprep.subr.bf16.mxu0 0
  %10495 = vmatpush1.bf16.msra.mxu0 %v9967
  %10496 = vmatprep.mubr.bf16.mxu0 %v8865
  %10497 = vmatmul.mubr.bf16.gmra.mrb[0].mxu0 %v8864
  %v10498 = vpop.f32.mrb[0].mxu0
  %v10499 = vadd.f32 0.0, %v10498
  %v10500 = vpop.f32.mrb[0].mxu0
  %v10501 = vpop.f32.mrb[0].mxu0
  %v10502 = vadd.f32 0.0, %v10501
  %v10503 = vpop.f32.mrb[0].mxu0
  %10504 = vdwg.mxu0
  %10505 = vmatprep.subr.bf16.mxu0 0
  %10506 = vmatpush1.bf16.msra.mxu0 %v9968
  %10507 = vmatprep.subr.bf16.mxu0 0
  %10508 = vmatpush1.bf16.msra.mxu0 %v9969
  %10509 = vmatprep.subr.bf16.mxu0 0
  %10510 = vmatpush1.bf16.msra.mxu0 %v9970
  %10511 = vmatprep.subr.bf16.mxu0 0
  %10512 = vmatpush1.bf16.msra.mxu0 %v9971
  %10513 = vmatprep.subr.bf16.mxu0 0
  %10514 = vmatpush1.bf16.msra.mxu0 %v9972
  %10515 = vmatprep.subr.bf16.mxu0 0
  %10516 = vmatpush1.bf16.msra.mxu0 %v9973
  %10517 = vmatprep.subr.bf16.mxu0 0
  %10518 = vmatpush1.bf16.msra.mxu0 %v9974
  %10519 = vmatprep.subr.bf16.mxu0 0
  %10520 = vmatpush1.bf16.msra.mxu0 %v9975
  %10521 = vmatprep.subr.bf16.mxu0 0
  %10522 = vmatpush1.bf16.msra.mxu0 %v9976
  %10523 = vmatprep.subr.bf16.mxu0 0
  %10524 = vmatpush1.bf16.msra.mxu0 %v9977
  %10525 = vmatprep.subr.bf16.mxu0 0
  %10526 = vmatpush1.bf16.msra.mxu0 %v9978
  %10527 = vmatprep.subr.bf16.mxu0 0
  %10528 = vmatpush1.bf16.msra.mxu0 %v9979
  %10529 = vmatprep.subr.bf16.mxu0 0
  %10530 = vmatpush1.bf16.msra.mxu0 %v9980
  %10531 = vmatprep.subr.bf16.mxu0 0
  %10532 = vmatpush1.bf16.msra.mxu0 %v9981
  %10533 = vmatprep.subr.bf16.mxu0 0
  %10534 = vmatpush1.bf16.msra.mxu0 %v9982
  %10535 = vmatprep.subr.bf16.mxu0 0
  %10536 = vmatpush1.bf16.msra.mxu0 %v9983
  %10537 = vmatprep.mubr.bf16.mxu0 %v8867
  %10538 = vmatmul.mubr.bf16.gmra.mrb[0].mxu0 %v8866
  %v10539 = vpop.f32.mrb[0].mxu0
  %v10540 = vadd.f32 %v10499, %v10539
  %v10541 = vpop.f32.mrb[0].mxu0
  %v10542 = vpop.f32.mrb[0].mxu0
  %v10543 = vadd.f32 %v10502, %v10542
  %v10544 = vpop.f32.mrb[0].mxu0
  %10545 = vdwg.mxu0
  %10546 = vmatprep.subr.bf16.mxu0 0
  %10547 = vmatpush1.bf16.msra.mxu0 %v9984
  %10548 = vmatprep.subr.bf16.mxu0 0
  %10549 = vmatpush1.bf16.msra.mxu0 %v9985
  %10550 = vmatprep.subr.bf16.mxu0 0
  %10551 = vmatpush1.bf16.msra.mxu0 %v9986
  %10552 = vmatprep.subr.bf16.mxu0 0
  %10553 = vmatpush1.bf16.msra.mxu0 %v9987
  %10554 = vmatprep.subr.bf16.mxu0 0
  %10555 = vmatpush1.bf16.msra.mxu0 %v9988
  %10556 = vmatprep.subr.bf16.mxu0 0
  %10557 = vmatpush1.bf16.msra.mxu0 %v9989
  %10558 = vmatprep.subr.bf16.mxu0 0
  %10559 = vmatpush1.bf16.msra.mxu0 %v9990
  %10560 = vmatprep.subr.bf16.mxu0 0
  %10561 = vmatpush1.bf16.msra.mxu0 %v9991
  %10562 = vmatprep.subr.bf16.mxu0 0
  %10563 = vmatpush1.bf16.msra.mxu0 %v9992
  %10564 = vmatprep.subr.bf16.mxu0 0
  %10565 = vmatpush1.bf16.msra.mxu0 %v9993
  %10566 = vmatprep.subr.bf16.mxu0 0
  %10567 = vmatpush1.bf16.msra.mxu0 %v9994
  %10568 = vmatprep.subr.bf16.mxu0 0
  %10569 = vmatpush1.bf16.msra.mxu0 %v9995
  %10570 = vmatprep.subr.bf16.mxu0 0
  %10571 = vmatpush1.bf16.msra.mxu0 %v9996
  %10572 = vmatprep.subr.bf16.mxu0 0
  %10573 = vmatpush1.bf16.msra.mxu0 %v9997
  %10574 = vmatprep.subr.bf16.mxu0 0
  %10575 = vmatpush1.bf16.msra.mxu0 %v9998
  %10576 = vmatprep.subr.bf16.mxu0 0
  %10577 = vmatpush1.bf16.msra.mxu0 %v9999
  %10578 = vmatprep.mubr.bf16.mxu0 %v8869
  %10579 = vmatmul.mubr.bf16.gmra.mrb[0].mxu0 %v8868
  %v10580 = vpop.f32.mrb[0].mxu0
  %v10581 = vadd.f32 %v10540, %v10580
  %v10582 = vpop.f32.mrb[0].mxu0
  %v10583 = vpop.f32.mrb[0].mxu0
  %v10584 = vadd.f32 %v10543, %v10583
  %v10585 = vpop.f32.mrb[0].mxu0
  %10586 = vdwg.mxu0
  %10587 = vmatprep.subr.bf16.mxu0 0
  %10588 = vmatpush1.bf16.msra.mxu0 %v10000
  %10589 = vmatprep.subr.bf16.mxu0 0
  %10590 = vmatpush1.bf16.msra.mxu0 %v10001
  %10591 = vmatprep.subr.bf16.mxu0 0
  %10592 = vmatpush1.bf16.msra.mxu0 %v10002
  %10593 = vmatprep.subr.bf16.mxu0 0
  %10594 = vmatpush1.bf16.msra.mxu0 %v10003
  %10595 = vmatprep.subr.bf16.mxu0 0
  %10596 = vmatpush1.bf16.msra.mxu0 %v10004
  %10597 = vmatprep.subr.bf16.mxu0 0
  %10598 = vmatpush1.bf16.msra.mxu0 %v10005
  %10599 = vmatprep.subr.bf16.mxu0 0
  %10600 = vmatpush1.bf16.msra.mxu0 %v10006
  %10601 = vmatprep.subr.bf16.mxu0 0
  %10602 = vmatpush1.bf16.msra.mxu0 %v10007
  %10603 = vmatprep.subr.bf16.mxu0 0
  %10604 = vmatpush1.bf16.msra.mxu0 %v10008
  %10605 = vmatprep.subr.bf16.mxu0 0
  %10606 = vmatpush1.bf16.msra.mxu0 %v10009
  %10607 = vmatprep.subr.bf16.mxu0 0
  %10608 = vmatpush1.bf16.msra.mxu0 %v10010
  %10609 = vmatprep.subr.bf16.mxu0 0
  %10610 = vmatpush1.bf16.msra.mxu0 %v10011
  %10611 = vmatprep.subr.bf16.mxu0 0
  %10612 = vmatpush1.bf16.msra.mxu0 %v10012
  %10613 = vmatprep.subr.bf16.mxu0 0
  %10614 = vmatpush1.bf16.msra.mxu0 %v10013
  %10615 = vmatprep.subr.bf16.mxu0 0
  %10616 = vmatpush1.bf16.msra.mxu0 %v10014
  %10617 = vmatprep.subr.bf16.mxu0 0
  %10618 = vmatpush1.bf16.msra.mxu0 %v10015
  %10619 = vmatprep.mubr.bf16.mxu0 %v8871
  %10620 = vmatmul.mubr.bf16.gmra.mrb[0].mxu0 %v8870
  %v10621 = vpop.f32.mrb[0].mxu0
  %v10622 = vadd.f32 %v10581, %v10621
  %v10623 = vpop.f32.mrb[0].mxu0
  %v10624 = vpop.f32.mrb[0].mxu0
  %v10625 = vadd.f32 %v10584, %v10624
  %v10626 = vpop.f32.mrb[0].mxu0
  %10627 = vdwg.mxu0
  %10628 = vmatprep.subr.bf16.mxu0 0
  %10629 = vmatpush1.bf16.msra.mxu0 %v10016
  %10630 = vmatprep.subr.bf16.mxu0 0
  %10631 = vmatpush1.bf16.msra.mxu0 %v10017
  %10632 = vmatprep.subr.bf16.mxu0 0
  %10633 = vmatpush1.bf16.msra.mxu0 %v10018
  %10634 = vmatprep.subr.bf16.mxu0 0
  %10635 = vmatpush1.bf16.msra.mxu0 %v10019
  %10636 = vmatprep.subr.bf16.mxu0 0
  %10637 = vmatpush1.bf16.msra.mxu0 %v10020
  %10638 = vmatprep.subr.bf16.mxu0 0
  %10639 = vmatpush1.bf16.msra.mxu0 %v10021
  %10640 = vmatprep.subr.bf16.mxu0 0
  %10641 = vmatpush1.bf16.msra.mxu0 %v10022
  %10642 = vmatprep.subr.bf16.mxu0 0
  %10643 = vmatpush1.bf16.msra.mxu0 %v10023
  %10644 = vmatprep.subr.bf16.mxu0 0
  %10645 = vmatpush1.bf16.msra.mxu0 %v10024
  %10646 = vmatprep.subr.bf16.mxu0 0
  %10647 = vmatpush1.bf16.msra.mxu0 %v10025
  %10648 = vmatprep.subr.bf16.mxu0 0
  %10649 = vmatpush1.bf16.msra.mxu0 %v10026
  %10650 = vmatprep.subr.bf16.mxu0 0
  %10651 = vmatpush1.bf16.msra.mxu0 %v10027
  %10652 = vmatprep.subr.bf16.mxu0 0
  %10653 = vmatpush1.bf16.msra.mxu0 %v10028
  %10654 = vmatprep.subr.bf16.mxu0 0
  %10655 = vmatpush1.bf16.msra.mxu0 %v10029
  %10656 = vmatprep.subr.bf16.mxu0 0
  %10657 = vmatpush1.bf16.msra.mxu0 %v10030
  %10658 = vmatprep.subr.bf16.mxu0 0
  %10659 = vmatpush1.bf16.msra.mxu0 %v10031
  %10660 = vmatprep.mubr.bf16.mxu0 %v8873
  %10661 = vmatmul.mubr.bf16.gmra.mrb[0].mxu0 %v8872
  %v10662 = vpop.f32.mrb[0].mxu0
  %v10663 = vadd.f32 %v10622, %v10662
  %v10664 = vpop.f32.mrb[0].mxu0
  %v10665 = vpop.f32.mrb[0].mxu0
  %v10666 = vadd.f32 %v10625, %v10665
  %v10667 = vpop.f32.mrb[0].mxu0
  %10668 = vdwg.mxu0
  %10669 = vmatprep.subr.bf16.mxu0 0
  %10670 = vmatpush1.bf16.msra.mxu0 %v10032
  %10671 = vmatprep.subr.bf16.mxu0 0
  %10672 = vmatpush1.bf16.msra.mxu0 %v10033
  %10673 = vmatprep.subr.bf16.mxu0 0
  %10674 = vmatpush1.bf16.msra.mxu0 %v10034
  %10675 = vmatprep.subr.bf16.mxu0 0
  %10676 = vmatpush1.bf16.msra.mxu0 %v10035
  %10677 = vmatprep.subr.bf16.mxu0 0
  %10678 = vmatpush1.bf16.msra.mxu0 %v10036
  %10679 = vmatprep.subr.bf16.mxu0 0
  %10680 = vmatpush1.bf16.msra.mxu0 %v10037
  %10681 = vmatprep.subr.bf16.mxu0 0
  %10682 = vmatpush1.bf16.msra.mxu0 %v10038
  %10683 = vmatprep.subr.bf16.mxu0 0
  %10684 = vmatpush1.bf16.msra.mxu0 %v10039
  %10685 = vmatprep.subr.bf16.mxu0 0
  %10686 = vmatpush1.bf16.msra.mxu0 %v10040
  %10687 = vmatprep.subr.bf16.mxu0 0
  %10688 = vmatpush1.bf16.msra.mxu0 %v10041
  %10689 = vmatprep.subr.bf16.mxu0 0
  %10690 = vmatpush1.bf16.msra.mxu0 %v10042
  %10691 = vmatprep.subr.bf16.mxu0 0
  %10692 = vmatpush1.bf16.msra.mxu0 %v10043
  %10693 = vmatprep.subr.bf16.mxu0 0
  %10694 = vmatpush1.bf16.msra.mxu0 %v10044
  %10695 = vmatprep.subr.bf16.mxu0 0
  %10696 = vmatpush1.bf16.msra.mxu0 %v10045
  %10697 = vmatprep.subr.bf16.mxu0 0
  %10698 = vmatpush1.bf16.msra.mxu0 %v10046
  %10699 = vmatprep.subr.bf16.mxu0 0
  %10700 = vmatpush1.bf16.msra.mxu0 %v10047
  %10701 = vmatprep.mubr.bf16.mxu0 %v8875
  %10702 = vmatmul.mubr.bf16.gmra.mrb[0].mxu0 %v8874
  %v10703 = vpop.f32.mrb[0].mxu0
  %v10704 = vadd.f32 %v10663, %v10703
  %v10705 = vpop.f32.mrb[0].mxu0
  %v10706 = vpop.f32.mrb[0].mxu0
  %v10707 = vadd.f32 %v10666, %v10706
  %v10708 = vpop.f32.mrb[0].mxu0
  %10709 = vdwg.mxu0
  %10710 = vmatprep.subr.bf16.mxu0 0
  %10711 = vmatpush1.bf16.msra.mxu0 %v10048
  %10712 = vmatprep.subr.bf16.mxu0 0
  %10713 = vmatpush1.bf16.msra.mxu0 %v10049
  %10714 = vmatprep.subr.bf16.mxu0 0
  %10715 = vmatpush1.bf16.msra.mxu0 %v10050
  %10716 = vmatprep.subr.bf16.mxu0 0
  %10717 = vmatpush1.bf16.msra.mxu0 %v10051
  %10718 = vmatprep.subr.bf16.mxu0 0
  %10719 = vmatpush1.bf16.msra.mxu0 %v10052
  %10720 = vmatprep.subr.bf16.mxu0 0
  %10721 = vmatpush1.bf16.msra.mxu0 %v10053
  %10722 = vmatprep.subr.bf16.mxu0 0
  %10723 = vmatpush1.bf16.msra.mxu0 %v10054
  %10724 = vmatprep.subr.bf16.mxu0 0
  %10725 = vmatpush1.bf16.msra.mxu0 %v10055
  %10726 = vmatprep.subr.bf16.mxu0 0
  %10727 = vmatpush1.bf16.msra.mxu0 %v10056
  %10728 = vmatprep.subr.bf16.mxu0 0
  %10729 = vmatpush1.bf16.msra.mxu0 %v10057
  %10730 = vmatprep.subr.bf16.mxu0 0
  %10731 = vmatpush1.bf16.msra.mxu0 %v10058
  %10732 = vmatprep.subr.bf16.mxu0 0
  %10733 = vmatpush1.bf16.msra.mxu0 %v10059
  %10734 = vmatprep.subr.bf16.mxu0 0
  %10735 = vmatpush1.bf16.msra.mxu0 %v10060
  %10736 = vmatprep.subr.bf16.mxu0 0
  %10737 = vmatpush1.bf16.msra.mxu0 %v10061
  %10738 = vmatprep.subr.bf16.mxu0 0
  %10739 = vmatpush1.bf16.msra.mxu0 %v10062
  %10740 = vmatprep.subr.bf16.mxu0 0
  %10741 = vmatpush1.bf16.msra.mxu0 %v10063
  %10742 = vmatprep.mubr.bf16.mxu0 %v8877
  %10743 = vmatmul.mubr.bf16.gmra.mrb[0].mxu0 %v8876
  %v10744 = vpop.f32.mrb[0].mxu0
  %v10745 = vadd.f32 %v10704, %v10744
  %v10746 = vpop.f32.mrb[0].mxu0
  %v10747 = vpop.f32.mrb[0].mxu0
  %v10748 = vadd.f32 %v10707, %v10747
  %v10749 = vpop.f32.mrb[0].mxu0
  %10750 = vdwg.mxu0
  %10751 = vmatprep.subr.bf16.mxu0 0
  %10752 = vmatpush1.bf16.msra.mxu0 %v10064
  %10753 = vmatprep.subr.bf16.mxu0 0
  %10754 = vmatpush1.bf16.msra.mxu0 %v10065
  %10755 = vmatprep.subr.bf16.mxu0 0
  %10756 = vmatpush1.bf16.msra.mxu0 %v10066
  %10757 = vmatprep.subr.bf16.mxu0 0
  %10758 = vmatpush1.bf16.msra.mxu0 %v10067
  %10759 = vmatprep.subr.bf16.mxu0 0
  %10760 = vmatpush1.bf16.msra.mxu0 %v10068
  %10761 = vmatprep.subr.bf16.mxu0 0
  %10762 = vmatpush1.bf16.msra.mxu0 %v10069
  %10763 = vmatprep.subr.bf16.mxu0 0
  %10764 = vmatpush1.bf16.msra.mxu0 %v10070
  %10765 = vmatprep.subr.bf16.mxu0 0
  %10766 = vmatpush1.bf16.msra.mxu0 %v10071
  %10767 = vmatprep.subr.bf16.mxu0 0
  %10768 = vmatpush1.bf16.msra.mxu0 %v10072
  %10769 = vmatprep.subr.bf16.mxu0 0
  %10770 = vmatpush1.bf16.msra.mxu0 %v10073
  %10771 = vmatprep.subr.bf16.mxu0 0
  %10772 = vmatpush1.bf16.msra.mxu0 %v10074
  %10773 = vmatprep.subr.bf16.mxu0 0
  %10774 = vmatpush1.bf16.msra.mxu0 %v10075
  %10775 = vmatprep.subr.bf16.mxu0 0
  %10776 = vmatpush1.bf16.msra.mxu0 %v10076
  %10777 = vmatprep.subr.bf16.mxu0 0
  %10778 = vmatpush1.bf16.msra.mxu0 %v10077
  %10779 = vmatprep.subr.bf16.mxu0 0
  %10780 = vmatpush1.bf16.msra.mxu0 %v10078
  %10781 = vmatprep.subr.bf16.mxu0 0
  %10782 = vmatpush1.bf16.msra.mxu0 %v10079
  %10783 = vmatprep.mubr.bf16.mxu0 %v8879
  %10784 = vmatmul.mubr.bf16.gmra.mrb[0].mxu0 %v8878
  %v10785 = vpop.f32.mrb[0].mxu0
  %v10786 = vadd.f32 %v10745, %v10785
  %v10787 = vpop.f32.mrb[0].mxu0
  %v10788 = vpop.f32.mrb[0].mxu0
  %v10789 = vadd.f32 %v10748, %v10788
  %v10790 = vpop.f32.mrb[0].mxu0
  %10791 = vdwg.mxu0
  %10792 = vmatprep.subr.bf16.mxu0 0
  %10793 = vmatpush1.bf16.msra.mxu0 %v10080
  %10794 = vmatprep.subr.bf16.mxu0 0
  %10795 = vmatpush1.bf16.msra.mxu0 %v10081
  %10796 = vmatprep.subr.bf16.mxu0 0
  %10797 = vmatpush1.bf16.msra.mxu0 %v10082
  %10798 = vmatprep.subr.bf16.mxu0 0
  %10799 = vmatpush1.bf16.msra.mxu0 %v10083
  %10800 = vmatprep.subr.bf16.mxu0 0
  %10801 = vmatpush1.bf16.msra.mxu0 %v10084
  %10802 = vmatprep.subr.bf16.mxu0 0
  %10803 = vmatpush1.bf16.msra.mxu0 %v10085
  %10804 = vmatprep.subr.bf16.mxu0 0
  %10805 = vmatpush1.bf16.msra.mxu0 %v10086
  %10806 = vmatprep.subr.bf16.mxu0 0
  %10807 = vmatpush1.bf16.msra.mxu0 %v10087
  %10808 = vmatprep.subr.bf16.mxu0 0
  %10809 = vmatpush1.bf16.msra.mxu0 %v10088
  %10810 = vmatprep.subr.bf16.mxu0 0
  %10811 = vmatpush1.bf16.msra.mxu0 %v10089
  %10812 = vmatprep.subr.bf16.mxu0 0
  %10813 = vmatpush1.bf16.msra.mxu0 %v10090
  %10814 = vmatprep.subr.bf16.mxu0 0
  %10815 = vmatpush1.bf16.msra.mxu0 %v10091
  %10816 = vmatprep.subr.bf16.mxu0 0
  %10817 = vmatpush1.bf16.msra.mxu0 %v10092
  %10818 = vmatprep.subr.bf16.mxu0 0
  %10819 = vmatpush1.bf16.msra.mxu0 %v10093
  %10820 = vmatprep.subr.bf16.mxu0 0
  %10821 = vmatpush1.bf16.msra.mxu0 %v10094
  %10822 = vmatprep.subr.bf16.mxu0 0
  %10823 = vmatpush1.bf16.msra.mxu0 %v10095
  %10824 = vmatprep.mubr.bf16.mxu0 %v8881
  %10825 = vmatmul.mubr.bf16.gmra.mrb[0].mxu0 %v8880
  %v10826 = vpop.f32.mrb[0].mxu0
  %v10827 = vadd.f32 %v10786, %v10826
  %v10828 = vpop.f32.mrb[0].mxu0
  %v10829 = vpop.f32.mrb[0].mxu0
  %v10830 = vadd.f32 %v10789, %v10829
  %v10831 = vpop.f32.mrb[0].mxu0
  %10832 = vdwg.mxu0
  %10833 = vmatprep.subr.bf16.mxu0 0
  %10834 = vmatpush1.bf16.msra.mxu0 %v10096
  %10835 = vmatprep.subr.bf16.mxu0 0
  %10836 = vmatpush1.bf16.msra.mxu0 %v10097
  %10837 = vmatprep.subr.bf16.mxu0 0
  %10838 = vmatpush1.bf16.msra.mxu0 %v10098
  %10839 = vmatprep.subr.bf16.mxu0 0
  %10840 = vmatpush1.bf16.msra.mxu0 %v10099
  %10841 = vmatprep.subr.bf16.mxu0 0
  %10842 = vmatpush1.bf16.msra.mxu0 %v10100
  %10843 = vmatprep.subr.bf16.mxu0 0
  %10844 = vmatpush1.bf16.msra.mxu0 %v10101
  %10845 = vmatprep.subr.bf16.mxu0 0
  %10846 = vmatpush1.bf16.msra.mxu0 %v10102
  %10847 = vmatprep.subr.bf16.mxu0 0
  %10848 = vmatpush1.bf16.msra.mxu0 %v10103
  %10849 = vmatprep.subr.bf16.mxu0 0
  %10850 = vmatpush1.bf16.msra.mxu0 %v10104
  %10851 = vmatprep.subr.bf16.mxu0 0
  %10852 = vmatpush1.bf16.msra.mxu0 %v10105
  %10853 = vmatprep.subr.bf16.mxu0 0
  %10854 = vmatpush1.bf16.msra.mxu0 %v10106
  %10855 = vmatprep.subr.bf16.mxu0 0
  %10856 = vmatpush1.bf16.msra.mxu0 %v10107
  %10857 = vmatprep.subr.bf16.mxu0 0
  %10858 = vmatpush1.bf16.msra.mxu0 %v10108
  %10859 = vmatprep.subr.bf16.mxu0 0
  %10860 = vmatpush1.bf16.msra.mxu0 %v10109
  %10861 = vmatprep.subr.bf16.mxu0 0
  %10862 = vmatpush1.bf16.msra.mxu0 %v10110
  %10863 = vmatprep.subr.bf16.mxu0 0
  %10864 = vmatpush1.bf16.msra.mxu0 %v10111
  %10865 = vmatprep.mubr.bf16.mxu0 %v8883
  %10866 = vmatmul.mubr.bf16.gmra.mrb[0].mxu0 %v8882
  %v10867 = vpop.f32.mrb[0].mxu0
  %v10868 = vadd.f32 %v10827, %v10867
  %v10869 = vpop.f32.mrb[0].mxu0
  %v10870 = vpop.f32.mrb[0].mxu0
  %v10871 = vadd.f32 %v10830, %v10870
  %v10872 = vpop.f32.mrb[0].mxu0
  %10873 = vdwg.mxu0
  %10874 = vmatprep.subr.bf16.mxu0 0
  %10875 = vmatpush1.bf16.msra.mxu0 %v10112
  %10876 = vmatprep.subr.bf16.mxu0 0
  %10877 = vmatpush1.bf16.msra.mxu0 %v10113
  %10878 = vmatprep.subr.bf16.mxu0 0
  %10879 = vmatpush1.bf16.msra.mxu0 %v10114
  %10880 = vmatprep.subr.bf16.mxu0 0
  %10881 = vmatpush1.bf16.msra.mxu0 %v10115
  %10882 = vmatprep.subr.bf16.mxu0 0
  %10883 = vmatpush1.bf16.msra.mxu0 %v10116
  %10884 = vmatprep.subr.bf16.mxu0 0
  %10885 = vmatpush1.bf16.msra.mxu0 %v10117
  %10886 = vmatprep.subr.bf16.mxu0 0
  %10887 = vmatpush1.bf16.msra.mxu0 %v10118
  %10888 = vmatprep.subr.bf16.mxu0 0
  %10889 = vmatpush1.bf16.msra.mxu0 %v10119
  %10890 = vmatprep.subr.bf16.mxu0 0
  %10891 = vmatpush1.bf16.msra.mxu0 %v10120
  %10892 = vmatprep.subr.bf16.mxu0 0
  %10893 = vmatpush1.bf16.msra.mxu0 %v10121
  %10894 = vmatprep.subr.bf16.mxu0 0
  %10895 = vmatpush1.bf16.msra.mxu0 %v10122
  %10896 = vmatprep.subr.bf16.mxu0 0
  %10897 = vmatpush1.bf16.msra.mxu0 %v10123
  %10898 = vmatprep.subr.bf16.mxu0 0
  %10899 = vmatpush1.bf16.msra.mxu0 %v10124
  %10900 = vmatprep.subr.bf16.mxu0 0
  %10901 = vmatpush1.bf16.msra.mxu0 %v10125
  %10902 = vmatprep.subr.bf16.mxu0 0
  %10903 = vmatpush1.bf16.msra.mxu0 %v10126
  %10904 = vmatprep.subr.bf16.mxu0 0
  %10905 = vmatpush1.bf16.msra.mxu0 %v10127
  %10906 = vmatprep.mubr.bf16.mxu0 %v8885
  %10907 = vmatmul.mubr.bf16.gmra.mrb[0].mxu0 %v8884
  %v10908 = vpop.f32.mrb[0].mxu0
  %v10909 = vadd.f32 %v10868, %v10908
  %v10910 = vpop.f32.mrb[0].mxu0
  %v10911 = vpop.f32.mrb[0].mxu0
  %v10912 = vadd.f32 %v10871, %v10911
  %v10913 = vpop.f32.mrb[0].mxu0
  %10914 = vdwg.mxu0
  %10915 = vmatprep.subr.bf16.mxu0 0
  %10916 = vmatpush1.bf16.msra.mxu0 %v10128
  %10917 = vmatprep.subr.bf16.mxu0 0
  %10918 = vmatpush1.bf16.msra.mxu0 %v10129
  %10919 = vmatprep.subr.bf16.mxu0 0
  %10920 = vmatpush1.bf16.msra.mxu0 %v10130
  %10921 = vmatprep.subr.bf16.mxu0 0
  %10922 = vmatpush1.bf16.msra.mxu0 %v10131
  %10923 = vmatprep.subr.bf16.mxu0 0
  %10924 = vmatpush1.bf16.msra.mxu0 %v10132
  %10925 = vmatprep.subr.bf16.mxu0 0
  %10926 = vmatpush1.bf16.msra.mxu0 %v10133
  %10927 = vmatprep.subr.bf16.mxu0 0
  %10928 = vmatpush1.bf16.msra.mxu0 %v10134
  %10929 = vmatprep.subr.bf16.mxu0 0
  %10930 = vmatpush1.bf16.msra.mxu0 %v10135
  %10931 = vmatprep.subr.bf16.mxu0 0
  %10932 = vmatpush1.bf16.msra.mxu0 %v10136
  %10933 = vmatprep.subr.bf16.mxu0 0
  %10934 = vmatpush1.bf16.msra.mxu0 %v10137
  %10935 = vmatprep.subr.bf16.mxu0 0
  %10936 = vmatpush1.bf16.msra.mxu0 %v10138
  %10937 = vmatprep.subr.bf16.mxu0 0
  %10938 = vmatpush1.bf16.msra.mxu0 %v10139
  %10939 = vmatprep.subr.bf16.mxu0 0
  %10940 = vmatpush1.bf16.msra.mxu0 %v10140
  %10941 = vmatprep.subr.bf16.mxu0 0
  %10942 = vmatpush1.bf16.msra.mxu0 %v10141
  %10943 = vmatprep.subr.bf16.mxu0 0
  %10944 = vmatpush1.bf16.msra.mxu0 %v10142
  %10945 = vmatprep.subr.bf16.mxu0 0
  %10946 = vmatpush1.bf16.msra.mxu0 %v10143
  %10947 = vmatprep.mubr.bf16.mxu0 %v8887
  %10948 = vmatmul.mubr.bf16.gmra.mrb[0].mxu0 %v8886
  %v10949 = vpop.f32.mrb[0].mxu0
  %v10950 = vadd.f32 %v10909, %v10949
  %v10951 = vpop.f32.mrb[0].mxu0
  %v10952 = vpop.f32.mrb[0].mxu0
  %v10953 = vadd.f32 %v10912, %v10952
  %v10954 = vpop.f32.mrb[0].mxu0
  %10955 = vdwg.mxu0
  %10956 = vmatprep.subr.bf16.mxu0 0
  %10957 = vmatpush1.bf16.msra.mxu0 %v10144
  %10958 = vmatprep.subr.bf16.mxu0 0
  %10959 = vmatpush1.bf16.msra.mxu0 %v10145
  %10960 = vmatprep.subr.bf16.mxu0 0
  %10961 = vmatpush1.bf16.msra.mxu0 %v10146
  %10962 = vmatprep.subr.bf16.mxu0 0
  %10963 = vmatpush1.bf16.msra.mxu0 %v10147
  %10964 = vmatprep.subr.bf16.mxu0 0
  %10965 = vmatpush1.bf16.msra.mxu0 %v10148
  %10966 = vmatprep.subr.bf16.mxu0 0
  %10967 = vmatpush1.bf16.msra.mxu0 %v10149
  %10968 = vmatprep.subr.bf16.mxu0 0
  %10969 = vmatpush1.bf16.msra.mxu0 %v10150
  %10970 = vmatprep.subr.bf16.mxu0 0
  %10971 = vmatpush1.bf16.msra.mxu0 %v10151
  %10972 = vmatprep.subr.bf16.mxu0 0
  %10973 = vmatpush1.bf16.msra.mxu0 %v10152
  %10974 = vmatprep.subr.bf16.mxu0 0
  %10975 = vmatpush1.bf16.msra.mxu0 %v10153
  %10976 = vmatprep.subr.bf16.mxu0 0
  %10977 = vmatpush1.bf16.msra.mxu0 %v10154
  %10978 = vmatprep.subr.bf16.mxu0 0
  %10979 = vmatpush1.bf16.msra.mxu0 %v10155
  %10980 = vmatprep.subr.bf16.mxu0 0
  %10981 = vmatpush1.bf16.msra.mxu0 %v10156
  %10982 = vmatprep.subr.bf16.mxu0 0
  %10983 = vmatpush1.bf16.msra.mxu0 %v10157
  %10984 = vmatprep.subr.bf16.mxu0 0
  %10985 = vmatpush1.bf16.msra.mxu0 %v10158
  %10986 = vmatprep.subr.bf16.mxu0 0
  %10987 = vmatpush1.bf16.msra.mxu0 %v10159
  %10988 = vmatprep.mubr.bf16.mxu0 %v8889
  %10989 = vmatmul.mubr.bf16.gmra.mrb[0].mxu0 %v8888
  %v10990 = vpop.f32.mrb[0].mxu0
  %v10991 = vadd.f32 %v10950, %v10990
  %v10992 = vpop.f32.mrb[0].mxu0
  %v10993 = vpop.f32.mrb[0].mxu0
  %v10994 = vadd.f32 %v10953, %v10993
  %v10995 = vpop.f32.mrb[0].mxu0
  %10996 = vdwg.mxu0
  %10997 = vmatprep.subr.bf16.mxu0 0
  %10998 = vmatpush1.bf16.msra.mxu0 %v10160
  %10999 = vmatprep.subr.bf16.mxu0 0
  %11000 = vmatpush1.bf16.msra.mxu0 %v10161
  %11001 = vmatprep.subr.bf16.mxu0 0
  %11002 = vmatpush1.bf16.msra.mxu0 %v10162
  %11003 = vmatprep.subr.bf16.mxu0 0
  %11004 = vmatpush1.bf16.msra.mxu0 %v10163
  %11005 = vmatprep.subr.bf16.mxu0 0
  %11006 = vmatpush1.bf16.msra.mxu0 %v10164
  %11007 = vmatprep.subr.bf16.mxu0 0
  %11008 = vmatpush1.bf16.msra.mxu0 %v10165
  %11009 = vmatprep.subr.bf16.mxu0 0
  %11010 = vmatpush1.bf16.msra.mxu0 %v10166
  %11011 = vmatprep.subr.bf16.mxu0 0
  %11012 = vmatpush1.bf16.msra.mxu0 %v10167
  %11013 = vmatprep.subr.bf16.mxu0 0
  %11014 = vmatpush1.bf16.msra.mxu0 %v10168
  %11015 = vmatprep.subr.bf16.mxu0 0
  %11016 = vmatpush1.bf16.msra.mxu0 %v10169
  %11017 = vmatprep.subr.bf16.mxu0 0
  %11018 = vmatpush1.bf16.msra.mxu0 %v10170
  %11019 = vmatprep.subr.bf16.mxu0 0
  %11020 = vmatpush1.bf16.msra.mxu0 %v10171
  %11021 = vmatprep.subr.bf16.mxu0 0
  %11022 = vmatpush1.bf16.msra.mxu0 %v10172
  %11023 = vmatprep.subr.bf16.mxu0 0
  %11024 = vmatpush1.bf16.msra.mxu0 %v10173
  %11025 = vmatprep.subr.bf16.mxu0 0
  %11026 = vmatpush1.bf16.msra.mxu0 %v10174
  %11027 = vmatprep.subr.bf16.mxu0 0
  %11028 = vmatpush1.bf16.msra.mxu0 %v10175
  %11029 = vmatprep.mubr.bf16.mxu0 %v8891
  %11030 = vmatmul.mubr.bf16.gmra.mrb[0].mxu0 %v8890
  %v11031 = vpop.f32.mrb[0].mxu0
  %v11032 = vadd.f32 %v10991, %v11031
  %v11033 = vpop.f32.mrb[0].mxu0
  %v11034 = vpop.f32.mrb[0].mxu0
  %v11035 = vadd.f32 %v10994, %v11034
  %v11036 = vpop.f32.mrb[0].mxu0
  %11037 = vdwg.mxu0
  %11038 = vmatprep.subr.bf16.mxu0 0
  %11039 = vmatpush1.bf16.msra.mxu0 %v10176
  %11040 = vmatprep.subr.bf16.mxu0 0
  %11041 = vmatpush1.bf16.msra.mxu0 %v10177
  %11042 = vmatprep.subr.bf16.mxu0 0
  %11043 = vmatpush1.bf16.msra.mxu0 %v10178
  %11044 = vmatprep.subr.bf16.mxu0 0
  %11045 = vmatpush1.bf16.msra.mxu0 %v10179
  %11046 = vmatprep.subr.bf16.mxu0 0
  %11047 = vmatpush1.bf16.msra.mxu0 %v10180
  %11048 = vmatprep.subr.bf16.mxu0 0
  %11049 = vmatpush1.bf16.msra.mxu0 %v10181
  %11050 = vmatprep.subr.bf16.mxu0 0
  %11051 = vmatpush1.bf16.msra.mxu0 %v10182
  %11052 = vmatprep.subr.bf16.mxu0 0
  %11053 = vmatpush1.bf16.msra.mxu0 %v10183
  %11054 = vmatprep.subr.bf16.mxu0 0
  %11055 = vmatpush1.bf16.msra.mxu0 %v10184
  %11056 = vmatprep.subr.bf16.mxu0 0
  %11057 = vmatpush1.bf16.msra.mxu0 %v10185
  %11058 = vmatprep.subr.bf16.mxu0 0
  %11059 = vmatpush1.bf16.msra.mxu0 %v10186
  %11060 = vmatprep.subr.bf16.mxu0 0
  %11061 = vmatpush1.bf16.msra.mxu0 %v10187
  %11062 = vmatprep.subr.bf16.mxu0 0
  %11063 = vmatpush1.bf16.msra.mxu0 %v10188
  %11064 = vmatprep.subr.bf16.mxu0 0
  %11065 = vmatpush1.bf16.msra.mxu0 %v10189
  %11066 = vmatprep.subr.bf16.mxu0 0
  %11067 = vmatpush1.bf16.msra.mxu0 %v10190
  %11068 = vmatprep.subr.bf16.mxu0 0
  %11069 = vmatpush1.bf16.msra.mxu0 %v10191
  %11070 = vmatprep.mubr.bf16.mxu0 %v8893
  %11071 = vmatmul.mubr.bf16.gmra.mrb[0].mxu0 %v8892
  %v11072 = vpop.f32.mrb[0].mxu0
  %v11073 = vadd.f32 %v11032, %v11072
  %v11074 = vpop.f32.mrb[0].mxu0
  %v11075 = vpop.f32.mrb[0].mxu0
  %v11076 = vadd.f32 %v11035, %v11075
  %v11077 = vpop.f32.mrb[0].mxu0
  %11078 = vdwg.mxu0
  %11079 = vmatprep.subr.bf16.mxu0 0
  %11080 = vmatpush1.bf16.msra.mxu0 %v10192
  %11081 = vmatprep.subr.bf16.mxu0 0
  %11082 = vmatpush1.bf16.msra.mxu0 %v10193
  %11083 = vmatprep.subr.bf16.mxu0 0
  %11084 = vmatpush1.bf16.msra.mxu0 %v10194
  %11085 = vmatprep.subr.bf16.mxu0 0
  %11086 = vmatpush1.bf16.msra.mxu0 %v10195
  %11087 = vmatprep.subr.bf16.mxu0 0
  %11088 = vmatpush1.bf16.msra.mxu0 %v10196
  %11089 = vmatprep.subr.bf16.mxu0 0
  %11090 = vmatpush1.bf16.msra.mxu0 %v10197
  %11091 = vmatprep.subr.bf16.mxu0 0
  %11092 = vmatpush1.bf16.msra.mxu0 %v10198
  %11093 = vmatprep.subr.bf16.mxu0 0
  %11094 = vmatpush1.bf16.msra.mxu0 %v10199
  %11095 = vmatprep.subr.bf16.mxu0 0
  %11096 = vmatpush1.bf16.msra.mxu0 %v10200
  %11097 = vmatprep.subr.bf16.mxu0 0
  %11098 = vmatpush1.bf16.msra.mxu0 %v10201
  %11099 = vmatprep.subr.bf16.mxu0 0
  %11100 = vmatpush1.bf16.msra.mxu0 %v10202
  %11101 = vmatprep.subr.bf16.mxu0 0
  %11102 = vmatpush1.bf16.msra.mxu0 %v10203
  %11103 = vmatprep.subr.bf16.mxu0 0
  %11104 = vmatpush1.bf16.msra.mxu0 %v10204
  %11105 = vmatprep.subr.bf16.mxu0 0
  %11106 = vmatpush1.bf16.msra.mxu0 %v10205
  %11107 = vmatprep.subr.bf16.mxu0 0
  %11108 = vmatpush1.bf16.msra.mxu0 %v10206
  %11109 = vmatprep.subr.bf16.mxu0 0
  %11110 = vmatpush1.bf16.msra.mxu0 %v10207
  %11111 = vmatprep.mubr.bf16.mxu0 %v8895
  %11112 = vmatmul.mubr.bf16.gmra.mrb[0].mxu0 %v8894
  %v11113 = vpop.f32.mrb[0].mxu0
  %v11114 = vadd.f32 %v11073, %v11113
  %v11115 = vpop.f32.mrb[0].mxu0
  %v11116 = vpop.f32.mrb[0].mxu0
  %v11117 = vadd.f32 %v11076, %v11116
  %v11118 = vpop.f32.mrb[0].mxu0
  %11119 = vdwg.mxu0
  %v11120 = vadd.f32 %v8766, %v11114
  %v11121 = vadd.f32 %v8767, %v11117
  %vm11122 = vcmask 261120
  %11123 = vst.msk [vmem:[#allocation2] sm:$0xff] %vm11122, %v11120
  %11124 = vst.msk [vmem:[#allocation2 + $0x8] sm:$0xff] %vm11122, %v11121
  %v11125 = vld [vmem:[#allocation3] sm:$0xff]
  %v11126 = vld [vmem:[#allocation3 + $0x8] sm:$0xff]
  %v11639 = vunpack.c.l.b16 %v8254
  %v11640 = vunpack.c.l.b16 %v8255
  %v11641 = vunpack.c.l.b16 %v8256
  %v11642 = vunpack.c.l.b16 %v8257
  %v11643 = vunpack.c.l.b16 %v8258
  %v11644 = vunpack.c.l.b16 %v8259
  %v11645 = vunpack.c.l.b16 %v8260
  %v11646 = vunpack.c.l.b16 %v8261
  %v11647 = vunpack.c.l.b16 %v8262
  %v11648 = vunpack.c.l.b16 %v8263
  %v11649 = vunpack.c.l.b16 %v8264
  %v11650 = vunpack.c.l.b16 %v8265
  %v11651 = vunpack.c.l.b16 %v8266
  %v11652 = vunpack.c.l.b16 %v8267
  %v11653 = vunpack.c.l.b16 %v8268
  %v11654 = vunpack.c.l.b16 %v8269
  %v11655 = vunpack.c.l.b16 %v8270
  %v11656 = vunpack.c.l.b16 %v8271
  %v11657 = vunpack.c.l.b16 %v8272
  %v11658 = vunpack.c.l.b16 %v8273
  %v11659 = vunpack.c.l.b16 %v8274
  %v11660 = vunpack.c.l.b16 %v8275
  %v11661 = vunpack.c.l.b16 %v8276
  %v11662 = vunpack.c.l.b16 %v8277
  %v11663 = vunpack.c.l.b16 %v8278
  %v11664 = vunpack.c.l.b16 %v8279
  %v11665 = vunpack.c.l.b16 %v8280
  %v11666 = vunpack.c.l.b16 %v8281
  %v11667 = vunpack.c.l.b16 %v8282
  %v11668 = vunpack.c.l.b16 %v8283
  %v11669 = vunpack.c.l.b16 %v8284
  %v11670 = vunpack.c.l.b16 %v8285
  %v11671 = vunpack.c.l.b16 %v8286
  %v11672 = vunpack.c.l.b16 %v8287
  %v11673 = vunpack.c.l.b16 %v8288
  %v11674 = vunpack.c.l.b16 %v8289
  %v11675 = vunpack.c.l.b16 %v8290
  %v11676 = vunpack.c.l.b16 %v8291
  %v11677 = vunpack.c.l.b16 %v8292
  %v11678 = vunpack.c.l.b16 %v8293
  %v11679 = vunpack.c.l.b16 %v8294
  %v11680 = vunpack.c.l.b16 %v8295
  %v11681 = vunpack.c.l.b16 %v8296
  %v11682 = vunpack.c.l.b16 %v8297
  %v11683 = vunpack.c.l.b16 %v8298
  %v11684 = vunpack.c.l.b16 %v8299
  %v11685 = vunpack.c.l.b16 %v8300
  %v11686 = vunpack.c.l.b16 %v8301
  %v11687 = vunpack.c.l.b16 %v8302
  %v11688 = vunpack.c.l.b16 %v8303
  %v11689 = vunpack.c.l.b16 %v8304
  %v11690 = vunpack.c.l.b16 %v8305
  %v11691 = vunpack.c.l.b16 %v8306
  %v11692 = vunpack.c.l.b16 %v8307
  %v11693 = vunpack.c.l.b16 %v8308
  %v11694 = vunpack.c.l.b16 %v8309
  %v11695 = vunpack.c.l.b16 %v8310
  %v11696 = vunpack.c.l.b16 %v8311
  %v11697 = vunpack.c.l.b16 %v8312
  %v11698 = vunpack.c.l.b16 %v8313
  %v11699 = vunpack.c.l.b16 %v8314
  %v11700 = vunpack.c.l.b16 %v8315
  %v11701 = vunpack.c.l.b16 %v8316
  %v11702 = vunpack.c.l.b16 %v8317
  %v11703 = vunpack.c.l.b16 %v8318
  %v11704 = vunpack.c.l.b16 %v8319
  %v11705 = vunpack.c.l.b16 %v8320
  %v11706 = vunpack.c.l.b16 %v8321
  %v11707 = vunpack.c.l.b16 %v8322
  %v11708 = vunpack.c.l.b16 %v8323
  %v11709 = vunpack.c.l.b16 %v8324
  %v11710 = vunpack.c.l.b16 %v8325
  %v11711 = vunpack.c.l.b16 %v8326
  %v11712 = vunpack.c.l.b16 %v8327
  %v11713 = vunpack.c.l.b16 %v8328
  %v11714 = vunpack.c.l.b16 %v8329
  %v11715 = vunpack.c.l.b16 %v8330
  %v11716 = vunpack.c.l.b16 %v8331
  %v11717 = vunpack.c.l.b16 %v8332
  %v11718 = vunpack.c.l.b16 %v8333
  %v11719 = vunpack.c.l.b16 %v8334
  %v11720 = vunpack.c.l.b16 %v8335
  %v11721 = vunpack.c.l.b16 %v8336
  %v11722 = vunpack.c.l.b16 %v8337
  %v11723 = vunpack.c.l.b16 %v8338
  %v11724 = vunpack.c.l.b16 %v8339
  %v11725 = vunpack.c.l.b16 %v8340
  %v11726 = vunpack.c.l.b16 %v8341
  %v11727 = vunpack.c.l.b16 %v8342
  %v11728 = vunpack.c.l.b16 %v8343
  %v11729 = vunpack.c.l.b16 %v8344
  %v11730 = vunpack.c.l.b16 %v8345
  %v11731 = vunpack.c.l.b16 %v8346
  %v11732 = vunpack.c.l.b16 %v8347
  %v11733 = vunpack.c.l.b16 %v8348
  %v11734 = vunpack.c.l.b16 %v8349
  %v11735 = vunpack.c.l.b16 %v8350
  %v11736 = vunpack.c.l.b16 %v8351
  %v11737 = vunpack.c.l.b16 %v8352
  %v11738 = vunpack.c.l.b16 %v8353
  %v11739 = vunpack.c.l.b16 %v8354
  %v11740 = vunpack.c.l.b16 %v8355
  %v11741 = vunpack.c.l.b16 %v8356
  %v11742 = vunpack.c.l.b16 %v8357
  %v11743 = vunpack.c.l.b16 %v8358
  %v11744 = vunpack.c.l.b16 %v8359
  %v11745 = vunpack.c.l.b16 %v8360
  %v11746 = vunpack.c.l.b16 %v8361
  %v11747 = vunpack.c.l.b16 %v8362
  %v11748 = vunpack.c.l.b16 %v8363
  %v11749 = vunpack.c.l.b16 %v8364
  %v11750 = vunpack.c.l.b16 %v8365
  %v11751 = vunpack.c.l.b16 %v8366
  %v11752 = vunpack.c.l.b16 %v8367
  %v11753 = vunpack.c.l.b16 %v8368
  %v11754 = vunpack.c.l.b16 %v8369
  %v11755 = vunpack.c.l.b16 %v8370
  %v11756 = vunpack.c.l.b16 %v8371
  %v11757 = vunpack.c.l.b16 %v8372
  %v11758 = vunpack.c.l.b16 %v8373
  %v11759 = vunpack.c.l.b16 %v8374
  %v11760 = vunpack.c.l.b16 %v8375
  %v11761 = vunpack.c.l.b16 %v8376
  %v11762 = vunpack.c.l.b16 %v8377
  %v11763 = vunpack.c.l.b16 %v8378
  %v11764 = vunpack.c.l.b16 %v8379
  %v11765 = vunpack.c.l.b16 %v8380
  %v11766 = vunpack.c.l.b16 %v8381
  %v11767 = vunpack.c.l.b16 %v8382
  %v11768 = vunpack.c.l.b16 %v8383
  %v11769 = vunpack.c.l.b16 %v8384
  %v11770 = vunpack.c.l.b16 %v8385
  %v11771 = vunpack.c.l.b16 %v8386
  %v11772 = vunpack.c.l.b16 %v8387
  %v11773 = vunpack.c.l.b16 %v8388
  %v11774 = vunpack.c.l.b16 %v8389
  %v11775 = vunpack.c.l.b16 %v8390
  %v11776 = vunpack.c.l.b16 %v8391
  %v11777 = vunpack.c.l.b16 %v8392
  %v11778 = vunpack.c.l.b16 %v8393
  %v11779 = vunpack.c.l.b16 %v8394
  %v11780 = vunpack.c.l.b16 %v8395
  %v11781 = vunpack.c.l.b16 %v8396
  %v11782 = vunpack.c.l.b16 %v8397
  %v11783 = vunpack.c.l.b16 %v8398
  %v11784 = vunpack.c.l.b16 %v8399
  %v11785 = vunpack.c.l.b16 %v8400
  %v11786 = vunpack.c.l.b16 %v8401
  %v11787 = vunpack.c.l.b16 %v8402
  %v11788 = vunpack.c.l.b16 %v8403
  %v11789 = vunpack.c.l.b16 %v8404
  %v11790 = vunpack.c.l.b16 %v8405
  %v11791 = vunpack.c.l.b16 %v8406
  %v11792 = vunpack.c.l.b16 %v8407
  %v11793 = vunpack.c.l.b16 %v8408
  %v11794 = vunpack.c.l.b16 %v8409
  %v11795 = vunpack.c.l.b16 %v8410
  %v11796 = vunpack.c.l.b16 %v8411
  %v11797 = vunpack.c.l.b16 %v8412
  %v11798 = vunpack.c.l.b16 %v8413
  %v11799 = vunpack.c.l.b16 %v8414
  %v11800 = vunpack.c.l.b16 %v8415
  %v11801 = vunpack.c.l.b16 %v8416
  %v11802 = vunpack.c.l.b16 %v8417
  %v11803 = vunpack.c.l.b16 %v8418
  %v11804 = vunpack.c.l.b16 %v8419
  %v11805 = vunpack.c.l.b16 %v8420
  %v11806 = vunpack.c.l.b16 %v8421
  %v11807 = vunpack.c.l.b16 %v8422
  %v11808 = vunpack.c.l.b16 %v8423
  %v11809 = vunpack.c.l.b16 %v8424
  %v11810 = vunpack.c.l.b16 %v8425
  %v11811 = vunpack.c.l.b16 %v8426
  %v11812 = vunpack.c.l.b16 %v8427
  %v11813 = vunpack.c.l.b16 %v8428
  %v11814 = vunpack.c.l.b16 %v8429
  %v11815 = vunpack.c.l.b16 %v8430
  %v11816 = vunpack.c.l.b16 %v8431
  %v11817 = vunpack.c.l.b16 %v8432
  %v11818 = vunpack.c.l.b16 %v8433
  %v11819 = vunpack.c.l.b16 %v8434
  %v11820 = vunpack.c.l.b16 %v8435
  %v11821 = vunpack.c.l.b16 %v8436
  %v11822 = vunpack.c.l.b16 %v8437
  %v11823 = vunpack.c.l.b16 %v8438
  %v11824 = vunpack.c.l.b16 %v8439
  %v11825 = vunpack.c.l.b16 %v8440
  %v11826 = vunpack.c.l.b16 %v8441
  %v11827 = vunpack.c.l.b16 %v8442
  %v11828 = vunpack.c.l.b16 %v8443
  %v11829 = vunpack.c.l.b16 %v8444
  %v11830 = vunpack.c.l.b16 %v8445
  %v11831 = vunpack.c.l.b16 %v8446
  %v11832 = vunpack.c.l.b16 %v8447
  %v11833 = vunpack.c.l.b16 %v8448
  %v11834 = vunpack.c.l.b16 %v8449
  %v11835 = vunpack.c.l.b16 %v8450
  %v11836 = vunpack.c.l.b16 %v8451
  %v11837 = vunpack.c.l.b16 %v8452
  %v11838 = vunpack.c.l.b16 %v8453
  %v11839 = vunpack.c.l.b16 %v8454
  %v11840 = vunpack.c.l.b16 %v8455
  %v11841 = vunpack.c.l.b16 %v8456
  %v11842 = vunpack.c.l.b16 %v8457
  %v11843 = vunpack.c.l.b16 %v8458
  %v11844 = vunpack.c.l.b16 %v8459
  %v11845 = vunpack.c.l.b16 %v8460
  %v11846 = vunpack.c.l.b16 %v8461
  %v11847 = vunpack.c.l.b16 %v8462
  %v11848 = vunpack.c.l.b16 %v8463
  %v11849 = vunpack.c.l.b16 %v8464
  %v11850 = vunpack.c.l.b16 %v8465
  %v11851 = vunpack.c.l.b16 %v8466
  %v11852 = vunpack.c.l.b16 %v8467
  %v11853 = vunpack.c.l.b16 %v8468
  %v11854 = vunpack.c.l.b16 %v8469
  %v11855 = vunpack.c.l.b16 %v8470
  %v11856 = vunpack.c.l.b16 %v8471
  %v11857 = vunpack.c.l.b16 %v8472
  %v11858 = vunpack.c.l.b16 %v8473
  %v11859 = vunpack.c.l.b16 %v8474
  %v11860 = vunpack.c.l.b16 %v8475
  %v11861 = vunpack.c.l.b16 %v8476
  %v11862 = vunpack.c.l.b16 %v8477
  %v11863 = vunpack.c.l.b16 %v8478
  %v11864 = vunpack.c.l.b16 %v8479
  %v11865 = vunpack.c.l.b16 %v8480
  %v11866 = vunpack.c.l.b16 %v8481
  %v11867 = vunpack.c.l.b16 %v8482
  %v11868 = vunpack.c.l.b16 %v8483
  %v11869 = vunpack.c.l.b16 %v8484
  %v11870 = vunpack.c.l.b16 %v8485
  %v11871 = vunpack.c.l.b16 %v8486
  %v11872 = vunpack.c.l.b16 %v8487
  %v11873 = vunpack.c.l.b16 %v8488
  %v11874 = vunpack.c.l.b16 %v8489
  %v11875 = vunpack.c.l.b16 %v8490
  %v11876 = vunpack.c.l.b16 %v8491
  %v11877 = vunpack.c.l.b16 %v8492
  %v11878 = vunpack.c.l.b16 %v8493
  %v11879 = vunpack.c.l.b16 %v8494
  %v11880 = vunpack.c.l.b16 %v8495
  %v11881 = vunpack.c.l.b16 %v8496
  %v11882 = vunpack.c.l.b16 %v8497
  %v11883 = vunpack.c.l.b16 %v8498
  %v11884 = vunpack.c.l.b16 %v8499
  %v11885 = vunpack.c.l.b16 %v8500
  %v11886 = vunpack.c.l.b16 %v8501
  %v11887 = vunpack.c.l.b16 %v8502
  %v11888 = vunpack.c.l.b16 %v8503
  %v11889 = vunpack.c.l.b16 %v8504
  %v11890 = vunpack.c.l.b16 %v8505
  %v11891 = vunpack.c.l.b16 %v8506
  %v11892 = vunpack.c.l.b16 %v8507
  %v11893 = vunpack.c.l.b16 %v8508
  %v11894 = vunpack.c.l.b16 %v8509
  %v11895 = vunpack.c.l.b16 %v8510
  %v11896 = vunpack.c.l.b16 %v8511
  %v11897 = vunpack.c.l.b16 %v8512
  %v11898 = vunpack.c.l.b16 %v8513
  %v11899 = vunpack.c.l.b16 %v8514
  %v11900 = vunpack.c.l.b16 %v8515
  %v11901 = vunpack.c.l.b16 %v8516
  %v11902 = vunpack.c.l.b16 %v8517
  %v11903 = vunpack.c.l.b16 %v8518
  %v11904 = vunpack.c.l.b16 %v8519
  %v11905 = vunpack.c.l.b16 %v8520
  %v11906 = vunpack.c.l.b16 %v8521
  %v11907 = vunpack.c.l.b16 %v8522
  %v11908 = vunpack.c.l.b16 %v8523
  %v11909 = vunpack.c.l.b16 %v8524
  %v11910 = vunpack.c.l.b16 %v8525
  %v11911 = vunpack.c.l.b16 %v8526
  %v11912 = vunpack.c.l.b16 %v8527
  %v11913 = vunpack.c.l.b16 %v8528
  %v11914 = vunpack.c.l.b16 %v8529
  %v11915 = vunpack.c.l.b16 %v8530
  %v11916 = vunpack.c.l.b16 %v8531
  %v11917 = vunpack.c.l.b16 %v8532
  %v11918 = vunpack.c.l.b16 %v8533
  %v11919 = vunpack.c.l.b16 %v8534
  %v11920 = vunpack.c.l.b16 %v8535
  %v11921 = vunpack.c.l.b16 %v8536
  %v11922 = vunpack.c.l.b16 %v8537
  %v11923 = vunpack.c.l.b16 %v8538
  %v11924 = vunpack.c.l.b16 %v8539
  %v11925 = vunpack.c.l.b16 %v8540
  %v11926 = vunpack.c.l.b16 %v8541
  %v11927 = vunpack.c.l.b16 %v8542
  %v11928 = vunpack.c.l.b16 %v8543
  %v11929 = vunpack.c.l.b16 %v8544
  %v11930 = vunpack.c.l.b16 %v8545
  %v11931 = vunpack.c.l.b16 %v8546
  %v11932 = vunpack.c.l.b16 %v8547
  %v11933 = vunpack.c.l.b16 %v8548
  %v11934 = vunpack.c.l.b16 %v8549
  %v11935 = vunpack.c.l.b16 %v8550
  %v11936 = vunpack.c.l.b16 %v8551
  %v11937 = vunpack.c.l.b16 %v8552
  %v11938 = vunpack.c.l.b16 %v8553
  %v11939 = vunpack.c.l.b16 %v8554
  %v11940 = vunpack.c.l.b16 %v8555
  %v11941 = vunpack.c.l.b16 %v8556
  %v11942 = vunpack.c.l.b16 %v8557
  %v11943 = vunpack.c.l.b16 %v8558
  %v11944 = vunpack.c.l.b16 %v8559
  %v11945 = vunpack.c.l.b16 %v8560
  %v11946 = vunpack.c.l.b16 %v8561
  %v11947 = vunpack.c.l.b16 %v8562
  %v11948 = vunpack.c.l.b16 %v8563
  %v11949 = vunpack.c.l.b16 %v8564
  %v11950 = vunpack.c.l.b16 %v8565
  %v11951 = vunpack.c.l.b16 %v8566
  %v11952 = vunpack.c.l.b16 %v8567
  %v11953 = vunpack.c.l.b16 %v8568
  %v11954 = vunpack.c.l.b16 %v8569
  %v11955 = vunpack.c.l.b16 %v8570
  %v11956 = vunpack.c.l.b16 %v8571
  %v11957 = vunpack.c.l.b16 %v8572
  %v11958 = vunpack.c.l.b16 %v8573
  %v11959 = vunpack.c.l.b16 %v8574
  %v11960 = vunpack.c.l.b16 %v8575
  %v11961 = vunpack.c.l.b16 %v8576
  %v11962 = vunpack.c.l.b16 %v8577
  %v11963 = vunpack.c.l.b16 %v8578
  %v11964 = vunpack.c.l.b16 %v8579
  %v11965 = vunpack.c.l.b16 %v8580
  %v11966 = vunpack.c.l.b16 %v8581
  %v11967 = vunpack.c.l.b16 %v8582
  %v11968 = vunpack.c.l.b16 %v8583
  %v11969 = vunpack.c.l.b16 %v8584
  %v11970 = vunpack.c.l.b16 %v8585
  %v11971 = vunpack.c.l.b16 %v8586
  %v11972 = vunpack.c.l.b16 %v8587
  %v11973 = vunpack.c.l.b16 %v8588
  %v11974 = vunpack.c.l.b16 %v8589
  %v11975 = vunpack.c.l.b16 %v8590
  %v11976 = vunpack.c.l.b16 %v8591
  %v11977 = vunpack.c.l.b16 %v8592
  %v11978 = vunpack.c.l.b16 %v8593
  %v11979 = vunpack.c.l.b16 %v8594
  %v11980 = vunpack.c.l.b16 %v8595
  %v11981 = vunpack.c.l.b16 %v8596
  %v11982 = vunpack.c.l.b16 %v8597
  %v11983 = vunpack.c.l.b16 %v8598
  %v11984 = vunpack.c.l.b16 %v8599
  %v11985 = vunpack.c.l.b16 %v8600
  %v11986 = vunpack.c.l.b16 %v8601
  %v11987 = vunpack.c.l.b16 %v8602
  %v11988 = vunpack.c.l.b16 %v8603
  %v11989 = vunpack.c.l.b16 %v8604
  %v11990 = vunpack.c.l.b16 %v8605
  %v11991 = vunpack.c.l.b16 %v8606
  %v11992 = vunpack.c.l.b16 %v8607
  %v11993 = vunpack.c.l.b16 %v8608
  %v11994 = vunpack.c.l.b16 %v8609
  %v11995 = vunpack.c.l.b16 %v8610
  %v11996 = vunpack.c.l.b16 %v8611
  %v11997 = vunpack.c.l.b16 %v8612
  %v11998 = vunpack.c.l.b16 %v8613
  %v11999 = vunpack.c.l.b16 %v8614
  %v12000 = vunpack.c.l.b16 %v8615
  %v12001 = vunpack.c.l.b16 %v8616
  %v12002 = vunpack.c.l.b16 %v8617
  %v12003 = vunpack.c.l.b16 %v8618
  %v12004 = vunpack.c.l.b16 %v8619
  %v12005 = vunpack.c.l.b16 %v8620
  %v12006 = vunpack.c.l.b16 %v8621
  %v12007 = vunpack.c.l.b16 %v8622
  %v12008 = vunpack.c.l.b16 %v8623
  %v12009 = vunpack.c.l.b16 %v8624
  %v12010 = vunpack.c.l.b16 %v8625
  %v12011 = vunpack.c.l.b16 %v8626
  %v12012 = vunpack.c.l.b16 %v8627
  %v12013 = vunpack.c.l.b16 %v8628
  %v12014 = vunpack.c.l.b16 %v8629
  %v12015 = vunpack.c.l.b16 %v8630
  %v12016 = vunpack.c.l.b16 %v8631
  %v12017 = vunpack.c.l.b16 %v8632
  %v12018 = vunpack.c.l.b16 %v8633
  %v12019 = vunpack.c.l.b16 %v8634
  %v12020 = vunpack.c.l.b16 %v8635
  %v12021 = vunpack.c.l.b16 %v8636
  %v12022 = vunpack.c.l.b16 %v8637
  %v12023 = vunpack.c.l.b16 %v8638
  %v12024 = vunpack.c.l.b16 %v8639
  %v12025 = vunpack.c.l.b16 %v8640
  %v12026 = vunpack.c.l.b16 %v8641
  %v12027 = vunpack.c.l.b16 %v8642
  %v12028 = vunpack.c.l.b16 %v8643
  %v12029 = vunpack.c.l.b16 %v8644
  %v12030 = vunpack.c.l.b16 %v8645
  %v12031 = vunpack.c.l.b16 %v8646
  %v12032 = vunpack.c.l.b16 %v8647
  %v12033 = vunpack.c.l.b16 %v8648
  %v12034 = vunpack.c.l.b16 %v8649
  %v12035 = vunpack.c.l.b16 %v8650
  %v12036 = vunpack.c.l.b16 %v8651
  %v12037 = vunpack.c.l.b16 %v8652
  %v12038 = vunpack.c.l.b16 %v8653
  %v12039 = vunpack.c.l.b16 %v8654
  %v12040 = vunpack.c.l.b16 %v8655
  %v12041 = vunpack.c.l.b16 %v8656
  %v12042 = vunpack.c.l.b16 %v8657
  %v12043 = vunpack.c.l.b16 %v8658
  %v12044 = vunpack.c.l.b16 %v8659
  %v12045 = vunpack.c.l.b16 %v8660
  %v12046 = vunpack.c.l.b16 %v8661
  %v12047 = vunpack.c.l.b16 %v8662
  %v12048 = vunpack.c.l.b16 %v8663
  %v12049 = vunpack.c.l.b16 %v8664
  %v12050 = vunpack.c.l.b16 %v8665
  %v12051 = vunpack.c.l.b16 %v8666
  %v12052 = vunpack.c.l.b16 %v8667
  %v12053 = vunpack.c.l.b16 %v8668
  %v12054 = vunpack.c.l.b16 %v8669
  %v12055 = vunpack.c.l.b16 %v8670
  %v12056 = vunpack.c.l.b16 %v8671
  %v12057 = vunpack.c.l.b16 %v8672
  %v12058 = vunpack.c.l.b16 %v8673
  %v12059 = vunpack.c.l.b16 %v8674
  %v12060 = vunpack.c.l.b16 %v8675
  %v12061 = vunpack.c.l.b16 %v8676
  %v12062 = vunpack.c.l.b16 %v8677
  %v12063 = vunpack.c.l.b16 %v8678
  %v12064 = vunpack.c.l.b16 %v8679
  %v12065 = vunpack.c.l.b16 %v8680
  %v12066 = vunpack.c.l.b16 %v8681
  %v12067 = vunpack.c.l.b16 %v8682
  %v12068 = vunpack.c.l.b16 %v8683
  %v12069 = vunpack.c.l.b16 %v8684
  %v12070 = vunpack.c.l.b16 %v8685
  %v12071 = vunpack.c.l.b16 %v8686
  %v12072 = vunpack.c.l.b16 %v8687
  %v12073 = vunpack.c.l.b16 %v8688
  %v12074 = vunpack.c.l.b16 %v8689
  %v12075 = vunpack.c.l.b16 %v8690
  %v12076 = vunpack.c.l.b16 %v8691
  %v12077 = vunpack.c.l.b16 %v8692
  %v12078 = vunpack.c.l.b16 %v8693
  %v12079 = vunpack.c.l.b16 %v8694
  %v12080 = vunpack.c.l.b16 %v8695
  %v12081 = vunpack.c.l.b16 %v8696
  %v12082 = vunpack.c.l.b16 %v8697
  %v12083 = vunpack.c.l.b16 %v8698
  %v12084 = vunpack.c.l.b16 %v8699
  %v12085 = vunpack.c.l.b16 %v8700
  %v12086 = vunpack.c.l.b16 %v8701
  %v12087 = vunpack.c.l.b16 %v8702
  %v12088 = vunpack.c.l.b16 %v8703
  %v12089 = vunpack.c.l.b16 %v8704
  %v12090 = vunpack.c.l.b16 %v8705
  %v12091 = vunpack.c.l.b16 %v8706
  %v12092 = vunpack.c.l.b16 %v8707
  %v12093 = vunpack.c.l.b16 %v8708
  %v12094 = vunpack.c.l.b16 %v8709
  %v12095 = vunpack.c.l.b16 %v8710
  %v12096 = vunpack.c.l.b16 %v8711
  %v12097 = vunpack.c.l.b16 %v8712
  %v12098 = vunpack.c.l.b16 %v8713
  %v12099 = vunpack.c.l.b16 %v8714
  %v12100 = vunpack.c.l.b16 %v8715
  %v12101 = vunpack.c.l.b16 %v8716
  %v12102 = vunpack.c.l.b16 %v8717
  %v12103 = vunpack.c.l.b16 %v8718
  %v12104 = vunpack.c.l.b16 %v8719
  %v12105 = vunpack.c.l.b16 %v8720
  %v12106 = vunpack.c.l.b16 %v8721
  %v12107 = vunpack.c.l.b16 %v8722
  %v12108 = vunpack.c.l.b16 %v8723
  %v12109 = vunpack.c.l.b16 %v8724
  %v12110 = vunpack.c.l.b16 %v8725
  %v12111 = vunpack.c.l.b16 %v8726
  %v12112 = vunpack.c.l.b16 %v8727
  %v12113 = vunpack.c.l.b16 %v8728
  %v12114 = vunpack.c.l.b16 %v8729
  %v12115 = vunpack.c.l.b16 %v8730
  %v12116 = vunpack.c.l.b16 %v8731
  %v12117 = vunpack.c.l.b16 %v8732
  %v12118 = vunpack.c.l.b16 %v8733
  %v12119 = vunpack.c.l.b16 %v8734
  %v12120 = vunpack.c.l.b16 %v8735
  %v12121 = vunpack.c.l.b16 %v8736
  %v12122 = vunpack.c.l.b16 %v8737
  %v12123 = vunpack.c.l.b16 %v8738
  %v12124 = vunpack.c.l.b16 %v8739
  %v12125 = vunpack.c.l.b16 %v8740
  %v12126 = vunpack.c.l.b16 %v8741
  %v12127 = vunpack.c.l.b16 %v8742
  %v12128 = vunpack.c.l.b16 %v8743
  %v12129 = vunpack.c.l.b16 %v8744
  %v12130 = vunpack.c.l.b16 %v8745
  %v12131 = vunpack.c.l.b16 %v8746
  %v12132 = vunpack.c.l.b16 %v8747
  %v12133 = vunpack.c.l.b16 %v8748
  %v12134 = vunpack.c.l.b16 %v8749
  %v12135 = vunpack.c.l.b16 %v8750
  %v12136 = vunpack.c.l.b16 %v8751
  %v12137 = vunpack.c.l.b16 %v8752
  %v12138 = vunpack.c.l.b16 %v8753
  %v12139 = vunpack.c.l.b16 %v8754
  %v12140 = vunpack.c.l.b16 %v8755
  %v12141 = vunpack.c.l.b16 %v8756
  %v12142 = vunpack.c.l.b16 %v8757
  %v12143 = vunpack.c.l.b16 %v8758
  %v12144 = vunpack.c.l.b16 %v8759
  %v12145 = vunpack.c.l.b16 %v8760
  %v12146 = vunpack.c.l.b16 %v8761
  %v12147 = vunpack.c.l.b16 %v8762
  %v12148 = vunpack.c.l.b16 %v8763
  %v12149 = vunpack.c.l.b16 %v8764
  %v12150 = vunpack.c.l.b16 %v8765
  %v12151 = vpack.c.b16 %v11640, %v11639
  %v12152 = vpack.c.b16 %v11642, %v11641
  %v12153 = vpack.c.b16 %v11644, %v11643
  %v12154 = vpack.c.b16 %v11646, %v11645
  %v12155 = vpack.c.b16 %v11648, %v11647
  %v12156 = vpack.c.b16 %v11650, %v11649
  %v12157 = vpack.c.b16 %v11652, %v11651
  %v12158 = vpack.c.b16 %v11654, %v11653
  %v12159 = vpack.c.b16 %v11656, %v11655
  %v12160 = vpack.c.b16 %v11658, %v11657
  %v12161 = vpack.c.b16 %v11660, %v11659
  %v12162 = vpack.c.b16 %v11662, %v11661
  %v12163 = vpack.c.b16 %v11664, %v11663
  %v12164 = vpack.c.b16 %v11666, %v11665
  %v12165 = vpack.c.b16 %v11668, %v11667
  %v12166 = vpack.c.b16 %v11670, %v11669
  %v12167 = vpack.c.b16 %v11672, %v11671
  %v12168 = vpack.c.b16 %v11674, %v11673
  %v12169 = vpack.c.b16 %v11676, %v11675
  %v12170 = vpack.c.b16 %v11678, %v11677
  %v12171 = vpack.c.b16 %v11680, %v11679
  %v12172 = vpack.c.b16 %v11682, %v11681
  %v12173 = vpack.c.b16 %v11684, %v11683
  %v12174 = vpack.c.b16 %v11686, %v11685
  %v12175 = vpack.c.b16 %v11688, %v11687
  %v12176 = vpack.c.b16 %v11690, %v11689
  %v12177 = vpack.c.b16 %v11692, %v11691
  %v12178 = vpack.c.b16 %v11694, %v11693
  %v12179 = vpack.c.b16 %v11696, %v11695
  %v12180 = vpack.c.b16 %v11698, %v11697
  %v12181 = vpack.c.b16 %v11700, %v11699
  %v12182 = vpack.c.b16 %v11702, %v11701
  %v12183 = vpack.c.b16 %v11704, %v11703
  %v12184 = vpack.c.b16 %v11706, %v11705
  %v12185 = vpack.c.b16 %v11708, %v11707
  %v12186 = vpack.c.b16 %v11710, %v11709
  %v12187 = vpack.c.b16 %v11712, %v11711
  %v12188 = vpack.c.b16 %v11714, %v11713
  %v12189 = vpack.c.b16 %v11716, %v11715
  %v12190 = vpack.c.b16 %v11718, %v11717
  %v12191 = vpack.c.b16 %v11720, %v11719
  %v12192 = vpack.c.b16 %v11722, %v11721
  %v12193 = vpack.c.b16 %v11724, %v11723
  %v12194 = vpack.c.b16 %v11726, %v11725
  %v12195 = vpack.c.b16 %v11728, %v11727
  %v12196 = vpack.c.b16 %v11730, %v11729
  %v12197 = vpack.c.b16 %v11732, %v11731
  %v12198 = vpack.c.b16 %v11734, %v11733
  %v12199 = vpack.c.b16 %v11736, %v11735
  %v12200 = vpack.c.b16 %v11738, %v11737
  %v12201 = vpack.c.b16 %v11740, %v11739
  %v12202 = vpack.c.b16 %v11742, %v11741
  %v12203 = vpack.c.b16 %v11744, %v11743
  %v12204 = vpack.c.b16 %v11746, %v11745
  %v12205 = vpack.c.b16 %v11748, %v11747
  %v12206 = vpack.c.b16 %v11750, %v11749
  %v12207 = vpack.c.b16 %v11752, %v11751
  %v12208 = vpack.c.b16 %v11754, %v11753
  %v12209 = vpack.c.b16 %v11756, %v11755
  %v12210 = vpack.c.b16 %v11758, %v11757
  %v12211 = vpack.c.b16 %v11760, %v11759
  %v12212 = vpack.c.b16 %v11762, %v11761
  %v12213 = vpack.c.b16 %v11764, %v11763
  %v12214 = vpack.c.b16 %v11766, %v11765
  %v12215 = vpack.c.b16 %v11768, %v11767
  %v12216 = vpack.c.b16 %v11770, %v11769
  %v12217 = vpack.c.b16 %v11772, %v11771
  %v12218 = vpack.c.b16 %v11774, %v11773
  %v12219 = vpack.c.b16 %v11776, %v11775
  %v12220 = vpack.c.b16 %v11778, %v11777
  %v12221 = vpack.c.b16 %v11780, %v11779
  %v12222 = vpack.c.b16 %v11782, %v11781
  %v12223 = vpack.c.b16 %v11784, %v11783
  %v12224 = vpack.c.b16 %v11786, %v11785
  %v12225 = vpack.c.b16 %v11788, %v11787
  %v12226 = vpack.c.b16 %v11790, %v11789
  %v12227 = vpack.c.b16 %v11792, %v11791
  %v12228 = vpack.c.b16 %v11794, %v11793
  %v12229 = vpack.c.b16 %v11796, %v11795
  %v12230 = vpack.c.b16 %v11798, %v11797
  %v12231 = vpack.c.b16 %v11800, %v11799
  %v12232 = vpack.c.b16 %v11802, %v11801
  %v12233 = vpack.c.b16 %v11804, %v11803
  %v12234 = vpack.c.b16 %v11806, %v11805
  %v12235 = vpack.c.b16 %v11808, %v11807
  %v12236 = vpack.c.b16 %v11810, %v11809
  %v12237 = vpack.c.b16 %v11812, %v11811
  %v12238 = vpack.c.b16 %v11814, %v11813
  %v12239 = vpack.c.b16 %v11816, %v11815
  %v12240 = vpack.c.b16 %v11818, %v11817
  %v12241 = vpack.c.b16 %v11820, %v11819
  %v12242 = vpack.c.b16 %v11822, %v11821
  %v12243 = vpack.c.b16 %v11824, %v11823
  %v12244 = vpack.c.b16 %v11826, %v11825
  %v12245 = vpack.c.b16 %v11828, %v11827
  %v12246 = vpack.c.b16 %v11830, %v11829
  %v12247 = vpack.c.b16 %v11832, %v11831
  %v12248 = vpack.c.b16 %v11834, %v11833
  %v12249 = vpack.c.b16 %v11836, %v11835
  %v12250 = vpack.c.b16 %v11838, %v11837
  %v12251 = vpack.c.b16 %v11840, %v11839
  %v12252 = vpack.c.b16 %v11842, %v11841
  %v12253 = vpack.c.b16 %v11844, %v11843
  %v12254 = vpack.c.b16 %v11846, %v11845
  %v12255 = vpack.c.b16 %v11848, %v11847
  %v12256 = vpack.c.b16 %v11850, %v11849
  %v12257 = vpack.c.b16 %v11852, %v11851
  %v12258 = vpack.c.b16 %v11854, %v11853
  %v12259 = vpack.c.b16 %v11856, %v11855
  %v12260 = vpack.c.b16 %v11858, %v11857
  %v12261 = vpack.c.b16 %v11860, %v11859
  %v12262 = vpack.c.b16 %v11862, %v11861
  %v12263 = vpack.c.b16 %v11864, %v11863
  %v12264 = vpack.c.b16 %v11866, %v11865
  %v12265 = vpack.c.b16 %v11868, %v11867
  %v12266 = vpack.c.b16 %v11870, %v11869
  %v12267 = vpack.c.b16 %v11872, %v11871
  %v12268 = vpack.c.b16 %v11874, %v11873
  %v12269 = vpack.c.b16 %v11876, %v11875
  %v12270 = vpack.c.b16 %v11878, %v11877
  %v12271 = vpack.c.b16 %v11880, %v11879
  %v12272 = vpack.c.b16 %v11882, %v11881
  %v12273 = vpack.c.b16 %v11884, %v11883
  %v12274 = vpack.c.b16 %v11886, %v11885
  %v12275 = vpack.c.b16 %v11888, %v11887
  %v12276 = vpack.c.b16 %v11890, %v11889
  %v12277 = vpack.c.b16 %v11892, %v11891
  %v12278 = vpack.c.b16 %v11894, %v11893
  %v12279 = vpack.c.b16 %v11896, %v11895
  %v12280 = vpack.c.b16 %v11898, %v11897
  %v12281 = vpack.c.b16 %v11900, %v11899
  %v12282 = vpack.c.b16 %v11902, %v11901
  %v12283 = vpack.c.b16 %v11904, %v11903
  %v12284 = vpack.c.b16 %v11906, %v11905
  %v12285 = vpack.c.b16 %v11908, %v11907
  %v12286 = vpack.c.b16 %v11910, %v11909
  %v12287 = vpack.c.b16 %v11912, %v11911
  %v12288 = vpack.c.b16 %v11914, %v11913
  %v12289 = vpack.c.b16 %v11916, %v11915
  %v12290 = vpack.c.b16 %v11918, %v11917
  %v12291 = vpack.c.b16 %v11920, %v11919
  %v12292 = vpack.c.b16 %v11922, %v11921
  %v12293 = vpack.c.b16 %v11924, %v11923
  %v12294 = vpack.c.b16 %v11926, %v11925
  %v12295 = vpack.c.b16 %v11928, %v11927
  %v12296 = vpack.c.b16 %v11930, %v11929
  %v12297 = vpack.c.b16 %v11932, %v11931
  %v12298 = vpack.c.b16 %v11934, %v11933
  %v12299 = vpack.c.b16 %v11936, %v11935
  %v12300 = vpack.c.b16 %v11938, %v11937
  %v12301 = vpack.c.b16 %v11940, %v11939
  %v12302 = vpack.c.b16 %v11942, %v11941
  %v12303 = vpack.c.b16 %v11944, %v11943
  %v12304 = vpack.c.b16 %v11946, %v11945
  %v12305 = vpack.c.b16 %v11948, %v11947
  %v12306 = vpack.c.b16 %v11950, %v11949
  %v12307 = vpack.c.b16 %v11952, %v11951
  %v12308 = vpack.c.b16 %v11954, %v11953
  %v12309 = vpack.c.b16 %v11956, %v11955
  %v12310 = vpack.c.b16 %v11958, %v11957
  %v12311 = vpack.c.b16 %v11960, %v11959
  %v12312 = vpack.c.b16 %v11962, %v11961
  %v12313 = vpack.c.b16 %v11964, %v11963
  %v12314 = vpack.c.b16 %v11966, %v11965
  %v12315 = vpack.c.b16 %v11968, %v11967
  %v12316 = vpack.c.b16 %v11970, %v11969
  %v12317 = vpack.c.b16 %v11972, %v11971
  %v12318 = vpack.c.b16 %v11974, %v11973
  %v12319 = vpack.c.b16 %v11976, %v11975
  %v12320 = vpack.c.b16 %v11978, %v11977
  %v12321 = vpack.c.b16 %v11980, %v11979
  %v12322 = vpack.c.b16 %v11982, %v11981
  %v12323 = vpack.c.b16 %v11984, %v11983
  %v12324 = vpack.c.b16 %v11986, %v11985
  %v12325 = vpack.c.b16 %v11988, %v11987
  %v12326 = vpack.c.b16 %v11990, %v11989
  %v12327 = vpack.c.b16 %v11992, %v11991
  %v12328 = vpack.c.b16 %v11994, %v11993
  %v12329 = vpack.c.b16 %v11996, %v11995
  %v12330 = vpack.c.b16 %v11998, %v11997
  %v12331 = vpack.c.b16 %v12000, %v11999
  %v12332 = vpack.c.b16 %v12002, %v12001
  %v12333 = vpack.c.b16 %v12004, %v12003
  %v12334 = vpack.c.b16 %v12006, %v12005
  %v12335 = vpack.c.b16 %v12008, %v12007
  %v12336 = vpack.c.b16 %v12010, %v12009
  %v12337 = vpack.c.b16 %v12012, %v12011
  %v12338 = vpack.c.b16 %v12014, %v12013
  %v12339 = vpack.c.b16 %v12016, %v12015
  %v12340 = vpack.c.b16 %v12018, %v12017
  %v12341 = vpack.c.b16 %v12020, %v12019
  %v12342 = vpack.c.b16 %v12022, %v12021
  %v12343 = vpack.c.b16 %v12024, %v12023
  %v12344 = vpack.c.b16 %v12026, %v12025
  %v12345 = vpack.c.b16 %v12028, %v12027
  %v12346 = vpack.c.b16 %v12030, %v12029
  %v12347 = vpack.c.b16 %v12032, %v12031
  %v12348 = vpack.c.b16 %v12034, %v12033
  %v12349 = vpack.c.b16 %v12036, %v12035
  %v12350 = vpack.c.b16 %v12038, %v12037
  %v12351 = vpack.c.b16 %v12040, %v12039
  %v12352 = vpack.c.b16 %v12042, %v12041
  %v12353 = vpack.c.b16 %v12044, %v12043
  %v12354 = vpack.c.b16 %v12046, %v12045
  %v12355 = vpack.c.b16 %v12048, %v12047
  %v12356 = vpack.c.b16 %v12050, %v12049
  %v12357 = vpack.c.b16 %v12052, %v12051
  %v12358 = vpack.c.b16 %v12054, %v12053
  %v12359 = vpack.c.b16 %v12056, %v12055
  %v12360 = vpack.c.b16 %v12058, %v12057
  %v12361 = vpack.c.b16 %v12060, %v12059
  %v12362 = vpack.c.b16 %v12062, %v12061
  %v12363 = vpack.c.b16 %v12064, %v12063
  %v12364 = vpack.c.b16 %v12066, %v12065
  %v12365 = vpack.c.b16 %v12068, %v12067
  %v12366 = vpack.c.b16 %v12070, %v12069
  %v12367 = vpack.c.b16 %v12072, %v12071
  %v12368 = vpack.c.b16 %v12074, %v12073
  %v12369 = vpack.c.b16 %v12076, %v12075
  %v12370 = vpack.c.b16 %v12078, %v12077
  %v12371 = vpack.c.b16 %v12080, %v12079
  %v12372 = vpack.c.b16 %v12082, %v12081
  %v12373 = vpack.c.b16 %v12084, %v12083
  %v12374 = vpack.c.b16 %v12086, %v12085
  %v12375 = vpack.c.b16 %v12088, %v12087
  %v12376 = vpack.c.b16 %v12090, %v12089
  %v12377 = vpack.c.b16 %v12092, %v12091
  %v12378 = vpack.c.b16 %v12094, %v12093
  %v12379 = vpack.c.b16 %v12096, %v12095
  %v12380 = vpack.c.b16 %v12098, %v12097
  %v12381 = vpack.c.b16 %v12100, %v12099
  %v12382 = vpack.c.b16 %v12102, %v12101
  %v12383 = vpack.c.b16 %v12104, %v12103
  %v12384 = vpack.c.b16 %v12106, %v12105
  %v12385 = vpack.c.b16 %v12108, %v12107
  %v12386 = vpack.c.b16 %v12110, %v12109
  %v12387 = vpack.c.b16 %v12112, %v12111
  %v12388 = vpack.c.b16 %v12114, %v12113
  %v12389 = vpack.c.b16 %v12116, %v12115
  %v12390 = vpack.c.b16 %v12118, %v12117
  %v12391 = vpack.c.b16 %v12120, %v12119
  %v12392 = vpack.c.b16 %v12122, %v12121
  %v12393 = vpack.c.b16 %v12124, %v12123
  %v12394 = vpack.c.b16 %v12126, %v12125
  %v12395 = vpack.c.b16 %v12128, %v12127
  %v12396 = vpack.c.b16 %v12130, %v12129
  %v12397 = vpack.c.b16 %v12132, %v12131
  %v12398 = vpack.c.b16 %v12134, %v12133
  %v12399 = vpack.c.b16 %v12136, %v12135
  %v12400 = vpack.c.b16 %v12138, %v12137
  %v12401 = vpack.c.b16 %v12140, %v12139
  %v12402 = vpack.c.b16 %v12142, %v12141
  %v12403 = vpack.c.b16 %v12144, %v12143
  %v12404 = vpack.c.b16 %v12146, %v12145
  %v12405 = vpack.c.b16 %v12148, %v12147
  %v12406 = vpack.c.b16 %v12150, %v12149
  %12663 = vmatprep.subr.bf16.mxu0 0
  %12664 = vmatpush1.bf16.msra.mxu0 %v12151
  %12665 = vmatprep.subr.bf16.mxu0 0
  %12666 = vmatpush1.bf16.msra.mxu0 %v12152
  %12667 = vmatprep.subr.bf16.mxu0 0
  %12668 = vmatpush1.bf16.msra.mxu0 %v12153
  %12669 = vmatprep.subr.bf16.mxu0 0
  %12670 = vmatpush1.bf16.msra.mxu0 %v12154
  %12671 = vmatprep.subr.bf16.mxu0 0
  %12672 = vmatpush1.bf16.msra.mxu0 %v12155
  %12673 = vmatprep.subr.bf16.mxu0 0
  %12674 = vmatpush1.bf16.msra.mxu0 %v12156
  %12675 = vmatprep.subr.bf16.mxu0 0
  %12676 = vmatpush1.bf16.msra.mxu0 %v12157
  %12677 = vmatprep.subr.bf16.mxu0 0
  %12678 = vmatpush1.bf16.msra.mxu0 %v12158
  %12679 = vmatprep.subr.bf16.mxu0 0
  %12680 = vmatpush1.bf16.msra.mxu0 %v12159
  %12681 = vmatprep.subr.bf16.mxu0 0
  %12682 = vmatpush1.bf16.msra.mxu0 %v12160
  %12683 = vmatprep.subr.bf16.mxu0 0
  %12684 = vmatpush1.bf16.msra.mxu0 %v12161
  %12685 = vmatprep.subr.bf16.mxu0 0
  %12686 = vmatpush1.bf16.msra.mxu0 %v12162
  %12687 = vmatprep.subr.bf16.mxu0 0
  %12688 = vmatpush1.bf16.msra.mxu0 %v12163
  %12689 = vmatprep.subr.bf16.mxu0 0
  %12690 = vmatpush1.bf16.msra.mxu0 %v12164
  %12691 = vmatprep.subr.bf16.mxu0 0
  %12692 = vmatpush1.bf16.msra.mxu0 %v12165
  %12693 = vmatprep.subr.bf16.mxu0 0
  %12694 = vmatpush1.bf16.msra.mxu0 %v12166
  %12695 = vmatprep.mubr.bf16.mxu0 %v8865
  %12696 = vmatmul.mubr.bf16.gmra.mrb[0].mxu0 %v8864
  %v12697 = vpop.f32.mrb[0].mxu0
  %v12698 = vadd.f32 0.0, %v12697
  %v12699 = vpop.f32.mrb[0].mxu0
  %v12700 = vpop.f32.mrb[0].mxu0
  %v12701 = vadd.f32 0.0, %v12700
  %v12702 = vpop.f32.mrb[0].mxu0
  %12703 = vdwg.mxu0
  %12704 = vmatprep.subr.bf16.mxu0 0
  %12705 = vmatpush1.bf16.msra.mxu0 %v12167
  %12706 = vmatprep.subr.bf16.mxu0 0
  %12707 = vmatpush1.bf16.msra.mxu0 %v12168
  %12708 = vmatprep.subr.bf16.mxu0 0
  %12709 = vmatpush1.bf16.msra.mxu0 %v12169
  %12710 = vmatprep.subr.bf16.mxu0 0
  %12711 = vmatpush1.bf16.msra.mxu0 %v12170
  %12712 = vmatprep.subr.bf16.mxu0 0
  %12713 = vmatpush1.bf16.msra.mxu0 %v12171
  %12714 = vmatprep.subr.bf16.mxu0 0
  %12715 = vmatpush1.bf16.msra.mxu0 %v12172
  %12716 = vmatprep.subr.bf16.mxu0 0
  %12717 = vmatpush1.bf16.msra.mxu0 %v12173
  %12718 = vmatprep.subr.bf16.mxu0 0
  %12719 = vmatpush1.bf16.msra.mxu0 %v12174
  %12720 = vmatprep.subr.bf16.mxu0 0
  %12721 = vmatpush1.bf16.msra.mxu0 %v12175
  %12722 = vmatprep.subr.bf16.mxu0 0
  %12723 = vmatpush1.bf16.msra.mxu0 %v12176
  %12724 = vmatprep.subr.bf16.mxu0 0
  %12725 = vmatpush1.bf16.msra.mxu0 %v12177
  %12726 = vmatprep.subr.bf16.mxu0 0
  %12727 = vmatpush1.bf16.msra.mxu0 %v12178
  %12728 = vmatprep.subr.bf16.mxu0 0
  %12729 = vmatpush1.bf16.msra.mxu0 %v12179
  %12730 = vmatprep.subr.bf16.mxu0 0
  %12731 = vmatpush1.bf16.msra.mxu0 %v12180
  %12732 = vmatprep.subr.bf16.mxu0 0
  %12733 = vmatpush1.bf16.msra.mxu0 %v12181
  %12734 = vmatprep.subr.bf16.mxu0 0
  %12735 = vmatpush1.bf16.msra.mxu0 %v12182
  %12736 = vmatprep.mubr.bf16.mxu0 %v8867
  %12737 = vmatmul.mubr.bf16.gmra.mrb[0].mxu0 %v8866
  %v12738 = vpop.f32.mrb[0].mxu0
  %v12739 = vadd.f32 %v12698, %v12738
  %v12740 = vpop.f32.mrb[0].mxu0
  %v12741 = vpop.f32.mrb[0].mxu0
  %v12742 = vadd.f32 %v12701, %v12741
  %v12743 = vpop.f32.mrb[0].mxu0
  %12744 = vdwg.mxu0
  %12745 = vmatprep.subr.bf16.mxu0 0
  %12746 = vmatpush1.bf16.msra.mxu0 %v12183
  %12747 = vmatprep.subr.bf16.mxu0 0
  %12748 = vmatpush1.bf16.msra.mxu0 %v12184
  %12749 = vmatprep.subr.bf16.mxu0 0
  %12750 = vmatpush1.bf16.msra.mxu0 %v12185
  %12751 = vmatprep.subr.bf16.mxu0 0
  %12752 = vmatpush1.bf16.msra.mxu0 %v12186
  %12753 = vmatprep.subr.bf16.mxu0 0
  %12754 = vmatpush1.bf16.msra.mxu0 %v12187
  %12755 = vmatprep.subr.bf16.mxu0 0
  %12756 = vmatpush1.bf16.msra.mxu0 %v12188
  %12757 = vmatprep.subr.bf16.mxu0 0
  %12758 = vmatpush1.bf16.msra.mxu0 %v12189
  %12759 = vmatprep.subr.bf16.mxu0 0
  %12760 = vmatpush1.bf16.msra.mxu0 %v12190
  %12761 = vmatprep.subr.bf16.mxu0 0
  %12762 = vmatpush1.bf16.msra.mxu0 %v12191
  %12763 = vmatprep.subr.bf16.mxu0 0
  %12764 = vmatpush1.bf16.msra.mxu0 %v12192
  %12765 = vmatprep.subr.bf16.mxu0 0
  %12766 = vmatpush1.bf16.msra.mxu0 %v12193
  %12767 = vmatprep.subr.bf16.mxu0 0
  %12768 = vmatpush1.bf16.msra.mxu0 %v12194
  %12769 = vmatprep.subr.bf16.mxu0 0
  %12770 = vmatpush1.bf16.msra.mxu0 %v12195
  %12771 = vmatprep.subr.bf16.mxu0 0
  %12772 = vmatpush1.bf16.msra.mxu0 %v12196
  %12773 = vmatprep.subr.bf16.mxu0 0
  %12774 = vmatpush1.bf16.msra.mxu0 %v12197
  %12775 = vmatprep.subr.bf16.mxu0 0
  %12776 = vmatpush1.bf16.msra.mxu0 %v12198
  %12777 = vmatprep.mubr.bf16.mxu0 %v8869
  %12778 = vmatmul.mubr.bf16.gmra.mrb[0].mxu0 %v8868
  %v12779 = vpop.f32.mrb[0].mxu0
  %v12780 = vadd.f32 %v12739, %v12779
  %v12781 = vpop.f32.mrb[0].mxu0
  %v12782 = vpop.f32.mrb[0].mxu0
  %v12783 = vadd.f32 %v12742, %v12782
  %v12784 = vpop.f32.mrb[0].mxu0
  %12785 = vdwg.mxu0
  %12786 = vmatprep.subr.bf16.mxu0 0
  %12787 = vmatpush1.bf16.msra.mxu0 %v12199
  %12788 = vmatprep.subr.bf16.mxu0 0
  %12789 = vmatpush1.bf16.msra.mxu0 %v12200
  %12790 = vmatprep.subr.bf16.mxu0 0
  %12791 = vmatpush1.bf16.msra.mxu0 %v12201
  %12792 = vmatprep.subr.bf16.mxu0 0
  %12793 = vmatpush1.bf16.msra.mxu0 %v12202
  %12794 = vmatprep.subr.bf16.mxu0 0
  %12795 = vmatpush1.bf16.msra.mxu0 %v12203
  %12796 = vmatprep.subr.bf16.mxu0 0
  %12797 = vmatpush1.bf16.msra.mxu0 %v12204
  %12798 = vmatprep.subr.bf16.mxu0 0
  %12799 = vmatpush1.bf16.msra.mxu0 %v12205
  %12800 = vmatprep.subr.bf16.mxu0 0
  %12801 = vmatpush1.bf16.msra.mxu0 %v12206
  %12802 = vmatprep.subr.bf16.mxu0 0
  %12803 = vmatpush1.bf16.msra.mxu0 %v12207
  %12804 = vmatprep.subr.bf16.mxu0 0
  %12805 = vmatpush1.bf16.msra.mxu0 %v12208
  %12806 = vmatprep.subr.bf16.mxu0 0
  %12807 = vmatpush1.bf16.msra.mxu0 %v12209
  %12808 = vmatprep.subr.bf16.mxu0 0
  %12809 = vmatpush1.bf16.msra.mxu0 %v12210
  %12810 = vmatprep.subr.bf16.mxu0 0
  %12811 = vmatpush1.bf16.msra.mxu0 %v12211
  %12812 = vmatprep.subr.bf16.mxu0 0
  %12813 = vmatpush1.bf16.msra.mxu0 %v12212
  %12814 = vmatprep.subr.bf16.mxu0 0
  %12815 = vmatpush1.bf16.msra.mxu0 %v12213
  %12816 = vmatprep.subr.bf16.mxu0 0
  %12817 = vmatpush1.bf16.msra.mxu0 %v12214
  %12818 = vmatprep.mubr.bf16.mxu0 %v8871
  %12819 = vmatmul.mubr.bf16.gmra.mrb[0].mxu0 %v8870
  %v12820 = vpop.f32.mrb[0].mxu0
  %v12821 = vadd.f32 %v12780, %v12820
  %v12822 = vpop.f32.mrb[0].mxu0
  %v12823 = vpop.f32.mrb[0].mxu0
  %v12824 = vadd.f32 %v12783, %v12823
  %v12825 = vpop.f32.mrb[0].mxu0
  %12826 = vdwg.mxu0
  %12827 = vmatprep.subr.bf16.mxu0 0
  %12828 = vmatpush1.bf16.msra.mxu0 %v12215
  %12829 = vmatprep.subr.bf16.mxu0 0
  %12830 = vmatpush1.bf16.msra.mxu0 %v12216
  %12831 = vmatprep.subr.bf16.mxu0 0
  %12832 = vmatpush1.bf16.msra.mxu0 %v12217
  %12833 = vmatprep.subr.bf16.mxu0 0
  %12834 = vmatpush1.bf16.msra.mxu0 %v12218
  %12835 = vmatprep.subr.bf16.mxu0 0
  %12836 = vmatpush1.bf16.msra.mxu0 %v12219
  %12837 = vmatprep.subr.bf16.mxu0 0
  %12838 = vmatpush1.bf16.msra.mxu0 %v12220
  %12839 = vmatprep.subr.bf16.mxu0 0
  %12840 = vmatpush1.bf16.msra.mxu0 %v12221
  %12841 = vmatprep.subr.bf16.mxu0 0
  %12842 = vmatpush1.bf16.msra.mxu0 %v12222
  %12843 = vmatprep.subr.bf16.mxu0 0
  %12844 = vmatpush1.bf16.msra.mxu0 %v12223
  %12845 = vmatprep.subr.bf16.mxu0 0
  %12846 = vmatpush1.bf16.msra.mxu0 %v12224
  %12847 = vmatprep.subr.bf16.mxu0 0
  %12848 = vmatpush1.bf16.msra.mxu0 %v12225
  %12849 = vmatprep.subr.bf16.mxu0 0
  %12850 = vmatpush1.bf16.msra.mxu0 %v12226
  %12851 = vmatprep.subr.bf16.mxu0 0
  %12852 = vmatpush1.bf16.msra.mxu0 %v12227
  %12853 = vmatprep.subr.bf16.mxu0 0
  %12854 = vmatpush1.bf16.msra.mxu0 %v12228
  %12855 = vmatprep.subr.bf16.mxu0 0
  %12856 = vmatpush1.bf16.msra.mxu0 %v12229
  %12857 = vmatprep.subr.bf16.mxu0 0
  %12858 = vmatpush1.bf16.msra.mxu0 %v12230
  %12859 = vmatprep.mubr.bf16.mxu0 %v8873
  %12860 = vmatmul.mubr.bf16.gmra.mrb[0].mxu0 %v8872
  %v12861 = vpop.f32.mrb[0].mxu0
  %v12862 = vadd.f32 %v12821, %v12861
  %v12863 = vpop.f32.mrb[0].mxu0
  %v12864 = vpop.f32.mrb[0].mxu0
  %v12865 = vadd.f32 %v12824, %v12864
  %v12866 = vpop.f32.mrb[0].mxu0
  %12867 = vdwg.mxu0
  %12868 = vmatprep.subr.bf16.mxu0 0
  %12869 = vmatpush1.bf16.msra.mxu0 %v12231
  %12870 = vmatprep.subr.bf16.mxu0 0
  %12871 = vmatpush1.bf16.msra.mxu0 %v12232
  %12872 = vmatprep.subr.bf16.mxu0 0
  %12873 = vmatpush1.bf16.msra.mxu0 %v12233
  %12874 = vmatprep.subr.bf16.mxu0 0
  %12875 = vmatpush1.bf16.msra.mxu0 %v12234
  %12876 = vmatprep.subr.bf16.mxu0 0
  %12877 = vmatpush1.bf16.msra.mxu0 %v12235
  %12878 = vmatprep.subr.bf16.mxu0 0
  %12879 = vmatpush1.bf16.msra.mxu0 %v12236
  %12880 = vmatprep.subr.bf16.mxu0 0
  %12881 = vmatpush1.bf16.msra.mxu0 %v12237
  %12882 = vmatprep.subr.bf16.mxu0 0
  %12883 = vmatpush1.bf16.msra.mxu0 %v12238
  %12884 = vmatprep.subr.bf16.mxu0 0
  %12885 = vmatpush1.bf16.msra.mxu0 %v12239
  %12886 = vmatprep.subr.bf16.mxu0 0
  %12887 = vmatpush1.bf16.msra.mxu0 %v12240
  %12888 = vmatprep.subr.bf16.mxu0 0
  %12889 = vmatpush1.bf16.msra.mxu0 %v12241
  %12890 = vmatprep.subr.bf16.mxu0 0
  %12891 = vmatpush1.bf16.msra.mxu0 %v12242
  %12892 = vmatprep.subr.bf16.mxu0 0
  %12893 = vmatpush1.bf16.msra.mxu0 %v12243
  %12894 = vmatprep.subr.bf16.mxu0 0
  %12895 = vmatpush1.bf16.msra.mxu0 %v12244
  %12896 = vmatprep.subr.bf16.mxu0 0
  %12897 = vmatpush1.bf16.msra.mxu0 %v12245
  %12898 = vmatprep.subr.bf16.mxu0 0
  %12899 = vmatpush1.bf16.msra.mxu0 %v12246
  %12900 = vmatprep.mubr.bf16.mxu0 %v8875
  %12901 = vmatmul.mubr.bf16.gmra.mrb[0].mxu0 %v8874
  %v12902 = vpop.f32.mrb[0].mxu0
  %v12903 = vadd.f32 %v12862, %v12902
  %v12904 = vpop.f32.mrb[0].mxu0
  %v12905 = vpop.f32.mrb[0].mxu0
  %v12906 = vadd.f32 %v12865, %v12905
  %v12907 = vpop.f32.mrb[0].mxu0
  %12908 = vdwg.mxu0
  %12909 = vmatprep.subr.bf16.mxu0 0
  %12910 = vmatpush1.bf16.msra.mxu0 %v12247
  %12911 = vmatprep.subr.bf16.mxu0 0
  %12912 = vmatpush1.bf16.msra.mxu0 %v12248
  %12913 = vmatprep.subr.bf16.mxu0 0
  %12914 = vmatpush1.bf16.msra.mxu0 %v12249
  %12915 = vmatprep.subr.bf16.mxu0 0
  %12916 = vmatpush1.bf16.msra.mxu0 %v12250
  %12917 = vmatprep.subr.bf16.mxu0 0
  %12918 = vmatpush1.bf16.msra.mxu0 %v12251
  %12919 = vmatprep.subr.bf16.mxu0 0
  %12920 = vmatpush1.bf16.msra.mxu0 %v12252
  %12921 = vmatprep.subr.bf16.mxu0 0
  %12922 = vmatpush1.bf16.msra.mxu0 %v12253
  %12923 = vmatprep.subr.bf16.mxu0 0
  %12924 = vmatpush1.bf16.msra.mxu0 %v12254
  %12925 = vmatprep.subr.bf16.mxu0 0
  %12926 = vmatpush1.bf16.msra.mxu0 %v12255
  %12927 = vmatprep.subr.bf16.mxu0 0
  %12928 = vmatpush1.bf16.msra.mxu0 %v12256
  %12929 = vmatprep.subr.bf16.mxu0 0
  %12930 = vmatpush1.bf16.msra.mxu0 %v12257
  %12931 = vmatprep.subr.bf16.mxu0 0
  %12932 = vmatpush1.bf16.msra.mxu0 %v12258
  %12933 = vmatprep.subr.bf16.mxu0 0
  %12934 = vmatpush1.bf16.msra.mxu0 %v12259
  %12935 = vmatprep.subr.bf16.mxu0 0
  %12936 = vmatpush1.bf16.msra.mxu0 %v12260
  %12937 = vmatprep.subr.bf16.mxu0 0
  %12938 = vmatpush1.bf16.msra.mxu0 %v12261
  %12939 = vmatprep.subr.bf16.mxu0 0
  %12940 = vmatpush1.bf16.msra.mxu0 %v12262
  %12941 = vmatprep.mubr.bf16.mxu0 %v8877
  %12942 = vmatmul.mubr.bf16.gmra.mrb[0].mxu0 %v8876
  %v12943 = vpop.f32.mrb[0].mxu0
  %v12944 = vadd.f32 %v12903, %v12943
  %v12945 = vpop.f32.mrb[0].mxu0
  %v12946 = vpop.f32.mrb[0].mxu0
  %v12947 = vadd.f32 %v12906, %v12946
  %v12948 = vpop.f32.mrb[0].mxu0
  %12949 = vdwg.mxu0
  %12950 = vmatprep.subr.bf16.mxu0 0
  %12951 = vmatpush1.bf16.msra.mxu0 %v12263
  %12952 = vmatprep.subr.bf16.mxu0 0
  %12953 = vmatpush1.bf16.msra.mxu0 %v12264
  %12954 = vmatprep.subr.bf16.mxu0 0
  %12955 = vmatpush1.bf16.msra.mxu0 %v12265
  %12956 = vmatprep.subr.bf16.mxu0 0
  %12957 = vmatpush1.bf16.msra.mxu0 %v12266
  %12958 = vmatprep.subr.bf16.mxu0 0
  %12959 = vmatpush1.bf16.msra.mxu0 %v12267
  %12960 = vmatprep.subr.bf16.mxu0 0
  %12961 = vmatpush1.bf16.msra.mxu0 %v12268
  %12962 = vmatprep.subr.bf16.mxu0 0
  %12963 = vmatpush1.bf16.msra.mxu0 %v12269
  %12964 = vmatprep.subr.bf16.mxu0 0
  %12965 = vmatpush1.bf16.msra.mxu0 %v12270
  %12966 = vmatprep.subr.bf16.mxu0 0
  %12967 = vmatpush1.bf16.msra.mxu0 %v12271
  %12968 = vmatprep.subr.bf16.mxu0 0
  %12969 = vmatpush1.bf16.msra.mxu0 %v12272
  %12970 = vmatprep.subr.bf16.mxu0 0
  %12971 = vmatpush1.bf16.msra.mxu0 %v12273
  %12972 = vmatprep.subr.bf16.mxu0 0
  %12973 = vmatpush1.bf16.msra.mxu0 %v12274
  %12974 = vmatprep.subr.bf16.mxu0 0
  %12975 = vmatpush1.bf16.msra.mxu0 %v12275
  %12976 = vmatprep.subr.bf16.mxu0 0
  %12977 = vmatpush1.bf16.msra.mxu0 %v12276
  %12978 = vmatprep.subr.bf16.mxu0 0
  %12979 = vmatpush1.bf16.msra.mxu0 %v12277
  %12980 = vmatprep.subr.bf16.mxu0 0
  %12981 = vmatpush1.bf16.msra.mxu0 %v12278
  %12982 = vmatprep.mubr.bf16.mxu0 %v8879
  %12983 = vmatmul.mubr.bf16.gmra.mrb[0].mxu0 %v8878
  %v12984 = vpop.f32.mrb[0].mxu0
  %v12985 = vadd.f32 %v12944, %v12984
  %v12986 = vpop.f32.mrb[0].mxu0
  %v12987 = vpop.f32.mrb[0].mxu0
  %v12988 = vadd.f32 %v12947, %v12987
  %v12989 = vpop.f32.mrb[0].mxu0
  %12990 = vdwg.mxu0
  %12991 = vmatprep.subr.bf16.mxu0 0
  %12992 = vmatpush1.bf16.msra.mxu0 %v12279
  %12993 = vmatprep.subr.bf16.mxu0 0
  %12994 = vmatpush1.bf16.msra.mxu0 %v12280
  %12995 = vmatprep.subr.bf16.mxu0 0
  %12996 = vmatpush1.bf16.msra.mxu0 %v12281
  %12997 = vmatprep.subr.bf16.mxu0 0
  %12998 = vmatpush1.bf16.msra.mxu0 %v12282
  %12999 = vmatprep.subr.bf16.mxu0 0
  %13000 = vmatpush1.bf16.msra.mxu0 %v12283
  %13001 = vmatprep.subr.bf16.mxu0 0
  %13002 = vmatpush1.bf16.msra.mxu0 %v12284
  %13003 = vmatprep.subr.bf16.mxu0 0
  %13004 = vmatpush1.bf16.msra.mxu0 %v12285
  %13005 = vmatprep.subr.bf16.mxu0 0
  %13006 = vmatpush1.bf16.msra.mxu0 %v12286
  %13007 = vmatprep.subr.bf16.mxu0 0
  %13008 = vmatpush1.bf16.msra.mxu0 %v12287
  %13009 = vmatprep.subr.bf16.mxu0 0
  %13010 = vmatpush1.bf16.msra.mxu0 %v12288
  %13011 = vmatprep.subr.bf16.mxu0 0
  %13012 = vmatpush1.bf16.msra.mxu0 %v12289
  %13013 = vmatprep.subr.bf16.mxu0 0
  %13014 = vmatpush1.bf16.msra.mxu0 %v12290
  %13015 = vmatprep.subr.bf16.mxu0 0
  %13016 = vmatpush1.bf16.msra.mxu0 %v12291
  %13017 = vmatprep.subr.bf16.mxu0 0
  %13018 = vmatpush1.bf16.msra.mxu0 %v12292
  %13019 = vmatprep.subr.bf16.mxu0 0
  %13020 = vmatpush1.bf16.msra.mxu0 %v12293
  %13021 = vmatprep.subr.bf16.mxu0 0
  %13022 = vmatpush1.bf16.msra.mxu0 %v12294
  %13023 = vmatprep.mubr.bf16.mxu0 %v8881
  %13024 = vmatmul.mubr.bf16.gmra.mrb[0].mxu0 %v8880
  %v13025 = vpop.f32.mrb[0].mxu0
  %v13026 = vadd.f32 %v12985, %v13025
  %v13027 = vpop.f32.mrb[0].mxu0
  %v13028 = vpop.f32.mrb[0].mxu0
  %v13029 = vadd.f32 %v12988, %v13028
  %v13030 = vpop.f32.mrb[0].mxu0
  %13031 = vdwg.mxu0
  %13032 = vmatprep.subr.bf16.mxu0 0
  %13033 = vmatpush1.bf16.msra.mxu0 %v12295
  %13034 = vmatprep.subr.bf16.mxu0 0
  %13035 = vmatpush1.bf16.msra.mxu0 %v12296
  %13036 = vmatprep.subr.bf16.mxu0 0
  %13037 = vmatpush1.bf16.msra.mxu0 %v12297
  %13038 = vmatprep.subr.bf16.mxu0 0
  %13039 = vmatpush1.bf16.msra.mxu0 %v12298
  %13040 = vmatprep.subr.bf16.mxu0 0
  %13041 = vmatpush1.bf16.msra.mxu0 %v12299
  %13042 = vmatprep.subr.bf16.mxu0 0
  %13043 = vmatpush1.bf16.msra.mxu0 %v12300
  %13044 = vmatprep.subr.bf16.mxu0 0
  %13045 = vmatpush1.bf16.msra.mxu0 %v12301
  %13046 = vmatprep.subr.bf16.mxu0 0
  %13047 = vmatpush1.bf16.msra.mxu0 %v12302
  %13048 = vmatprep.subr.bf16.mxu0 0
  %13049 = vmatpush1.bf16.msra.mxu0 %v12303
  %13050 = vmatprep.subr.bf16.mxu0 0
  %13051 = vmatpush1.bf16.msra.mxu0 %v12304
  %13052 = vmatprep.subr.bf16.mxu0 0
  %13053 = vmatpush1.bf16.msra.mxu0 %v12305
  %13054 = vmatprep.subr.bf16.mxu0 0
  %13055 = vmatpush1.bf16.msra.mxu0 %v12306
  %13056 = vmatprep.subr.bf16.mxu0 0
  %13057 = vmatpush1.bf16.msra.mxu0 %v12307
  %13058 = vmatprep.subr.bf16.mxu0 0
  %13059 = vmatpush1.bf16.msra.mxu0 %v12308
  %13060 = vmatprep.subr.bf16.mxu0 0
  %13061 = vmatpush1.bf16.msra.mxu0 %v12309
  %13062 = vmatprep.subr.bf16.mxu0 0
  %13063 = vmatpush1.bf16.msra.mxu0 %v12310
  %13064 = vmatprep.mubr.bf16.mxu0 %v8883
  %13065 = vmatmul.mubr.bf16.gmra.mrb[0].mxu0 %v8882
  %v13066 = vpop.f32.mrb[0].mxu0
  %v13067 = vadd.f32 %v13026, %v13066
  %v13068 = vpop.f32.mrb[0].mxu0
  %v13069 = vpop.f32.mrb[0].mxu0
  %v13070 = vadd.f32 %v13029, %v13069
  %v13071 = vpop.f32.mrb[0].mxu0
  %13072 = vdwg.mxu0
  %13073 = vmatprep.subr.bf16.mxu0 0
  %13074 = vmatpush1.bf16.msra.mxu0 %v12311
  %13075 = vmatprep.subr.bf16.mxu0 0
  %13076 = vmatpush1.bf16.msra.mxu0 %v12312
  %13077 = vmatprep.subr.bf16.mxu0 0
  %13078 = vmatpush1.bf16.msra.mxu0 %v12313
  %13079 = vmatprep.subr.bf16.mxu0 0
  %13080 = vmatpush1.bf16.msra.mxu0 %v12314
  %13081 = vmatprep.subr.bf16.mxu0 0
  %13082 = vmatpush1.bf16.msra.mxu0 %v12315
  %13083 = vmatprep.subr.bf16.mxu0 0
  %13084 = vmatpush1.bf16.msra.mxu0 %v12316
  %13085 = vmatprep.subr.bf16.mxu0 0
  %13086 = vmatpush1.bf16.msra.mxu0 %v12317
  %13087 = vmatprep.subr.bf16.mxu0 0
  %13088 = vmatpush1.bf16.msra.mxu0 %v12318
  %13089 = vmatprep.subr.bf16.mxu0 0
  %13090 = vmatpush1.bf16.msra.mxu0 %v12319
  %13091 = vmatprep.subr.bf16.mxu0 0
  %13092 = vmatpush1.bf16.msra.mxu0 %v12320
  %13093 = vmatprep.subr.bf16.mxu0 0
  %13094 = vmatpush1.bf16.msra.mxu0 %v12321
  %13095 = vmatprep.subr.bf16.mxu0 0
  %13096 = vmatpush1.bf16.msra.mxu0 %v12322
  %13097 = vmatprep.subr.bf16.mxu0 0
  %13098 = vmatpush1.bf16.msra.mxu0 %v12323
  %13099 = vmatprep.subr.bf16.mxu0 0
  %13100 = vmatpush1.bf16.msra.mxu0 %v12324
  %13101 = vmatprep.subr.bf16.mxu0 0
  %13102 = vmatpush1.bf16.msra.mxu0 %v12325
  %13103 = vmatprep.subr.bf16.mxu0 0
  %13104 = vmatpush1.bf16.msra.mxu0 %v12326
  %13105 = vmatprep.mubr.bf16.mxu0 %v8885
  %13106 = vmatmul.mubr.bf16.gmra.mrb[0].mxu0 %v8884
  %v13107 = vpop.f32.mrb[0].mxu0
  %v13108 = vadd.f32 %v13067, %v13107
  %v13109 = vpop.f32.mrb[0].mxu0
  %v13110 = vpop.f32.mrb[0].mxu0
  %v13111 = vadd.f32 %v13070, %v13110
  %v13112 = vpop.f32.mrb[0].mxu0
  %13113 = vdwg.mxu0
  %13114 = vmatprep.subr.bf16.mxu0 0
  %13115 = vmatpush1.bf16.msra.mxu0 %v12327
  %13116 = vmatprep.subr.bf16.mxu0 0
  %13117 = vmatpush1.bf16.msra.mxu0 %v12328
  %13118 = vmatprep.subr.bf16.mxu0 0
  %13119 = vmatpush1.bf16.msra.mxu0 %v12329
  %13120 = vmatprep.subr.bf16.mxu0 0
  %13121 = vmatpush1.bf16.msra.mxu0 %v12330
  %13122 = vmatprep.subr.bf16.mxu0 0
  %13123 = vmatpush1.bf16.msra.mxu0 %v12331
  %13124 = vmatprep.subr.bf16.mxu0 0
  %13125 = vmatpush1.bf16.msra.mxu0 %v12332
  %13126 = vmatprep.subr.bf16.mxu0 0
  %13127 = vmatpush1.bf16.msra.mxu0 %v12333
  %13128 = vmatprep.subr.bf16.mxu0 0
  %13129 = vmatpush1.bf16.msra.mxu0 %v12334
  %13130 = vmatprep.subr.bf16.mxu0 0
  %13131 = vmatpush1.bf16.msra.mxu0 %v12335
  %13132 = vmatprep.subr.bf16.mxu0 0
  %13133 = vmatpush1.bf16.msra.mxu0 %v12336
  %13134 = vmatprep.subr.bf16.mxu0 0
  %13135 = vmatpush1.bf16.msra.mxu0 %v12337
  %13136 = vmatprep.subr.bf16.mxu0 0
  %13137 = vmatpush1.bf16.msra.mxu0 %v12338
  %13138 = vmatprep.subr.bf16.mxu0 0
  %13139 = vmatpush1.bf16.msra.mxu0 %v12339
  %13140 = vmatprep.subr.bf16.mxu0 0
  %13141 = vmatpush1.bf16.msra.mxu0 %v12340
  %13142 = vmatprep.subr.bf16.mxu0 0
  %13143 = vmatpush1.bf16.msra.mxu0 %v12341
  %13144 = vmatprep.subr.bf16.mxu0 0
  %13145 = vmatpush1.bf16.msra.mxu0 %v12342
  %13146 = vmatprep.mubr.bf16.mxu0 %v8887
  %13147 = vmatmul.mubr.bf16.gmra.mrb[0].mxu0 %v8886
  %v13148 = vpop.f32.mrb[0].mxu0
  %v13149 = vadd.f32 %v13108, %v13148
  %v13150 = vpop.f32.mrb[0].mxu0
  %v13151 = vpop.f32.mrb[0].mxu0
  %v13152 = vadd.f32 %v13111, %v13151
  %v13153 = vpop.f32.mrb[0].mxu0
  %13154 = vdwg.mxu0
  %13155 = vmatprep.subr.bf16.mxu0 0
  %13156 = vmatpush1.bf16.msra.mxu0 %v12343
  %13157 = vmatprep.subr.bf16.mxu0 0
  %13158 = vmatpush1.bf16.msra.mxu0 %v12344
  %13159 = vmatprep.subr.bf16.mxu0 0
  %13160 = vmatpush1.bf16.msra.mxu0 %v12345
  %13161 = vmatprep.subr.bf16.mxu0 0
  %13162 = vmatpush1.bf16.msra.mxu0 %v12346
  %13163 = vmatprep.subr.bf16.mxu0 0
  %13164 = vmatpush1.bf16.msra.mxu0 %v12347
  %13165 = vmatprep.subr.bf16.mxu0 0
  %13166 = vmatpush1.bf16.msra.mxu0 %v12348
  %13167 = vmatprep.subr.bf16.mxu0 0
  %13168 = vmatpush1.bf16.msra.mxu0 %v12349
  %13169 = vmatprep.subr.bf16.mxu0 0
  %13170 = vmatpush1.bf16.msra.mxu0 %v12350
  %13171 = vmatprep.subr.bf16.mxu0 0
  %13172 = vmatpush1.bf16.msra.mxu0 %v12351
  %13173 = vmatprep.subr.bf16.mxu0 0
  %13174 = vmatpush1.bf16.msra.mxu0 %v12352
  %13175 = vmatprep.subr.bf16.mxu0 0
  %13176 = vmatpush1.bf16.msra.mxu0 %v12353
  %13177 = vmatprep.subr.bf16.mxu0 0
  %13178 = vmatpush1.bf16.msra.mxu0 %v12354
  %13179 = vmatprep.subr.bf16.mxu0 0
  %13180 = vmatpush1.bf16.msra.mxu0 %v12355
  %13181 = vmatprep.subr.bf16.mxu0 0
  %13182 = vmatpush1.bf16.msra.mxu0 %v12356
  %13183 = vmatprep.subr.bf16.mxu0 0
  %13184 = vmatpush1.bf16.msra.mxu0 %v12357
  %13185 = vmatprep.subr.bf16.mxu0 0
  %13186 = vmatpush1.bf16.msra.mxu0 %v12358
  %13187 = vmatprep.mubr.bf16.mxu0 %v8889
  %13188 = vmatmul.mubr.bf16.gmra.mrb[0].mxu0 %v8888
  %v13189 = vpop.f32.mrb[0].mxu0
  %v13190 = vadd.f32 %v13149, %v13189
  %v13191 = vpop.f32.mrb[0].mxu0
  %v13192 = vpop.f32.mrb[0].mxu0
  %v13193 = vadd.f32 %v13152, %v13192
  %v13194 = vpop.f32.mrb[0].mxu0
  %13195 = vdwg.mxu0
  %13196 = vmatprep.subr.bf16.mxu0 0
  %13197 = vmatpush1.bf16.msra.mxu0 %v12359
  %13198 = vmatprep.subr.bf16.mxu0 0
  %13199 = vmatpush1.bf16.msra.mxu0 %v12360
  %13200 = vmatprep.subr.bf16.mxu0 0
  %13201 = vmatpush1.bf16.msra.mxu0 %v12361
  %13202 = vmatprep.subr.bf16.mxu0 0
  %13203 = vmatpush1.bf16.msra.mxu0 %v12362
  %13204 = vmatprep.subr.bf16.mxu0 0
  %13205 = vmatpush1.bf16.msra.mxu0 %v12363
  %13206 = vmatprep.subr.bf16.mxu0 0
  %13207 = vmatpush1.bf16.msra.mxu0 %v12364
  %13208 = vmatprep.subr.bf16.mxu0 0
  %13209 = vmatpush1.bf16.msra.mxu0 %v12365
  %13210 = vmatprep.subr.bf16.mxu0 0
  %13211 = vmatpush1.bf16.msra.mxu0 %v12366
  %13212 = vmatprep.subr.bf16.mxu0 0
  %13213 = vmatpush1.bf16.msra.mxu0 %v12367
  %13214 = vmatprep.subr.bf16.mxu0 0
  %13215 = vmatpush1.bf16.msra.mxu0 %v12368
  %13216 = vmatprep.subr.bf16.mxu0 0
  %13217 = vmatpush1.bf16.msra.mxu0 %v12369
  %13218 = vmatprep.subr.bf16.mxu0 0
  %13219 = vmatpush1.bf16.msra.mxu0 %v12370
  %13220 = vmatprep.subr.bf16.mxu0 0
  %13221 = vmatpush1.bf16.msra.mxu0 %v12371
  %13222 = vmatprep.subr.bf16.mxu0 0
  %13223 = vmatpush1.bf16.msra.mxu0 %v12372
  %13224 = vmatprep.subr.bf16.mxu0 0
  %13225 = vmatpush1.bf16.msra.mxu0 %v12373
  %13226 = vmatprep.subr.bf16.mxu0 0
  %13227 = vmatpush1.bf16.msra.mxu0 %v12374
  %13228 = vmatprep.mubr.bf16.mxu0 %v8891
  %13229 = vmatmul.mubr.bf16.gmra.mrb[0].mxu0 %v8890
  %v13230 = vpop.f32.mrb[0].mxu0
  %v13231 = vadd.f32 %v13190, %v13230
  %v13232 = vpop.f32.mrb[0].mxu0
  %v13233 = vpop.f32.mrb[0].mxu0
  %v13234 = vadd.f32 %v13193, %v13233
  %v13235 = vpop.f32.mrb[0].mxu0
  %13236 = vdwg.mxu0
  %13237 = vmatprep.subr.bf16.mxu0 0
  %13238 = vmatpush1.bf16.msra.mxu0 %v12375
  %13239 = vmatprep.subr.bf16.mxu0 0
  %13240 = vmatpush1.bf16.msra.mxu0 %v12376
  %13241 = vmatprep.subr.bf16.mxu0 0
  %13242 = vmatpush1.bf16.msra.mxu0 %v12377
  %13243 = vmatprep.subr.bf16.mxu0 0
  %13244 = vmatpush1.bf16.msra.mxu0 %v12378
  %13245 = vmatprep.subr.bf16.mxu0 0
  %13246 = vmatpush1.bf16.msra.mxu0 %v12379
  %13247 = vmatprep.subr.bf16.mxu0 0
  %13248 = vmatpush1.bf16.msra.mxu0 %v12380
  %13249 = vmatprep.subr.bf16.mxu0 0
  %13250 = vmatpush1.bf16.msra.mxu0 %v12381
  %13251 = vmatprep.subr.bf16.mxu0 0
  %13252 = vmatpush1.bf16.msra.mxu0 %v12382
  %13253 = vmatprep.subr.bf16.mxu0 0
  %13254 = vmatpush1.bf16.msra.mxu0 %v12383
  %13255 = vmatprep.subr.bf16.mxu0 0
  %13256 = vmatpush1.bf16.msra.mxu0 %v12384
  %13257 = vmatprep.subr.bf16.mxu0 0
  %13258 = vmatpush1.bf16.msra.mxu0 %v12385
  %13259 = vmatprep.subr.bf16.mxu0 0
  %13260 = vmatpush1.bf16.msra.mxu0 %v12386
  %13261 = vmatprep.subr.bf16.mxu0 0
  %13262 = vmatpush1.bf16.msra.mxu0 %v12387
  %13263 = vmatprep.subr.bf16.mxu0 0
  %13264 = vmatpush1.bf16.msra.mxu0 %v12388
  %13265 = vmatprep.subr.bf16.mxu0 0
  %13266 = vmatpush1.bf16.msra.mxu0 %v12389
  %13267 = vmatprep.subr.bf16.mxu0 0
  %13268 = vmatpush1.bf16.msra.mxu0 %v12390
  %13269 = vmatprep.mubr.bf16.mxu0 %v8893
  %13270 = vmatmul.mubr.bf16.gmra.mrb[0].mxu0 %v8892
  %v13271 = vpop.f32.mrb[0].mxu0
  %v13272 = vadd.f32 %v13231, %v13271
  %v13273 = vpop.f32.mrb[0].mxu0
  %v13274 = vpop.f32.mrb[0].mxu0
  %v13275 = vadd.f32 %v13234, %v13274
  %v13276 = vpop.f32.mrb[0].mxu0
  %13277 = vdwg.mxu0
  %13278 = vmatprep.subr.bf16.mxu0 0
  %13279 = vmatpush1.bf16.msra.mxu0 %v12391
  %13280 = vmatprep.subr.bf16.mxu0 0
  %13281 = vmatpush1.bf16.msra.mxu0 %v12392
  %13282 = vmatprep.subr.bf16.mxu0 0
  %13283 = vmatpush1.bf16.msra.mxu0 %v12393
  %13284 = vmatprep.subr.bf16.mxu0 0
  %13285 = vmatpush1.bf16.msra.mxu0 %v12394
  %13286 = vmatprep.subr.bf16.mxu0 0
  %13287 = vmatpush1.bf16.msra.mxu0 %v12395
  %13288 = vmatprep.subr.bf16.mxu0 0
  %13289 = vmatpush1.bf16.msra.mxu0 %v12396
  %13290 = vmatprep.subr.bf16.mxu0 0
  %13291 = vmatpush1.bf16.msra.mxu0 %v12397
  %13292 = vmatprep.subr.bf16.mxu0 0
  %13293 = vmatpush1.bf16.msra.mxu0 %v12398
  %13294 = vmatprep.subr.bf16.mxu0 0
  %13295 = vmatpush1.bf16.msra.mxu0 %v12399
  %13296 = vmatprep.subr.bf16.mxu0 0
  %13297 = vmatpush1.bf16.msra.mxu0 %v12400
  %13298 = vmatprep.subr.bf16.mxu0 0
  %13299 = vmatpush1.bf16.msra.mxu0 %v12401
  %13300 = vmatprep.subr.bf16.mxu0 0
  %13301 = vmatpush1.bf16.msra.mxu0 %v12402
  %13302 = vmatprep.subr.bf16.mxu0 0
  %13303 = vmatpush1.bf16.msra.mxu0 %v12403
  %13304 = vmatprep.subr.bf16.mxu0 0
  %13305 = vmatpush1.bf16.msra.mxu0 %v12404
  %13306 = vmatprep.subr.bf16.mxu0 0
  %13307 = vmatpush1.bf16.msra.mxu0 %v12405
  %13308 = vmatprep.subr.bf16.mxu0 0
  %13309 = vmatpush1.bf16.msra.mxu0 %v12406
  %13310 = vmatprep.mubr.bf16.mxu0 %v8895
  %13311 = vmatmul.mubr.bf16.gmra.mrb[0].mxu0 %v8894
  %v13312 = vpop.f32.mrb[0].mxu0
  %v13313 = vadd.f32 %v13272, %v13312
  %v13314 = vpop.f32.mrb[0].mxu0
  %v13315 = vpop.f32.mrb[0].mxu0
  %v13316 = vadd.f32 %v13275, %v13315
  %v13317 = vpop.f32.mrb[0].mxu0
  %13318 = vdwg.mxu0
  %v13319 = vadd.f32 %v11125, %v13313
  %v13320 = vadd.f32 %v11126, %v13316
  %13321 = vst.msk [vmem:[#allocation3] sm:$0xff] %vm11122, %v13319
  %13322 = vst.msk [vmem:[#allocation3 + $0x8] sm:$0xff] %vm11122, %v13320
  %v13323 = vld [vmem:[#allocation4] sm:$0xff]
  %v13324 = vld [vmem:[#allocation4 + $0x8] sm:$0xff]
  %v13837 = vunpack.c.l.b16 %v30
  %v13838 = vunpack.c.l.b16 %v31
  %v13839 = vunpack.c.l.b16 %v32
  %v13840 = vunpack.c.l.b16 %v33
  %v13841 = vunpack.c.l.b16 %v34
  %v13842 = vunpack.c.l.b16 %v35
  %v13843 = vunpack.c.l.b16 %v36
  %v13844 = vunpack.c.l.b16 %v37
  %v13845 = vunpack.c.l.b16 %v38
  %v13846 = vunpack.c.l.b16 %v39
  %v13847 = vunpack.c.l.b16 %v40
  %v13848 = vunpack.c.l.b16 %v41
  %v13849 = vunpack.c.l.b16 %v42
  %v13850 = vunpack.c.l.b16 %v43
  %v13851 = vunpack.c.l.b16 %v44
  %v13852 = vunpack.c.l.b16 %v45
  %v13853 = vunpack.c.l.b16 %v46
  %v13854 = vunpack.c.l.b16 %v47
  %v13855 = vunpack.c.l.b16 %v48
  %v13856 = vunpack.c.l.b16 %v49
  %v13857 = vunpack.c.l.b16 %v50
  %v13858 = vunpack.c.l.b16 %v51
  %v13859 = vunpack.c.l.b16 %v52
  %v13860 = vunpack.c.l.b16 %v53
  %v13861 = vunpack.c.l.b16 %v54
  %v13862 = vunpack.c.l.b16 %v55
  %v13863 = vunpack.c.l.b16 %v56
  %v13864 = vunpack.c.l.b16 %v57
  %v13865 = vunpack.c.l.b16 %v58
  %v13866 = vunpack.c.l.b16 %v59
  %v13867 = vunpack.c.l.b16 %v60
  %v13868 = vunpack.c.l.b16 %v61
  %v13869 = vunpack.c.l.b16 %v62
  %v13870 = vunpack.c.l.b16 %v63
  %v13871 = vunpack.c.l.b16 %v64
  %v13872 = vunpack.c.l.b16 %v65
  %v13873 = vunpack.c.l.b16 %v66
  %v13874 = vunpack.c.l.b16 %v67
  %v13875 = vunpack.c.l.b16 %v68
  %v13876 = vunpack.c.l.b16 %v69
  %v13877 = vunpack.c.l.b16 %v70
  %v13878 = vunpack.c.l.b16 %v71
  %v13879 = vunpack.c.l.b16 %v72
  %v13880 = vunpack.c.l.b16 %v73
  %v13881 = vunpack.c.l.b16 %v74
  %v13882 = vunpack.c.l.b16 %v75
  %v13883 = vunpack.c.l.b16 %v76
  %v13884 = vunpack.c.l.b16 %v77
  %v13885 = vunpack.c.l.b16 %v78
  %v13886 = vunpack.c.l.b16 %v79
  %v13887 = vunpack.c.l.b16 %v80
  %v13888 = vunpack.c.l.b16 %v81
  %v13889 = vunpack.c.l.b16 %v82
  %v13890 = vunpack.c.l.b16 %v83
  %v13891 = vunpack.c.l.b16 %v84
  %v13892 = vunpack.c.l.b16 %v85
  %v13893 = vunpack.c.l.b16 %v86
  %v13894 = vunpack.c.l.b16 %v87
  %v13895 = vunpack.c.l.b16 %v88
  %v13896 = vunpack.c.l.b16 %v89
  %v13897 = vunpack.c.l.b16 %v90
  %v13898 = vunpack.c.l.b16 %v91
  %v13899 = vunpack.c.l.b16 %v92
  %v13900 = vunpack.c.l.b16 %v93
  %v13901 = vunpack.c.l.b16 %v94
  %v13902 = vunpack.c.l.b16 %v95
  %v13903 = vunpack.c.l.b16 %v96
  %v13904 = vunpack.c.l.b16 %v97
  %v13905 = vunpack.c.l.b16 %v98
  %v13906 = vunpack.c.l.b16 %v99
  %v13907 = vunpack.c.l.b16 %v100
  %v13908 = vunpack.c.l.b16 %v101
  %v13909 = vunpack.c.l.b16 %v102
  %v13910 = vunpack.c.l.b16 %v103
  %v13911 = vunpack.c.l.b16 %v104
  %v13912 = vunpack.c.l.b16 %v105
  %v13913 = vunpack.c.l.b16 %v106
  %v13914 = vunpack.c.l.b16 %v107
  %v13915 = vunpack.c.l.b16 %v108
  %v13916 = vunpack.c.l.b16 %v109
  %v13917 = vunpack.c.l.b16 %v110
  %v13918 = vunpack.c.l.b16 %v111
  %v13919 = vunpack.c.l.b16 %v112
  %v13920 = vunpack.c.l.b16 %v113
  %v13921 = vunpack.c.l.b16 %v114
  %v13922 = vunpack.c.l.b16 %v115
  %v13923 = vunpack.c.l.b16 %v116
  %v13924 = vunpack.c.l.b16 %v117
  %v13925 = vunpack.c.l.b16 %v118
  %v13926 = vunpack.c.l.b16 %v119
  %v13927 = vunpack.c.l.b16 %v120
  %v13928 = vunpack.c.l.b16 %v121
  %v13929 = vunpack.c.l.b16 %v122
  %v13930 = vunpack.c.l.b16 %v123
  %v13931 = vunpack.c.l.b16 %v124
  %v13932 = vunpack.c.l.b16 %v125
  %v13933 = vunpack.c.l.b16 %v126
  %v13934 = vunpack.c.l.b16 %v127
  %v13935 = vunpack.c.l.b16 %v128
  %v13936 = vunpack.c.l.b16 %v129
  %v13937 = vunpack.c.l.b16 %v130
  %v13938 = vunpack.c.l.b16 %v131
  %v13939 = vunpack.c.l.b16 %v132
  %v13940 = vunpack.c.l.b16 %v133
  %v13941 = vunpack.c.l.b16 %v134
  %v13942 = vunpack.c.l.b16 %v135
  %v13943 = vunpack.c.l.b16 %v136
  %v13944 = vunpack.c.l.b16 %v137
  %v13945 = vunpack.c.l.b16 %v138
  %v13946 = vunpack.c.l.b16 %v139
  %v13947 = vunpack.c.l.b16 %v140
  %v13948 = vunpack.c.l.b16 %v141
  %v13949 = vunpack.c.l.b16 %v142
  %v13950 = vunpack.c.l.b16 %v143
  %v13951 = vunpack.c.l.b16 %v144
  %v13952 = vunpack.c.l.b16 %v145
  %v13953 = vunpack.c.l.b16 %v146
  %v13954 = vunpack.c.l.b16 %v147
  %v13955 = vunpack.c.l.b16 %v148
  %v13956 = vunpack.c.l.b16 %v149
  %v13957 = vunpack.c.l.b16 %v150
  %v13958 = vunpack.c.l.b16 %v151
  %v13959 = vunpack.c.l.b16 %v152
  %v13960 = vunpack.c.l.b16 %v153
  %v13961 = vunpack.c.l.b16 %v154
  %v13962 = vunpack.c.l.b16 %v155
  %v13963 = vunpack.c.l.b16 %v156
  %v13964 = vunpack.c.l.b16 %v157
  %v13965 = vunpack.c.l.b16 %v158
  %v13966 = vunpack.c.l.b16 %v159
  %v13967 = vunpack.c.l.b16 %v160
  %v13968 = vunpack.c.l.b16 %v161
  %v13969 = vunpack.c.l.b16 %v162
  %v13970 = vunpack.c.l.b16 %v163
  %v13971 = vunpack.c.l.b16 %v164
  %v13972 = vunpack.c.l.b16 %v165
  %v13973 = vunpack.c.l.b16 %v166
  %v13974 = vunpack.c.l.b16 %v167
  %v13975 = vunpack.c.l.b16 %v168
  %v13976 = vunpack.c.l.b16 %v169
  %v13977 = vunpack.c.l.b16 %v170
  %v13978 = vunpack.c.l.b16 %v171
  %v13979 = vunpack.c.l.b16 %v172
  %v13980 = vunpack.c.l.b16 %v173
  %v13981 = vunpack.c.l.b16 %v174
  %v13982 = vunpack.c.l.b16 %v175
  %v13983 = vunpack.c.l.b16 %v176
  %v13984 = vunpack.c.l.b16 %v177
  %v13985 = vunpack.c.l.b16 %v178
  %v13986 = vunpack.c.l.b16 %v179
  %v13987 = vunpack.c.l.b16 %v180
  %v13988 = vunpack.c.l.b16 %v181
  %v13989 = vunpack.c.l.b16 %v182
  %v13990 = vunpack.c.l.b16 %v183
  %v13991 = vunpack.c.l.b16 %v184
  %v13992 = vunpack.c.l.b16 %v185
  %v13993 = vunpack.c.l.b16 %v186
  %v13994 = vunpack.c.l.b16 %v187
  %v13995 = vunpack.c.l.b16 %v188
  %v13996 = vunpack.c.l.b16 %v189
  %v13997 = vunpack.c.l.b16 %v190
  %v13998 = vunpack.c.l.b16 %v191
  %v13999 = vunpack.c.l.b16 %v192
  %v14000 = vunpack.c.l.b16 %v193
  %v14001 = vunpack.c.l.b16 %v194
  %v14002 = vunpack.c.l.b16 %v195
  %v14003 = vunpack.c.l.b16 %v196
  %v14004 = vunpack.c.l.b16 %v197
  %v14005 = vunpack.c.l.b16 %v198
  %v14006 = vunpack.c.l.b16 %v199
  %v14007 = vunpack.c.l.b16 %v200
  %v14008 = vunpack.c.l.b16 %v201
  %v14009 = vunpack.c.l.b16 %v202
  %v14010 = vunpack.c.l.b16 %v203
  %v14011 = vunpack.c.l.b16 %v204
  %v14012 = vunpack.c.l.b16 %v205
  %v14013 = vunpack.c.l.b16 %v206
  %v14014 = vunpack.c.l.b16 %v207
  %v14015 = vunpack.c.l.b16 %v208
  %v14016 = vunpack.c.l.b16 %v209
  %v14017 = vunpack.c.l.b16 %v210
  %v14018 = vunpack.c.l.b16 %v211
  %v14019 = vunpack.c.l.b16 %v212
  %v14020 = vunpack.c.l.b16 %v213
  %v14021 = vunpack.c.l.b16 %v214
  %v14022 = vunpack.c.l.b16 %v215
  %v14023 = vunpack.c.l.b16 %v216
  %v14024 = vunpack.c.l.b16 %v217
  %v14025 = vunpack.c.l.b16 %v218
  %v14026 = vunpack.c.l.b16 %v219
  %v14027 = vunpack.c.l.b16 %v220
  %v14028 = vunpack.c.l.b16 %v221
  %v14029 = vunpack.c.l.b16 %v222
  %v14030 = vunpack.c.l.b16 %v223
  %v14031 = vunpack.c.l.b16 %v224
  %v14032 = vunpack.c.l.b16 %v225
  %v14033 = vunpack.c.l.b16 %v226
  %v14034 = vunpack.c.l.b16 %v227
  %v14035 = vunpack.c.l.b16 %v228
  %v14036 = vunpack.c.l.b16 %v229
  %v14037 = vunpack.c.l.b16 %v230
  %v14038 = vunpack.c.l.b16 %v231
  %v14039 = vunpack.c.l.b16 %v232
  %v14040 = vunpack.c.l.b16 %v233
  %v14041 = vunpack.c.l.b16 %v234
  %v14042 = vunpack.c.l.b16 %v235
  %v14043 = vunpack.c.l.b16 %v236
  %v14044 = vunpack.c.l.b16 %v237
  %v14045 = vunpack.c.l.b16 %v238
  %v14046 = vunpack.c.l.b16 %v239
  %v14047 = vunpack.c.l.b16 %v240
  %v14048 = vunpack.c.l.b16 %v241
  %v14049 = vunpack.c.l.b16 %v242
  %v14050 = vunpack.c.l.b16 %v243
  %v14051 = vunpack.c.l.b16 %v244
  %v14052 = vunpack.c.l.b16 %v245
  %v14053 = vunpack.c.l.b16 %v246
  %v14054 = vunpack.c.l.b16 %v247
  %v14055 = vunpack.c.l.b16 %v248
  %v14056 = vunpack.c.l.b16 %v249
  %v14057 = vunpack.c.l.b16 %v250
  %v14058 = vunpack.c.l.b16 %v251
  %v14059 = vunpack.c.l.b16 %v252
  %v14060 = vunpack.c.l.b16 %v253
  %v14061 = vunpack.c.l.b16 %v254
  %v14062 = vunpack.c.l.b16 %v255
  %v14063 = vunpack.c.l.b16 %v256
  %v14064 = vunpack.c.l.b16 %v257
  %v14065 = vunpack.c.l.b16 %v258
  %v14066 = vunpack.c.l.b16 %v259
  %v14067 = vunpack.c.l.b16 %v260
  %v14068 = vunpack.c.l.b16 %v261
  %v14069 = vunpack.c.l.b16 %v262
  %v14070 = vunpack.c.l.b16 %v263
  %v14071 = vunpack.c.l.b16 %v264
  %v14072 = vunpack.c.l.b16 %v265
  %v14073 = vunpack.c.l.b16 %v266
  %v14074 = vunpack.c.l.b16 %v267
  %v14075 = vunpack.c.l.b16 %v268
  %v14076 = vunpack.c.l.b16 %v269
  %v14077 = vunpack.c.l.b16 %v270
  %v14078 = vunpack.c.l.b16 %v271
  %v14079 = vunpack.c.l.b16 %v272
  %v14080 = vunpack.c.l.b16 %v273
  %v14081 = vunpack.c.l.b16 %v274
  %v14082 = vunpack.c.l.b16 %v275
  %v14083 = vunpack.c.l.b16 %v276
  %v14084 = vunpack.c.l.b16 %v277
  %v14085 = vunpack.c.l.b16 %v278
  %v14086 = vunpack.c.l.b16 %v279
  %v14087 = vunpack.c.l.b16 %v280
  %v14088 = vunpack.c.l.b16 %v281
  %v14089 = vunpack.c.l.b16 %v282
  %v14090 = vunpack.c.l.b16 %v283
  %v14091 = vunpack.c.l.b16 %v284
  %v14092 = vunpack.c.l.b16 %v285
  %v14093 = vunpack.c.l.b16 %v286
  %v14094 = vunpack.c.l.b16 %v287
  %v14095 = vunpack.c.l.b16 %v288
  %v14096 = vunpack.c.l.b16 %v289
  %v14097 = vunpack.c.l.b16 %v290
  %v14098 = vunpack.c.l.b16 %v291
  %v14099 = vunpack.c.l.b16 %v292
  %v14100 = vunpack.c.l.b16 %v293
  %v14101 = vunpack.c.l.b16 %v294
  %v14102 = vunpack.c.l.b16 %v295
  %v14103 = vunpack.c.l.b16 %v296
  %v14104 = vunpack.c.l.b16 %v297
  %v14105 = vunpack.c.l.b16 %v298
  %v14106 = vunpack.c.l.b16 %v299
  %v14107 = vunpack.c.l.b16 %v300
  %v14108 = vunpack.c.l.b16 %v301
  %v14109 = vunpack.c.l.b16 %v302
  %v14110 = vunpack.c.l.b16 %v303
  %v14111 = vunpack.c.l.b16 %v304
  %v14112 = vunpack.c.l.b16 %v305
  %v14113 = vunpack.c.l.b16 %v306
  %v14114 = vunpack.c.l.b16 %v307
  %v14115 = vunpack.c.l.b16 %v308
  %v14116 = vunpack.c.l.b16 %v309
  %v14117 = vunpack.c.l.b16 %v310
  %v14118 = vunpack.c.l.b16 %v311
  %v14119 = vunpack.c.l.b16 %v312
  %v14120 = vunpack.c.l.b16 %v313
  %v14121 = vunpack.c.l.b16 %v314
  %v14122 = vunpack.c.l.b16 %v315
  %v14123 = vunpack.c.l.b16 %v316
  %v14124 = vunpack.c.l.b16 %v317
  %v14125 = vunpack.c.l.b16 %v318
  %v14126 = vunpack.c.l.b16 %v319
  %v14127 = vunpack.c.l.b16 %v320
  %v14128 = vunpack.c.l.b16 %v321
  %v14129 = vunpack.c.l.b16 %v322
  %v14130 = vunpack.c.l.b16 %v323
  %v14131 = vunpack.c.l.b16 %v324
  %v14132 = vunpack.c.l.b16 %v325
  %v14133 = vunpack.c.l.b16 %v326
  %v14134 = vunpack.c.l.b16 %v327
  %v14135 = vunpack.c.l.b16 %v328
  %v14136 = vunpack.c.l.b16 %v329
  %v14137 = vunpack.c.l.b16 %v330
  %v14138 = vunpack.c.l.b16 %v331
  %v14139 = vunpack.c.l.b16 %v332
  %v14140 = vunpack.c.l.b16 %v333
  %v14141 = vunpack.c.l.b16 %v334
  %v14142 = vunpack.c.l.b16 %v335
  %v14143 = vunpack.c.l.b16 %v336
  %v14144 = vunpack.c.l.b16 %v337
  %v14145 = vunpack.c.l.b16 %v338
  %v14146 = vunpack.c.l.b16 %v339
  %v14147 = vunpack.c.l.b16 %v340
  %v14148 = vunpack.c.l.b16 %v341
  %v14149 = vunpack.c.l.b16 %v342
  %v14150 = vunpack.c.l.b16 %v343
  %v14151 = vunpack.c.l.b16 %v344
  %v14152 = vunpack.c.l.b16 %v345
  %v14153 = vunpack.c.l.b16 %v346
  %v14154 = vunpack.c.l.b16 %v347
  %v14155 = vunpack.c.l.b16 %v348
  %v14156 = vunpack.c.l.b16 %v349
  %v14157 = vunpack.c.l.b16 %v350
  %v14158 = vunpack.c.l.b16 %v351
  %v14159 = vunpack.c.l.b16 %v352
  %v14160 = vunpack.c.l.b16 %v353
  %v14161 = vunpack.c.l.b16 %v354
  %v14162 = vunpack.c.l.b16 %v355
  %v14163 = vunpack.c.l.b16 %v356
  %v14164 = vunpack.c.l.b16 %v357
  %v14165 = vunpack.c.l.b16 %v358
  %v14166 = vunpack.c.l.b16 %v359
  %v14167 = vunpack.c.l.b16 %v360
  %v14168 = vunpack.c.l.b16 %v361
  %v14169 = vunpack.c.l.b16 %v362
  %v14170 = vunpack.c.l.b16 %v363
  %v14171 = vunpack.c.l.b16 %v364
  %v14172 = vunpack.c.l.b16 %v365
  %v14173 = vunpack.c.l.b16 %v366
  %v14174 = vunpack.c.l.b16 %v367
  %v14175 = vunpack.c.l.b16 %v368
  %v14176 = vunpack.c.l.b16 %v369
  %v14177 = vunpack.c.l.b16 %v370
  %v14178 = vunpack.c.l.b16 %v371
  %v14179 = vunpack.c.l.b16 %v372
  %v14180 = vunpack.c.l.b16 %v373
  %v14181 = vunpack.c.l.b16 %v374
  %v14182 = vunpack.c.l.b16 %v375
  %v14183 = vunpack.c.l.b16 %v376
  %v14184 = vunpack.c.l.b16 %v377
  %v14185 = vunpack.c.l.b16 %v378
  %v14186 = vunpack.c.l.b16 %v379
  %v14187 = vunpack.c.l.b16 %v380
  %v14188 = vunpack.c.l.b16 %v381
  %v14189 = vunpack.c.l.b16 %v382
  %v14190 = vunpack.c.l.b16 %v383
  %v14191 = vunpack.c.l.b16 %v384
  %v14192 = vunpack.c.l.b16 %v385
  %v14193 = vunpack.c.l.b16 %v386
  %v14194 = vunpack.c.l.b16 %v387
  %v14195 = vunpack.c.l.b16 %v388
  %v14196 = vunpack.c.l.b16 %v389
  %v14197 = vunpack.c.l.b16 %v390
  %v14198 = vunpack.c.l.b16 %v391
  %v14199 = vunpack.c.l.b16 %v392
  %v14200 = vunpack.c.l.b16 %v393
  %v14201 = vunpack.c.l.b16 %v394
  %v14202 = vunpack.c.l.b16 %v395
  %v14203 = vunpack.c.l.b16 %v396
  %v14204 = vunpack.c.l.b16 %v397
  %v14205 = vunpack.c.l.b16 %v398
  %v14206 = vunpack.c.l.b16 %v399
  %v14207 = vunpack.c.l.b16 %v400
  %v14208 = vunpack.c.l.b16 %v401
  %v14209 = vunpack.c.l.b16 %v402
  %v14210 = vunpack.c.l.b16 %v403
  %v14211 = vunpack.c.l.b16 %v404
  %v14212 = vunpack.c.l.b16 %v405
  %v14213 = vunpack.c.l.b16 %v406
  %v14214 = vunpack.c.l.b16 %v407
  %v14215 = vunpack.c.l.b16 %v408
  %v14216 = vunpack.c.l.b16 %v409
  %v14217 = vunpack.c.l.b16 %v410
  %v14218 = vunpack.c.l.b16 %v411
  %v14219 = vunpack.c.l.b16 %v412
  %v14220 = vunpack.c.l.b16 %v413
  %v14221 = vunpack.c.l.b16 %v414
  %v14222 = vunpack.c.l.b16 %v415
  %v14223 = vunpack.c.l.b16 %v416
  %v14224 = vunpack.c.l.b16 %v417
  %v14225 = vunpack.c.l.b16 %v418
  %v14226 = vunpack.c.l.b16 %v419
  %v14227 = vunpack.c.l.b16 %v420
  %v14228 = vunpack.c.l.b16 %v421
  %v14229 = vunpack.c.l.b16 %v422
  %v14230 = vunpack.c.l.b16 %v423
  %v14231 = vunpack.c.l.b16 %v424
  %v14232 = vunpack.c.l.b16 %v425
  %v14233 = vunpack.c.l.b16 %v426
  %v14234 = vunpack.c.l.b16 %v427
  %v14235 = vunpack.c.l.b16 %v428
  %v14236 = vunpack.c.l.b16 %v429
  %v14237 = vunpack.c.l.b16 %v430
  %v14238 = vunpack.c.l.b16 %v431
  %v14239 = vunpack.c.l.b16 %v432
  %v14240 = vunpack.c.l.b16 %v433
  %v14241 = vunpack.c.l.b16 %v434
  %v14242 = vunpack.c.l.b16 %v435
  %v14243 = vunpack.c.l.b16 %v436
  %v14244 = vunpack.c.l.b16 %v437
  %v14245 = vunpack.c.l.b16 %v438
  %v14246 = vunpack.c.l.b16 %v439
  %v14247 = vunpack.c.l.b16 %v440
  %v14248 = vunpack.c.l.b16 %v441
  %v14249 = vunpack.c.l.b16 %v442
  %v14250 = vunpack.c.l.b16 %v443
  %v14251 = vunpack.c.l.b16 %v444
  %v14252 = vunpack.c.l.b16 %v445
  %v14253 = vunpack.c.l.b16 %v446
  %v14254 = vunpack.c.l.b16 %v447
  %v14255 = vunpack.c.l.b16 %v448
  %v14256 = vunpack.c.l.b16 %v449
  %v14257 = vunpack.c.l.b16 %v450
  %v14258 = vunpack.c.l.b16 %v451
  %v14259 = vunpack.c.l.b16 %v452
  %v14260 = vunpack.c.l.b16 %v453
  %v14261 = vunpack.c.l.b16 %v454
  %v14262 = vunpack.c.l.b16 %v455
  %v14263 = vunpack.c.l.b16 %v456
  %v14264 = vunpack.c.l.b16 %v457
  %v14265 = vunpack.c.l.b16 %v458
  %v14266 = vunpack.c.l.b16 %v459
  %v14267 = vunpack.c.l.b16 %v460
  %v14268 = vunpack.c.l.b16 %v461
  %v14269 = vunpack.c.l.b16 %v462
  %v14270 = vunpack.c.l.b16 %v463
  %v14271 = vunpack.c.l.b16 %v464
  %v14272 = vunpack.c.l.b16 %v465
  %v14273 = vunpack.c.l.b16 %v466
  %v14274 = vunpack.c.l.b16 %v467
  %v14275 = vunpack.c.l.b16 %v468
  %v14276 = vunpack.c.l.b16 %v469
  %v14277 = vunpack.c.l.b16 %v470
  %v14278 = vunpack.c.l.b16 %v471
  %v14279 = vunpack.c.l.b16 %v472
  %v14280 = vunpack.c.l.b16 %v473
  %v14281 = vunpack.c.l.b16 %v474
  %v14282 = vunpack.c.l.b16 %v475
  %v14283 = vunpack.c.l.b16 %v476
  %v14284 = vunpack.c.l.b16 %v477
  %v14285 = vunpack.c.l.b16 %v478
  %v14286 = vunpack.c.l.b16 %v479
  %v14287 = vunpack.c.l.b16 %v480
  %v14288 = vunpack.c.l.b16 %v481
  %v14289 = vunpack.c.l.b16 %v482
  %v14290 = vunpack.c.l.b16 %v483
  %v14291 = vunpack.c.l.b16 %v484
  %v14292 = vunpack.c.l.b16 %v485
  %v14293 = vunpack.c.l.b16 %v486
  %v14294 = vunpack.c.l.b16 %v487
  %v14295 = vunpack.c.l.b16 %v488
  %v14296 = vunpack.c.l.b16 %v489
  %v14297 = vunpack.c.l.b16 %v490
  %v14298 = vunpack.c.l.b16 %v491
  %v14299 = vunpack.c.l.b16 %v492
  %v14300 = vunpack.c.l.b16 %v493
  %v14301 = vunpack.c.l.b16 %v494
  %v14302 = vunpack.c.l.b16 %v495
  %v14303 = vunpack.c.l.b16 %v496
  %v14304 = vunpack.c.l.b16 %v497
  %v14305 = vunpack.c.l.b16 %v498
  %v14306 = vunpack.c.l.b16 %v499
  %v14307 = vunpack.c.l.b16 %v500
  %v14308 = vunpack.c.l.b16 %v501
  %v14309 = vunpack.c.l.b16 %v502
  %v14310 = vunpack.c.l.b16 %v503
  %v14311 = vunpack.c.l.b16 %v504
  %v14312 = vunpack.c.l.b16 %v505
  %v14313 = vunpack.c.l.b16 %v506
  %v14314 = vunpack.c.l.b16 %v507
  %v14315 = vunpack.c.l.b16 %v508
  %v14316 = vunpack.c.l.b16 %v509
  %v14317 = vunpack.c.l.b16 %v510
  %v14318 = vunpack.c.l.b16 %v511
  %v14319 = vunpack.c.l.b16 %v512
  %v14320 = vunpack.c.l.b16 %v513
  %v14321 = vunpack.c.l.b16 %v514
  %v14322 = vunpack.c.l.b16 %v515
  %v14323 = vunpack.c.l.b16 %v516
  %v14324 = vunpack.c.l.b16 %v517
  %v14325 = vunpack.c.l.b16 %v518
  %v14326 = vunpack.c.l.b16 %v519
  %v14327 = vunpack.c.l.b16 %v520
  %v14328 = vunpack.c.l.b16 %v521
  %v14329 = vunpack.c.l.b16 %v522
  %v14330 = vunpack.c.l.b16 %v523
  %v14331 = vunpack.c.l.b16 %v524
  %v14332 = vunpack.c.l.b16 %v525
  %v14333 = vunpack.c.l.b16 %v526
  %v14334 = vunpack.c.l.b16 %v527
  %v14335 = vunpack.c.l.b16 %v528
  %v14336 = vunpack.c.l.b16 %v529
  %v14337 = vunpack.c.l.b16 %v530
  %v14338 = vunpack.c.l.b16 %v531
  %v14339 = vunpack.c.l.b16 %v532
  %v14340 = vunpack.c.l.b16 %v533
  %v14341 = vunpack.c.l.b16 %v534
  %v14342 = vunpack.c.l.b16 %v535
  %v14343 = vunpack.c.l.b16 %v536
  %v14344 = vunpack.c.l.b16 %v537
  %v14345 = vunpack.c.l.b16 %v538
  %v14346 = vunpack.c.l.b16 %v539
  %v14347 = vunpack.c.l.b16 %v540
  %v14348 = vunpack.c.l.b16 %v541
  %v14349 = vpack.c.b16 %v13838, %v13837
  %v14350 = vpack.c.b16 %v13840, %v13839
  %v14351 = vpack.c.b16 %v13842, %v13841
  %v14352 = vpack.c.b16 %v13844, %v13843
  %v14353 = vpack.c.b16 %v13846, %v13845
  %v14354 = vpack.c.b16 %v13848, %v13847
  %v14355 = vpack.c.b16 %v13850, %v13849
  %v14356 = vpack.c.b16 %v13852, %v13851
  %v14357 = vpack.c.b16 %v13854, %v13853
  %v14358 = vpack.c.b16 %v13856, %v13855
  %v14359 = vpack.c.b16 %v13858, %v13857
  %v14360 = vpack.c.b16 %v13860, %v13859
  %v14361 = vpack.c.b16 %v13862, %v13861
  %v14362 = vpack.c.b16 %v13864, %v13863
  %v14363 = vpack.c.b16 %v13866, %v13865
  %v14364 = vpack.c.b16 %v13868, %v13867
  %v14365 = vpack.c.b16 %v13870, %v13869
  %v14366 = vpack.c.b16 %v13872, %v13871
  %v14367 = vpack.c.b16 %v13874, %v13873
  %v14368 = vpack.c.b16 %v13876, %v13875
  %v14369 = vpack.c.b16 %v13878, %v13877
  %v14370 = vpack.c.b16 %v13880, %v13879
  %v14371 = vpack.c.b16 %v13882, %v13881
  %v14372 = vpack.c.b16 %v13884, %v13883
  %v14373 = vpack.c.b16 %v13886, %v13885
  %v14374 = vpack.c.b16 %v13888, %v13887
  %v14375 = vpack.c.b16 %v13890, %v13889
  %v14376 = vpack.c.b16 %v13892, %v13891
  %v14377 = vpack.c.b16 %v13894, %v13893
  %v14378 = vpack.c.b16 %v13896, %v13895
  %v14379 = vpack.c.b16 %v13898, %v13897
  %v14380 = vpack.c.b16 %v13900, %v13899
  %v14381 = vpack.c.b16 %v13902, %v13901
  %v14382 = vpack.c.b16 %v13904, %v13903
  %v14383 = vpack.c.b16 %v13906, %v13905
  %v14384 = vpack.c.b16 %v13908, %v13907
  %v14385 = vpack.c.b16 %v13910, %v13909
  %v14386 = vpack.c.b16 %v13912, %v13911
  %v14387 = vpack.c.b16 %v13914, %v13913
  %v14388 = vpack.c.b16 %v13916, %v13915
  %v14389 = vpack.c.b16 %v13918, %v13917
  %v14390 = vpack.c.b16 %v13920, %v13919
  %v14391 = vpack.c.b16 %v13922, %v13921
  %v14392 = vpack.c.b16 %v13924, %v13923
  %v14393 = vpack.c.b16 %v13926, %v13925
  %v14394 = vpack.c.b16 %v13928, %v13927
  %v14395 = vpack.c.b16 %v13930, %v13929
  %v14396 = vpack.c.b16 %v13932, %v13931
  %v14397 = vpack.c.b16 %v13934, %v13933
  %v14398 = vpack.c.b16 %v13936, %v13935
  %v14399 = vpack.c.b16 %v13938, %v13937
  %v14400 = vpack.c.b16 %v13940, %v13939
  %v14401 = vpack.c.b16 %v13942, %v13941
  %v14402 = vpack.c.b16 %v13944, %v13943
  %v14403 = vpack.c.b16 %v13946, %v13945
  %v14404 = vpack.c.b16 %v13948, %v13947
  %v14405 = vpack.c.b16 %v13950, %v13949
  %v14406 = vpack.c.b16 %v13952, %v13951
  %v14407 = vpack.c.b16 %v13954, %v13953
  %v14408 = vpack.c.b16 %v13956, %v13955
  %v14409 = vpack.c.b16 %v13958, %v13957
  %v14410 = vpack.c.b16 %v13960, %v13959
  %v14411 = vpack.c.b16 %v13962, %v13961
  %v14412 = vpack.c.b16 %v13964, %v13963
  %v14413 = vpack.c.b16 %v13966, %v13965
  %v14414 = vpack.c.b16 %v13968, %v13967
  %v14415 = vpack.c.b16 %v13970, %v13969
  %v14416 = vpack.c.b16 %v13972, %v13971
  %v14417 = vpack.c.b16 %v13974, %v13973
  %v14418 = vpack.c.b16 %v13976, %v13975
  %v14419 = vpack.c.b16 %v13978, %v13977
  %v14420 = vpack.c.b16 %v13980, %v13979
  %v14421 = vpack.c.b16 %v13982, %v13981
  %v14422 = vpack.c.b16 %v13984, %v13983
  %v14423 = vpack.c.b16 %v13986, %v13985
  %v14424 = vpack.c.b16 %v13988, %v13987
  %v14425 = vpack.c.b16 %v13990, %v13989
  %v14426 = vpack.c.b16 %v13992, %v13991
  %v14427 = vpack.c.b16 %v13994, %v13993
  %v14428 = vpack.c.b16 %v13996, %v13995
  %v14429 = vpack.c.b16 %v13998, %v13997
  %v14430 = vpack.c.b16 %v14000, %v13999
  %v14431 = vpack.c.b16 %v14002, %v14001
  %v14432 = vpack.c.b16 %v14004, %v14003
  %v14433 = vpack.c.b16 %v14006, %v14005
  %v14434 = vpack.c.b16 %v14008, %v14007
  %v14435 = vpack.c.b16 %v14010, %v14009
  %v14436 = vpack.c.b16 %v14012, %v14011
  %v14437 = vpack.c.b16 %v14014, %v14013
  %v14438 = vpack.c.b16 %v14016, %v14015
  %v14439 = vpack.c.b16 %v14018, %v14017
  %v14440 = vpack.c.b16 %v14020, %v14019
  %v14441 = vpack.c.b16 %v14022, %v14021
  %v14442 = vpack.c.b16 %v14024, %v14023
  %v14443 = vpack.c.b16 %v14026, %v14025
  %v14444 = vpack.c.b16 %v14028, %v14027
  %v14445 = vpack.c.b16 %v14030, %v14029
  %v14446 = vpack.c.b16 %v14032, %v14031
  %v14447 = vpack.c.b16 %v14034, %v14033
  %v14448 = vpack.c.b16 %v14036, %v14035
  %v14449 = vpack.c.b16 %v14038, %v14037
  %v14450 = vpack.c.b16 %v14040, %v14039
  %v14451 = vpack.c.b16 %v14042, %v14041
  %v14452 = vpack.c.b16 %v14044, %v14043
  %v14453 = vpack.c.b16 %v14046, %v14045
  %v14454 = vpack.c.b16 %v14048, %v14047
  %v14455 = vpack.c.b16 %v14050, %v14049
  %v14456 = vpack.c.b16 %v14052, %v14051
  %v14457 = vpack.c.b16 %v14054, %v14053
  %v14458 = vpack.c.b16 %v14056, %v14055
  %v14459 = vpack.c.b16 %v14058, %v14057
  %v14460 = vpack.c.b16 %v14060, %v14059
  %v14461 = vpack.c.b16 %v14062, %v14061
  %v14462 = vpack.c.b16 %v14064, %v14063
  %v14463 = vpack.c.b16 %v14066, %v14065
  %v14464 = vpack.c.b16 %v14068, %v14067
  %v14465 = vpack.c.b16 %v14070, %v14069
  %v14466 = vpack.c.b16 %v14072, %v14071
  %v14467 = vpack.c.b16 %v14074, %v14073
  %v14468 = vpack.c.b16 %v14076, %v14075
  %v14469 = vpack.c.b16 %v14078, %v14077
  %v14470 = vpack.c.b16 %v14080, %v14079
  %v14471 = vpack.c.b16 %v14082, %v14081
  %v14472 = vpack.c.b16 %v14084, %v14083
  %v14473 = vpack.c.b16 %v14086, %v14085
  %v14474 = vpack.c.b16 %v14088, %v14087
  %v14475 = vpack.c.b16 %v14090, %v14089
  %v14476 = vpack.c.b16 %v14092, %v14091
  %v14477 = vpack.c.b16 %v14094, %v14093
  %v14478 = vpack.c.b16 %v14096, %v14095
  %v14479 = vpack.c.b16 %v14098, %v14097
  %v14480 = vpack.c.b16 %v14100, %v14099
  %v14481 = vpack.c.b16 %v14102, %v14101
  %v14482 = vpack.c.b16 %v14104, %v14103
  %v14483 = vpack.c.b16 %v14106, %v14105
  %v14484 = vpack.c.b16 %v14108, %v14107
  %v14485 = vpack.c.b16 %v14110, %v14109
  %v14486 = vpack.c.b16 %v14112, %v14111
  %v14487 = vpack.c.b16 %v14114, %v14113
  %v14488 = vpack.c.b16 %v14116, %v14115
  %v14489 = vpack.c.b16 %v14118, %v14117
  %v14490 = vpack.c.b16 %v14120, %v14119
  %v14491 = vpack.c.b16 %v14122, %v14121
  %v14492 = vpack.c.b16 %v14124, %v14123
  %v14493 = vpack.c.b16 %v14126, %v14125
  %v14494 = vpack.c.b16 %v14128, %v14127
  %v14495 = vpack.c.b16 %v14130, %v14129
  %v14496 = vpack.c.b16 %v14132, %v14131
  %v14497 = vpack.c.b16 %v14134, %v14133
  %v14498 = vpack.c.b16 %v14136, %v14135
  %v14499 = vpack.c.b16 %v14138, %v14137
  %v14500 = vpack.c.b16 %v14140, %v14139
  %v14501 = vpack.c.b16 %v14142, %v14141
  %v14502 = vpack.c.b16 %v14144, %v14143
  %v14503 = vpack.c.b16 %v14146, %v14145
  %v14504 = vpack.c.b16 %v14148, %v14147
  %v14505 = vpack.c.b16 %v14150, %v14149
  %v14506 = vpack.c.b16 %v14152, %v14151
  %v14507 = vpack.c.b16 %v14154, %v14153
  %v14508 = vpack.c.b16 %v14156, %v14155
  %v14509 = vpack.c.b16 %v14158, %v14157
  %v14510 = vpack.c.b16 %v14160, %v14159
  %v14511 = vpack.c.b16 %v14162, %v14161
  %v14512 = vpack.c.b16 %v14164, %v14163
  %v14513 = vpack.c.b16 %v14166, %v14165
  %v14514 = vpack.c.b16 %v14168, %v14167
  %v14515 = vpack.c.b16 %v14170, %v14169
  %v14516 = vpack.c.b16 %v14172, %v14171
  %v14517 = vpack.c.b16 %v14174, %v14173
  %v14518 = vpack.c.b16 %v14176, %v14175
  %v14519 = vpack.c.b16 %v14178, %v14177
  %v14520 = vpack.c.b16 %v14180, %v14179
  %v14521 = vpack.c.b16 %v14182, %v14181
  %v14522 = vpack.c.b16 %v14184, %v14183
  %v14523 = vpack.c.b16 %v14186, %v14185
  %v14524 = vpack.c.b16 %v14188, %v14187
  %v14525 = vpack.c.b16 %v14190, %v14189
  %v14526 = vpack.c.b16 %v14192, %v14191
  %v14527 = vpack.c.b16 %v14194, %v14193
  %v14528 = vpack.c.b16 %v14196, %v14195
  %v14529 = vpack.c.b16 %v14198, %v14197
  %v14530 = vpack.c.b16 %v14200, %v14199
  %v14531 = vpack.c.b16 %v14202, %v14201
  %v14532 = vpack.c.b16 %v14204, %v14203
  %v14533 = vpack.c.b16 %v14206, %v14205
  %v14534 = vpack.c.b16 %v14208, %v14207
  %v14535 = vpack.c.b16 %v14210, %v14209
  %v14536 = vpack.c.b16 %v14212, %v14211
  %v14537 = vpack.c.b16 %v14214, %v14213
  %v14538 = vpack.c.b16 %v14216, %v14215
  %v14539 = vpack.c.b16 %v14218, %v14217
  %v14540 = vpack.c.b16 %v14220, %v14219
  %v14541 = vpack.c.b16 %v14222, %v14221
  %v14542 = vpack.c.b16 %v14224, %v14223
  %v14543 = vpack.c.b16 %v14226, %v14225
  %v14544 = vpack.c.b16 %v14228, %v14227
  %v14545 = vpack.c.b16 %v14230, %v14229
  %v14546 = vpack.c.b16 %v14232, %v14231
  %v14547 = vpack.c.b16 %v14234, %v14233
  %v14548 = vpack.c.b16 %v14236, %v14235
  %v14549 = vpack.c.b16 %v14238, %v14237
  %v14550 = vpack.c.b16 %v14240, %v14239
  %v14551 = vpack.c.b16 %v14242, %v14241
  %v14552 = vpack.c.b16 %v14244, %v14243
  %v14553 = vpack.c.b16 %v14246, %v14245
  %v14554 = vpack.c.b16 %v14248, %v14247
  %v14555 = vpack.c.b16 %v14250, %v14249
  %v14556 = vpack.c.b16 %v14252, %v14251
  %v14557 = vpack.c.b16 %v14254, %v14253
  %v14558 = vpack.c.b16 %v14256, %v14255
  %v14559 = vpack.c.b16 %v14258, %v14257
  %v14560 = vpack.c.b16 %v14260, %v14259
  %v14561 = vpack.c.b16 %v14262, %v14261
  %v14562 = vpack.c.b16 %v14264, %v14263
  %v14563 = vpack.c.b16 %v14266, %v14265
  %v14564 = vpack.c.b16 %v14268, %v14267
  %v14565 = vpack.c.b16 %v14270, %v14269
  %v14566 = vpack.c.b16 %v14272, %v14271
  %v14567 = vpack.c.b16 %v14274, %v14273
  %v14568 = vpack.c.b16 %v14276, %v14275
  %v14569 = vpack.c.b16 %v14278, %v14277
  %v14570 = vpack.c.b16 %v14280, %v14279
  %v14571 = vpack.c.b16 %v14282, %v14281
  %v14572 = vpack.c.b16 %v14284, %v14283
  %v14573 = vpack.c.b16 %v14286, %v14285
  %v14574 = vpack.c.b16 %v14288, %v14287
  %v14575 = vpack.c.b16 %v14290, %v14289
  %v14576 = vpack.c.b16 %v14292, %v14291
  %v14577 = vpack.c.b16 %v14294, %v14293
  %v14578 = vpack.c.b16 %v14296, %v14295
  %v14579 = vpack.c.b16 %v14298, %v14297
  %v14580 = vpack.c.b16 %v14300, %v14299
  %v14581 = vpack.c.b16 %v14302, %v14301
  %v14582 = vpack.c.b16 %v14304, %v14303
  %v14583 = vpack.c.b16 %v14306, %v14305
  %v14584 = vpack.c.b16 %v14308, %v14307
  %v14585 = vpack.c.b16 %v14310, %v14309
  %v14586 = vpack.c.b16 %v14312, %v14311
  %v14587 = vpack.c.b16 %v14314, %v14313
  %v14588 = vpack.c.b16 %v14316, %v14315
  %v14589 = vpack.c.b16 %v14318, %v14317
  %v14590 = vpack.c.b16 %v14320, %v14319
  %v14591 = vpack.c.b16 %v14322, %v14321
  %v14592 = vpack.c.b16 %v14324, %v14323
  %v14593 = vpack.c.b16 %v14326, %v14325
  %v14594 = vpack.c.b16 %v14328, %v14327
  %v14595 = vpack.c.b16 %v14330, %v14329
  %v14596 = vpack.c.b16 %v14332, %v14331
  %v14597 = vpack.c.b16 %v14334, %v14333
  %v14598 = vpack.c.b16 %v14336, %v14335
  %v14599 = vpack.c.b16 %v14338, %v14337
  %v14600 = vpack.c.b16 %v14340, %v14339
  %v14601 = vpack.c.b16 %v14342, %v14341
  %v14602 = vpack.c.b16 %v14344, %v14343
  %v14603 = vpack.c.b16 %v14346, %v14345
  %v14604 = vpack.c.b16 %v14348, %v14347
  %14861 = vmatprep.subr.bf16.mxu0 0
  %14862 = vmatpush1.bf16.msra.mxu0 %v14349
  %14863 = vmatprep.subr.bf16.mxu0 0
  %14864 = vmatpush1.bf16.msra.mxu0 %v14350
  %14865 = vmatprep.subr.bf16.mxu0 0
  %14866 = vmatpush1.bf16.msra.mxu0 %v14351
  %14867 = vmatprep.subr.bf16.mxu0 0
  %14868 = vmatpush1.bf16.msra.mxu0 %v14352
  %14869 = vmatprep.subr.bf16.mxu0 0
  %14870 = vmatpush1.bf16.msra.mxu0 %v14353
  %14871 = vmatprep.subr.bf16.mxu0 0
  %14872 = vmatpush1.bf16.msra.mxu0 %v14354
  %14873 = vmatprep.subr.bf16.mxu0 0
  %14874 = vmatpush1.bf16.msra.mxu0 %v14355
  %14875 = vmatprep.subr.bf16.mxu0 0
  %14876 = vmatpush1.bf16.msra.mxu0 %v14356
  %14877 = vmatprep.subr.bf16.mxu0 0
  %14878 = vmatpush1.bf16.msra.mxu0 %v14357
  %14879 = vmatprep.subr.bf16.mxu0 0
  %14880 = vmatpush1.bf16.msra.mxu0 %v14358
  %14881 = vmatprep.subr.bf16.mxu0 0
  %14882 = vmatpush1.bf16.msra.mxu0 %v14359
  %14883 = vmatprep.subr.bf16.mxu0 0
  %14884 = vmatpush1.bf16.msra.mxu0 %v14360
  %14885 = vmatprep.subr.bf16.mxu0 0
  %14886 = vmatpush1.bf16.msra.mxu0 %v14361
  %14887 = vmatprep.subr.bf16.mxu0 0
  %14888 = vmatpush1.bf16.msra.mxu0 %v14362
  %14889 = vmatprep.subr.bf16.mxu0 0
  %14890 = vmatpush1.bf16.msra.mxu0 %v14363
  %14891 = vmatprep.subr.bf16.mxu0 0
  %14892 = vmatpush1.bf16.msra.mxu0 %v14364
  %14893 = vmatprep.mubr.bf16.mxu0 %v8865
  %14894 = vmatmul.mubr.bf16.gmra.mrb[0].mxu0 %v8864
  %v14895 = vpop.f32.mrb[0].mxu0
  %v14896 = vadd.f32 0.0, %v14895
  %v14897 = vpop.f32.mrb[0].mxu0
  %v14898 = vpop.f32.mrb[0].mxu0
  %v14899 = vadd.f32 0.0, %v14898
  %v14900 = vpop.f32.mrb[0].mxu0
  %14901 = vdwg.mxu0
  %14902 = vmatprep.subr.bf16.mxu0 0
  %14903 = vmatpush1.bf16.msra.mxu0 %v14365
  %14904 = vmatprep.subr.bf16.mxu0 0
  %14905 = vmatpush1.bf16.msra.mxu0 %v14366
  %14906 = vmatprep.subr.bf16.mxu0 0
  %14907 = vmatpush1.bf16.msra.mxu0 %v14367
  %14908 = vmatprep.subr.bf16.mxu0 0
  %14909 = vmatpush1.bf16.msra.mxu0 %v14368
  %14910 = vmatprep.subr.bf16.mxu0 0
  %14911 = vmatpush1.bf16.msra.mxu0 %v14369
  %14912 = vmatprep.subr.bf16.mxu0 0
  %14913 = vmatpush1.bf16.msra.mxu0 %v14370
  %14914 = vmatprep.subr.bf16.mxu0 0
  %14915 = vmatpush1.bf16.msra.mxu0 %v14371
  %14916 = vmatprep.subr.bf16.mxu0 0
  %14917 = vmatpush1.bf16.msra.mxu0 %v14372
  %14918 = vmatprep.subr.bf16.mxu0 0
  %14919 = vmatpush1.bf16.msra.mxu0 %v14373
  %14920 = vmatprep.subr.bf16.mxu0 0
  %14921 = vmatpush1.bf16.msra.mxu0 %v14374
  %14922 = vmatprep.subr.bf16.mxu0 0
  %14923 = vmatpush1.bf16.msra.mxu0 %v14375
  %14924 = vmatprep.subr.bf16.mxu0 0
  %14925 = vmatpush1.bf16.msra.mxu0 %v14376
  %14926 = vmatprep.subr.bf16.mxu0 0
  %14927 = vmatpush1.bf16.msra.mxu0 %v14377
  %14928 = vmatprep.subr.bf16.mxu0 0
  %14929 = vmatpush1.bf16.msra.mxu0 %v14378
  %14930 = vmatprep.subr.bf16.mxu0 0
  %14931 = vmatpush1.bf16.msra.mxu0 %v14379
  %14932 = vmatprep.subr.bf16.mxu0 0
  %14933 = vmatpush1.bf16.msra.mxu0 %v14380
  %14934 = vmatprep.mubr.bf16.mxu0 %v8867
  %14935 = vmatmul.mubr.bf16.gmra.mrb[0].mxu0 %v8866
  %v14936 = vpop.f32.mrb[0].mxu0
  %v14937 = vadd.f32 %v14896, %v14936
  %v14938 = vpop.f32.mrb[0].mxu0
  %v14939 = vpop.f32.mrb[0].mxu0
  %v14940 = vadd.f32 %v14899, %v14939
  %v14941 = vpop.f32.mrb[0].mxu0
  %14942 = vdwg.mxu0
  %14943 = vmatprep.subr.bf16.mxu0 0
  %14944 = vmatpush1.bf16.msra.mxu0 %v14381
  %14945 = vmatprep.subr.bf16.mxu0 0
  %14946 = vmatpush1.bf16.msra.mxu0 %v14382
  %14947 = vmatprep.subr.bf16.mxu0 0
  %14948 = vmatpush1.bf16.msra.mxu0 %v14383
  %14949 = vmatprep.subr.bf16.mxu0 0
  %14950 = vmatpush1.bf16.msra.mxu0 %v14384
  %14951 = vmatprep.subr.bf16.mxu0 0
  %14952 = vmatpush1.bf16.msra.mxu0 %v14385
  %14953 = vmatprep.subr.bf16.mxu0 0
  %14954 = vmatpush1.bf16.msra.mxu0 %v14386
  %14955 = vmatprep.subr.bf16.mxu0 0
  %14956 = vmatpush1.bf16.msra.mxu0 %v14387
  %14957 = vmatprep.subr.bf16.mxu0 0
  %14958 = vmatpush1.bf16.msra.mxu0 %v14388
  %14959 = vmatprep.subr.bf16.mxu0 0
  %14960 = vmatpush1.bf16.msra.mxu0 %v14389
  %14961 = vmatprep.subr.bf16.mxu0 0
  %14962 = vmatpush1.bf16.msra.mxu0 %v14390
  %14963 = vmatprep.subr.bf16.mxu0 0
  %14964 = vmatpush1.bf16.msra.mxu0 %v14391
  %14965 = vmatprep.subr.bf16.mxu0 0
  %14966 = vmatpush1.bf16.msra.mxu0 %v14392
  %14967 = vmatprep.subr.bf16.mxu0 0
  %14968 = vmatpush1.bf16.msra.mxu0 %v14393
  %14969 = vmatprep.subr.bf16.mxu0 0
  %14970 = vmatpush1.bf16.msra.mxu0 %v14394
  %14971 = vmatprep.subr.bf16.mxu0 0
  %14972 = vmatpush1.bf16.msra.mxu0 %v14395
  %14973 = vmatprep.subr.bf16.mxu0 0
  %14974 = vmatpush1.bf16.msra.mxu0 %v14396
  %14975 = vmatprep.mubr.bf16.mxu0 %v8869
  %14976 = vmatmul.mubr.bf16.gmra.mrb[0].mxu0 %v8868
  %v14977 = vpop.f32.mrb[0].mxu0
  %v14978 = vadd.f32 %v14937, %v14977
  %v14979 = vpop.f32.mrb[0].mxu0
  %v14980 = vpop.f32.mrb[0].mxu0
  %v14981 = vadd.f32 %v14940, %v14980
  %v14982 = vpop.f32.mrb[0].mxu0
  %14983 = vdwg.mxu0
  %14984 = vmatprep.subr.bf16.mxu0 0
  %14985 = vmatpush1.bf16.msra.mxu0 %v14397
  %14986 = vmatprep.subr.bf16.mxu0 0
  %14987 = vmatpush1.bf16.msra.mxu0 %v14398
  %14988 = vmatprep.subr.bf16.mxu0 0
  %14989 = vmatpush1.bf16.msra.mxu0 %v14399
  %14990 = vmatprep.subr.bf16.mxu0 0
  %14991 = vmatpush1.bf16.msra.mxu0 %v14400
  %14992 = vmatprep.subr.bf16.mxu0 0
  %14993 = vmatpush1.bf16.msra.mxu0 %v14401
  %14994 = vmatprep.subr.bf16.mxu0 0
  %14995 = vmatpush1.bf16.msra.mxu0 %v14402
  %14996 = vmatprep.subr.bf16.mxu0 0
  %14997 = vmatpush1.bf16.msra.mxu0 %v14403
  %14998 = vmatprep.subr.bf16.mxu0 0
  %14999 = vmatpush1.bf16.msra.mxu0 %v14404
  %15000 = vmatprep.subr.bf16.mxu0 0
  %15001 = vmatpush1.bf16.msra.mxu0 %v14405
  %15002 = vmatprep.subr.bf16.mxu0 0
  %15003 = vmatpush1.bf16.msra.mxu0 %v14406
  %15004 = vmatprep.subr.bf16.mxu0 0
  %15005 = vmatpush1.bf16.msra.mxu0 %v14407
  %15006 = vmatprep.subr.bf16.mxu0 0
  %15007 = vmatpush1.bf16.msra.mxu0 %v14408
  %15008 = vmatprep.subr.bf16.mxu0 0
  %15009 = vmatpush1.bf16.msra.mxu0 %v14409
  %15010 = vmatprep.subr.bf16.mxu0 0
  %15011 = vmatpush1.bf16.msra.mxu0 %v14410
  %15012 = vmatprep.subr.bf16.mxu0 0
  %15013 = vmatpush1.bf16.msra.mxu0 %v14411
  %15014 = vmatprep.subr.bf16.mxu0 0
  %15015 = vmatpush1.bf16.msra.mxu0 %v14412
  %15016 = vmatprep.mubr.bf16.mxu0 %v8871
  %15017 = vmatmul.mubr.bf16.gmra.mrb[0].mxu0 %v8870
  %v15018 = vpop.f32.mrb[0].mxu0
  %v15019 = vadd.f32 %v14978, %v15018
  %v15020 = vpop.f32.mrb[0].mxu0
  %v15021 = vpop.f32.mrb[0].mxu0
  %v15022 = vadd.f32 %v14981, %v15021
  %v15023 = vpop.f32.mrb[0].mxu0
  %15024 = vdwg.mxu0
  %15025 = vmatprep.subr.bf16.mxu0 0
  %15026 = vmatpush1.bf16.msra.mxu0 %v14413
  %15027 = vmatprep.subr.bf16.mxu0 0
  %15028 = vmatpush1.bf16.msra.mxu0 %v14414
  %15029 = vmatprep.subr.bf16.mxu0 0
  %15030 = vmatpush1.bf16.msra.mxu0 %v14415
  %15031 = vmatprep.subr.bf16.mxu0 0
  %15032 = vmatpush1.bf16.msra.mxu0 %v14416
  %15033 = vmatprep.subr.bf16.mxu0 0
  %15034 = vmatpush1.bf16.msra.mxu0 %v14417
  %15035 = vmatprep.subr.bf16.mxu0 0
  %15036 = vmatpush1.bf16.msra.mxu0 %v14418
  %15037 = vmatprep.subr.bf16.mxu0 0
  %15038 = vmatpush1.bf16.msra.mxu0 %v14419
  %15039 = vmatprep.subr.bf16.mxu0 0
  %15040 = vmatpush1.bf16.msra.mxu0 %v14420
  %15041 = vmatprep.subr.bf16.mxu0 0
  %15042 = vmatpush1.bf16.msra.mxu0 %v14421
  %15043 = vmatprep.subr.bf16.mxu0 0
  %15044 = vmatpush1.bf16.msra.mxu0 %v14422
  %15045 = vmatprep.subr.bf16.mxu0 0
  %15046 = vmatpush1.bf16.msra.mxu0 %v14423
  %15047 = vmatprep.subr.bf16.mxu0 0
  %15048 = vmatpush1.bf16.msra.mxu0 %v14424
  %15049 = vmatprep.subr.bf16.mxu0 0
  %15050 = vmatpush1.bf16.msra.mxu0 %v14425
  %15051 = vmatprep.subr.bf16.mxu0 0
  %15052 = vmatpush1.bf16.msra.mxu0 %v14426
  %15053 = vmatprep.subr.bf16.mxu0 0
  %15054 = vmatpush1.bf16.msra.mxu0 %v14427
  %15055 = vmatprep.subr.bf16.mxu0 0
  %15056 = vmatpush1.bf16.msra.mxu0 %v14428
  %15057 = vmatprep.mubr.bf16.mxu0 %v8873
  %15058 = vmatmul.mubr.bf16.gmra.mrb[0].mxu0 %v8872
  %v15059 = vpop.f32.mrb[0].mxu0
  %v15060 = vadd.f32 %v15019, %v15059
  %v15061 = vpop.f32.mrb[0].mxu0
  %v15062 = vpop.f32.mrb[0].mxu0
  %v15063 = vadd.f32 %v15022, %v15062
  %v15064 = vpop.f32.mrb[0].mxu0
  %15065 = vdwg.mxu0
  %15066 = vmatprep.subr.bf16.mxu0 0
  %15067 = vmatpush1.bf16.msra.mxu0 %v14429
  %15068 = vmatprep.subr.bf16.mxu0 0
  %15069 = vmatpush1.bf16.msra.mxu0 %v14430
  %15070 = vmatprep.subr.bf16.mxu0 0
  %15071 = vmatpush1.bf16.msra.mxu0 %v14431
  %15072 = vmatprep.subr.bf16.mxu0 0
  %15073 = vmatpush1.bf16.msra.mxu0 %v14432
  %15074 = vmatprep.subr.bf16.mxu0 0
  %15075 = vmatpush1.bf16.msra.mxu0 %v14433
  %15076 = vmatprep.subr.bf16.mxu0 0
  %15077 = vmatpush1.bf16.msra.mxu0 %v14434
  %15078 = vmatprep.subr.bf16.mxu0 0
  %15079 = vmatpush1.bf16.msra.mxu0 %v14435
  %15080 = vmatprep.subr.bf16.mxu0 0
  %15081 = vmatpush1.bf16.msra.mxu0 %v14436
  %15082 = vmatprep.subr.bf16.mxu0 0
  %15083 = vmatpush1.bf16.msra.mxu0 %v14437
  %15084 = vmatprep.subr.bf16.mxu0 0
  %15085 = vmatpush1.bf16.msra.mxu0 %v14438
  %15086 = vmatprep.subr.bf16.mxu0 0
  %15087 = vmatpush1.bf16.msra.mxu0 %v14439
  %15088 = vmatprep.subr.bf16.mxu0 0
  %15089 = vmatpush1.bf16.msra.mxu0 %v14440
  %15090 = vmatprep.subr.bf16.mxu0 0
  %15091 = vmatpush1.bf16.msra.mxu0 %v14441
  %15092 = vmatprep.subr.bf16.mxu0 0
  %15093 = vmatpush1.bf16.msra.mxu0 %v14442
  %15094 = vmatprep.subr.bf16.mxu0 0
  %15095 = vmatpush1.bf16.msra.mxu0 %v14443
  %15096 = vmatprep.subr.bf16.mxu0 0
  %15097 = vmatpush1.bf16.msra.mxu0 %v14444
  %15098 = vmatprep.mubr.bf16.mxu0 %v8875
  %15099 = vmatmul.mubr.bf16.gmra.mrb[0].mxu0 %v8874
  %v15100 = vpop.f32.mrb[0].mxu0
  %v15101 = vadd.f32 %v15060, %v15100
  %v15102 = vpop.f32.mrb[0].mxu0
  %v15103 = vpop.f32.mrb[0].mxu0
  %v15104 = vadd.f32 %v15063, %v15103
  %v15105 = vpop.f32.mrb[0].mxu0
  %15106 = vdwg.mxu0
  %15107 = vmatprep.subr.bf16.mxu0 0
  %15108 = vmatpush1.bf16.msra.mxu0 %v14445
  %15109 = vmatprep.subr.bf16.mxu0 0
  %15110 = vmatpush1.bf16.msra.mxu0 %v14446
  %15111 = vmatprep.subr.bf16.mxu0 0
  %15112 = vmatpush1.bf16.msra.mxu0 %v14447
  %15113 = vmatprep.subr.bf16.mxu0 0
  %15114 = vmatpush1.bf16.msra.mxu0 %v14448
  %15115 = vmatprep.subr.bf16.mxu0 0
  %15116 = vmatpush1.bf16.msra.mxu0 %v14449
  %15117 = vmatprep.subr.bf16.mxu0 0
  %15118 = vmatpush1.bf16.msra.mxu0 %v14450
  %15119 = vmatprep.subr.bf16.mxu0 0
  %15120 = vmatpush1.bf16.msra.mxu0 %v14451
  %15121 = vmatprep.subr.bf16.mxu0 0
  %15122 = vmatpush1.bf16.msra.mxu0 %v14452
  %15123 = vmatprep.subr.bf16.mxu0 0
  %15124 = vmatpush1.bf16.msra.mxu0 %v14453
  %15125 = vmatprep.subr.bf16.mxu0 0
  %15126 = vmatpush1.bf16.msra.mxu0 %v14454
  %15127 = vmatprep.subr.bf16.mxu0 0
  %15128 = vmatpush1.bf16.msra.mxu0 %v14455
  %15129 = vmatprep.subr.bf16.mxu0 0
  %15130 = vmatpush1.bf16.msra.mxu0 %v14456
  %15131 = vmatprep.subr.bf16.mxu0 0
  %15132 = vmatpush1.bf16.msra.mxu0 %v14457
  %15133 = vmatprep.subr.bf16.mxu0 0
  %15134 = vmatpush1.bf16.msra.mxu0 %v14458
  %15135 = vmatprep.subr.bf16.mxu0 0
  %15136 = vmatpush1.bf16.msra.mxu0 %v14459
  %15137 = vmatprep.subr.bf16.mxu0 0
  %15138 = vmatpush1.bf16.msra.mxu0 %v14460
  %15139 = vmatprep.mubr.bf16.mxu0 %v8877
  %15140 = vmatmul.mubr.bf16.gmra.mrb[0].mxu0 %v8876
  %v15141 = vpop.f32.mrb[0].mxu0
  %v15142 = vadd.f32 %v15101, %v15141
  %v15143 = vpop.f32.mrb[0].mxu0
  %v15144 = vpop.f32.mrb[0].mxu0
  %v15145 = vadd.f32 %v15104, %v15144
  %v15146 = vpop.f32.mrb[0].mxu0
  %15147 = vdwg.mxu0
  %15148 = vmatprep.subr.bf16.mxu0 0
  %15149 = vmatpush1.bf16.msra.mxu0 %v14461
  %15150 = vmatprep.subr.bf16.mxu0 0
  %15151 = vmatpush1.bf16.msra.mxu0 %v14462
  %15152 = vmatprep.subr.bf16.mxu0 0
  %15153 = vmatpush1.bf16.msra.mxu0 %v14463
  %15154 = vmatprep.subr.bf16.mxu0 0
  %15155 = vmatpush1.bf16.msra.mxu0 %v14464
  %15156 = vmatprep.subr.bf16.mxu0 0
  %15157 = vmatpush1.bf16.msra.mxu0 %v14465
  %15158 = vmatprep.subr.bf16.mxu0 0
  %15159 = vmatpush1.bf16.msra.mxu0 %v14466
  %15160 = vmatprep.subr.bf16.mxu0 0
  %15161 = vmatpush1.bf16.msra.mxu0 %v14467
  %15162 = vmatprep.subr.bf16.mxu0 0
  %15163 = vmatpush1.bf16.msra.mxu0 %v14468
  %15164 = vmatprep.subr.bf16.mxu0 0
  %15165 = vmatpush1.bf16.msra.mxu0 %v14469
  %15166 = vmatprep.subr.bf16.mxu0 0
  %15167 = vmatpush1.bf16.msra.mxu0 %v14470
  %15168 = vmatprep.subr.bf16.mxu0 0
  %15169 = vmatpush1.bf16.msra.mxu0 %v14471
  %15170 = vmatprep.subr.bf16.mxu0 0
  %15171 = vmatpush1.bf16.msra.mxu0 %v14472
  %15172 = vmatprep.subr.bf16.mxu0 0
  %15173 = vmatpush1.bf16.msra.mxu0 %v14473
  %15174 = vmatprep.subr.bf16.mxu0 0
  %15175 = vmatpush1.bf16.msra.mxu0 %v14474
  %15176 = vmatprep.subr.bf16.mxu0 0
  %15177 = vmatpush1.bf16.msra.mxu0 %v14475
  %15178 = vmatprep.subr.bf16.mxu0 0
  %15179 = vmatpush1.bf16.msra.mxu0 %v14476
  %15180 = vmatprep.mubr.bf16.mxu0 %v8879
  %15181 = vmatmul.mubr.bf16.gmra.mrb[0].mxu0 %v8878
  %v15182 = vpop.f32.mrb[0].mxu0
  %v15183 = vadd.f32 %v15142, %v15182
  %v15184 = vpop.f32.mrb[0].mxu0
  %v15185 = vpop.f32.mrb[0].mxu0
  %v15186 = vadd.f32 %v15145, %v15185
  %v15187 = vpop.f32.mrb[0].mxu0
  %15188 = vdwg.mxu0
  %15189 = vmatprep.subr.bf16.mxu0 0
  %15190 = vmatpush1.bf16.msra.mxu0 %v14477
  %15191 = vmatprep.subr.bf16.mxu0 0
  %15192 = vmatpush1.bf16.msra.mxu0 %v14478
  %15193 = vmatprep.subr.bf16.mxu0 0
  %15194 = vmatpush1.bf16.msra.mxu0 %v14479
  %15195 = vmatprep.subr.bf16.mxu0 0
  %15196 = vmatpush1.bf16.msra.mxu0 %v14480
  %15197 = vmatprep.subr.bf16.mxu0 0
  %15198 = vmatpush1.bf16.msra.mxu0 %v14481
  %15199 = vmatprep.subr.bf16.mxu0 0
  %15200 = vmatpush1.bf16.msra.mxu0 %v14482
  %15201 = vmatprep.subr.bf16.mxu0 0
  %15202 = vmatpush1.bf16.msra.mxu0 %v14483
  %15203 = vmatprep.subr.bf16.mxu0 0
  %15204 = vmatpush1.bf16.msra.mxu0 %v14484
  %15205 = vmatprep.subr.bf16.mxu0 0
  %15206 = vmatpush1.bf16.msra.mxu0 %v14485
  %15207 = vmatprep.subr.bf16.mxu0 0
  %15208 = vmatpush1.bf16.msra.mxu0 %v14486
  %15209 = vmatprep.subr.bf16.mxu0 0
  %15210 = vmatpush1.bf16.msra.mxu0 %v14487
  %15211 = vmatprep.subr.bf16.mxu0 0
  %15212 = vmatpush1.bf16.msra.mxu0 %v14488
  %15213 = vmatprep.subr.bf16.mxu0 0
  %15214 = vmatpush1.bf16.msra.mxu0 %v14489
  %15215 = vmatprep.subr.bf16.mxu0 0
  %15216 = vmatpush1.bf16.msra.mxu0 %v14490
  %15217 = vmatprep.subr.bf16.mxu0 0
  %15218 = vmatpush1.bf16.msra.mxu0 %v14491
  %15219 = vmatprep.subr.bf16.mxu0 0
  %15220 = vmatpush1.bf16.msra.mxu0 %v14492
  %15221 = vmatprep.mubr.bf16.mxu0 %v8881
  %15222 = vmatmul.mubr.bf16.gmra.mrb[0].mxu0 %v8880
  %v15223 = vpop.f32.mrb[0].mxu0
  %v15224 = vadd.f32 %v15183, %v15223
  %v15225 = vpop.f32.mrb[0].mxu0
  %v15226 = vpop.f32.mrb[0].mxu0
  %v15227 = vadd.f32 %v15186, %v15226
  %v15228 = vpop.f32.mrb[0].mxu0
  %15229 = vdwg.mxu0
  %15230 = vmatprep.subr.bf16.mxu0 0
  %15231 = vmatpush1.bf16.msra.mxu0 %v14493
  %15232 = vmatprep.subr.bf16.mxu0 0
  %15233 = vmatpush1.bf16.msra.mxu0 %v14494
  %15234 = vmatprep.subr.bf16.mxu0 0
  %15235 = vmatpush1.bf16.msra.mxu0 %v14495
  %15236 = vmatprep.subr.bf16.mxu0 0
  %15237 = vmatpush1.bf16.msra.mxu0 %v14496
  %15238 = vmatprep.subr.bf16.mxu0 0
  %15239 = vmatpush1.bf16.msra.mxu0 %v14497
  %15240 = vmatprep.subr.bf16.mxu0 0
  %15241 = vmatpush1.bf16.msra.mxu0 %v14498
  %15242 = vmatprep.subr.bf16.mxu0 0
  %15243 = vmatpush1.bf16.msra.mxu0 %v14499
  %15244 = vmatprep.subr.bf16.mxu0 0
  %15245 = vmatpush1.bf16.msra.mxu0 %v14500
  %15246 = vmatprep.subr.bf16.mxu0 0
  %15247 = vmatpush1.bf16.msra.mxu0 %v14501
  %15248 = vmatprep.subr.bf16.mxu0 0
  %15249 = vmatpush1.bf16.msra.mxu0 %v14502
  %15250 = vmatprep.subr.bf16.mxu0 0
  %15251 = vmatpush1.bf16.msra.mxu0 %v14503
  %15252 = vmatprep.subr.bf16.mxu0 0
  %15253 = vmatpush1.bf16.msra.mxu0 %v14504
  %15254 = vmatprep.subr.bf16.mxu0 0
  %15255 = vmatpush1.bf16.msra.mxu0 %v14505
  %15256 = vmatprep.subr.bf16.mxu0 0
  %15257 = vmatpush1.bf16.msra.mxu0 %v14506
  %15258 = vmatprep.subr.bf16.mxu0 0
  %15259 = vmatpush1.bf16.msra.mxu0 %v14507
  %15260 = vmatprep.subr.bf16.mxu0 0
  %15261 = vmatpush1.bf16.msra.mxu0 %v14508
  %15262 = vmatprep.mubr.bf16.mxu0 %v8883
  %15263 = vmatmul.mubr.bf16.gmra.mrb[0].mxu0 %v8882
  %v15264 = vpop.f32.mrb[0].mxu0
  %v15265 = vadd.f32 %v15224, %v15264
  %v15266 = vpop.f32.mrb[0].mxu0
  %v15267 = vpop.f32.mrb[0].mxu0
  %v15268 = vadd.f32 %v15227, %v15267
  %v15269 = vpop.f32.mrb[0].mxu0
  %15270 = vdwg.mxu0
  %15271 = vmatprep.subr.bf16.mxu0 0
  %15272 = vmatpush1.bf16.msra.mxu0 %v14509
  %15273 = vmatprep.subr.bf16.mxu0 0
  %15274 = vmatpush1.bf16.msra.mxu0 %v14510
  %15275 = vmatprep.subr.bf16.mxu0 0
  %15276 = vmatpush1.bf16.msra.mxu0 %v14511
  %15277 = vmatprep.subr.bf16.mxu0 0
  %15278 = vmatpush1.bf16.msra.mxu0 %v14512
  %15279 = vmatprep.subr.bf16.mxu0 0
  %15280 = vmatpush1.bf16.msra.mxu0 %v14513
  %15281 = vmatprep.subr.bf16.mxu0 0
  %15282 = vmatpush1.bf16.msra.mxu0 %v14514
  %15283 = vmatprep.subr.bf16.mxu0 0
  %15284 = vmatpush1.bf16.msra.mxu0 %v14515
  %15285 = vmatprep.subr.bf16.mxu0 0
  %15286 = vmatpush1.bf16.msra.mxu0 %v14516
  %15287 = vmatprep.subr.bf16.mxu0 0
  %15288 = vmatpush1.bf16.msra.mxu0 %v14517
  %15289 = vmatprep.subr.bf16.mxu0 0
  %15290 = vmatpush1.bf16.msra.mxu0 %v14518
  %15291 = vmatprep.subr.bf16.mxu0 0
  %15292 = vmatpush1.bf16.msra.mxu0 %v14519
  %15293 = vmatprep.subr.bf16.mxu0 0
  %15294 = vmatpush1.bf16.msra.mxu0 %v14520
  %15295 = vmatprep.subr.bf16.mxu0 0
  %15296 = vmatpush1.bf16.msra.mxu0 %v14521
  %15297 = vmatprep.subr.bf16.mxu0 0
  %15298 = vmatpush1.bf16.msra.mxu0 %v14522
  %15299 = vmatprep.subr.bf16.mxu0 0
  %15300 = vmatpush1.bf16.msra.mxu0 %v14523
  %15301 = vmatprep.subr.bf16.mxu0 0
  %15302 = vmatpush1.bf16.msra.mxu0 %v14524
  %15303 = vmatprep.mubr.bf16.mxu0 %v8885
  %15304 = vmatmul.mubr.bf16.gmra.mrb[0].mxu0 %v8884
  %v15305 = vpop.f32.mrb[0].mxu0
  %v15306 = vadd.f32 %v15265, %v15305
  %v15307 = vpop.f32.mrb[0].mxu0
  %v15308 = vpop.f32.mrb[0].mxu0
  %v15309 = vadd.f32 %v15268, %v15308
  %v15310 = vpop.f32.mrb[0].mxu0
  %15311 = vdwg.mxu0
  %15312 = vmatprep.subr.bf16.mxu0 0
  %15313 = vmatpush1.bf16.msra.mxu0 %v14525
  %15314 = vmatprep.subr.bf16.mxu0 0
  %15315 = vmatpush1.bf16.msra.mxu0 %v14526
  %15316 = vmatprep.subr.bf16.mxu0 0
  %15317 = vmatpush1.bf16.msra.mxu0 %v14527
  %15318 = vmatprep.subr.bf16.mxu0 0
  %15319 = vmatpush1.bf16.msra.mxu0 %v14528
  %15320 = vmatprep.subr.bf16.mxu0 0
  %15321 = vmatpush1.bf16.msra.mxu0 %v14529
  %15322 = vmatprep.subr.bf16.mxu0 0
  %15323 = vmatpush1.bf16.msra.mxu0 %v14530
  %15324 = vmatprep.subr.bf16.mxu0 0
  %15325 = vmatpush1.bf16.msra.mxu0 %v14531
  %15326 = vmatprep.subr.bf16.mxu0 0
  %15327 = vmatpush1.bf16.msra.mxu0 %v14532
  %15328 = vmatprep.subr.bf16.mxu0 0
  %15329 = vmatpush1.bf16.msra.mxu0 %v14533
  %15330 = vmatprep.subr.bf16.mxu0 0
  %15331 = vmatpush1.bf16.msra.mxu0 %v14534
  %15332 = vmatprep.subr.bf16.mxu0 0
  %15333 = vmatpush1.bf16.msra.mxu0 %v14535
  %15334 = vmatprep.subr.bf16.mxu0 0
  %15335 = vmatpush1.bf16.msra.mxu0 %v14536
  %15336 = vmatprep.subr.bf16.mxu0 0
  %15337 = vmatpush1.bf16.msra.mxu0 %v14537
  %15338 = vmatprep.subr.bf16.mxu0 0
  %15339 = vmatpush1.bf16.msra.mxu0 %v14538
  %15340 = vmatprep.subr.bf16.mxu0 0
  %15341 = vmatpush1.bf16.msra.mxu0 %v14539
  %15342 = vmatprep.subr.bf16.mxu0 0
  %15343 = vmatpush1.bf16.msra.mxu0 %v14540
  %15344 = vmatprep.mubr.bf16.mxu0 %v8887
  %15345 = vmatmul.mubr.bf16.gmra.mrb[0].mxu0 %v8886
  %v15346 = vpop.f32.mrb[0].mxu0
  %v15347 = vadd.f32 %v15306, %v15346
  %v15348 = vpop.f32.mrb[0].mxu0
  %v15349 = vpop.f32.mrb[0].mxu0
  %v15350 = vadd.f32 %v15309, %v15349
  %v15351 = vpop.f32.mrb[0].mxu0
  %15352 = vdwg.mxu0
  %15353 = vmatprep.subr.bf16.mxu0 0
  %15354 = vmatpush1.bf16.msra.mxu0 %v14541
  %15355 = vmatprep.subr.bf16.mxu0 0
  %15356 = vmatpush1.bf16.msra.mxu0 %v14542
  %15357 = vmatprep.subr.bf16.mxu0 0
  %15358 = vmatpush1.bf16.msra.mxu0 %v14543
  %15359 = vmatprep.subr.bf16.mxu0 0
  %15360 = vmatpush1.bf16.msra.mxu0 %v14544
  %15361 = vmatprep.subr.bf16.mxu0 0
  %15362 = vmatpush1.bf16.msra.mxu0 %v14545
  %15363 = vmatprep.subr.bf16.mxu0 0
  %15364 = vmatpush1.bf16.msra.mxu0 %v14546
  %15365 = vmatprep.subr.bf16.mxu0 0
  %15366 = vmatpush1.bf16.msra.mxu0 %v14547
  %15367 = vmatprep.subr.bf16.mxu0 0
  %15368 = vmatpush1.bf16.msra.mxu0 %v14548
  %15369 = vmatprep.subr.bf16.mxu0 0
  %15370 = vmatpush1.bf16.msra.mxu0 %v14549
  %15371 = vmatprep.subr.bf16.mxu0 0
  %15372 = vmatpush1.bf16.msra.mxu0 %v14550
  %15373 = vmatprep.subr.bf16.mxu0 0
  %15374 = vmatpush1.bf16.msra.mxu0 %v14551
  %15375 = vmatprep.subr.bf16.mxu0 0
  %15376 = vmatpush1.bf16.msra.mxu0 %v14552
  %15377 = vmatprep.subr.bf16.mxu0 0
  %15378 = vmatpush1.bf16.msra.mxu0 %v14553
  %15379 = vmatprep.subr.bf16.mxu0 0
  %15380 = vmatpush1.bf16.msra.mxu0 %v14554
  %15381 = vmatprep.subr.bf16.mxu0 0
  %15382 = vmatpush1.bf16.msra.mxu0 %v14555
  %15383 = vmatprep.subr.bf16.mxu0 0
  %15384 = vmatpush1.bf16.msra.mxu0 %v14556
  %15385 = vmatprep.mubr.bf16.mxu0 %v8889
  %15386 = vmatmul.mubr.bf16.gmra.mrb[0].mxu0 %v8888
  %v15387 = vpop.f32.mrb[0].mxu0
  %v15388 = vadd.f32 %v15347, %v15387
  %v15389 = vpop.f32.mrb[0].mxu0
  %v15390 = vpop.f32.mrb[0].mxu0
  %v15391 = vadd.f32 %v15350, %v15390
  %v15392 = vpop.f32.mrb[0].mxu0
  %15393 = vdwg.mxu0
  %15394 = vmatprep.subr.bf16.mxu0 0
  %15395 = vmatpush1.bf16.msra.mxu0 %v14557
  %15396 = vmatprep.subr.bf16.mxu0 0
  %15397 = vmatpush1.bf16.msra.mxu0 %v14558
  %15398 = vmatprep.subr.bf16.mxu0 0
  %15399 = vmatpush1.bf16.msra.mxu0 %v14559
  %15400 = vmatprep.subr.bf16.mxu0 0
  %15401 = vmatpush1.bf16.msra.mxu0 %v14560
  %15402 = vmatprep.subr.bf16.mxu0 0
  %15403 = vmatpush1.bf16.msra.mxu0 %v14561
  %15404 = vmatprep.subr.bf16.mxu0 0
  %15405 = vmatpush1.bf16.msra.mxu0 %v14562
  %15406 = vmatprep.subr.bf16.mxu0 0
  %15407 = vmatpush1.bf16.msra.mxu0 %v14563
  %15408 = vmatprep.subr.bf16.mxu0 0
  %15409 = vmatpush1.bf16.msra.mxu0 %v14564
  %15410 = vmatprep.subr.bf16.mxu0 0
  %15411 = vmatpush1.bf16.msra.mxu0 %v14565
  %15412 = vmatprep.subr.bf16.mxu0 0
  %15413 = vmatpush1.bf16.msra.mxu0 %v14566
  %15414 = vmatprep.subr.bf16.mxu0 0
  %15415 = vmatpush1.bf16.msra.mxu0 %v14567
  %15416 = vmatprep.subr.bf16.mxu0 0
  %15417 = vmatpush1.bf16.msra.mxu0 %v14568
  %15418 = vmatprep.subr.bf16.mxu0 0
  %15419 = vmatpush1.bf16.msra.mxu0 %v14569
  %15420 = vmatprep.subr.bf16.mxu0 0
  %15421 = vmatpush1.bf16.msra.mxu0 %v14570
  %15422 = vmatprep.subr.bf16.mxu0 0
  %15423 = vmatpush1.bf16.msra.mxu0 %v14571
  %15424 = vmatprep.subr.bf16.mxu0 0
  %15425 = vmatpush1.bf16.msra.mxu0 %v14572
  %15426 = vmatprep.mubr.bf16.mxu0 %v8891
  %15427 = vmatmul.mubr.bf16.gmra.mrb[0].mxu0 %v8890
  %v15428 = vpop.f32.mrb[0].mxu0
  %v15429 = vadd.f32 %v15388, %v15428
  %v15430 = vpop.f32.mrb[0].mxu0
  %v15431 = vpop.f32.mrb[0].mxu0
  %v15432 = vadd.f32 %v15391, %v15431
  %v15433 = vpop.f32.mrb[0].mxu0
  %15434 = vdwg.mxu0
  %15435 = vmatprep.subr.bf16.mxu0 0
  %15436 = vmatpush1.bf16.msra.mxu0 %v14573
  %15437 = vmatprep.subr.bf16.mxu0 0
  %15438 = vmatpush1.bf16.msra.mxu0 %v14574
  %15439 = vmatprep.subr.bf16.mxu0 0
  %15440 = vmatpush1.bf16.msra.mxu0 %v14575
  %15441 = vmatprep.subr.bf16.mxu0 0
  %15442 = vmatpush1.bf16.msra.mxu0 %v14576
  %15443 = vmatprep.subr.bf16.mxu0 0
  %15444 = vmatpush1.bf16.msra.mxu0 %v14577
  %15445 = vmatprep.subr.bf16.mxu0 0
  %15446 = vmatpush1.bf16.msra.mxu0 %v14578
  %15447 = vmatprep.subr.bf16.mxu0 0
  %15448 = vmatpush1.bf16.msra.mxu0 %v14579
  %15449 = vmatprep.subr.bf16.mxu0 0
  %15450 = vmatpush1.bf16.msra.mxu0 %v14580
  %15451 = vmatprep.subr.bf16.mxu0 0
  %15452 = vmatpush1.bf16.msra.mxu0 %v14581
  %15453 = vmatprep.subr.bf16.mxu0 0
  %15454 = vmatpush1.bf16.msra.mxu0 %v14582
  %15455 = vmatprep.subr.bf16.mxu0 0
  %15456 = vmatpush1.bf16.msra.mxu0 %v14583
  %15457 = vmatprep.subr.bf16.mxu0 0
  %15458 = vmatpush1.bf16.msra.mxu0 %v14584
  %15459 = vmatprep.subr.bf16.mxu0 0
  %15460 = vmatpush1.bf16.msra.mxu0 %v14585
  %15461 = vmatprep.subr.bf16.mxu0 0
  %15462 = vmatpush1.bf16.msra.mxu0 %v14586
  %15463 = vmatprep.subr.bf16.mxu0 0
  %15464 = vmatpush1.bf16.msra.mxu0 %v14587
  %15465 = vmatprep.subr.bf16.mxu0 0
  %15466 = vmatpush1.bf16.msra.mxu0 %v14588
  %15467 = vmatprep.mubr.bf16.mxu0 %v8893
  %15468 = vmatmul.mubr.bf16.gmra.mrb[0].mxu0 %v8892
  %v15469 = vpop.f32.mrb[0].mxu0
  %v15470 = vadd.f32 %v15429, %v15469
  %v15471 = vpop.f32.mrb[0].mxu0
  %v15472 = vpop.f32.mrb[0].mxu0
  %v15473 = vadd.f32 %v15432, %v15472
  %v15474 = vpop.f32.mrb[0].mxu0
  %15475 = vdwg.mxu0
  %15476 = vmatprep.subr.bf16.mxu0 0
  %15477 = vmatpush1.bf16.msra.mxu0 %v14589
  %15478 = vmatprep.subr.bf16.mxu0 0
  %15479 = vmatpush1.bf16.msra.mxu0 %v14590
  %15480 = vmatprep.subr.bf16.mxu0 0
  %15481 = vmatpush1.bf16.msra.mxu0 %v14591
  %15482 = vmatprep.subr.bf16.mxu0 0
  %15483 = vmatpush1.bf16.msra.mxu0 %v14592
  %15484 = vmatprep.subr.bf16.mxu0 0
  %15485 = vmatpush1.bf16.msra.mxu0 %v14593
  %15486 = vmatprep.subr.bf16.mxu0 0
  %15487 = vmatpush1.bf16.msra.mxu0 %v14594
  %15488 = vmatprep.subr.bf16.mxu0 0
  %15489 = vmatpush1.bf16.msra.mxu0 %v14595
  %15490 = vmatprep.subr.bf16.mxu0 0
  %15491 = vmatpush1.bf16.msra.mxu0 %v14596
  %15492 = vmatprep.subr.bf16.mxu0 0
  %15493 = vmatpush1.bf16.msra.mxu0 %v14597
  %15494 = vmatprep.subr.bf16.mxu0 0
  %15495 = vmatpush1.bf16.msra.mxu0 %v14598
  %15496 = vmatprep.subr.bf16.mxu0 0
  %15497 = vmatpush1.bf16.msra.mxu0 %v14599
  %15498 = vmatprep.subr.bf16.mxu0 0
  %15499 = vmatpush1.bf16.msra.mxu0 %v14600
  %15500 = vmatprep.subr.bf16.mxu0 0
  %15501 = vmatpush1.bf16.msra.mxu0 %v14601
  %15502 = vmatprep.subr.bf16.mxu0 0
  %15503 = vmatpush1.bf16.msra.mxu0 %v14602
  %15504 = vmatprep.subr.bf16.mxu0 0
  %15505 = vmatpush1.bf16.msra.mxu0 %v14603
  %15506 = vmatprep.subr.bf16.mxu0 0
  %15507 = vmatpush1.bf16.msra.mxu0 %v14604
  %15508 = vmatprep.mubr.bf16.mxu0 %v8895
  %15509 = vmatmul.mubr.bf16.gmra.mrb[0].mxu0 %v8894
  %v15510 = vpop.f32.mrb[0].mxu0
  %v15511 = vadd.f32 %v15470, %v15510
  %v15512 = vpop.f32.mrb[0].mxu0
  %v15513 = vpop.f32.mrb[0].mxu0
  %v15514 = vadd.f32 %v15473, %v15513
  %v15515 = vpop.f32.mrb[0].mxu0
  %15516 = vdwg.mxu0
  %v15517 = vadd.f32 %v13323, %v15511
  %v15518 = vadd.f32 %v13324, %v15514
  %vm15519 = vcmask 15360
  %15520 = vst.msk [vmem:[#allocation4] sm:$0xff] %vm15519, %v15517
  %15521 = vst.msk [vmem:[#allocation4 + $0x8] sm:$0xff] %vm15519, %v15518
  // Predicated region
  $region22: #{gescf_forward.5} parent=0 // pred_check
    %p15522 = pneg %p18
  $region23: #{gescf_forward.5} parent=0 // pred_check_branch
    %15524 = sbr.rel (%p15522) target = $region25
  $region24: #{gescf_forward.5} parent=0 // pred_region
    %v15525 = vld [vmem:[#allocation2] sm:$0xff]
    %v15526 = vld [vmem:[#allocation2 + $0x8] sm:$0xff]
    %v15527 = vld [vmem:[#allocation3] sm:$0xff]
    %v15528 = vld [vmem:[#allocation3 + $0x8] sm:$0xff]
    %v15529 = vmul.f32 %v15525, %v15527
    %v15530 = vmul.f32 %v15526, %v15528
    %v15531 = vsel %vm11122, %v15529, 0.0
    %15532 = vadd.xlane.f32.xlu0 %v15531
    %v15533 = vpop.xlane.xlu0 %15532
    %v15534 = vsel %vm11122, %v15530, 0.0
    %15535 = vadd.xlane.f32.xlu0 %v15534
    %v15536 = vpop.xlane.xlu0 %15535
    %v15537 = vmul.f32 %v15525, %v15525
    %v15538 = vmul.f32 %v15526, %v15526
    %v15539 = vsel %vm11122, %v15537, 0.0
    %15540 = vadd.xlane.f32.xlu0 %v15539
    %v15541 = vpop.xlane.xlu0 %15540
    %v15542 = vsel %vm11122, %v15538, 0.0
    %15543 = vadd.xlane.f32.xlu0 %v15542
    %v15544 = vpop.xlane.xlu0 %15543
    %v15545 = vmul.f32 %v15527, %v15527
    %v15546 = vmul.f32 %v15528, %v15528
    %v15547 = vsel %vm11122, %v15545, 0.0
    %15548 = vadd.xlane.f32.xlu0 %v15547
    %v15549 = vpop.xlane.xlu0 %15548
    %v15550 = vsel %vm11122, %v15546, 0.0
    %15551 = vadd.xlane.f32.xlu0 %v15550
    %v15552 = vpop.xlane.xlu0 %15551
    %v15553 = vmax.f32 %v15541, 1e-12
    %v15554 = vmax.f32 %v15544, 1e-12
    %v15555 = vrsqrt.pop %v15553
    %v15556 = vrsqrt.pop %v15554
    %v15557 = vmul.f32 %v15533, %v15555
    %v15558 = vmul.f32 %v15536, %v15556
    %v15559 = vmax.f32 %v15549, 1e-12
    %v15560 = vmax.f32 %v15552, 1e-12
    %v15561 = vrsqrt.pop %v15559
    %v15562 = vrsqrt.pop %v15560
    %v15563 = vmul.f32 %v15557, %v15561
    %v15564 = vmul.f32 %v15558, %v15562
    %v15565 = vld [vmem:[#allocation4] sm:$0xff]
    %v15566 = vld [vmem:[#allocation4 + $0x8] sm:$0xff]
    %v15567 = vlaneseq
    %v15568 = vand.u32 %v15567, 127
    %vm15569 = vcmp.eq.s32.totalorder %v15568, 0
    %vm15570 = vcmp.eq.s32.totalorder %v15568, 1
    %vm15571 = vcmp.eq.s32.totalorder %v15568, 2
    %v15572 = vsel %vm15571, %v15563, 0.0
    %v15573 = vsel %vm15571, %v15564, 0.0
    %15575 = vset.pattern.permute.xlu0 1
    %15576 = vperm.xlu0 %15575, %v15565
    %v15577 = vpop.permute.xlu0 %15576
    %15580 = vset.pattern.permute.xlu0 1
    %15581 = vperm.xlu0 %15580, %v15566
    %v15582 = vpop.permute.xlu0 %15581
    %v15584 = vsel %vm15570, %v15577, %v15572
    %v15585 = vsel %vm15570, %v15582, %v15573
    %15586 = vset.pattern.permute.xlu0 0
    %15587 = vperm.xlu0 %15586, %v15565
    %v15588 = vpop.permute.xlu0 %15587
    %15590 = vset.pattern.permute.xlu0 0
    %15591 = vperm.xlu0 %15590, %v15566
    %v15592 = vpop.permute.xlu0 %15591
    %v15594 = vsel %vm15569, %v15588, %v15584
    %v15595 = vsel %vm15569, %v15592, %v15585
    %15596 = vst [vmem:[%s4] sm:$0xff] %v15594
    %15597 = vst [vmem:[%s4 + $0x8] sm:$0xff] %v15595
  $region25: #{gescf_forward.5} parent=0 // pred_fallthru
    _
  // Predicated region
  $region26: #{gescf_forward.5} parent=0 // pred_check
    _
  $region27: #{gescf_forward.5} parent=0 // pred_check_branch
    %15599 = sbr.rel (0) target = $region29
  $region28: #{gescf_forward.5} parent=0 // pred_region
    _
  $region29: #{gescf_forward.5} parent=0 // pred_fallthru
    _
  // Predicated region
  $region30: #{gescf_forward.5} parent=0 // pred_check
    _
  $region31: #{gescf_forward.5} parent=0 // pred_check_branch
    %15601 = sbr.rel (0) target = $region33
  $region32: #{gescf_forward.5} parent=0 // pred_region
    _
  $region33: #{gescf_forward.5} parent=0 // pred_fallthru
    _

</llo_original>
